<compile_context>
chip_gen: v5e
topology: v5e:2x2
jax: 0.10.0
libtpu: 0.0.40
codegen_flags: <defaults>
</compile_context>

<pallas_src>
import functools
import math

import jax
import jax.numpy as jnp
from jax.experimental import pallas as pl
from jax.experimental.pallas import tpu as pltpu


COMPUTE_DTYPE = jnp.bfloat16   # MXU operand dtype (accumulation stays f32)


# ---------------------------------------------------------------------------
# Shared math helpers (used both inside the kernel and by the pure-JAX ref)
# ---------------------------------------------------------------------------
def _layer_norm(x, gamma, beta, eps=1e-5):
    mu = jnp.mean(x, axis=-1, keepdims=True)
    xc = x - mu
    var = jnp.mean(xc * xc, axis=-1, keepdims=True)
    return xc * jax.lax.rsqrt(var + eps) * gamma + beta


# ---------------------------------------------------------------------------
# The fused kernel: offsets + L encoder layers for Bt boards at a time.
# ---------------------------------------------------------------------------
def chessformer_kernel(x_ref, mul_ref, add_ref,
                       wqkv_ref, bqkv_ref, wo_ref, bo_ref,
                       g1_ref, be1_ref,
                       w1_ref, b1_ref, w2_ref, b2_ref,
                       g2_ref, be2_ref,
                       o_ref, *, num_heads):
    L, D, _ = wqkv_ref.shape
    Bt, N, _ = x_ref.shape
    H = num_heads
    hd = D // H
    M = Bt * N
    cdt = wqkv_ref.dtype            # MXU operand dtype (bf16 or f32)

    # learned offsets, fused into the same kernel; fold boards into rows
    x = (x_ref[...].astype(jnp.float32) * mul_ref[0] + add_ref[0]).reshape(M, D)

    # TODO(synk): for large num_layers switch this static unroll to
    # lax.fori_loop with dynamic first-axis weight indexing.
    for l in range(L):
        bqkv_l = bqkv_ref[l]                                   # (1, 3D)
        bo_l = bo_ref[l]                                       # (1, D)

        # ---- fused Q/K/V projection: one wide matmul --------------------
        # 1/sqrt(hd) already folded into the Q columns and bias.
        qkv = jnp.dot(x.astype(cdt), wqkv_ref[l],
                      preferred_element_type=jnp.float32) + bqkv_l   # (M, 3D)
        qkv = qkv.reshape(Bt, N, 3 * D)

        # ---- per-head attention; fold heads straight into out_proj ------
        attn_out = jnp.zeros((M, D), jnp.float32)
        for h in range(H):
            c = h * hd
            qh = qkv[:, :, c:c + hd].astype(cdt)               # (Bt, N, hd)
            kh = qkv[:, :, D + c:D + c + hd].astype(cdt)
            vh = qkv[:, :, 2 * D + c:2 * D + c + hd]           # keep f32

            logits = jnp.einsum('bqe,bke->bqk', qh, kh,
                                preferred_element_type=jnp.float32)  # (Bt,N,N)
            # rel_bias_k in the reference forward is all zeros -> omitted
            m = jnp.max(logits, axis=-1, keepdims=True)
            p = jnp.exp(logits - m)
            attn = p * pl.reciprocal(jnp.sum(p, axis=-1, keepdims=True),
                                     approx=True)              # f32 probs

            ctx = jnp.einsum('bqk,bke->bqe', attn, vh,
                             preferred_element_type=jnp.float32)     # (Bt,N,hd)

            # head recombination == partial output projection of this head
            attn_out = attn_out + jnp.dot(
                ctx.reshape(M, hd).astype(cdt), wo_ref[l, h],
                preferred_element_type=jnp.float32)            # (M, D)
        attn_out = attn_out + bo_l

        # ---- residual + LayerNorm 1 (dropout = identity, beta = 1) ------
        x1 = _layer_norm(x + attn_out, g1_ref[l], be1_ref[l])

        # ---- feed forward: Linear -> Mish -> Linear ----------------------
        hpre = jnp.dot(x1.astype(cdt), w1_ref[l],
                       preferred_element_type=jnp.float32) + b1_ref[l]
        softplus = jnp.log1p(jnp.exp(-jnp.abs(hpre))) + jnp.maximum(hpre, 0.0)
        mish = hpre * jnp.tanh(softplus)
        f = jnp.dot(mish.astype(cdt), w2_ref[l],
                    preferred_element_type=jnp.float32) + b2_ref[l]

        # ---- residual + LayerNorm 2 --------------------------------------
        x = _layer_norm(x1 + f, g2_ref[l], be2_ref[l])

    o_ref[...] = x.reshape(Bt, N, D).astype(o_ref.dtype)


# ---------------------------------------------------------------------------
# Wrapper: stack / fuse weights once, launch one pallas_call.
# ---------------------------------------------------------------------------
def _prepare_weights(params, num_heads, compute_dtype):
    layers = params["layers"]
    L = len(layers)
    D = layers[0]["wq"].shape[0]
    hd = D // num_heads
    scale = 1.0 / math.sqrt(hd)

    def stack(name):
        return jnp.stack([lp[name] for lp in layers], axis=0)

    # fused [Wq|Wk|Wv] with the softmax scale folded into the Q part
    wqkv = jnp.concatenate([stack("wq") * scale, stack("wk"), stack("wv")],
                           axis=-1).astype(compute_dtype)            # (L, D, 3D)
    bqkv = jnp.concatenate([stack("bq") * scale, stack("bk"), stack("bv")],
                           axis=-1).astype(jnp.float32)              # (L, 1, 3D)
    # out_proj rows pre-split by head: (L, D, D) -> (L, H, hd, D) (widest last)
    wo = stack("wo").reshape(L, num_heads, hd, D).astype(compute_dtype)

    return [
        wqkv, bqkv,
        wo, stack("bo").astype(jnp.float32),
        stack("ln1_g").astype(jnp.float32), stack("ln1_b").astype(jnp.float32),
        stack("w1").astype(compute_dtype),  stack("b1").astype(jnp.float32),
        stack("w2").astype(compute_dtype),  stack("b2").astype(jnp.float32),
        stack("ln2_g").astype(jnp.float32), stack("ln2_b").astype(jnp.float32),
    ]


def chessformer_encoder(x, params, num_heads,
                        compute_dtype=COMPUTE_DTYPE, batch_tile=None):
    B, N, D = x.shape
    weights = _prepare_weights(params, num_heads, compute_dtype)

    # Bt boards per grid step (Bt*64 rows per matmul). min(B,8) keeps every
    # step a few hundred MXU rows while bounding activation VMEM.
    Bt = batch_tile if batch_tile is not None else min(B, 8)
    Bp = ((B + Bt - 1) // Bt) * Bt
    x_in = x if Bp == B else jnp.pad(x, ((0, Bp - B), (0, 0), (0, 0)))

    in_specs = [
        pl.BlockSpec((Bt, N, D), lambda b: (b, 0, 0)),   # Bt boards per step
        pl.BlockSpec((1, N, D), lambda b: (0, 0, 0)),    # multiplicative offset
        pl.BlockSpec((1, N, D), lambda b: (0, 0, 0)),    # additive offset
    ]
    # Whole stacked weights, constant block index -> resident in VMEM.
    # TODO(synk): for scaled-up models on v7x, single-buffer these
    # (pipeline_mode=pl.Buffered(1)) to halve resident weight VMEM.
    for w in weights:
        in_specs.append(pl.BlockSpec(w.shape, lambda b, nd=w.ndim: (0,) * nd))

    out = pl.pallas_call(
        functools.partial(chessformer_kernel, num_heads=num_heads),
        out_shape=jax.ShapeDtypeStruct((Bp, N, D), x.dtype),
        grid=(Bp // Bt,),
        in_specs=in_specs,
        out_specs=pl.BlockSpec((Bt, N, D), lambda b: (b, 0, 0)),
        compiler_params=pltpu.CompilerParams(
            dimension_semantics=("parallel",)),
    )(x_in, params["mult_offset"], params["add_offset"], *weights)
    return out[:B]


# ---------------------------------------------------------------------------
# Pure-JAX reference (f32) for correctness checking.
# ---------------------------------------------------------------------------
def reference_forward(x, params, num_heads):
    x = x * params["mult_offset"] + params["add_offset"]
    B, N, D = x.shape
    H = num_heads
    hd = D // H
    for p in params["layers"]:
        q = jnp.transpose((x @ p["wq"] + p["bq"]).reshape(B, N, H, hd), (0, 2, 1, 3))
        k = jnp.transpose((x @ p["wk"] + p["bk"]).reshape(B, N, H, hd), (0, 2, 1, 3))
        v = jnp.transpose((x @ p["wv"] + p["bv"]).reshape(B, N, H, hd), (0, 2, 1, 3))
        logits = jnp.einsum('bhqd,bhkd->bhqk', q, k) / math.sqrt(hd)
        a = jax.nn.softmax(logits, axis=-1)
        ctx = jnp.einsum('bhqk,bhkd->bhqd', a, v)
        ctx = jnp.transpose(ctx, (0, 2, 1, 3)).reshape(B, N, D)
        attn_out = ctx @ p["wo"] + p["bo"]
        x = _layer_norm(x + attn_out, p["ln1_g"], p["ln1_b"])
        h = x @ p["w1"] + p["b1"]
        mish = h * jnp.tanh(jax.nn.softplus(h))
        f = mish @ p["w2"] + p["b2"]
        x = _layer_norm(x + f, p["ln2_g"], p["ln2_b"])
    return x


# ---------------------------------------------------------------------------
# Parameter construction (deterministic, synthetic — mimics the module's init)
# ---------------------------------------------------------------------------
def _xavier_uniform(key, shape_in_out, gain):
    fan_in, fan_out = shape_in_out
    bound = gain * math.sqrt(6.0 / (fan_in + fan_out))
    # stored as (in, out) so kernels compute y = x @ W + b
    return jax.random.uniform(key, (fan_in, fan_out),
                              minval=-bound, maxval=bound, dtype=jnp.float32)


def make_params(key, embed_dim, num_heads, ff_hidden_dim, num_layers):
    gain = math.pow(2.0 * num_layers, 0.25)
    key, k_mul, k_add = jax.random.split(key, 3)
    params = {
        "mult_offset": 1.0 + 0.02 * jax.random.normal(
            k_mul, (1, 64, embed_dim), dtype=jnp.float32),
        "add_offset": 0.02 * jax.random.normal(
            k_add, (1, 64, embed_dim), dtype=jnp.float32),
        "layers": [],
    }
    for _ in range(num_layers):
        key, kq, kk, kv, ko, k1, k2 = jax.random.split(key, 7)
        params["layers"].append({
            "wq": _xavier_uniform(kq, (embed_dim, embed_dim), gain),
            "bq": jnp.zeros((1, embed_dim), jnp.float32),
            "wk": _xavier_uniform(kk, (embed_dim, embed_dim), gain),
            "bk": jnp.zeros((1, embed_dim), jnp.float32),
            "wv": _xavier_uniform(kv, (embed_dim, embed_dim), gain),
            "bv": jnp.zeros((1, embed_dim), jnp.float32),
            "wo": _xavier_uniform(ko, (embed_dim, embed_dim), gain),
            "bo": jnp.zeros((1, embed_dim), jnp.float32),
            "ln1_g": jnp.ones((1, embed_dim), jnp.float32),
            "ln1_b": jnp.zeros((1, embed_dim), jnp.float32),
            "w1": _xavier_uniform(k1, (embed_dim, ff_hidden_dim), gain),
            "b1": jnp.zeros((1, ff_hidden_dim), jnp.float32),
            "w2": _xavier_uniform(k2, (ff_hidden_dim, embed_dim), gain),
            "b2": jnp.zeros((1, embed_dim), jnp.float32),
            "ln2_g": jnp.ones((1, embed_dim), jnp.float32),
            "ln2_b": jnp.zeros((1, embed_dim), jnp.float32),
        })
    return params


# ---------------------------------------------------------------------------
if __name__ == "__main__":
    # Small-shape config consistent with the module: N must be 64 (chess board).
    B, N = 2, 64
    embed_dim, num_heads, ff_hidden_dim, num_layers = 32, 4, 64, 2

    key = jax.random.PRNGKey(0)
    key, kx, kp = jax.random.split(key, 3)
    x = jax.random.normal(kx, (B, N, embed_dim), dtype=jnp.float32)
    params = make_params(kp, embed_dim, num_heads, ff_hidden_dim, num_layers)

    fwd = jax.jit(functools.partial(chessformer_encoder, num_heads=num_heads))
    out = jax.block_until_ready(fwd(x, params))

    assert out.shape == (B, N, embed_dim)
    assert bool(jnp.all(jnp.isfinite(out)))

    # Correctness vs pure-JAX f32 reference (loose tol: bf16 MXU operands).
    ref = reference_forward(x, params, num_heads)
    err = float(jnp.max(jnp.abs(out - ref)))
    assert err < 0.2, f"max abs err vs reference = {err}"

    print("KERNEL_OK")
</pallas_src>

<mosaic_0001>
module attributes {stable_mosaic.version = 11 : i64} {
  func.func @chessformer_kernel(%arg0: i32, %arg1: memref<2x64x32xf32, #tpu.memory_space<vmem>>, %arg2: memref<1x64x32xf32, #tpu.memory_space<vmem>>, %arg3: memref<1x64x32xf32, #tpu.memory_space<vmem>>, %arg4: memref<2x32x96xbf16, #tpu.memory_space<vmem>>, %arg5: memref<2x1x96xf32, #tpu.memory_space<vmem>>, %arg6: memref<2x4x8x32xbf16, #tpu.memory_space<vmem>>, %arg7: memref<2x1x32xf32, #tpu.memory_space<vmem>>, %arg8: memref<2x1x32xf32, #tpu.memory_space<vmem>>, %arg9: memref<2x1x32xf32, #tpu.memory_space<vmem>>, %arg10: memref<2x32x64xbf16, #tpu.memory_space<vmem>>, %arg11: memref<2x1x64xf32, #tpu.memory_space<vmem>>, %arg12: memref<2x64x32xbf16, #tpu.memory_space<vmem>>, %arg13: memref<2x1x32xf32, #tpu.memory_space<vmem>>, %arg14: memref<2x1x32xf32, #tpu.memory_space<vmem>>, %arg15: memref<2x1x32xf32, #tpu.memory_space<vmem>>, %arg16: memref<2x64x32xf32, #tpu.memory_space<vmem>>) attributes {dimension_semantics = [#tpu.dimension_semantics<parallel>], iteration_bounds = array<i64: 1>, scalar_prefetch = 0 : i64, scratch_operands = 0 : i64, tpu.core_type = #tpu.core_type<tc>, window_params = [{transform_indices = @transform_0, window_bounds = array<i64: 2, 64, 32>}, {pipeline_mode = #tpu.pipeline_mode<synchronous>, transform_indices = @transform_1, window_bounds = array<i64: 1, 64, 32>}, {pipeline_mode = #tpu.pipeline_mode<synchronous>, transform_indices = @transform_2, window_bounds = array<i64: 1, 64, 32>}, {pipeline_mode = #tpu.pipeline_mode<synchronous>, transform_indices = @transform_3, window_bounds = array<i64: 2, 32, 96>}, {pipeline_mode = #tpu.pipeline_mode<synchronous>, transform_indices = @transform_4, window_bounds = array<i64: 2, 1, 96>}, {pipeline_mode = #tpu.pipeline_mode<synchronous>, transform_indices = @transform_5, window_bounds = array<i64: 2, 4, 8, 32>}, {pipeline_mode = #tpu.pipeline_mode<synchronous>, transform_indices = @transform_6, window_bounds = array<i64: 2, 1, 32>}, {pipeline_mode = #tpu.pipeline_mode<synchronous>, transform_indices = @transform_7, window_bounds = array<i64: 2, 1, 32>}, {pipeline_mode = #tpu.pipeline_mode<synchronous>, transform_indices = @transform_8, window_bounds = array<i64: 2, 1, 32>}, {pipeline_mode = #tpu.pipeline_mode<synchronous>, transform_indices = @transform_9, window_bounds = array<i64: 2, 32, 64>}, {pipeline_mode = #tpu.pipeline_mode<synchronous>, transform_indices = @transform_10, window_bounds = array<i64: 2, 1, 64>}, {pipeline_mode = #tpu.pipeline_mode<synchronous>, transform_indices = @transform_11, window_bounds = array<i64: 2, 64, 32>}, {pipeline_mode = #tpu.pipeline_mode<synchronous>, transform_indices = @transform_12, window_bounds = array<i64: 2, 1, 32>}, {pipeline_mode = #tpu.pipeline_mode<synchronous>, transform_indices = @transform_13, window_bounds = array<i64: 2, 1, 32>}, {pipeline_mode = #tpu.pipeline_mode<synchronous>, transform_indices = @transform_14, window_bounds = array<i64: 2, 1, 32>}, {transform_indices = @transform_15, window_bounds = array<i64: 2, 64, 32>}]} {
    %c0 = arith.constant 0 : index
    %c0_0 = arith.constant 0 : index
    %c0_1 = arith.constant 0 : index
    %0 = vector.load %arg1[%c0, %c0_0, %c0_1] : memref<2x64x32xf32, #tpu.memory_space<vmem>>, vector<2x64x32xf32>
    %c0_2 = arith.constant 0 : index
    %c0_3 = arith.constant 0 : index
    %c0_4 = arith.constant 0 : index
    %1 = vector.load %arg2[%c0_2, %c0_3, %c0_4] : memref<1x64x32xf32, #tpu.memory_space<vmem>>, vector<1x64x32xf32>
    %2 = vector.shape_cast %1 : vector<1x64x32xf32> to vector<64x32xf32>
    %3 = vector.shape_cast %2 : vector<64x32xf32> to vector<1x64x32xf32>
    %4 = vector.broadcast %3 : vector<1x64x32xf32> to vector<2x64x32xf32>
    %5 = arith.mulf %0, %4 : vector<2x64x32xf32>
    %c0_5 = arith.constant 0 : index
    %c0_6 = arith.constant 0 : index
    %c0_7 = arith.constant 0 : index
    %6 = vector.load %arg3[%c0_5, %c0_6, %c0_7] : memref<1x64x32xf32, #tpu.memory_space<vmem>>, vector<1x64x32xf32>
    %7 = vector.shape_cast %6 : vector<1x64x32xf32> to vector<64x32xf32>
    %8 = vector.shape_cast %7 : vector<64x32xf32> to vector<1x64x32xf32>
    %9 = vector.broadcast %8 : vector<1x64x32xf32> to vector<2x64x32xf32>
    %10 = arith.addf %5, %9 : vector<2x64x32xf32>
    %11 = vector.shape_cast %10 : vector<2x64x32xf32> to vector<128x32xf32>
    %c0_8 = arith.constant 0 : index
    %c0_9 = arith.constant 0 : index
    %c0_10 = arith.constant 0 : index
    %12 = vector.load %arg5[%c0_8, %c0_9, %c0_10] : memref<2x1x96xf32, #tpu.memory_space<vmem>>, vector<1x1x96xf32>
    %13 = vector.shape_cast %12 : vector<1x1x96xf32> to vector<1x96xf32>
    %c0_11 = arith.constant 0 : index
    %c0_12 = arith.constant 0 : index
    %c0_13 = arith.constant 0 : index
    %14 = vector.load %arg7[%c0_11, %c0_12, %c0_13] : memref<2x1x32xf32, #tpu.memory_space<vmem>>, vector<1x1x32xf32>
    %15 = vector.shape_cast %14 : vector<1x1x32xf32> to vector<1x32xf32>
    %16 = arith.truncf %11 : vector<128x32xf32> to vector<128x32xbf16>
    %c0_14 = arith.constant 0 : index
    %c0_15 = arith.constant 0 : index
    %c0_16 = arith.constant 0 : index
    %17 = vector.load %arg4[%c0_14, %c0_15, %c0_16] : memref<2x32x96xbf16, #tpu.memory_space<vmem>>, vector<1x32x96xbf16>
    %18 = vector.shape_cast %17 : vector<1x32x96xbf16> to vector<32x96xbf16>
    %cst = arith.constant dense<0.000000e+00> : vector<128x96xf32>
    %19 = tpu.matmul %16, %18, %cst {dimension_numbers = #tpu.dot_dimension_numbers<[1], [0], [0], [1], [0, 0, 1, 1], [], []>} : vector<128x32xbf16>, vector<32x96xbf16>, vector<128x96xf32> -> vector<128x96xf32>
    %20 = vector.broadcast %13 : vector<1x96xf32> to vector<128x96xf32>
    %21 = arith.addf %19, %20 : vector<128x96xf32>
    %22 = vector.shape_cast %21 : vector<128x96xf32> to vector<2x64x96xf32>
    %cst_17 = arith.constant 0.000000e+00 : f32
    %23 = vector.broadcast %cst_17 : f32 to vector<128x32xf32>
    %24 = vector.extract_strided_slice %22 {offsets = [0, 0, 0], sizes = [2, 64, 8], strides = [1, 1, 1]} : vector<2x64x96xf32> to vector<2x64x8xf32>
    %25 = arith.truncf %24 : vector<2x64x8xf32> to vector<2x64x8xbf16>
    %26 = vector.extract_strided_slice %22 {offsets = [0, 0, 32], sizes = [2, 64, 8], strides = [1, 1, 1]} : vector<2x64x96xf32> to vector<2x64x8xf32>
    %27 = arith.truncf %26 : vector<2x64x8xf32> to vector<2x64x8xbf16>
    %28 = vector.extract_strided_slice %22 {offsets = [0, 0, 64], sizes = [2, 64, 8], strides = [1, 1, 1]} : vector<2x64x96xf32> to vector<2x64x8xf32>
    "tpu.trace_start"() <{level = 10 : i32, message = "bqe,bke->bqk"}> : () -> ()
    %cst_18 = arith.constant dense<0.000000e+00> : vector<2x64x64xf32>
    %29 = tpu.matmul %25, %27, %cst_18 {dimension_numbers = #tpu.dot_dimension_numbers<[2], [2], [1], [1], [0, 0, 0, 1, 1, 1], [0], [0]>} : vector<2x64x8xbf16>, vector<2x64x8xbf16>, vector<2x64x64xf32> -> vector<2x64x64xf32>
    "tpu.trace_stop"() : () -> ()
    %cst_19 = arith.constant dense<0xFF800000> : vector<2x64xf32>
    %30 = vector.multi_reduction <maximumf>, %29, %cst_19 [2] : vector<2x64x64xf32> to vector<2x64xf32>
    %31 = vector.shape_cast %30 : vector<2x64xf32> to vector<2x64x1xf32>
    %32 = vector.broadcast %31 : vector<2x64x1xf32> to vector<2x64x64xf32>
    %33 = arith.subf %29, %32 : vector<2x64x64xf32>
    %34 = math.exp %33 : vector<2x64x64xf32>
    %cst_20 = arith.constant dense<0.000000e+00> : vector<2x64xf32>
    %35 = vector.multi_reduction <add>, %34, %cst_20 [2] : vector<2x64x64xf32> to vector<2x64xf32>
    %36 = vector.shape_cast %35 : vector<2x64xf32> to vector<2x64x1xf32>
    %37 = tpu.reciprocal %36 {approx = true} : vector<2x64x1xf32> -> vector<2x64x1xf32>
    %38 = vector.broadcast %37 : vector<2x64x1xf32> to vector<2x64x64xf32>
    %39 = arith.mulf %34, %38 : vector<2x64x64xf32>
    "tpu.trace_start"() <{level = 10 : i32, message = "bqk,bke->bqe"}> : () -> ()
    %cst_21 = arith.constant dense<0.000000e+00> : vector<2x64x8xf32>
    %40 = tpu.matmul %39, %28, %cst_21 {dimension_numbers = #tpu.dot_dimension_numbers<[2], [1], [1], [2], [0, 0, 0, 1, 1, 2], [0], [0]>} : vector<2x64x64xf32>, vector<2x64x8xf32>, vector<2x64x8xf32> -> vector<2x64x8xf32>
    "tpu.trace_stop"() : () -> ()
    %41 = vector.shape_cast %40 : vector<2x64x8xf32> to vector<128x8xf32>
    %42 = arith.truncf %41 : vector<128x8xf32> to vector<128x8xbf16>
    %c0_22 = arith.constant 0 : index
    %c0_23 = arith.constant 0 : index
    %c0_24 = arith.constant 0 : index
    %c0_25 = arith.constant 0 : index
    %43 = vector.load %arg6[%c0_22, %c0_23, %c0_24, %c0_25] : memref<2x4x8x32xbf16, #tpu.memory_space<vmem>>, vector<1x1x8x32xbf16>
    %44 = vector.shape_cast %43 : vector<1x1x8x32xbf16> to vector<8x32xbf16>
    %cst_26 = arith.constant dense<0.000000e+00> : vector<128x32xf32>
    %45 = tpu.matmul %42, %44, %cst_26 {dimension_numbers = #tpu.dot_dimension_numbers<[1], [0], [0], [1], [0, 0, 1, 1], [], []>} : vector<128x8xbf16>, vector<8x32xbf16>, vector<128x32xf32> -> vector<128x32xf32>
    %46 = arith.addf %23, %45 : vector<128x32xf32>
    %47 = vector.extract_strided_slice %22 {offsets = [0, 0, 8], sizes = [2, 64, 8], strides = [1, 1, 1]} : vector<2x64x96xf32> to vector<2x64x8xf32>
    %48 = arith.truncf %47 : vector<2x64x8xf32> to vector<2x64x8xbf16>
    %49 = vector.extract_strided_slice %22 {offsets = [0, 0, 40], sizes = [2, 64, 8], strides = [1, 1, 1]} : vector<2x64x96xf32> to vector<2x64x8xf32>
    %50 = arith.truncf %49 : vector<2x64x8xf32> to vector<2x64x8xbf16>
    %51 = vector.extract_strided_slice %22 {offsets = [0, 0, 72], sizes = [2, 64, 8], strides = [1, 1, 1]} : vector<2x64x96xf32> to vector<2x64x8xf32>
    "tpu.trace_start"() <{level = 10 : i32, message = "bqe,bke->bqk"}> : () -> ()
    %cst_27 = arith.constant dense<0.000000e+00> : vector<2x64x64xf32>
    %52 = tpu.matmul %48, %50, %cst_27 {dimension_numbers = #tpu.dot_dimension_numbers<[2], [2], [1], [1], [0, 0, 0, 1, 1, 1], [0], [0]>} : vector<2x64x8xbf16>, vector<2x64x8xbf16>, vector<2x64x64xf32> -> vector<2x64x64xf32>
    "tpu.trace_stop"() : () -> ()
    %cst_28 = arith.constant dense<0xFF800000> : vector<2x64xf32>
    %53 = vector.multi_reduction <maximumf>, %52, %cst_28 [2] : vector<2x64x64xf32> to vector<2x64xf32>
    %54 = vector.shape_cast %53 : vector<2x64xf32> to vector<2x64x1xf32>
    %55 = vector.broadcast %54 : vector<2x64x1xf32> to vector<2x64x64xf32>
    %56 = arith.subf %52, %55 : vector<2x64x64xf32>
    %57 = math.exp %56 : vector<2x64x64xf32>
    %cst_29 = arith.constant dense<0.000000e+00> : vector<2x64xf32>
    %58 = vector.multi_reduction <add>, %57, %cst_29 [2] : vector<2x64x64xf32> to vector<2x64xf32>
    %59 = vector.shape_cast %58 : vector<2x64xf32> to vector<2x64x1xf32>
    %60 = tpu.reciprocal %59 {approx = true} : vector<2x64x1xf32> -> vector<2x64x1xf32>
    %61 = vector.broadcast %60 : vector<2x64x1xf32> to vector<2x64x64xf32>
    %62 = arith.mulf %57, %61 : vector<2x64x64xf32>
    "tpu.trace_start"() <{level = 10 : i32, message = "bqk,bke->bqe"}> : () -> ()
    %cst_30 = arith.constant dense<0.000000e+00> : vector<2x64x8xf32>
    %63 = tpu.matmul %62, %51, %cst_30 {dimension_numbers = #tpu.dot_dimension_numbers<[2], [1], [1], [2], [0, 0, 0, 1, 1, 2], [0], [0]>} : vector<2x64x64xf32>, vector<2x64x8xf32>, vector<2x64x8xf32> -> vector<2x64x8xf32>
    "tpu.trace_stop"() : () -> ()
    %64 = vector.shape_cast %63 : vector<2x64x8xf32> to vector<128x8xf32>
    %65 = arith.truncf %64 : vector<128x8xf32> to vector<128x8xbf16>
    %c0_31 = arith.constant 0 : index
    %c1 = arith.constant 1 : index
    %c0_32 = arith.constant 0 : index
    %c0_33 = arith.constant 0 : index
    %66 = vector.load %arg6[%c0_31, %c1, %c0_32, %c0_33] : memref<2x4x8x32xbf16, #tpu.memory_space<vmem>>, vector<1x1x8x32xbf16>
    %67 = vector.shape_cast %66 : vector<1x1x8x32xbf16> to vector<8x32xbf16>
    %cst_34 = arith.constant dense<0.000000e+00> : vector<128x32xf32>
    %68 = tpu.matmul %65, %67, %cst_34 {dimension_numbers = #tpu.dot_dimension_numbers<[1], [0], [0], [1], [0, 0, 1, 1], [], []>} : vector<128x8xbf16>, vector<8x32xbf16>, vector<128x32xf32> -> vector<128x32xf32>
    %69 = arith.addf %46, %68 : vector<128x32xf32>
    %70 = vector.extract_strided_slice %22 {offsets = [0, 0, 16], sizes = [2, 64, 8], strides = [1, 1, 1]} : vector<2x64x96xf32> to vector<2x64x8xf32>
    %71 = arith.truncf %70 : vector<2x64x8xf32> to vector<2x64x8xbf16>
    %72 = vector.extract_strided_slice %22 {offsets = [0, 0, 48], sizes = [2, 64, 8], strides = [1, 1, 1]} : vector<2x64x96xf32> to vector<2x64x8xf32>
    %73 = arith.truncf %72 : vector<2x64x8xf32> to vector<2x64x8xbf16>
    %74 = vector.extract_strided_slice %22 {offsets = [0, 0, 80], sizes = [2, 64, 8], strides = [1, 1, 1]} : vector<2x64x96xf32> to vector<2x64x8xf32>
    "tpu.trace_start"() <{level = 10 : i32, message = "bqe,bke->bqk"}> : () -> ()
    %cst_35 = arith.constant dense<0.000000e+00> : vector<2x64x64xf32>
    %75 = tpu.matmul %71, %73, %cst_35 {dimension_numbers = #tpu.dot_dimension_numbers<[2], [2], [1], [1], [0, 0, 0, 1, 1, 1], [0], [0]>} : vector<2x64x8xbf16>, vector<2x64x8xbf16>, vector<2x64x64xf32> -> vector<2x64x64xf32>
    "tpu.trace_stop"() : () -> ()
    %cst_36 = arith.constant dense<0xFF800000> : vector<2x64xf32>
    %76 = vector.multi_reduction <maximumf>, %75, %cst_36 [2] : vector<2x64x64xf32> to vector<2x64xf32>
    %77 = vector.shape_cast %76 : vector<2x64xf32> to vector<2x64x1xf32>
    %78 = vector.broadcast %77 : vector<2x64x1xf32> to vector<2x64x64xf32>
    %79 = arith.subf %75, %78 : vector<2x64x64xf32>
    %80 = math.exp %79 : vector<2x64x64xf32>
    %cst_37 = arith.constant dense<0.000000e+00> : vector<2x64xf32>
    %81 = vector.multi_reduction <add>, %80, %cst_37 [2] : vector<2x64x64xf32> to vector<2x64xf32>
    %82 = vector.shape_cast %81 : vector<2x64xf32> to vector<2x64x1xf32>
    %83 = tpu.reciprocal %82 {approx = true} : vector<2x64x1xf32> -> vector<2x64x1xf32>
    %84 = vector.broadcast %83 : vector<2x64x1xf32> to vector<2x64x64xf32>
    %85 = arith.mulf %80, %84 : vector<2x64x64xf32>
    "tpu.trace_start"() <{level = 10 : i32, message = "bqk,bke->bqe"}> : () -> ()
    %cst_38 = arith.constant dense<0.000000e+00> : vector<2x64x8xf32>
    %86 = tpu.matmul %85, %74, %cst_38 {dimension_numbers = #tpu.dot_dimension_numbers<[2], [1], [1], [2], [0, 0, 0, 1, 1, 2], [0], [0]>} : vector<2x64x64xf32>, vector<2x64x8xf32>, vector<2x64x8xf32> -> vector<2x64x8xf32>
    "tpu.trace_stop"() : () -> ()
    %87 = vector.shape_cast %86 : vector<2x64x8xf32> to vector<128x8xf32>
    %88 = arith.truncf %87 : vector<128x8xf32> to vector<128x8xbf16>
    %c0_39 = arith.constant 0 : index
    %c2 = arith.constant 2 : index
    %c0_40 = arith.constant 0 : index
    %c0_41 = arith.constant 0 : index
    %89 = vector.load %arg6[%c0_39, %c2, %c0_40, %c0_41] : memref<2x4x8x32xbf16, #tpu.memory_space<vmem>>, vector<1x1x8x32xbf16>
    %90 = vector.shape_cast %89 : vector<1x1x8x32xbf16> to vector<8x32xbf16>
    %cst_42 = arith.constant dense<0.000000e+00> : vector<128x32xf32>
    %91 = tpu.matmul %88, %90, %cst_42 {dimension_numbers = #tpu.dot_dimension_numbers<[1], [0], [0], [1], [0, 0, 1, 1], [], []>} : vector<128x8xbf16>, vector<8x32xbf16>, vector<128x32xf32> -> vector<128x32xf32>
    %92 = arith.addf %69, %91 : vector<128x32xf32>
    %93 = vector.extract_strided_slice %22 {offsets = [0, 0, 24], sizes = [2, 64, 8], strides = [1, 1, 1]} : vector<2x64x96xf32> to vector<2x64x8xf32>
    %94 = arith.truncf %93 : vector<2x64x8xf32> to vector<2x64x8xbf16>
    %95 = vector.extract_strided_slice %22 {offsets = [0, 0, 56], sizes = [2, 64, 8], strides = [1, 1, 1]} : vector<2x64x96xf32> to vector<2x64x8xf32>
    %96 = arith.truncf %95 : vector<2x64x8xf32> to vector<2x64x8xbf16>
    %97 = vector.extract_strided_slice %22 {offsets = [0, 0, 88], sizes = [2, 64, 8], strides = [1, 1, 1]} : vector<2x64x96xf32> to vector<2x64x8xf32>
    "tpu.trace_start"() <{level = 10 : i32, message = "bqe,bke->bqk"}> : () -> ()
    %cst_43 = arith.constant dense<0.000000e+00> : vector<2x64x64xf32>
    %98 = tpu.matmul %94, %96, %cst_43 {dimension_numbers = #tpu.dot_dimension_numbers<[2], [2], [1], [1], [0, 0, 0, 1, 1, 1], [0], [0]>} : vector<2x64x8xbf16>, vector<2x64x8xbf16>, vector<2x64x64xf32> -> vector<2x64x64xf32>
    "tpu.trace_stop"() : () -> ()
    %cst_44 = arith.constant dense<0xFF800000> : vector<2x64xf32>
    %99 = vector.multi_reduction <maximumf>, %98, %cst_44 [2] : vector<2x64x64xf32> to vector<2x64xf32>
    %100 = vector.shape_cast %99 : vector<2x64xf32> to vector<2x64x1xf32>
    %101 = vector.broadcast %100 : vector<2x64x1xf32> to vector<2x64x64xf32>
    %102 = arith.subf %98, %101 : vector<2x64x64xf32>
    %103 = math.exp %102 : vector<2x64x64xf32>
    %cst_45 = arith.constant dense<0.000000e+00> : vector<2x64xf32>
    %104 = vector.multi_reduction <add>, %103, %cst_45 [2] : vector<2x64x64xf32> to vector<2x64xf32>
    %105 = vector.shape_cast %104 : vector<2x64xf32> to vector<2x64x1xf32>
    %106 = tpu.reciprocal %105 {approx = true} : vector<2x64x1xf32> -> vector<2x64x1xf32>
    %107 = vector.broadcast %106 : vector<2x64x1xf32> to vector<2x64x64xf32>
    %108 = arith.mulf %103, %107 : vector<2x64x64xf32>
    "tpu.trace_start"() <{level = 10 : i32, message = "bqk,bke->bqe"}> : () -> ()
    %cst_46 = arith.constant dense<0.000000e+00> : vector<2x64x8xf32>
    %109 = tpu.matmul %108, %97, %cst_46 {dimension_numbers = #tpu.dot_dimension_numbers<[2], [1], [1], [2], [0, 0, 0, 1, 1, 2], [0], [0]>} : vector<2x64x64xf32>, vector<2x64x8xf32>, vector<2x64x8xf32> -> vector<2x64x8xf32>
    "tpu.trace_stop"() : () -> ()
    %110 = vector.shape_cast %109 : vector<2x64x8xf32> to vector<128x8xf32>
    %111 = arith.truncf %110 : vector<128x8xf32> to vector<128x8xbf16>
    %c0_47 = arith.constant 0 : index
    %c3 = arith.constant 3 : index
    %c0_48 = arith.constant 0 : index
    %c0_49 = arith.constant 0 : index
    %112 = vector.load %arg6[%c0_47, %c3, %c0_48, %c0_49] : memref<2x4x8x32xbf16, #tpu.memory_space<vmem>>, vector<1x1x8x32xbf16>
    %113 = vector.shape_cast %112 : vector<1x1x8x32xbf16> to vector<8x32xbf16>
    %cst_50 = arith.constant dense<0.000000e+00> : vector<128x32xf32>
    %114 = tpu.matmul %111, %113, %cst_50 {dimension_numbers = #tpu.dot_dimension_numbers<[1], [0], [0], [1], [0, 0, 1, 1], [], []>} : vector<128x8xbf16>, vector<8x32xbf16>, vector<128x32xf32> -> vector<128x32xf32>
    %115 = arith.addf %92, %114 : vector<128x32xf32>
    %116 = vector.broadcast %15 : vector<1x32xf32> to vector<128x32xf32>
    %117 = arith.addf %115, %116 : vector<128x32xf32>
    %118 = arith.addf %11, %117 : vector<128x32xf32>
    %c0_51 = arith.constant 0 : index
    %c0_52 = arith.constant 0 : index
    %c0_53 = arith.constant 0 : index
    %119 = vector.load %arg8[%c0_51, %c0_52, %c0_53] : memref<2x1x32xf32, #tpu.memory_space<vmem>>, vector<1x1x32xf32>
    %120 = vector.shape_cast %119 : vector<1x1x32xf32> to vector<1x32xf32>
    %c0_54 = arith.constant 0 : index
    %c0_55 = arith.constant 0 : index
    %c0_56 = arith.constant 0 : index
    %121 = vector.load %arg9[%c0_54, %c0_55, %c0_56] : memref<2x1x32xf32, #tpu.memory_space<vmem>>, vector<1x1x32xf32>
    %122 = vector.shape_cast %121 : vector<1x1x32xf32> to vector<1x32xf32>
    %cst_57 = arith.constant dense<0.000000e+00> : vector<128xf32>
    %123 = vector.multi_reduction <add>, %118, %cst_57 [1] : vector<128x32xf32> to vector<128xf32>
    %124 = vector.shape_cast %123 : vector<128xf32> to vector<128x1xf32>
    %cst_58 = arith.constant 3.200000e+01 : f32
    %125 = vector.broadcast %cst_58 : f32 to vector<128x1xf32>
    %126 = arith.divf %124, %125 : vector<128x1xf32>
    %127 = vector.broadcast %126 : vector<128x1xf32> to vector<128x32xf32>
    %128 = arith.subf %118, %127 : vector<128x32xf32>
    %129 = arith.mulf %128, %128 : vector<128x32xf32>
    %cst_59 = arith.constant dense<0.000000e+00> : vector<128xf32>
    %130 = vector.multi_reduction <add>, %129, %cst_59 [1] : vector<128x32xf32> to vector<128xf32>
    %131 = vector.shape_cast %130 : vector<128xf32> to vector<128x1xf32>
    %cst_60 = arith.constant 3.200000e+01 : f32
    %132 = vector.broadcast %cst_60 : f32 to vector<128x1xf32>
    %133 = arith.divf %131, %132 : vector<128x1xf32>
    %cst_61 = arith.constant 9.99999974E-6 : f32
    %134 = vector.broadcast %cst_61 : f32 to vector<128x1xf32>
    %135 = arith.addf %133, %134 : vector<128x1xf32>
    %136 = math.rsqrt %135 : vector<128x1xf32>
    %137 = vector.broadcast %136 : vector<128x1xf32> to vector<128x32xf32>
    %138 = arith.mulf %128, %137 : vector<128x32xf32>
    %139 = vector.broadcast %120 : vector<1x32xf32> to vector<128x32xf32>
    %140 = arith.mulf %138, %139 : vector<128x32xf32>
    %141 = vector.broadcast %122 : vector<1x32xf32> to vector<128x32xf32>
    %142 = arith.addf %140, %141 : vector<128x32xf32>
    %143 = arith.truncf %142 : vector<128x32xf32> to vector<128x32xbf16>
    %c0_62 = arith.constant 0 : index
    %c0_63 = arith.constant 0 : index
    %c0_64 = arith.constant 0 : index
    %144 = vector.load %arg10[%c0_62, %c0_63, %c0_64] : memref<2x32x64xbf16, #tpu.memory_space<vmem>>, vector<1x32x64xbf16>
    %145 = vector.shape_cast %144 : vector<1x32x64xbf16> to vector<32x64xbf16>
    %cst_65 = arith.constant dense<0.000000e+00> : vector<128x64xf32>
    %146 = tpu.matmul %143, %145, %cst_65 {dimension_numbers = #tpu.dot_dimension_numbers<[1], [0], [0], [1], [0, 0, 1, 1], [], []>} : vector<128x32xbf16>, vector<32x64xbf16>, vector<128x64xf32> -> vector<128x64xf32>
    %c0_66 = arith.constant 0 : index
    %c0_67 = arith.constant 0 : index
    %c0_68 = arith.constant 0 : index
    %147 = vector.load %arg11[%c0_66, %c0_67, %c0_68] : memref<2x1x64xf32, #tpu.memory_space<vmem>>, vector<1x1x64xf32>
    %148 = vector.shape_cast %147 : vector<1x1x64xf32> to vector<1x64xf32>
    %149 = vector.broadcast %148 : vector<1x64xf32> to vector<128x64xf32>
    %150 = arith.addf %146, %149 : vector<128x64xf32>
    %151 = math.absf %150 : vector<128x64xf32>
    %cst_69 = arith.constant 0.000000e+00 : f32
    %152 = vector.broadcast %cst_69 : f32 to vector<128x64xf32>
    %153 = arith.subf %152, %151 : vector<128x64xf32>
    %154 = math.exp %153 : vector<128x64xf32>
    %155 = math.log1p %154 : vector<128x64xf32>
    %cst_70 = arith.constant 0.000000e+00 : f32
    %156 = vector.broadcast %cst_70 : f32 to vector<128x64xf32>
    %157 = arith.maximumf %150, %156 : vector<128x64xf32>
    %158 = arith.addf %155, %157 : vector<128x64xf32>
    %159 = math.tanh %158 : vector<128x64xf32>
    %160 = arith.mulf %150, %159 : vector<128x64xf32>
    %161 = arith.truncf %160 : vector<128x64xf32> to vector<128x64xbf16>
    %c0_71 = arith.constant 0 : index
    %c0_72 = arith.constant 0 : index
    %c0_73 = arith.constant 0 : index
    %162 = vector.load %arg12[%c0_71, %c0_72, %c0_73] : memref<2x64x32xbf16, #tpu.memory_space<vmem>>, vector<1x64x32xbf16>
    %163 = vector.shape_cast %162 : vector<1x64x32xbf16> to vector<64x32xbf16>
    %cst_74 = arith.constant dense<0.000000e+00> : vector<128x32xf32>
    %164 = tpu.matmul %161, %163, %cst_74 {dimension_numbers = #tpu.dot_dimension_numbers<[1], [0], [0], [1], [0, 0, 1, 1], [], []>} : vector<128x64xbf16>, vector<64x32xbf16>, vector<128x32xf32> -> vector<128x32xf32>
    %c0_75 = arith.constant 0 : index
    %c0_76 = arith.constant 0 : index
    %c0_77 = arith.constant 0 : index
    %165 = vector.load %arg13[%c0_75, %c0_76, %c0_77] : memref<2x1x32xf32, #tpu.memory_space<vmem>>, vector<1x1x32xf32>
    %166 = vector.shape_cast %165 : vector<1x1x32xf32> to vector<1x32xf32>
    %167 = vector.broadcast %166 : vector<1x32xf32> to vector<128x32xf32>
    %168 = arith.addf %164, %167 : vector<128x32xf32>
    %169 = arith.addf %142, %168 : vector<128x32xf32>
    %c0_78 = arith.constant 0 : index
    %c0_79 = arith.constant 0 : index
    %c0_80 = arith.constant 0 : index
    %170 = vector.load %arg14[%c0_78, %c0_79, %c0_80] : memref<2x1x32xf32, #tpu.memory_space<vmem>>, vector<1x1x32xf32>
    %171 = vector.shape_cast %170 : vector<1x1x32xf32> to vector<1x32xf32>
    %c0_81 = arith.constant 0 : index
    %c0_82 = arith.constant 0 : index
    %c0_83 = arith.constant 0 : index
    %172 = vector.load %arg15[%c0_81, %c0_82, %c0_83] : memref<2x1x32xf32, #tpu.memory_space<vmem>>, vector<1x1x32xf32>
    %173 = vector.shape_cast %172 : vector<1x1x32xf32> to vector<1x32xf32>
    %cst_84 = arith.constant dense<0.000000e+00> : vector<128xf32>
    %174 = vector.multi_reduction <add>, %169, %cst_84 [1] : vector<128x32xf32> to vector<128xf32>
    %175 = vector.shape_cast %174 : vector<128xf32> to vector<128x1xf32>
    %cst_85 = arith.constant 3.200000e+01 : f32
    %176 = vector.broadcast %cst_85 : f32 to vector<128x1xf32>
    %177 = arith.divf %175, %176 : vector<128x1xf32>
    %178 = vector.broadcast %177 : vector<128x1xf32> to vector<128x32xf32>
    %179 = arith.subf %169, %178 : vector<128x32xf32>
    %180 = arith.mulf %179, %179 : vector<128x32xf32>
    %cst_86 = arith.constant dense<0.000000e+00> : vector<128xf32>
    %181 = vector.multi_reduction <add>, %180, %cst_86 [1] : vector<128x32xf32> to vector<128xf32>
    %182 = vector.shape_cast %181 : vector<128xf32> to vector<128x1xf32>
    %cst_87 = arith.constant 3.200000e+01 : f32
    %183 = vector.broadcast %cst_87 : f32 to vector<128x1xf32>
    %184 = arith.divf %182, %183 : vector<128x1xf32>
    %cst_88 = arith.constant 9.99999974E-6 : f32
    %185 = vector.broadcast %cst_88 : f32 to vector<128x1xf32>
    %186 = arith.addf %184, %185 : vector<128x1xf32>
    %187 = math.rsqrt %186 : vector<128x1xf32>
    %188 = vector.broadcast %187 : vector<128x1xf32> to vector<128x32xf32>
    %189 = arith.mulf %179, %188 : vector<128x32xf32>
    %190 = vector.broadcast %171 : vector<1x32xf32> to vector<128x32xf32>
    %191 = arith.mulf %189, %190 : vector<128x32xf32>
    %192 = vector.broadcast %173 : vector<1x32xf32> to vector<128x32xf32>
    %193 = arith.addf %191, %192 : vector<128x32xf32>
    %c1_89 = arith.constant 1 : index
    %c0_90 = arith.constant 0 : index
    %c0_91 = arith.constant 0 : index
    %194 = vector.load %arg5[%c1_89, %c0_90, %c0_91] : memref<2x1x96xf32, #tpu.memory_space<vmem>>, vector<1x1x96xf32>
    %195 = vector.shape_cast %194 : vector<1x1x96xf32> to vector<1x96xf32>
    %c1_92 = arith.constant 1 : index
    %c0_93 = arith.constant 0 : index
    %c0_94 = arith.constant 0 : index
    %196 = vector.load %arg7[%c1_92, %c0_93, %c0_94] : memref<2x1x32xf32, #tpu.memory_space<vmem>>, vector<1x1x32xf32>
    %197 = vector.shape_cast %196 : vector<1x1x32xf32> to vector<1x32xf32>
    %198 = arith.truncf %193 : vector<128x32xf32> to vector<128x32xbf16>
    %c1_95 = arith.constant 1 : index
    %c0_96 = arith.constant 0 : index
    %c0_97 = arith.constant 0 : index
    %199 = vector.load %arg4[%c1_95, %c0_96, %c0_97] : memref<2x32x96xbf16, #tpu.memory_space<vmem>>, vector<1x32x96xbf16>
    %200 = vector.shape_cast %199 : vector<1x32x96xbf16> to vector<32x96xbf16>
    %cst_98 = arith.constant dense<0.000000e+00> : vector<128x96xf32>
    %201 = tpu.matmul %198, %200, %cst_98 {dimension_numbers = #tpu.dot_dimension_numbers<[1], [0], [0], [1], [0, 0, 1, 1], [], []>} : vector<128x32xbf16>, vector<32x96xbf16>, vector<128x96xf32> -> vector<128x96xf32>
    %202 = vector.broadcast %195 : vector<1x96xf32> to vector<128x96xf32>
    %203 = arith.addf %201, %202 : vector<128x96xf32>
    %204 = vector.shape_cast %203 : vector<128x96xf32> to vector<2x64x96xf32>
    %cst_99 = arith.constant 0.000000e+00 : f32
    %205 = vector.broadcast %cst_99 : f32 to vector<128x32xf32>
    %206 = vector.extract_strided_slice %204 {offsets = [0, 0, 0], sizes = [2, 64, 8], strides = [1, 1, 1]} : vector<2x64x96xf32> to vector<2x64x8xf32>
    %207 = arith.truncf %206 : vector<2x64x8xf32> to vector<2x64x8xbf16>
    %208 = vector.extract_strided_slice %204 {offsets = [0, 0, 32], sizes = [2, 64, 8], strides = [1, 1, 1]} : vector<2x64x96xf32> to vector<2x64x8xf32>
    %209 = arith.truncf %208 : vector<2x64x8xf32> to vector<2x64x8xbf16>
    %210 = vector.extract_strided_slice %204 {offsets = [0, 0, 64], sizes = [2, 64, 8], strides = [1, 1, 1]} : vector<2x64x96xf32> to vector<2x64x8xf32>
    "tpu.trace_start"() <{level = 10 : i32, message = "bqe,bke->bqk"}> : () -> ()
    %cst_100 = arith.constant dense<0.000000e+00> : vector<2x64x64xf32>
    %211 = tpu.matmul %207, %209, %cst_100 {dimension_numbers = #tpu.dot_dimension_numbers<[2], [2], [1], [1], [0, 0, 0, 1, 1, 1], [0], [0]>} : vector<2x64x8xbf16>, vector<2x64x8xbf16>, vector<2x64x64xf32> -> vector<2x64x64xf32>
    "tpu.trace_stop"() : () -> ()
    %cst_101 = arith.constant dense<0xFF800000> : vector<2x64xf32>
    %212 = vector.multi_reduction <maximumf>, %211, %cst_101 [2] : vector<2x64x64xf32> to vector<2x64xf32>
    %213 = vector.shape_cast %212 : vector<2x64xf32> to vector<2x64x1xf32>
    %214 = vector.broadcast %213 : vector<2x64x1xf32> to vector<2x64x64xf32>
    %215 = arith.subf %211, %214 : vector<2x64x64xf32>
    %216 = math.exp %215 : vector<2x64x64xf32>
    %cst_102 = arith.constant dense<0.000000e+00> : vector<2x64xf32>
    %217 = vector.multi_reduction <add>, %216, %cst_102 [2] : vector<2x64x64xf32> to vector<2x64xf32>
    %218 = vector.shape_cast %217 : vector<2x64xf32> to vector<2x64x1xf32>
    %219 = tpu.reciprocal %218 {approx = true} : vector<2x64x1xf32> -> vector<2x64x1xf32>
    %220 = vector.broadcast %219 : vector<2x64x1xf32> to vector<2x64x64xf32>
    %221 = arith.mulf %216, %220 : vector<2x64x64xf32>
    "tpu.trace_start"() <{level = 10 : i32, message = "bqk,bke->bqe"}> : () -> ()
    %cst_103 = arith.constant dense<0.000000e+00> : vector<2x64x8xf32>
    %222 = tpu.matmul %221, %210, %cst_103 {dimension_numbers = #tpu.dot_dimension_numbers<[2], [1], [1], [2], [0, 0, 0, 1, 1, 2], [0], [0]>} : vector<2x64x64xf32>, vector<2x64x8xf32>, vector<2x64x8xf32> -> vector<2x64x8xf32>
    "tpu.trace_stop"() : () -> ()
    %223 = vector.shape_cast %222 : vector<2x64x8xf32> to vector<128x8xf32>
    %224 = arith.truncf %223 : vector<128x8xf32> to vector<128x8xbf16>
    %c1_104 = arith.constant 1 : index
    %c0_105 = arith.constant 0 : index
    %c0_106 = arith.constant 0 : index
    %c0_107 = arith.constant 0 : index
    %225 = vector.load %arg6[%c1_104, %c0_105, %c0_106, %c0_107] : memref<2x4x8x32xbf16, #tpu.memory_space<vmem>>, vector<1x1x8x32xbf16>
    %226 = vector.shape_cast %225 : vector<1x1x8x32xbf16> to vector<8x32xbf16>
    %cst_108 = arith.constant dense<0.000000e+00> : vector<128x32xf32>
    %227 = tpu.matmul %224, %226, %cst_108 {dimension_numbers = #tpu.dot_dimension_numbers<[1], [0], [0], [1], [0, 0, 1, 1], [], []>} : vector<128x8xbf16>, vector<8x32xbf16>, vector<128x32xf32> -> vector<128x32xf32>
    %228 = arith.addf %205, %227 : vector<128x32xf32>
    %229 = vector.extract_strided_slice %204 {offsets = [0, 0, 8], sizes = [2, 64, 8], strides = [1, 1, 1]} : vector<2x64x96xf32> to vector<2x64x8xf32>
    %230 = arith.truncf %229 : vector<2x64x8xf32> to vector<2x64x8xbf16>
    %231 = vector.extract_strided_slice %204 {offsets = [0, 0, 40], sizes = [2, 64, 8], strides = [1, 1, 1]} : vector<2x64x96xf32> to vector<2x64x8xf32>
    %232 = arith.truncf %231 : vector<2x64x8xf32> to vector<2x64x8xbf16>
    %233 = vector.extract_strided_slice %204 {offsets = [0, 0, 72], sizes = [2, 64, 8], strides = [1, 1, 1]} : vector<2x64x96xf32> to vector<2x64x8xf32>
    "tpu.trace_start"() <{level = 10 : i32, message = "bqe,bke->bqk"}> : () -> ()
    %cst_109 = arith.constant dense<0.000000e+00> : vector<2x64x64xf32>
    %234 = tpu.matmul %230, %232, %cst_109 {dimension_numbers = #tpu.dot_dimension_numbers<[2], [2], [1], [1], [0, 0, 0, 1, 1, 1], [0], [0]>} : vector<2x64x8xbf16>, vector<2x64x8xbf16>, vector<2x64x64xf32> -> vector<2x64x64xf32>
    "tpu.trace_stop"() : () -> ()
    %cst_110 = arith.constant dense<0xFF800000> : vector<2x64xf32>
    %235 = vector.multi_reduction <maximumf>, %234, %cst_110 [2] : vector<2x64x64xf32> to vector<2x64xf32>
    %236 = vector.shape_cast %235 : vector<2x64xf32> to vector<2x64x1xf32>
    %237 = vector.broadcast %236 : vector<2x64x1xf32> to vector<2x64x64xf32>
    %238 = arith.subf %234, %237 : vector<2x64x64xf32>
    %239 = math.exp %238 : vector<2x64x64xf32>
    %cst_111 = arith.constant dense<0.000000e+00> : vector<2x64xf32>
    %240 = vector.multi_reduction <add>, %239, %cst_111 [2] : vector<2x64x64xf32> to vector<2x64xf32>
    %241 = vector.shape_cast %240 : vector<2x64xf32> to vector<2x64x1xf32>
    %242 = tpu.reciprocal %241 {approx = true} : vector<2x64x1xf32> -> vector<2x64x1xf32>
    %243 = vector.broadcast %242 : vector<2x64x1xf32> to vector<2x64x64xf32>
    %244 = arith.mulf %239, %243 : vector<2x64x64xf32>
    "tpu.trace_start"() <{level = 10 : i32, message = "bqk,bke->bqe"}> : () -> ()
    %cst_112 = arith.constant dense<0.000000e+00> : vector<2x64x8xf32>
    %245 = tpu.matmul %244, %233, %cst_112 {dimension_numbers = #tpu.dot_dimension_numbers<[2], [1], [1], [2], [0, 0, 0, 1, 1, 2], [0], [0]>} : vector<2x64x64xf32>, vector<2x64x8xf32>, vector<2x64x8xf32> -> vector<2x64x8xf32>
    "tpu.trace_stop"() : () -> ()
    %246 = vector.shape_cast %245 : vector<2x64x8xf32> to vector<128x8xf32>
    %247 = arith.truncf %246 : vector<128x8xf32> to vector<128x8xbf16>
    %c1_113 = arith.constant 1 : index
    %c1_114 = arith.constant 1 : index
    %c0_115 = arith.constant 0 : index
    %c0_116 = arith.constant 0 : index
    %248 = vector.load %arg6[%c1_113, %c1_114, %c0_115, %c0_116] : memref<2x4x8x32xbf16, #tpu.memory_space<vmem>>, vector<1x1x8x32xbf16>
    %249 = vector.shape_cast %248 : vector<1x1x8x32xbf16> to vector<8x32xbf16>
    %cst_117 = arith.constant dense<0.000000e+00> : vector<128x32xf32>
    %250 = tpu.matmul %247, %249, %cst_117 {dimension_numbers = #tpu.dot_dimension_numbers<[1], [0], [0], [1], [0, 0, 1, 1], [], []>} : vector<128x8xbf16>, vector<8x32xbf16>, vector<128x32xf32> -> vector<128x32xf32>
    %251 = arith.addf %228, %250 : vector<128x32xf32>
    %252 = vector.extract_strided_slice %204 {offsets = [0, 0, 16], sizes = [2, 64, 8], strides = [1, 1, 1]} : vector<2x64x96xf32> to vector<2x64x8xf32>
    %253 = arith.truncf %252 : vector<2x64x8xf32> to vector<2x64x8xbf16>
    %254 = vector.extract_strided_slice %204 {offsets = [0, 0, 48], sizes = [2, 64, 8], strides = [1, 1, 1]} : vector<2x64x96xf32> to vector<2x64x8xf32>
    %255 = arith.truncf %254 : vector<2x64x8xf32> to vector<2x64x8xbf16>
    %256 = vector.extract_strided_slice %204 {offsets = [0, 0, 80], sizes = [2, 64, 8], strides = [1, 1, 1]} : vector<2x64x96xf32> to vector<2x64x8xf32>
    "tpu.trace_start"() <{level = 10 : i32, message = "bqe,bke->bqk"}> : () -> ()
    %cst_118 = arith.constant dense<0.000000e+00> : vector<2x64x64xf32>
    %257 = tpu.matmul %253, %255, %cst_118 {dimension_numbers = #tpu.dot_dimension_numbers<[2], [2], [1], [1], [0, 0, 0, 1, 1, 1], [0], [0]>} : vector<2x64x8xbf16>, vector<2x64x8xbf16>, vector<2x64x64xf32> -> vector<2x64x64xf32>
    "tpu.trace_stop"() : () -> ()
    %cst_119 = arith.constant dense<0xFF800000> : vector<2x64xf32>
    %258 = vector.multi_reduction <maximumf>, %257, %cst_119 [2] : vector<2x64x64xf32> to vector<2x64xf32>
    %259 = vector.shape_cast %258 : vector<2x64xf32> to vector<2x64x1xf32>
    %260 = vector.broadcast %259 : vector<2x64x1xf32> to vector<2x64x64xf32>
    %261 = arith.subf %257, %260 : vector<2x64x64xf32>
    %262 = math.exp %261 : vector<2x64x64xf32>
    %cst_120 = arith.constant dense<0.000000e+00> : vector<2x64xf32>
    %263 = vector.multi_reduction <add>, %262, %cst_120 [2] : vector<2x64x64xf32> to vector<2x64xf32>
    %264 = vector.shape_cast %263 : vector<2x64xf32> to vector<2x64x1xf32>
    %265 = tpu.reciprocal %264 {approx = true} : vector<2x64x1xf32> -> vector<2x64x1xf32>
    %266 = vector.broadcast %265 : vector<2x64x1xf32> to vector<2x64x64xf32>
    %267 = arith.mulf %262, %266 : vector<2x64x64xf32>
    "tpu.trace_start"() <{level = 10 : i32, message = "bqk,bke->bqe"}> : () -> ()
    %cst_121 = arith.constant dense<0.000000e+00> : vector<2x64x8xf32>
    %268 = tpu.matmul %267, %256, %cst_121 {dimension_numbers = #tpu.dot_dimension_numbers<[2], [1], [1], [2], [0, 0, 0, 1, 1, 2], [0], [0]>} : vector<2x64x64xf32>, vector<2x64x8xf32>, vector<2x64x8xf32> -> vector<2x64x8xf32>
    "tpu.trace_stop"() : () -> ()
    %269 = vector.shape_cast %268 : vector<2x64x8xf32> to vector<128x8xf32>
    %270 = arith.truncf %269 : vector<128x8xf32> to vector<128x8xbf16>
    %c1_122 = arith.constant 1 : index
    %c2_123 = arith.constant 2 : index
    %c0_124 = arith.constant 0 : index
    %c0_125 = arith.constant 0 : index
    %271 = vector.load %arg6[%c1_122, %c2_123, %c0_124, %c0_125] : memref<2x4x8x32xbf16, #tpu.memory_space<vmem>>, vector<1x1x8x32xbf16>
    %272 = vector.shape_cast %271 : vector<1x1x8x32xbf16> to vector<8x32xbf16>
    %cst_126 = arith.constant dense<0.000000e+00> : vector<128x32xf32>
    %273 = tpu.matmul %270, %272, %cst_126 {dimension_numbers = #tpu.dot_dimension_numbers<[1], [0], [0], [1], [0, 0, 1, 1], [], []>} : vector<128x8xbf16>, vector<8x32xbf16>, vector<128x32xf32> -> vector<128x32xf32>
    %274 = arith.addf %251, %273 : vector<128x32xf32>
    %275 = vector.extract_strided_slice %204 {offsets = [0, 0, 24], sizes = [2, 64, 8], strides = [1, 1, 1]} : vector<2x64x96xf32> to vector<2x64x8xf32>
    %276 = arith.truncf %275 : vector<2x64x8xf32> to vector<2x64x8xbf16>
    %277 = vector.extract_strided_slice %204 {offsets = [0, 0, 56], sizes = [2, 64, 8], strides = [1, 1, 1]} : vector<2x64x96xf32> to vector<2x64x8xf32>
    %278 = arith.truncf %277 : vector<2x64x8xf32> to vector<2x64x8xbf16>
    %279 = vector.extract_strided_slice %204 {offsets = [0, 0, 88], sizes = [2, 64, 8], strides = [1, 1, 1]} : vector<2x64x96xf32> to vector<2x64x8xf32>
    "tpu.trace_start"() <{level = 10 : i32, message = "bqe,bke->bqk"}> : () -> ()
    %cst_127 = arith.constant dense<0.000000e+00> : vector<2x64x64xf32>
    %280 = tpu.matmul %276, %278, %cst_127 {dimension_numbers = #tpu.dot_dimension_numbers<[2], [2], [1], [1], [0, 0, 0, 1, 1, 1], [0], [0]>} : vector<2x64x8xbf16>, vector<2x64x8xbf16>, vector<2x64x64xf32> -> vector<2x64x64xf32>
    "tpu.trace_stop"() : () -> ()
    %cst_128 = arith.constant dense<0xFF800000> : vector<2x64xf32>
    %281 = vector.multi_reduction <maximumf>, %280, %cst_128 [2] : vector<2x64x64xf32> to vector<2x64xf32>
    %282 = vector.shape_cast %281 : vector<2x64xf32> to vector<2x64x1xf32>
    %283 = vector.broadcast %282 : vector<2x64x1xf32> to vector<2x64x64xf32>
    %284 = arith.subf %280, %283 : vector<2x64x64xf32>
    %285 = math.exp %284 : vector<2x64x64xf32>
    %cst_129 = arith.constant dense<0.000000e+00> : vector<2x64xf32>
    %286 = vector.multi_reduction <add>, %285, %cst_129 [2] : vector<2x64x64xf32> to vector<2x64xf32>
    %287 = vector.shape_cast %286 : vector<2x64xf32> to vector<2x64x1xf32>
    %288 = tpu.reciprocal %287 {approx = true} : vector<2x64x1xf32> -> vector<2x64x1xf32>
    %289 = vector.broadcast %288 : vector<2x64x1xf32> to vector<2x64x64xf32>
    %290 = arith.mulf %285, %289 : vector<2x64x64xf32>
    "tpu.trace_start"() <{level = 10 : i32, message = "bqk,bke->bqe"}> : () -> ()
    %cst_130 = arith.constant dense<0.000000e+00> : vector<2x64x8xf32>
    %291 = tpu.matmul %290, %279, %cst_130 {dimension_numbers = #tpu.dot_dimension_numbers<[2], [1], [1], [2], [0, 0, 0, 1, 1, 2], [0], [0]>} : vector<2x64x64xf32>, vector<2x64x8xf32>, vector<2x64x8xf32> -> vector<2x64x8xf32>
    "tpu.trace_stop"() : () -> ()
    %292 = vector.shape_cast %291 : vector<2x64x8xf32> to vector<128x8xf32>
    %293 = arith.truncf %292 : vector<128x8xf32> to vector<128x8xbf16>
    %c1_131 = arith.constant 1 : index
    %c3_132 = arith.constant 3 : index
    %c0_133 = arith.constant 0 : index
    %c0_134 = arith.constant 0 : index
    %294 = vector.load %arg6[%c1_131, %c3_132, %c0_133, %c0_134] : memref<2x4x8x32xbf16, #tpu.memory_space<vmem>>, vector<1x1x8x32xbf16>
    %295 = vector.shape_cast %294 : vector<1x1x8x32xbf16> to vector<8x32xbf16>
    %cst_135 = arith.constant dense<0.000000e+00> : vector<128x32xf32>
    %296 = tpu.matmul %293, %295, %cst_135 {dimension_numbers = #tpu.dot_dimension_numbers<[1], [0], [0], [1], [0, 0, 1, 1], [], []>} : vector<128x8xbf16>, vector<8x32xbf16>, vector<128x32xf32> -> vector<128x32xf32>
    %297 = arith.addf %274, %296 : vector<128x32xf32>
    %298 = vector.broadcast %197 : vector<1x32xf32> to vector<128x32xf32>
    %299 = arith.addf %297, %298 : vector<128x32xf32>
    %300 = arith.addf %193, %299 : vector<128x32xf32>
    %c1_136 = arith.constant 1 : index
    %c0_137 = arith.constant 0 : index
    %c0_138 = arith.constant 0 : index
    %301 = vector.load %arg8[%c1_136, %c0_137, %c0_138] : memref<2x1x32xf32, #tpu.memory_space<vmem>>, vector<1x1x32xf32>
    %302 = vector.shape_cast %301 : vector<1x1x32xf32> to vector<1x32xf32>
    %c1_139 = arith.constant 1 : index
    %c0_140 = arith.constant 0 : index
    %c0_141 = arith.constant 0 : index
    %303 = vector.load %arg9[%c1_139, %c0_140, %c0_141] : memref<2x1x32xf32, #tpu.memory_space<vmem>>, vector<1x1x32xf32>
    %304 = vector.shape_cast %303 : vector<1x1x32xf32> to vector<1x32xf32>
    %cst_142 = arith.constant dense<0.000000e+00> : vector<128xf32>
    %305 = vector.multi_reduction <add>, %300, %cst_142 [1] : vector<128x32xf32> to vector<128xf32>
    %306 = vector.shape_cast %305 : vector<128xf32> to vector<128x1xf32>
    %cst_143 = arith.constant 3.200000e+01 : f32
    %307 = vector.broadcast %cst_143 : f32 to vector<128x1xf32>
    %308 = arith.divf %306, %307 : vector<128x1xf32>
    %309 = vector.broadcast %308 : vector<128x1xf32> to vector<128x32xf32>
    %310 = arith.subf %300, %309 : vector<128x32xf32>
    %311 = arith.mulf %310, %310 : vector<128x32xf32>
    %cst_144 = arith.constant dense<0.000000e+00> : vector<128xf32>
    %312 = vector.multi_reduction <add>, %311, %cst_144 [1] : vector<128x32xf32> to vector<128xf32>
    %313 = vector.shape_cast %312 : vector<128xf32> to vector<128x1xf32>
    %cst_145 = arith.constant 3.200000e+01 : f32
    %314 = vector.broadcast %cst_145 : f32 to vector<128x1xf32>
    %315 = arith.divf %313, %314 : vector<128x1xf32>
    %cst_146 = arith.constant 9.99999974E-6 : f32
    %316 = vector.broadcast %cst_146 : f32 to vector<128x1xf32>
    %317 = arith.addf %315, %316 : vector<128x1xf32>
    %318 = math.rsqrt %317 : vector<128x1xf32>
    %319 = vector.broadcast %318 : vector<128x1xf32> to vector<128x32xf32>
    %320 = arith.mulf %310, %319 : vector<128x32xf32>
    %321 = vector.broadcast %302 : vector<1x32xf32> to vector<128x32xf32>
    %322 = arith.mulf %320, %321 : vector<128x32xf32>
    %323 = vector.broadcast %304 : vector<1x32xf32> to vector<128x32xf32>
    %324 = arith.addf %322, %323 : vector<128x32xf32>
    %325 = arith.truncf %324 : vector<128x32xf32> to vector<128x32xbf16>
    %c1_147 = arith.constant 1 : index
    %c0_148 = arith.constant 0 : index
    %c0_149 = arith.constant 0 : index
    %326 = vector.load %arg10[%c1_147, %c0_148, %c0_149] : memref<2x32x64xbf16, #tpu.memory_space<vmem>>, vector<1x32x64xbf16>
    %327 = vector.shape_cast %326 : vector<1x32x64xbf16> to vector<32x64xbf16>
    %cst_150 = arith.constant dense<0.000000e+00> : vector<128x64xf32>
    %328 = tpu.matmul %325, %327, %cst_150 {dimension_numbers = #tpu.dot_dimension_numbers<[1], [0], [0], [1], [0, 0, 1, 1], [], []>} : vector<128x32xbf16>, vector<32x64xbf16>, vector<128x64xf32> -> vector<128x64xf32>
    %c1_151 = arith.constant 1 : index
    %c0_152 = arith.constant 0 : index
    %c0_153 = arith.constant 0 : index
    %329 = vector.load %arg11[%c1_151, %c0_152, %c0_153] : memref<2x1x64xf32, #tpu.memory_space<vmem>>, vector<1x1x64xf32>
    %330 = vector.shape_cast %329 : vector<1x1x64xf32> to vector<1x64xf32>
    %331 = vector.broadcast %330 : vector<1x64xf32> to vector<128x64xf32>
    %332 = arith.addf %328, %331 : vector<128x64xf32>
    %333 = math.absf %332 : vector<128x64xf32>
    %cst_154 = arith.constant 0.000000e+00 : f32
    %334 = vector.broadcast %cst_154 : f32 to vector<128x64xf32>
    %335 = arith.subf %334, %333 : vector<128x64xf32>
    %336 = math.exp %335 : vector<128x64xf32>
    %337 = math.log1p %336 : vector<128x64xf32>
    %cst_155 = arith.constant 0.000000e+00 : f32
    %338 = vector.broadcast %cst_155 : f32 to vector<128x64xf32>
    %339 = arith.maximumf %332, %338 : vector<128x64xf32>
    %340 = arith.addf %337, %339 : vector<128x64xf32>
    %341 = math.tanh %340 : vector<128x64xf32>
    %342 = arith.mulf %332, %341 : vector<128x64xf32>
    %343 = arith.truncf %342 : vector<128x64xf32> to vector<128x64xbf16>
    %c1_156 = arith.constant 1 : index
    %c0_157 = arith.constant 0 : index
    %c0_158 = arith.constant 0 : index
    %344 = vector.load %arg12[%c1_156, %c0_157, %c0_158] : memref<2x64x32xbf16, #tpu.memory_space<vmem>>, vector<1x64x32xbf16>
    %345 = vector.shape_cast %344 : vector<1x64x32xbf16> to vector<64x32xbf16>
    %cst_159 = arith.constant dense<0.000000e+00> : vector<128x32xf32>
    %346 = tpu.matmul %343, %345, %cst_159 {dimension_numbers = #tpu.dot_dimension_numbers<[1], [0], [0], [1], [0, 0, 1, 1], [], []>} : vector<128x64xbf16>, vector<64x32xbf16>, vector<128x32xf32> -> vector<128x32xf32>
    %c1_160 = arith.constant 1 : index
    %c0_161 = arith.constant 0 : index
    %c0_162 = arith.constant 0 : index
    %347 = vector.load %arg13[%c1_160, %c0_161, %c0_162] : memref<2x1x32xf32, #tpu.memory_space<vmem>>, vector<1x1x32xf32>
    %348 = vector.shape_cast %347 : vector<1x1x32xf32> to vector<1x32xf32>
    %349 = vector.broadcast %348 : vector<1x32xf32> to vector<128x32xf32>
    %350 = arith.addf %346, %349 : vector<128x32xf32>
    %351 = arith.addf %324, %350 : vector<128x32xf32>
    %c1_163 = arith.constant 1 : index
    %c0_164 = arith.constant 0 : index
    %c0_165 = arith.constant 0 : index
    %352 = vector.load %arg14[%c1_163, %c0_164, %c0_165] : memref<2x1x32xf32, #tpu.memory_space<vmem>>, vector<1x1x32xf32>
    %353 = vector.shape_cast %352 : vector<1x1x32xf32> to vector<1x32xf32>
    %c1_166 = arith.constant 1 : index
    %c0_167 = arith.constant 0 : index
    %c0_168 = arith.constant 0 : index
    %354 = vector.load %arg15[%c1_166, %c0_167, %c0_168] : memref<2x1x32xf32, #tpu.memory_space<vmem>>, vector<1x1x32xf32>
    %355 = vector.shape_cast %354 : vector<1x1x32xf32> to vector<1x32xf32>
    %cst_169 = arith.constant dense<0.000000e+00> : vector<128xf32>
    %356 = vector.multi_reduction <add>, %351, %cst_169 [1] : vector<128x32xf32> to vector<128xf32>
    %357 = vector.shape_cast %356 : vector<128xf32> to vector<128x1xf32>
    %cst_170 = arith.constant 3.200000e+01 : f32
    %358 = vector.broadcast %cst_170 : f32 to vector<128x1xf32>
    %359 = arith.divf %357, %358 : vector<128x1xf32>
    %360 = vector.broadcast %359 : vector<128x1xf32> to vector<128x32xf32>
    %361 = arith.subf %351, %360 : vector<128x32xf32>
    %362 = arith.mulf %361, %361 : vector<128x32xf32>
    %cst_171 = arith.constant dense<0.000000e+00> : vector<128xf32>
    %363 = vector.multi_reduction <add>, %362, %cst_171 [1] : vector<128x32xf32> to vector<128xf32>
    %364 = vector.shape_cast %363 : vector<128xf32> to vector<128x1xf32>
    %cst_172 = arith.constant 3.200000e+01 : f32
    %365 = vector.broadcast %cst_172 : f32 to vector<128x1xf32>
    %366 = arith.divf %364, %365 : vector<128x1xf32>
    %cst_173 = arith.constant 9.99999974E-6 : f32
    %367 = vector.broadcast %cst_173 : f32 to vector<128x1xf32>
    %368 = arith.addf %366, %367 : vector<128x1xf32>
    %369 = math.rsqrt %368 : vector<128x1xf32>
    %370 = vector.broadcast %369 : vector<128x1xf32> to vector<128x32xf32>
    %371 = arith.mulf %361, %370 : vector<128x32xf32>
    %372 = vector.broadcast %353 : vector<1x32xf32> to vector<128x32xf32>
    %373 = arith.mulf %371, %372 : vector<128x32xf32>
    %374 = vector.broadcast %355 : vector<1x32xf32> to vector<128x32xf32>
    %375 = arith.addf %373, %374 : vector<128x32xf32>
    %376 = vector.shape_cast %375 : vector<128x32xf32> to vector<2x64x32xf32>
    %c0_174 = arith.constant 0 : index
    %c0_175 = arith.constant 0 : index
    %c0_176 = arith.constant 0 : index
    %377 = vector.load %arg16[%c0_174, %c0_175, %c0_176] : memref<2x64x32xf32, #tpu.memory_space<vmem>>, vector<2x64x32xf32>
    tpu.vector_store %arg16[%c0_174, %c0_175, %c0_176], %376 {strides = array<i32>} : memref<2x64x32xf32, #tpu.memory_space<vmem>>, vector<2x64x32xf32>,
    return
  }
  func.func @transform_0(%arg0: i32) -> (i32, i32, i32) {
    %c0_i32 = arith.constant 0 : i32
    %c0_i32_0 = arith.constant 0 : i32
    %c0_i32_1 = arith.constant 0 : i32
    return %arg0, %c0_i32, %c0_i32_0 : i32, i32, i32
  }
  func.func @transform_1(%arg0: i32) -> (i32, i32, i32) {
    %c0_i32 = arith.constant 0 : i32
    %c0_i32_0 = arith.constant 0 : i32
    %c0_i32_1 = arith.constant 0 : i32
    %c0_i32_2 = arith.constant 0 : i32
    return %c0_i32, %c0_i32_0, %c0_i32_1 : i32, i32, i32
  }
  func.func @transform_2(%arg0: i32) -> (i32, i32, i32) {
    %c0_i32 = arith.constant 0 : i32
    %c0_i32_0 = arith.constant 0 : i32
    %c0_i32_1 = arith.constant 0 : i32
    %c0_i32_2 = arith.constant 0 : i32
    return %c0_i32, %c0_i32_0, %c0_i32_1 : i32, i32, i32
  }
  func.func @transform_3(%arg0: i32) -> (i32, i32, i32) {
    %c0_i32 = arith.constant 0 : i32
    %c0_i32_0 = arith.constant 0 : i32
    %c0_i32_1 = arith.constant 0 : i32
    %c0_i32_2 = arith.constant 0 : i32
    return %c0_i32, %c0_i32_0, %c0_i32_1 : i32, i32, i32
  }
  func.func @transform_4(%arg0: i32) -> (i32, i32, i32) {
    %c0_i32 = arith.constant 0 : i32
    %c0_i32_0 = arith.constant 0 : i32
    %c0_i32_1 = arith.constant 0 : i32
    %c0_i32_2 = arith.constant 0 : i32
    return %c0_i32, %c0_i32_0, %c0_i32_1 : i32, i32, i32
  }
  func.func @transform_5(%arg0: i32) -> (i32, i32, i32, i32) {
    %c0_i32 = arith.constant 0 : i32
    %c0_i32_0 = arith.constant 0 : i32
    %c0_i32_1 = arith.constant 0 : i32
    %c0_i32_2 = arith.constant 0 : i32
    %c0_i32_3 = arith.constant 0 : i32
    return %c0_i32, %c0_i32_0, %c0_i32_1, %c0_i32_2 : i32, i32, i32, i32
  }
  func.func @transform_6(%arg0: i32) -> (i32, i32, i32) {
    %c0_i32 = arith.constant 0 : i32
    %c0_i32_0 = arith.constant 0 : i32
    %c0_i32_1 = arith.constant 0 : i32
    %c0_i32_2 = arith.constant 0 : i32
    return %c0_i32, %c0_i32_0, %c0_i32_1 : i32, i32, i32
  }
  func.func @transform_7(%arg0: i32) -> (i32, i32, i32) {
    %c0_i32 = arith.constant 0 : i32
    %c0_i32_0 = arith.constant 0 : i32
    %c0_i32_1 = arith.constant 0 : i32
    %c0_i32_2 = arith.constant 0 : i32
    return %c0_i32, %c0_i32_0, %c0_i32_1 : i32, i32, i32
  }
  func.func @transform_8(%arg0: i32) -> (i32, i32, i32) {
    %c0_i32 = arith.constant 0 : i32
    %c0_i32_0 = arith.constant 0 : i32
    %c0_i32_1 = arith.constant 0 : i32
    %c0_i32_2 = arith.constant 0 : i32
    return %c0_i32, %c0_i32_0, %c0_i32_1 : i32, i32, i32
  }
  func.func @transform_9(%arg0: i32) -> (i32, i32, i32) {
    %c0_i32 = arith.constant 0 : i32
    %c0_i32_0 = arith.constant 0 : i32
    %c0_i32_1 = arith.constant 0 : i32
    %c0_i32_2 = arith.constant 0 : i32
    return %c0_i32, %c0_i32_0, %c0_i32_1 : i32, i32, i32
  }
  func.func @transform_10(%arg0: i32) -> (i32, i32, i32) {
    %c0_i32 = arith.constant 0 : i32
    %c0_i32_0 = arith.constant 0 : i32
    %c0_i32_1 = arith.constant 0 : i32
    %c0_i32_2 = arith.constant 0 : i32
    return %c0_i32, %c0_i32_0, %c0_i32_1 : i32, i32, i32
  }
  func.func @transform_11(%arg0: i32) -> (i32, i32, i32) {
    %c0_i32 = arith.constant 0 : i32
    %c0_i32_0 = arith.constant 0 : i32
    %c0_i32_1 = arith.constant 0 : i32
    %c0_i32_2 = arith.constant 0 : i32
    return %c0_i32, %c0_i32_0, %c0_i32_1 : i32, i32, i32
  }
  func.func @transform_12(%arg0: i32) -> (i32, i32, i32) {
    %c0_i32 = arith.constant 0 : i32
    %c0_i32_0 = arith.constant 0 : i32
    %c0_i32_1 = arith.constant 0 : i32
    %c0_i32_2 = arith.constant 0 : i32
    return %c0_i32, %c0_i32_0, %c0_i32_1 : i32, i32, i32
  }
  func.func @transform_13(%arg0: i32) -> (i32, i32, i32) {
    %c0_i32 = arith.constant 0 : i32
    %c0_i32_0 = arith.constant 0 : i32
    %c0_i32_1 = arith.constant 0 : i32
    %c0_i32_2 = arith.constant 0 : i32
    return %c0_i32, %c0_i32_0, %c0_i32_1 : i32, i32, i32
  }
  func.func @transform_14(%arg0: i32) -> (i32, i32, i32) {
    %c0_i32 = arith.constant 0 : i32
    %c0_i32_0 = arith.constant 0 : i32
    %c0_i32_1 = arith.constant 0 : i32
    %c0_i32_2 = arith.constant 0 : i32
    return %c0_i32, %c0_i32_0, %c0_i32_1 : i32, i32, i32
  }
  func.func @transform_15(%arg0: i32) -> (i32, i32, i32) {
    %c0_i32 = arith.constant 0 : i32
    %c0_i32_0 = arith.constant 0 : i32
    %c0_i32_1 = arith.constant 0 : i32
    return %arg0, %c0_i32, %c0_i32_0 : i32, i32, i32
  }
}

</mosaic_0001>

<llo_original>
// kernel: chessformer_encoder.1
$region0: #{chessformer_encoder.1}
  #allocation0 [shape = 'u32[]', space=smem, size = 0x4, offset = 0x4, fixed_abs, tag = 'smem constant byte address 0x4 - core index']
  #allocation1 [shape = 'u32[72,128]{1,0:T(1,128)}', space=vmem, size = 0x9000, scoped, tag = 'internal scratch']
  %s0 = inlined_call_operand.vmem [shape: f32[2,64,32], index: 0, kind: input, shape index: {}]
  %s1 = inlined_call_operand.vmem [shape: f32[1,64,32], index: 1, kind: input, shape index: {}]
  %s2 = inlined_call_operand.vmem [shape: f32[1,64,32], index: 2, kind: input, shape index: {}]
  %s3 = inlined_call_operand.vmem [shape: bf16[2,32,96], index: 3, kind: input, shape index: {}]
  %s4 = inlined_call_operand.vmem [shape: f32[2,1,96], index: 4, kind: input, shape index: {}]
  %s5 = inlined_call_operand.vmem [shape: bf16[2,4,8,32], index: 5, kind: input, shape index: {}]
  %s6 = inlined_call_operand.vmem [shape: f32[2,1,32], index: 6, kind: input, shape index: {}]
  %s7 = inlined_call_operand.vmem [shape: f32[2,1,32], index: 7, kind: input, shape index: {}]
  %s8 = inlined_call_operand.vmem [shape: f32[2,1,32], index: 8, kind: input, shape index: {}]
  %s9 = inlined_call_operand.vmem [shape: bf16[2,32,64], index: 9, kind: input, shape index: {}]
  %s10 = inlined_call_operand.vmem [shape: f32[2,1,64], index: 10, kind: input, shape index: {}]
  %s11 = inlined_call_operand.vmem [shape: bf16[2,64,32], index: 11, kind: input, shape index: {}]
  %s12 = inlined_call_operand.vmem [shape: f32[2,1,32], index: 12, kind: input, shape index: {}]
  %s13 = inlined_call_operand.vmem [shape: f32[2,1,32], index: 13, kind: input, shape index: {}]
  %s14 = inlined_call_operand.vmem [shape: f32[2,1,32], index: 14, kind: input, shape index: {}]
  %s15 = inlined_call_operand.vmem [shape: f32[2,64,32], index: 15, kind: output, shape index: {}]
  %s16 = sld [smem:[#allocation0]]
  $region70: #{chessformer_encoder.1} parent=0
    _
  %s18 = ssub.s32 1, %s16
  %s19 = scalar_select 0, %s18, %s16
  // Predicated region
  $region2: #{chessformer_encoder.1} parent=0 // pred_check
    _
  $region3: #{chessformer_encoder.1} parent=0 // pred_check_branch
    %21 = sbr.rel (0) target = $region5
  $region4: #{chessformer_encoder.1} parent=0 // pred_region
    _
  $region5: #{chessformer_encoder.1} parent=0 // pred_fallthru
    _
  // Predicated region
  $region6: #{chessformer_encoder.1} parent=0 // pred_check
    _
  $region7: #{chessformer_encoder.1} parent=0 // pred_check_branch
    %23 = sbr.rel (0) target = $region9
  $region8: #{chessformer_encoder.1} parent=0 // pred_region
    _
  $region9: #{chessformer_encoder.1} parent=0 // pred_fallthru
    _
  // Predicated region
  $region10: #{chessformer_encoder.1} parent=0 // pred_check
    _
  $region11: #{chessformer_encoder.1} parent=0 // pred_check_branch
    %25 = sbr.rel (0) target = $region13
  $region12: #{chessformer_encoder.1} parent=0 // pred_region
    _
  $region13: #{chessformer_encoder.1} parent=0 // pred_fallthru
    _
  // Predicated region
  $region14: #{chessformer_encoder.1} parent=0 // pred_check
    _
  $region15: #{chessformer_encoder.1} parent=0 // pred_check_branch
    %27 = sbr.rel (0) target = $region17
  $region16: #{chessformer_encoder.1} parent=0 // pred_region
    _
  $region17: #{chessformer_encoder.1} parent=0 // pred_fallthru
    _
  // Predicated region
  $region18: #{chessformer_encoder.1} parent=0 // pred_check
    _
  $region19: #{chessformer_encoder.1} parent=0 // pred_check_branch
    %29 = sbr.rel (0) target = $region21
  $region20: #{chessformer_encoder.1} parent=0 // pred_region
    _
  $region21: #{chessformer_encoder.1} parent=0 // pred_fallthru
    _
  // Predicated region
  $region22: #{chessformer_encoder.1} parent=0 // pred_check
    _
  $region23: #{chessformer_encoder.1} parent=0 // pred_check_branch
    %31 = sbr.rel (0) target = $region25
  $region24: #{chessformer_encoder.1} parent=0 // pred_region
    _
  $region25: #{chessformer_encoder.1} parent=0 // pred_fallthru
    _
  // Predicated region
  $region26: #{chessformer_encoder.1} parent=0 // pred_check
    _
  $region27: #{chessformer_encoder.1} parent=0 // pred_check_branch
    %33 = sbr.rel (0) target = $region29
  $region28: #{chessformer_encoder.1} parent=0 // pred_region
    _
  $region29: #{chessformer_encoder.1} parent=0 // pred_fallthru
    _
  // Predicated region
  $region30: #{chessformer_encoder.1} parent=0 // pred_check
    _
  $region31: #{chessformer_encoder.1} parent=0 // pred_check_branch
    %35 = sbr.rel (0) target = $region33
  $region32: #{chessformer_encoder.1} parent=0 // pred_region
    _
  $region33: #{chessformer_encoder.1} parent=0 // pred_fallthru
    _
  // Predicated region
  $region34: #{chessformer_encoder.1} parent=0 // pred_check
    _
  $region35: #{chessformer_encoder.1} parent=0 // pred_check_branch
    %37 = sbr.rel (0) target = $region37
  $region36: #{chessformer_encoder.1} parent=0 // pred_region
    _
  $region37: #{chessformer_encoder.1} parent=0 // pred_fallthru
    _
  // Predicated region
  $region38: #{chessformer_encoder.1} parent=0 // pred_check
    _
  $region39: #{chessformer_encoder.1} parent=0 // pred_check_branch
    %39 = sbr.rel (0) target = $region41
  $region40: #{chessformer_encoder.1} parent=0 // pred_region
    _
  $region41: #{chessformer_encoder.1} parent=0 // pred_fallthru
    _
  // Predicated region
  $region42: #{chessformer_encoder.1} parent=0 // pred_check
    _
  $region43: #{chessformer_encoder.1} parent=0 // pred_check_branch
    %41 = sbr.rel (0) target = $region45
  $region44: #{chessformer_encoder.1} parent=0 // pred_region
    _
  $region45: #{chessformer_encoder.1} parent=0 // pred_fallthru
    _
  // Predicated region
  $region46: #{chessformer_encoder.1} parent=0 // pred_check
    _
  $region47: #{chessformer_encoder.1} parent=0 // pred_check_branch
    %43 = sbr.rel (0) target = $region49
  $region48: #{chessformer_encoder.1} parent=0 // pred_region
    _
  $region49: #{chessformer_encoder.1} parent=0 // pred_fallthru
    _
  // Predicated region
  $region50: #{chessformer_encoder.1} parent=0 // pred_check
    _
  $region51: #{chessformer_encoder.1} parent=0 // pred_check_branch
    %45 = sbr.rel (0) target = $region53
  $region52: #{chessformer_encoder.1} parent=0 // pred_region
    _
  $region53: #{chessformer_encoder.1} parent=0 // pred_fallthru
    _
  // Predicated region
  $region54: #{chessformer_encoder.1} parent=0 // pred_check
    _
  $region55: #{chessformer_encoder.1} parent=0 // pred_check_branch
    %47 = sbr.rel (0) target = $region57
  $region56: #{chessformer_encoder.1} parent=0 // pred_region
    _
  $region57: #{chessformer_encoder.1} parent=0 // pred_fallthru
    _
  // Predicated region
  $region58: #{chessformer_encoder.1} parent=0 // pred_check
    _
  $region59: #{chessformer_encoder.1} parent=0 // pred_check_branch
    %49 = sbr.rel (0) target = $region61
  $region60: #{chessformer_encoder.1} parent=0 // pred_region
    _
  $region61: #{chessformer_encoder.1} parent=0 // pred_fallthru
    _
  %v51 = vld [vmem:[%s0] sm:$0xff]
  %v52 = vld [vmem:[%s0 + $0x8] sm:$0xff]
  %v53 = vld [vmem:[%s0 + $0x10] sm:$0xff]
  %v54 = vld [vmem:[%s0 + $0x18] sm:$0xff]
  %v55 = vld [vmem:[%s0 + $0x20] sm:$0xff]
  %v56 = vld [vmem:[%s0 + $0x28] sm:$0xff]
  %v57 = vld [vmem:[%s0 + $0x30] sm:$0xff]
  %v58 = vld [vmem:[%s0 + $0x38] sm:$0xff]
  %v59 = vld [vmem:[%s0 + $0x40] sm:$0xff]
  %v60 = vld [vmem:[%s0 + $0x48] sm:$0xff]
  %v61 = vld [vmem:[%s0 + $0x50] sm:$0xff]
  %v62 = vld [vmem:[%s0 + $0x58] sm:$0xff]
  %v63 = vld [vmem:[%s0 + $0x60] sm:$0xff]
  %v64 = vld [vmem:[%s0 + $0x68] sm:$0xff]
  %v65 = vld [vmem:[%s0 + $0x70] sm:$0xff]
  %v66 = vld [vmem:[%s0 + $0x78] sm:$0xff]
  %v67 = vld [vmem:[%s1] sm:$0xff]
  %v68 = vld [vmem:[%s1 + $0x8] sm:$0xff]
  %v69 = vld [vmem:[%s1 + $0x10] sm:$0xff]
  %v70 = vld [vmem:[%s1 + $0x18] sm:$0xff]
  %v71 = vld [vmem:[%s1 + $0x20] sm:$0xff]
  %v72 = vld [vmem:[%s1 + $0x28] sm:$0xff]
  %v73 = vld [vmem:[%s1 + $0x30] sm:$0xff]
  %v74 = vld [vmem:[%s1 + $0x38] sm:$0xff]
  %v75 = vmul.f32 %v51, %v67
  %v76 = vmul.f32 %v52, %v68
  %v77 = vmul.f32 %v53, %v69
  %v78 = vmul.f32 %v54, %v70
  %v79 = vmul.f32 %v55, %v71
  %v80 = vmul.f32 %v56, %v72
  %v81 = vmul.f32 %v57, %v73
  %v82 = vmul.f32 %v58, %v74
  %v83 = vmul.f32 %v59, %v67
  %v84 = vmul.f32 %v60, %v68
  %v85 = vmul.f32 %v61, %v69
  %v86 = vmul.f32 %v62, %v70
  %v87 = vmul.f32 %v63, %v71
  %v88 = vmul.f32 %v64, %v72
  %v89 = vmul.f32 %v65, %v73
  %v90 = vmul.f32 %v66, %v74
  %v91 = vld [vmem:[%s2] sm:$0xff]
  %v92 = vld [vmem:[%s2 + $0x8] sm:$0xff]
  %v93 = vld [vmem:[%s2 + $0x10] sm:$0xff]
  %v94 = vld [vmem:[%s2 + $0x18] sm:$0xff]
  %v95 = vld [vmem:[%s2 + $0x20] sm:$0xff]
  %v96 = vld [vmem:[%s2 + $0x28] sm:$0xff]
  %v97 = vld [vmem:[%s2 + $0x30] sm:$0xff]
  %v98 = vld [vmem:[%s2 + $0x38] sm:$0xff]
  %v99 = vadd.f32 %v75, %v91
  %v100 = vadd.f32 %v76, %v92
  %v101 = vadd.f32 %v77, %v93
  %v102 = vadd.f32 %v78, %v94
  %v103 = vadd.f32 %v79, %v95
  %v104 = vadd.f32 %v80, %v96
  %v105 = vadd.f32 %v81, %v97
  %v106 = vadd.f32 %v82, %v98
  %v107 = vadd.f32 %v83, %v91
  %v108 = vadd.f32 %v84, %v92
  %v109 = vadd.f32 %v85, %v93
  %v110 = vadd.f32 %v86, %v94
  %v111 = vadd.f32 %v87, %v95
  %v112 = vadd.f32 %v88, %v96
  %v113 = vadd.f32 %v89, %v97
  %v114 = vadd.f32 %v90, %v98
  %v115 = vld [vmem:[%s4] sm:$0x1]
  %v116 = vld [vmem:[%s6] sm:$0x1]
  %v117 = vpack.c.bf16 %v100, %v99
  %v118 = vpack.c.bf16 %v102, %v101
  %v119 = vpack.c.bf16 %v104, %v103
  %v120 = vpack.c.bf16 %v106, %v105
  %v121 = vpack.c.bf16 %v108, %v107
  %v122 = vpack.c.bf16 %v110, %v109
  %v123 = vpack.c.bf16 %v112, %v111
  %v124 = vpack.c.bf16 %v114, %v113
  %v125 = vld [vmem:[%s3] sm:$0xf]
  %v126 = vld [vmem:[%s3 + $0x4] sm:$0xf]
  %v127 = vld [vmem:[%s3 + $0x8] sm:$0xf]
  %v128 = vld [vmem:[%s3 + $0xc] sm:$0xf]
  %v130 = vperm.slane %v115, 0
  %v136 = vunpack.c.l.b16 %v125
  %v137 = vunpack.c.l.b16 %v126
  %v138 = vunpack.c.l.b16 %v127
  %v139 = vunpack.c.l.b16 %v128
  %v140 = vpack.c.b16 %v137, %v136
  %v141 = vpack.c.b16 %v139, %v138
  %vm144 = vcmask 261120
  %v146 = vsel %vm144, %v117, 0
  %v149 = vsel %vm144, %v118, 0
  %v152 = vsel %vm144, %v119, 0
  %v155 = vsel %vm144, %v120, 0
  %v158 = vsel %vm144, %v121, 0
  %v161 = vsel %vm144, %v122, 0
  %v164 = vsel %vm144, %v123, 0
  %v167 = vsel %vm144, %v124, 0
  %169 = vmatpush.bf16.msra.mxu0 0
  %170 = vmatpush.bf16.msra.mxu0 0
  %171 = vmatpush.bf16.msra.mxu0 0
  %172 = vmatpush.bf16.msra.mxu0 0
  %173 = vmatpush.bf16.msra.mxu0 0
  %174 = vmatpush.bf16.msra.mxu0 0
  %175 = vmatpush.bf16.msra.mxu0 %v141
  %176 = vmatpush.bf16.msra.mxu0 %v140
  %177 = vmatmul.bf16.gmra.mxu0 %v146
  %v178 = vpop.f32.mrf.mxu0
  %v179 = vadd.f32 %v130, %v178
  %v180 = vpop.f32.mrf.mxu0
  %v181 = vadd.f32 %v130, %v180
  %182 = vmatmul.bf16.gmra.mxu0 %v149
  %v183 = vpop.f32.mrf.mxu0
  %v184 = vadd.f32 %v130, %v183
  %v185 = vpop.f32.mrf.mxu0
  %v186 = vadd.f32 %v130, %v185
  %187 = vmatmul.bf16.gmra.mxu0 %v152
  %v188 = vpop.f32.mrf.mxu0
  %v189 = vadd.f32 %v130, %v188
  %v190 = vpop.f32.mrf.mxu0
  %v191 = vadd.f32 %v130, %v190
  %192 = vmatmul.bf16.gmra.mxu0 %v155
  %v193 = vpop.f32.mrf.mxu0
  %v194 = vadd.f32 %v130, %v193
  %v195 = vpop.f32.mrf.mxu0
  %v196 = vadd.f32 %v130, %v195
  %197 = vmatmul.bf16.gmra.mxu0 %v158
  %v198 = vpop.f32.mrf.mxu0
  %v199 = vadd.f32 %v130, %v198
  %v200 = vpop.f32.mrf.mxu0
  %v201 = vadd.f32 %v130, %v200
  %202 = vmatmul.bf16.gmra.mxu0 %v161
  %v203 = vpop.f32.mrf.mxu0
  %v204 = vadd.f32 %v130, %v203
  %v205 = vpop.f32.mrf.mxu0
  %v206 = vadd.f32 %v130, %v205
  %207 = vmatmul.bf16.gmra.mxu0 %v164
  %v208 = vpop.f32.mrf.mxu0
  %v209 = vadd.f32 %v130, %v208
  %v210 = vpop.f32.mrf.mxu0
  %v211 = vadd.f32 %v130, %v210
  %212 = vmatmul.bf16.gmra.mxu0 %v167
  %v213 = vpop.f32.mrf.mxu0
  %v214 = vadd.f32 %v130, %v213
  %v215 = vpop.f32.mrf.mxu0
  %v216 = vadd.f32 %v130, %v215
  %217 = vdwg.mxu0
  %v218 = vpack.c.bf16 %v179, %v179
  %v219 = vpack.c.bf16 %v181, %v181
  %v220 = vpack.c.bf16 %v184, %v184
  %v221 = vpack.c.bf16 %v186, %v186
  %v222 = vpack.c.bf16 %v189, %v189
  %v223 = vpack.c.bf16 %v191, %v191
  %v224 = vpack.c.bf16 %v194, %v194
  %v225 = vpack.c.bf16 %v196, %v196
  %v226 = vpack.c.bf16 %v199, %v199
  %v227 = vpack.c.bf16 %v201, %v201
  %v228 = vpack.c.bf16 %v204, %v204
  %v229 = vpack.c.bf16 %v206, %v206
  %v230 = vpack.c.bf16 %v209, %v209
  %v231 = vpack.c.bf16 %v211, %v211
  %v232 = vpack.c.bf16 %v214, %v214
  %v233 = vpack.c.bf16 %v216, %v216
  %v242 = vunpack.c.l.b16 %v218
  %v243 = vunpack.c.l.b16 %v219
  %v244 = vunpack.c.l.b16 %v220
  %v245 = vunpack.c.l.b16 %v221
  %v246 = vunpack.c.l.b16 %v222
  %v247 = vunpack.c.l.b16 %v223
  %v248 = vunpack.c.l.b16 %v224
  %v249 = vunpack.c.l.b16 %v225
  %v250 = vpack.c.b16 %v243, %v242
  %v251 = vpack.c.b16 %v245, %v244
  %v252 = vpack.c.b16 %v247, %v246
  %v253 = vpack.c.b16 %v249, %v248
  %254 = vrot.lane.b32.xlu0 %v250, 96
  %v255 = vpop.permute.xlu0 %254
  %256 = vrot.lane.b32.xlu0 %v251, 96
  %v257 = vpop.permute.xlu0 %256
  %258 = vrot.lane.b32.xlu0 %v252, 96
  %v259 = vpop.permute.xlu0 %258
  %260 = vrot.lane.b32.xlu0 %v253, 96
  %v261 = vpop.permute.xlu0 %260
  %vm262 = vcmask 64512
  %v264 = vsel %vm262, %v250, 0
  %v267 = vsel %vm262, %v251, 0
  %v270 = vsel %vm262, %v252, 0
  %v273 = vsel %vm262, %v253, 0
  %v276 = vsel %vm262, %v255, 0
  %v279 = vsel %vm262, %v257, 0
  %v282 = vsel %vm262, %v259, 0
  %v285 = vsel %vm262, %v261, 0
  %287 = vmatpush.bf16.xpose.msra.mxu0 0
  %288 = vmatpush.bf16.xpose.msra.mxu0 0
  %289 = vmatpush.bf16.xpose.msra.mxu0 0
  %290 = vmatpush.bf16.xpose.msra.mxu0 0
  %291 = vmatpush.bf16.xpose.msra.mxu0 %v285
  %292 = vmatpush.bf16.xpose.msra.mxu0 %v282
  %293 = vmatpush.bf16.xpose.msra.mxu0 %v279
  %294 = vmatpush.bf16.xpose.msra.mxu0 %v276
  %295 = vmatmul.bf16.gmra.mxu0 %v264
  %v296 = vpop.f32.mrf.mxu0
  %v297 = vadd.f32 0.0, %v296
  %v298 = vpop.f32.mrf.mxu0
  %v299 = vadd.f32 0.0, %v298
  %300 = vmatmul.bf16.gmra.mxu0 %v267
  %v301 = vpop.f32.mrf.mxu0
  %v302 = vadd.f32 0.0, %v301
  %v303 = vpop.f32.mrf.mxu0
  %v304 = vadd.f32 0.0, %v303
  %305 = vmatmul.bf16.gmra.mxu0 %v270
  %v306 = vpop.f32.mrf.mxu0
  %v307 = vadd.f32 0.0, %v306
  %v308 = vpop.f32.mrf.mxu0
  %v309 = vadd.f32 0.0, %v308
  %310 = vmatmul.bf16.gmra.mxu0 %v273
  %v311 = vpop.f32.mrf.mxu0
  %v312 = vadd.f32 0.0, %v311
  %v313 = vpop.f32.mrf.mxu0
  %v314 = vadd.f32 0.0, %v313
  %315 = vdwg.mxu0
  %v324 = vunpack.c.l.b16 %v226
  %v325 = vunpack.c.l.b16 %v227
  %v326 = vunpack.c.l.b16 %v228
  %v327 = vunpack.c.l.b16 %v229
  %v328 = vunpack.c.l.b16 %v230
  %v329 = vunpack.c.l.b16 %v231
  %v330 = vunpack.c.l.b16 %v232
  %v331 = vunpack.c.l.b16 %v233
  %v332 = vpack.c.b16 %v325, %v324
  %v333 = vpack.c.b16 %v327, %v326
  %v334 = vpack.c.b16 %v329, %v328
  %v335 = vpack.c.b16 %v331, %v330
  %336 = vrot.lane.b32.xlu0 %v332, 96
  %v337 = vpop.permute.xlu0 %336
  %338 = vrot.lane.b32.xlu0 %v333, 96
  %v339 = vpop.permute.xlu0 %338
  %340 = vrot.lane.b32.xlu0 %v334, 96
  %v341 = vpop.permute.xlu0 %340
  %342 = vrot.lane.b32.xlu0 %v335, 96
  %v343 = vpop.permute.xlu0 %342
  %v345 = vsel %vm262, %v332, 0
  %v348 = vsel %vm262, %v333, 0
  %v351 = vsel %vm262, %v334, 0
  %v354 = vsel %vm262, %v335, 0
  %v357 = vsel %vm262, %v337, 0
  %v360 = vsel %vm262, %v339, 0
  %v363 = vsel %vm262, %v341, 0
  %v366 = vsel %vm262, %v343, 0
  %368 = vmatpush.bf16.xpose.msra.mxu0 0
  %369 = vmatpush.bf16.xpose.msra.mxu0 0
  %370 = vmatpush.bf16.xpose.msra.mxu0 0
  %371 = vmatpush.bf16.xpose.msra.mxu0 0
  %372 = vmatpush.bf16.xpose.msra.mxu0 %v366
  %373 = vmatpush.bf16.xpose.msra.mxu0 %v363
  %374 = vmatpush.bf16.xpose.msra.mxu0 %v360
  %375 = vmatpush.bf16.xpose.msra.mxu0 %v357
  %376 = vmatmul.bf16.gmra.mxu0 %v345
  %v377 = vpop.f32.mrf.mxu0
  %v378 = vadd.f32 0.0, %v377
  %v379 = vpop.f32.mrf.mxu0
  %v380 = vadd.f32 0.0, %v379
  %381 = vmatmul.bf16.gmra.mxu0 %v348
  %v382 = vpop.f32.mrf.mxu0
  %v383 = vadd.f32 0.0, %v382
  %v384 = vpop.f32.mrf.mxu0
  %v385 = vadd.f32 0.0, %v384
  %386 = vmatmul.bf16.gmra.mxu0 %v351
  %v387 = vpop.f32.mrf.mxu0
  %v388 = vadd.f32 0.0, %v387
  %v389 = vpop.f32.mrf.mxu0
  %v390 = vadd.f32 0.0, %v389
  %391 = vmatmul.bf16.gmra.mxu0 %v354
  %v392 = vpop.f32.mrf.mxu0
  %v393 = vadd.f32 0.0, %v392
  %v394 = vpop.f32.mrf.mxu0
  %v395 = vadd.f32 0.0, %v394
  %396 = vdwg.mxu0
  %vm397 = vcmask 523264
  %v398 = vsel %vm397, %v297, -inf
  %399 = vmax.xlane.f32.xlu0 %v398
  %v400 = vpop.xlane.xlu0 %399
  %v401 = vsel %vm397, %v299, -inf
  %402 = vmax.xlane.f32.xlu0 %v401
  %v403 = vpop.xlane.xlu0 %402
  %v404 = vsel %vm397, %v302, -inf
  %405 = vmax.xlane.f32.xlu0 %v404
  %v406 = vpop.xlane.xlu0 %405
  %v407 = vsel %vm397, %v304, -inf
  %408 = vmax.xlane.f32.xlu0 %v407
  %v409 = vpop.xlane.xlu0 %408
  %v410 = vsel %vm397, %v307, -inf
  %411 = vmax.xlane.f32.xlu0 %v410
  %v412 = vpop.xlane.xlu0 %411
  %v413 = vsel %vm397, %v309, -inf
  %414 = vmax.xlane.f32.xlu0 %v413
  %v415 = vpop.xlane.xlu0 %414
  %v416 = vsel %vm397, %v312, -inf
  %417 = vmax.xlane.f32.xlu0 %v416
  %v418 = vpop.xlane.xlu0 %417
  %v419 = vsel %vm397, %v314, -inf
  %420 = vmax.xlane.f32.xlu0 %v419
  %v421 = vpop.xlane.xlu0 %420
  %v422 = vsel %vm397, %v378, -inf
  %423 = vmax.xlane.f32.xlu0 %v422
  %v424 = vpop.xlane.xlu0 %423
  %v425 = vsel %vm397, %v380, -inf
  %426 = vmax.xlane.f32.xlu0 %v425
  %v427 = vpop.xlane.xlu0 %426
  %v428 = vsel %vm397, %v383, -inf
  %429 = vmax.xlane.f32.xlu0 %v428
  %v430 = vpop.xlane.xlu0 %429
  %v431 = vsel %vm397, %v385, -inf
  %432 = vmax.xlane.f32.xlu0 %v431
  %v433 = vpop.xlane.xlu0 %432
  %v434 = vsel %vm397, %v388, -inf
  %435 = vmax.xlane.f32.xlu0 %v434
  %v436 = vpop.xlane.xlu0 %435
  %v437 = vsel %vm397, %v390, -inf
  %438 = vmax.xlane.f32.xlu0 %v437
  %v439 = vpop.xlane.xlu0 %438
  %v440 = vsel %vm397, %v393, -inf
  %441 = vmax.xlane.f32.xlu0 %v440
  %v442 = vpop.xlane.xlu0 %441
  %v443 = vsel %vm397, %v395, -inf
  %444 = vmax.xlane.f32.xlu0 %v443
  %v445 = vpop.xlane.xlu0 %444
  %v446 = vsub.f32 %v297, %v400
  %v447 = vsub.f32 %v299, %v403
  %v448 = vsub.f32 %v302, %v406
  %v449 = vsub.f32 %v304, %v409
  %v450 = vsub.f32 %v307, %v412
  %v451 = vsub.f32 %v309, %v415
  %v452 = vsub.f32 %v312, %v418
  %v453 = vsub.f32 %v314, %v421
  %v454 = vsub.f32 %v378, %v424
  %v455 = vsub.f32 %v380, %v427
  %v456 = vsub.f32 %v383, %v430
  %v457 = vsub.f32 %v385, %v433
  %v458 = vsub.f32 %v388, %v436
  %v459 = vsub.f32 %v390, %v439
  %v460 = vsub.f32 %v393, %v442
  %v461 = vsub.f32 %v395, %v445
  %v462 = vmul.f32 %v446, 1.442695
  %v463 = vpow.pop %v462
  %v464 = vmul.f32 %v447, 1.442695
  %v465 = vpow.pop %v464
  %v466 = vmul.f32 %v448, 1.442695
  %v467 = vpow.pop %v466
  %v468 = vmul.f32 %v449, 1.442695
  %v469 = vpow.pop %v468
  %v470 = vmul.f32 %v450, 1.442695
  %v471 = vpow.pop %v470
  %v472 = vmul.f32 %v451, 1.442695
  %v473 = vpow.pop %v472
  %v474 = vmul.f32 %v452, 1.442695
  %v475 = vpow.pop %v474
  %v476 = vmul.f32 %v453, 1.442695
  %v477 = vpow.pop %v476
  %v478 = vmul.f32 %v454, 1.442695
  %v479 = vpow.pop %v478
  %v480 = vmul.f32 %v455, 1.442695
  %v481 = vpow.pop %v480
  %v482 = vmul.f32 %v456, 1.442695
  %v483 = vpow.pop %v482
  %v484 = vmul.f32 %v457, 1.442695
  %v485 = vpow.pop %v484
  %v486 = vmul.f32 %v458, 1.442695
  %v487 = vpow.pop %v486
  %v488 = vmul.f32 %v459, 1.442695
  %v489 = vpow.pop %v488
  %v490 = vmul.f32 %v460, 1.442695
  %v491 = vpow.pop %v490
  %v492 = vmul.f32 %v461, 1.442695
  %v493 = vpow.pop %v492
  %v494 = vsel %vm397, %v463, 0.0
  %495 = vadd.xlane.f32.xlu0 %v494
  %v496 = vpop.xlane.xlu0 %495
  %v497 = vsel %vm397, %v465, 0.0
  %498 = vadd.xlane.f32.xlu0 %v497
  %v499 = vpop.xlane.xlu0 %498
  %v500 = vsel %vm397, %v467, 0.0
  %501 = vadd.xlane.f32.xlu0 %v500
  %v502 = vpop.xlane.xlu0 %501
  %v503 = vsel %vm397, %v469, 0.0
  %504 = vadd.xlane.f32.xlu0 %v503
  %v505 = vpop.xlane.xlu0 %504
  %v506 = vsel %vm397, %v471, 0.0
  %507 = vadd.xlane.f32.xlu0 %v506
  %v508 = vpop.xlane.xlu0 %507
  %v509 = vsel %vm397, %v473, 0.0
  %510 = vadd.xlane.f32.xlu0 %v509
  %v511 = vpop.xlane.xlu0 %510
  %v512 = vsel %vm397, %v475, 0.0
  %513 = vadd.xlane.f32.xlu0 %v512
  %v514 = vpop.xlane.xlu0 %513
  %v515 = vsel %vm397, %v477, 0.0
  %516 = vadd.xlane.f32.xlu0 %v515
  %v517 = vpop.xlane.xlu0 %516
  %v518 = vsel %vm397, %v479, 0.0
  %519 = vadd.xlane.f32.xlu0 %v518
  %v520 = vpop.xlane.xlu0 %519
  %v521 = vsel %vm397, %v481, 0.0
  %522 = vadd.xlane.f32.xlu0 %v521
  %v523 = vpop.xlane.xlu0 %522
  %v524 = vsel %vm397, %v483, 0.0
  %525 = vadd.xlane.f32.xlu0 %v524
  %v526 = vpop.xlane.xlu0 %525
  %v527 = vsel %vm397, %v485, 0.0
  %528 = vadd.xlane.f32.xlu0 %v527
  %v529 = vpop.xlane.xlu0 %528
  %v530 = vsel %vm397, %v487, 0.0
  %531 = vadd.xlane.f32.xlu0 %v530
  %v532 = vpop.xlane.xlu0 %531
  %v533 = vsel %vm397, %v489, 0.0
  %534 = vadd.xlane.f32.xlu0 %v533
  %v535 = vpop.xlane.xlu0 %534
  %v536 = vsel %vm397, %v491, 0.0
  %537 = vadd.xlane.f32.xlu0 %v536
  %v538 = vpop.xlane.xlu0 %537
  %v539 = vsel %vm397, %v493, 0.0
  %540 = vadd.xlane.f32.xlu0 %v539
  %v541 = vpop.xlane.xlu0 %540
  %v542 = vrcp.pop %v496
  %v543 = vrcp.pop %v499
  %v544 = vrcp.pop %v502
  %v545 = vrcp.pop %v505
  %v546 = vrcp.pop %v508
  %v547 = vrcp.pop %v511
  %v548 = vrcp.pop %v514
  %v549 = vrcp.pop %v517
  %v550 = vrcp.pop %v520
  %v551 = vrcp.pop %v523
  %v552 = vrcp.pop %v526
  %v553 = vrcp.pop %v529
  %v554 = vrcp.pop %v532
  %v555 = vrcp.pop %v535
  %v556 = vrcp.pop %v538
  %v557 = vrcp.pop %v541
  %v558 = vmul.f32 %v463, %v542
  %v559 = vmul.f32 %v465, %v543
  %v560 = vmul.f32 %v467, %v544
  %v561 = vmul.f32 %v469, %v545
  %v562 = vmul.f32 %v471, %v546
  %v563 = vmul.f32 %v473, %v547
  %v564 = vmul.f32 %v475, %v548
  %v565 = vmul.f32 %v477, %v549
  %v566 = vmul.f32 %v479, %v550
  %v567 = vmul.f32 %v481, %v551
  %v568 = vmul.f32 %v483, %v552
  %v569 = vmul.f32 %v485, %v553
  %v570 = vmul.f32 %v487, %v554
  %v571 = vmul.f32 %v489, %v555
  %v572 = vmul.f32 %v491, %v556
  %v573 = vmul.f32 %v493, %v557
  %582 = vrot.lane.b32.xlu0 %v179, 64
  %v583 = vpop.permute.xlu0 %582
  %584 = vrot.lane.b32.xlu0 %v181, 64
  %v585 = vpop.permute.xlu0 %584
  %586 = vrot.lane.b32.xlu0 %v184, 64
  %v587 = vpop.permute.xlu0 %586
  %588 = vrot.lane.b32.xlu0 %v186, 64
  %v589 = vpop.permute.xlu0 %588
  %590 = vrot.lane.b32.xlu0 %v189, 64
  %v591 = vpop.permute.xlu0 %590
  %592 = vrot.lane.b32.xlu0 %v191, 64
  %v593 = vpop.permute.xlu0 %592
  %594 = vrot.lane.b32.xlu0 %v194, 64
  %v595 = vpop.permute.xlu0 %594
  %596 = vrot.lane.b32.xlu0 %v196, 64
  %v597 = vpop.permute.xlu0 %596
  %v607 = vsel %vm397, %v558, 0
  %v610 = vsel %vm397, %v559, 0
  %v613 = vsel %vm397, %v560, 0
  %v616 = vsel %vm397, %v561, 0
  %v619 = vsel %vm397, %v562, 0
  %v622 = vsel %vm397, %v563, 0
  %v625 = vsel %vm397, %v564, 0
  %v628 = vsel %vm397, %v565, 0
  %630 = vmatpush.msra.mxu0 0.0
  %631 = vmatpush.msra.mxu0 0.0
  %632 = vmatpush.msra.mxu0 0.0
  %633 = vmatpush.msra.mxu0 0.0
  %634 = vmatpush.msra.mxu0 0.0
  %635 = vmatpush.msra.mxu0 0.0
  %636 = vmatpush.msra.mxu0 0.0
  %637 = vmatpush.msra.mxu0 0.0
  %638 = vmatpush.msra.mxu0 %v597
  %639 = vmatpush.msra.mxu0 %v595
  %640 = vmatpush.msra.mxu0 %v593
  %641 = vmatpush.msra.mxu0 %v591
  %642 = vmatpush.msra.mxu0 %v589
  %643 = vmatpush.msra.mxu0 %v587
  %644 = vmatpush.msra.mxu0 %v585
  %645 = vmatpush.msra.mxu0 %v583
  %646 = vmatmul.f32.gmra.mxu0 %v607
  %v647 = vpop.f32.mrf.mxu0
  %v648 = vadd.f32 0.0, %v647
  %649 = vmatmul.f32.gmra.mxu0 %v610
  %v650 = vpop.f32.mrf.mxu0
  %v651 = vadd.f32 0.0, %v650
  %652 = vmatmul.f32.gmra.mxu0 %v613
  %v653 = vpop.f32.mrf.mxu0
  %v654 = vadd.f32 0.0, %v653
  %655 = vmatmul.f32.gmra.mxu0 %v616
  %v656 = vpop.f32.mrf.mxu0
  %v657 = vadd.f32 0.0, %v656
  %658 = vmatmul.f32.gmra.mxu0 %v619
  %v659 = vpop.f32.mrf.mxu0
  %v660 = vadd.f32 0.0, %v659
  %661 = vmatmul.f32.gmra.mxu0 %v622
  %v662 = vpop.f32.mrf.mxu0
  %v663 = vadd.f32 0.0, %v662
  %664 = vmatmul.f32.gmra.mxu0 %v625
  %v665 = vpop.f32.mrf.mxu0
  %v666 = vadd.f32 0.0, %v665
  %667 = vmatmul.f32.gmra.mxu0 %v628
  %v668 = vpop.f32.mrf.mxu0
  %v669 = vadd.f32 0.0, %v668
  %670 = vdwg.mxu0
  %679 = vrot.lane.b32.xlu0 %v199, 64
  %v680 = vpop.permute.xlu0 %679
  %681 = vrot.lane.b32.xlu0 %v201, 64
  %v682 = vpop.permute.xlu0 %681
  %683 = vrot.lane.b32.xlu0 %v204, 64
  %v684 = vpop.permute.xlu0 %683
  %685 = vrot.lane.b32.xlu0 %v206, 64
  %v686 = vpop.permute.xlu0 %685
  %687 = vrot.lane.b32.xlu0 %v209, 64
  %v688 = vpop.permute.xlu0 %687
  %689 = vrot.lane.b32.xlu0 %v211, 64
  %v690 = vpop.permute.xlu0 %689
  %691 = vrot.lane.b32.xlu0 %v214, 64
  %v692 = vpop.permute.xlu0 %691
  %693 = vrot.lane.b32.xlu0 %v216, 64
  %v694 = vpop.permute.xlu0 %693
  %v704 = vsel %vm397, %v566, 0
  %v707 = vsel %vm397, %v567, 0
  %v710 = vsel %vm397, %v568, 0
  %v713 = vsel %vm397, %v569, 0
  %v716 = vsel %vm397, %v570, 0
  %v719 = vsel %vm397, %v571, 0
  %v722 = vsel %vm397, %v572, 0
  %v725 = vsel %vm397, %v573, 0
  %727 = vmatpush.msra.mxu0 0.0
  %728 = vmatpush.msra.mxu0 0.0
  %729 = vmatpush.msra.mxu0 0.0
  %730 = vmatpush.msra.mxu0 0.0
  %731 = vmatpush.msra.mxu0 0.0
  %732 = vmatpush.msra.mxu0 0.0
  %733 = vmatpush.msra.mxu0 0.0
  %734 = vmatpush.msra.mxu0 0.0
  %735 = vmatpush.msra.mxu0 %v694
  %736 = vmatpush.msra.mxu0 %v692
  %737 = vmatpush.msra.mxu0 %v690
  %738 = vmatpush.msra.mxu0 %v688
  %739 = vmatpush.msra.mxu0 %v686
  %740 = vmatpush.msra.mxu0 %v684
  %741 = vmatpush.msra.mxu0 %v682
  %742 = vmatpush.msra.mxu0 %v680
  %743 = vmatmul.f32.gmra.mxu0 %v704
  %v744 = vpop.f32.mrf.mxu0
  %v745 = vadd.f32 0.0, %v744
  %746 = vmatmul.f32.gmra.mxu0 %v707
  %v747 = vpop.f32.mrf.mxu0
  %v748 = vadd.f32 0.0, %v747
  %749 = vmatmul.f32.gmra.mxu0 %v710
  %v750 = vpop.f32.mrf.mxu0
  %v751 = vadd.f32 0.0, %v750
  %752 = vmatmul.f32.gmra.mxu0 %v713
  %v753 = vpop.f32.mrf.mxu0
  %v754 = vadd.f32 0.0, %v753
  %755 = vmatmul.f32.gmra.mxu0 %v716
  %v756 = vpop.f32.mrf.mxu0
  %v757 = vadd.f32 0.0, %v756
  %758 = vmatmul.f32.gmra.mxu0 %v719
  %v759 = vpop.f32.mrf.mxu0
  %v760 = vadd.f32 0.0, %v759
  %761 = vmatmul.f32.gmra.mxu0 %v722
  %v762 = vpop.f32.mrf.mxu0
  %v763 = vadd.f32 0.0, %v762
  %764 = vmatmul.f32.gmra.mxu0 %v725
  %v765 = vpop.f32.mrf.mxu0
  %v766 = vadd.f32 0.0, %v765
  %767 = vdwg.mxu0
  %v768 = vpack.c.bf16 %v651, %v648
  %v769 = vpack.c.bf16 %v657, %v654
  %v770 = vpack.c.bf16 %v663, %v660
  %v771 = vpack.c.bf16 %v669, %v666
  %v772 = vpack.c.bf16 %v748, %v745
  %v773 = vpack.c.bf16 %v754, %v751
  %v774 = vpack.c.bf16 %v760, %v757
  %v775 = vpack.c.bf16 %v766, %v763
  %v776 = vld [vmem:[%s5] sm:$0xf]
  %777 = vrot.lane.b32.xlu0 %v250, 120
  %v778 = vpop.permute.xlu0 %777
  %779 = vrot.lane.b32.xlu0 %v251, 120
  %v780 = vpop.permute.xlu0 %779
  %781 = vrot.lane.b32.xlu0 %v252, 120
  %v782 = vpop.permute.xlu0 %781
  %783 = vrot.lane.b32.xlu0 %v253, 120
  %v784 = vpop.permute.xlu0 %783
  %785 = vrot.lane.b32.xlu0 %v250, 88
  %v786 = vpop.permute.xlu0 %785
  %787 = vrot.lane.b32.xlu0 %v251, 88
  %v788 = vpop.permute.xlu0 %787
  %789 = vrot.lane.b32.xlu0 %v252, 88
  %v790 = vpop.permute.xlu0 %789
  %791 = vrot.lane.b32.xlu0 %v253, 88
  %v792 = vpop.permute.xlu0 %791
  %v794 = vsel %vm262, %v778, 0
  %v797 = vsel %vm262, %v780, 0
  %v800 = vsel %vm262, %v782, 0
  %v803 = vsel %vm262, %v784, 0
  %v806 = vsel %vm262, %v786, 0
  %v809 = vsel %vm262, %v788, 0
  %v812 = vsel %vm262, %v790, 0
  %v815 = vsel %vm262, %v792, 0
  %817 = vmatpush.bf16.xpose.msra.mxu0 0
  %818 = vmatpush.bf16.xpose.msra.mxu0 0
  %819 = vmatpush.bf16.xpose.msra.mxu0 0
  %820 = vmatpush.bf16.xpose.msra.mxu0 0
  %821 = vmatpush.bf16.xpose.msra.mxu0 %v815
  %822 = vmatpush.bf16.xpose.msra.mxu0 %v812
  %823 = vmatpush.bf16.xpose.msra.mxu0 %v809
  %824 = vmatpush.bf16.xpose.msra.mxu0 %v806
  %825 = vmatmul.bf16.gmra.mxu0 %v794
  %v826 = vpop.f32.mrf.mxu0
  %v827 = vadd.f32 0.0, %v826
  %v828 = vpop.f32.mrf.mxu0
  %v829 = vadd.f32 0.0, %v828
  %830 = vmatmul.bf16.gmra.mxu0 %v797
  %v831 = vpop.f32.mrf.mxu0
  %v832 = vadd.f32 0.0, %v831
  %v833 = vpop.f32.mrf.mxu0
  %v834 = vadd.f32 0.0, %v833
  %835 = vmatmul.bf16.gmra.mxu0 %v800
  %v836 = vpop.f32.mrf.mxu0
  %v837 = vadd.f32 0.0, %v836
  %v838 = vpop.f32.mrf.mxu0
  %v839 = vadd.f32 0.0, %v838
  %840 = vmatmul.bf16.gmra.mxu0 %v803
  %v841 = vpop.f32.mrf.mxu0
  %v842 = vadd.f32 0.0, %v841
  %v843 = vpop.f32.mrf.mxu0
  %v844 = vadd.f32 0.0, %v843
  %845 = vdwg.mxu0
  %846 = vrot.lane.b32.xlu0 %v332, 120
  %v847 = vpop.permute.xlu0 %846
  %848 = vrot.lane.b32.xlu0 %v333, 120
  %v849 = vpop.permute.xlu0 %848
  %850 = vrot.lane.b32.xlu0 %v334, 120
  %v851 = vpop.permute.xlu0 %850
  %852 = vrot.lane.b32.xlu0 %v335, 120
  %v853 = vpop.permute.xlu0 %852
  %854 = vrot.lane.b32.xlu0 %v332, 88
  %v855 = vpop.permute.xlu0 %854
  %856 = vrot.lane.b32.xlu0 %v333, 88
  %v857 = vpop.permute.xlu0 %856
  %858 = vrot.lane.b32.xlu0 %v334, 88
  %v859 = vpop.permute.xlu0 %858
  %860 = vrot.lane.b32.xlu0 %v335, 88
  %v861 = vpop.permute.xlu0 %860
  %v863 = vsel %vm262, %v847, 0
  %v866 = vsel %vm262, %v849, 0
  %v869 = vsel %vm262, %v851, 0
  %v872 = vsel %vm262, %v853, 0
  %v875 = vsel %vm262, %v855, 0
  %v878 = vsel %vm262, %v857, 0
  %v881 = vsel %vm262, %v859, 0
  %v884 = vsel %vm262, %v861, 0
  %886 = vmatpush.bf16.xpose.msra.mxu0 0
  %887 = vmatpush.bf16.xpose.msra.mxu0 0
  %888 = vmatpush.bf16.xpose.msra.mxu0 0
  %889 = vmatpush.bf16.xpose.msra.mxu0 0
  %890 = vmatpush.bf16.xpose.msra.mxu0 %v884
  %891 = vmatpush.bf16.xpose.msra.mxu0 %v881
  %892 = vmatpush.bf16.xpose.msra.mxu0 %v878
  %893 = vmatpush.bf16.xpose.msra.mxu0 %v875
  %894 = vmatmul.bf16.gmra.mxu0 %v863
  %v895 = vpop.f32.mrf.mxu0
  %v896 = vadd.f32 0.0, %v895
  %v897 = vpop.f32.mrf.mxu0
  %v898 = vadd.f32 0.0, %v897
  %899 = vmatmul.bf16.gmra.mxu0 %v866
  %v900 = vpop.f32.mrf.mxu0
  %v901 = vadd.f32 0.0, %v900
  %v902 = vpop.f32.mrf.mxu0
  %v903 = vadd.f32 0.0, %v902
  %904 = vmatmul.bf16.gmra.mxu0 %v869
  %v905 = vpop.f32.mrf.mxu0
  %v906 = vadd.f32 0.0, %v905
  %v907 = vpop.f32.mrf.mxu0
  %v908 = vadd.f32 0.0, %v907
  %909 = vmatmul.bf16.gmra.mxu0 %v872
  %v910 = vpop.f32.mrf.mxu0
  %v911 = vadd.f32 0.0, %v910
  %v912 = vpop.f32.mrf.mxu0
  %v913 = vadd.f32 0.0, %v912
  %914 = vdwg.mxu0
  %v915 = vsel %vm397, %v827, -inf
  %916 = vmax.xlane.f32.xlu0 %v915
  %v917 = vpop.xlane.xlu0 %916
  %v918 = vsel %vm397, %v829, -inf
  %919 = vmax.xlane.f32.xlu0 %v918
  %v920 = vpop.xlane.xlu0 %919
  %v921 = vsel %vm397, %v832, -inf
  %922 = vmax.xlane.f32.xlu0 %v921
  %v923 = vpop.xlane.xlu0 %922
  %v924 = vsel %vm397, %v834, -inf
  %925 = vmax.xlane.f32.xlu0 %v924
  %v926 = vpop.xlane.xlu0 %925
  %v927 = vsel %vm397, %v837, -inf
  %928 = vmax.xlane.f32.xlu0 %v927
  %v929 = vpop.xlane.xlu0 %928
  %v930 = vsel %vm397, %v839, -inf
  %931 = vmax.xlane.f32.xlu0 %v930
  %v932 = vpop.xlane.xlu0 %931
  %v933 = vsel %vm397, %v842, -inf
  %934 = vmax.xlane.f32.xlu0 %v933
  %v935 = vpop.xlane.xlu0 %934
  %v936 = vsel %vm397, %v844, -inf
  %937 = vmax.xlane.f32.xlu0 %v936
  %v938 = vpop.xlane.xlu0 %937
  %v939 = vsel %vm397, %v896, -inf
  %940 = vmax.xlane.f32.xlu0 %v939
  %v941 = vpop.xlane.xlu0 %940
  %v942 = vsel %vm397, %v898, -inf
  %943 = vmax.xlane.f32.xlu0 %v942
  %v944 = vpop.xlane.xlu0 %943
  %v945 = vsel %vm397, %v901, -inf
  %946 = vmax.xlane.f32.xlu0 %v945
  %v947 = vpop.xlane.xlu0 %946
  %v948 = vsel %vm397, %v903, -inf
  %949 = vmax.xlane.f32.xlu0 %v948
  %v950 = vpop.xlane.xlu0 %949
  %v951 = vsel %vm397, %v906, -inf
  %952 = vmax.xlane.f32.xlu0 %v951
  %v953 = vpop.xlane.xlu0 %952
  %v954 = vsel %vm397, %v908, -inf
  %955 = vmax.xlane.f32.xlu0 %v954
  %v956 = vpop.xlane.xlu0 %955
  %v957 = vsel %vm397, %v911, -inf
  %958 = vmax.xlane.f32.xlu0 %v957
  %v959 = vpop.xlane.xlu0 %958
  %v960 = vsel %vm397, %v913, -inf
  %961 = vmax.xlane.f32.xlu0 %v960
  %v962 = vpop.xlane.xlu0 %961
  %v963 = vsub.f32 %v827, %v917
  %v964 = vsub.f32 %v829, %v920
  %v965 = vsub.f32 %v832, %v923
  %v966 = vsub.f32 %v834, %v926
  %v967 = vsub.f32 %v837, %v929
  %v968 = vsub.f32 %v839, %v932
  %v969 = vsub.f32 %v842, %v935
  %v970 = vsub.f32 %v844, %v938
  %v971 = vsub.f32 %v896, %v941
  %v972 = vsub.f32 %v898, %v944
  %v973 = vsub.f32 %v901, %v947
  %v974 = vsub.f32 %v903, %v950
  %v975 = vsub.f32 %v906, %v953
  %v976 = vsub.f32 %v908, %v956
  %v977 = vsub.f32 %v911, %v959
  %v978 = vsub.f32 %v913, %v962
  %v979 = vmul.f32 %v963, 1.442695
  %v980 = vpow.pop %v979
  %v981 = vmul.f32 %v964, 1.442695
  %v982 = vpow.pop %v981
  %v983 = vmul.f32 %v965, 1.442695
  %v984 = vpow.pop %v983
  %v985 = vmul.f32 %v966, 1.442695
  %v986 = vpow.pop %v985
  %v987 = vmul.f32 %v967, 1.442695
  %v988 = vpow.pop %v987
  %v989 = vmul.f32 %v968, 1.442695
  %v990 = vpow.pop %v989
  %v991 = vmul.f32 %v969, 1.442695
  %v992 = vpow.pop %v991
  %v993 = vmul.f32 %v970, 1.442695
  %v994 = vpow.pop %v993
  %v995 = vmul.f32 %v971, 1.442695
  %v996 = vpow.pop %v995
  %v997 = vmul.f32 %v972, 1.442695
  %v998 = vpow.pop %v997
  %v999 = vmul.f32 %v973, 1.442695
  %v1000 = vpow.pop %v999
  %v1001 = vmul.f32 %v974, 1.442695
  %v1002 = vpow.pop %v1001
  %v1003 = vmul.f32 %v975, 1.442695
  %v1004 = vpow.pop %v1003
  %v1005 = vmul.f32 %v976, 1.442695
  %v1006 = vpow.pop %v1005
  %v1007 = vmul.f32 %v977, 1.442695
  %v1008 = vpow.pop %v1007
  %v1009 = vmul.f32 %v978, 1.442695
  %v1010 = vpow.pop %v1009
  %v1011 = vsel %vm397, %v980, 0.0
  %1012 = vadd.xlane.f32.xlu0 %v1011
  %v1013 = vpop.xlane.xlu0 %1012
  %v1014 = vsel %vm397, %v982, 0.0
  %1015 = vadd.xlane.f32.xlu0 %v1014
  %v1016 = vpop.xlane.xlu0 %1015
  %v1017 = vsel %vm397, %v984, 0.0
  %1018 = vadd.xlane.f32.xlu0 %v1017
  %v1019 = vpop.xlane.xlu0 %1018
  %v1020 = vsel %vm397, %v986, 0.0
  %1021 = vadd.xlane.f32.xlu0 %v1020
  %v1022 = vpop.xlane.xlu0 %1021
  %v1023 = vsel %vm397, %v988, 0.0
  %1024 = vadd.xlane.f32.xlu0 %v1023
  %v1025 = vpop.xlane.xlu0 %1024
  %v1026 = vsel %vm397, %v990, 0.0
  %1027 = vadd.xlane.f32.xlu0 %v1026
  %v1028 = vpop.xlane.xlu0 %1027
  %v1029 = vsel %vm397, %v992, 0.0
  %1030 = vadd.xlane.f32.xlu0 %v1029
  %v1031 = vpop.xlane.xlu0 %1030
  %v1032 = vsel %vm397, %v994, 0.0
  %1033 = vadd.xlane.f32.xlu0 %v1032
  %v1034 = vpop.xlane.xlu0 %1033
  %v1035 = vsel %vm397, %v996, 0.0
  %1036 = vadd.xlane.f32.xlu0 %v1035
  %v1037 = vpop.xlane.xlu0 %1036
  %v1038 = vsel %vm397, %v998, 0.0
  %1039 = vadd.xlane.f32.xlu0 %v1038
  %v1040 = vpop.xlane.xlu0 %1039
  %v1041 = vsel %vm397, %v1000, 0.0
  %1042 = vadd.xlane.f32.xlu0 %v1041
  %v1043 = vpop.xlane.xlu0 %1042
  %v1044 = vsel %vm397, %v1002, 0.0
  %1045 = vadd.xlane.f32.xlu0 %v1044
  %v1046 = vpop.xlane.xlu0 %1045
  %v1047 = vsel %vm397, %v1004, 0.0
  %1048 = vadd.xlane.f32.xlu0 %v1047
  %v1049 = vpop.xlane.xlu0 %1048
  %v1050 = vsel %vm397, %v1006, 0.0
  %1051 = vadd.xlane.f32.xlu0 %v1050
  %v1052 = vpop.xlane.xlu0 %1051
  %v1053 = vsel %vm397, %v1008, 0.0
  %1054 = vadd.xlane.f32.xlu0 %v1053
  %v1055 = vpop.xlane.xlu0 %1054
  %v1056 = vsel %vm397, %v1010, 0.0
  %1057 = vadd.xlane.f32.xlu0 %v1056
  %v1058 = vpop.xlane.xlu0 %1057
  %v1059 = vrcp.pop %v1013
  %v1060 = vrcp.pop %v1016
  %v1061 = vrcp.pop %v1019
  %v1062 = vrcp.pop %v1022
  %v1063 = vrcp.pop %v1025
  %v1064 = vrcp.pop %v1028
  %v1065 = vrcp.pop %v1031
  %v1066 = vrcp.pop %v1034
  %v1067 = vrcp.pop %v1037
  %v1068 = vrcp.pop %v1040
  %v1069 = vrcp.pop %v1043
  %v1070 = vrcp.pop %v1046
  %v1071 = vrcp.pop %v1049
  %v1072 = vrcp.pop %v1052
  %v1073 = vrcp.pop %v1055
  %v1074 = vrcp.pop %v1058
  %v1075 = vmul.f32 %v980, %v1059
  %v1076 = vmul.f32 %v982, %v1060
  %v1077 = vmul.f32 %v984, %v1061
  %v1078 = vmul.f32 %v986, %v1062
  %v1079 = vmul.f32 %v988, %v1063
  %v1080 = vmul.f32 %v990, %v1064
  %v1081 = vmul.f32 %v992, %v1065
  %v1082 = vmul.f32 %v994, %v1066
  %v1083 = vmul.f32 %v996, %v1067
  %v1084 = vmul.f32 %v998, %v1068
  %v1085 = vmul.f32 %v1000, %v1069
  %v1086 = vmul.f32 %v1002, %v1070
  %v1087 = vmul.f32 %v1004, %v1071
  %v1088 = vmul.f32 %v1006, %v1072
  %v1089 = vmul.f32 %v1008, %v1073
  %v1090 = vmul.f32 %v1010, %v1074
  %1091 = vrot.lane.b32.xlu0 %v179, 56
  %v1092 = vpop.permute.xlu0 %1091
  %1093 = vrot.lane.b32.xlu0 %v181, 56
  %v1094 = vpop.permute.xlu0 %1093
  %1095 = vrot.lane.b32.xlu0 %v184, 56
  %v1096 = vpop.permute.xlu0 %1095
  %1097 = vrot.lane.b32.xlu0 %v186, 56
  %v1098 = vpop.permute.xlu0 %1097
  %1099 = vrot.lane.b32.xlu0 %v189, 56
  %v1100 = vpop.permute.xlu0 %1099
  %1101 = vrot.lane.b32.xlu0 %v191, 56
  %v1102 = vpop.permute.xlu0 %1101
  %1103 = vrot.lane.b32.xlu0 %v194, 56
  %v1104 = vpop.permute.xlu0 %1103
  %1105 = vrot.lane.b32.xlu0 %v196, 56
  %v1106 = vpop.permute.xlu0 %1105
  %v1116 = vsel %vm397, %v1075, 0
  %v1119 = vsel %vm397, %v1076, 0
  %v1122 = vsel %vm397, %v1077, 0
  %v1125 = vsel %vm397, %v1078, 0
  %v1128 = vsel %vm397, %v1079, 0
  %v1131 = vsel %vm397, %v1080, 0
  %v1134 = vsel %vm397, %v1081, 0
  %v1137 = vsel %vm397, %v1082, 0
  %1139 = vmatpush.msra.mxu0 0.0
  %1140 = vmatpush.msra.mxu0 0.0
  %1141 = vmatpush.msra.mxu0 0.0
  %1142 = vmatpush.msra.mxu0 0.0
  %1143 = vmatpush.msra.mxu0 0.0
  %1144 = vmatpush.msra.mxu0 0.0
  %1145 = vmatpush.msra.mxu0 0.0
  %1146 = vmatpush.msra.mxu0 0.0
  %1147 = vmatpush.msra.mxu0 %v1106
  %1148 = vmatpush.msra.mxu0 %v1104
  %1149 = vmatpush.msra.mxu0 %v1102
  %1150 = vmatpush.msra.mxu0 %v1100
  %1151 = vmatpush.msra.mxu0 %v1098
  %1152 = vmatpush.msra.mxu0 %v1096
  %1153 = vmatpush.msra.mxu0 %v1094
  %1154 = vmatpush.msra.mxu0 %v1092
  %1155 = vmatmul.f32.gmra.mxu0 %v1116
  %v1156 = vpop.f32.mrf.mxu0
  %v1157 = vadd.f32 0.0, %v1156
  %1158 = vmatmul.f32.gmra.mxu0 %v1119
  %v1159 = vpop.f32.mrf.mxu0
  %v1160 = vadd.f32 0.0, %v1159
  %1161 = vmatmul.f32.gmra.mxu0 %v1122
  %v1162 = vpop.f32.mrf.mxu0
  %v1163 = vadd.f32 0.0, %v1162
  %1164 = vmatmul.f32.gmra.mxu0 %v1125
  %v1165 = vpop.f32.mrf.mxu0
  %v1166 = vadd.f32 0.0, %v1165
  %1167 = vmatmul.f32.gmra.mxu0 %v1128
  %v1168 = vpop.f32.mrf.mxu0
  %v1169 = vadd.f32 0.0, %v1168
  %1170 = vmatmul.f32.gmra.mxu0 %v1131
  %v1171 = vpop.f32.mrf.mxu0
  %v1172 = vadd.f32 0.0, %v1171
  %1173 = vmatmul.f32.gmra.mxu0 %v1134
  %v1174 = vpop.f32.mrf.mxu0
  %v1175 = vadd.f32 0.0, %v1174
  %1176 = vmatmul.f32.gmra.mxu0 %v1137
  %v1177 = vpop.f32.mrf.mxu0
  %v1178 = vadd.f32 0.0, %v1177
  %1179 = vdwg.mxu0
  %1180 = vrot.lane.b32.xlu0 %v199, 56
  %v1181 = vpop.permute.xlu0 %1180
  %1182 = vrot.lane.b32.xlu0 %v201, 56
  %v1183 = vpop.permute.xlu0 %1182
  %1184 = vrot.lane.b32.xlu0 %v204, 56
  %v1185 = vpop.permute.xlu0 %1184
  %1186 = vrot.lane.b32.xlu0 %v206, 56
  %v1187 = vpop.permute.xlu0 %1186
  %1188 = vrot.lane.b32.xlu0 %v209, 56
  %v1189 = vpop.permute.xlu0 %1188
  %1190 = vrot.lane.b32.xlu0 %v211, 56
  %v1191 = vpop.permute.xlu0 %1190
  %1192 = vrot.lane.b32.xlu0 %v214, 56
  %v1193 = vpop.permute.xlu0 %1192
  %1194 = vrot.lane.b32.xlu0 %v216, 56
  %v1195 = vpop.permute.xlu0 %1194
  %v1205 = vsel %vm397, %v1083, 0
  %v1208 = vsel %vm397, %v1084, 0
  %v1211 = vsel %vm397, %v1085, 0
  %v1214 = vsel %vm397, %v1086, 0
  %v1217 = vsel %vm397, %v1087, 0
  %v1220 = vsel %vm397, %v1088, 0
  %v1223 = vsel %vm397, %v1089, 0
  %v1226 = vsel %vm397, %v1090, 0
  %1228 = vmatpush.msra.mxu0 0.0
  %1229 = vmatpush.msra.mxu0 0.0
  %1230 = vmatpush.msra.mxu0 0.0
  %1231 = vmatpush.msra.mxu0 0.0
  %1232 = vmatpush.msra.mxu0 0.0
  %1233 = vmatpush.msra.mxu0 0.0
  %1234 = vmatpush.msra.mxu0 0.0
  %1235 = vmatpush.msra.mxu0 0.0
  %1236 = vmatpush.msra.mxu0 %v1195
  %1237 = vmatpush.msra.mxu0 %v1193
  %1238 = vmatpush.msra.mxu0 %v1191
  %1239 = vmatpush.msra.mxu0 %v1189
  %1240 = vmatpush.msra.mxu0 %v1187
  %1241 = vmatpush.msra.mxu0 %v1185
  %1242 = vmatpush.msra.mxu0 %v1183
  %1243 = vmatpush.msra.mxu0 %v1181
  %1244 = vmatmul.f32.gmra.mxu0 %v1205
  %v1245 = vpop.f32.mrf.mxu0
  %v1246 = vadd.f32 0.0, %v1245
  %1247 = vmatmul.f32.gmra.mxu0 %v1208
  %v1248 = vpop.f32.mrf.mxu0
  %v1249 = vadd.f32 0.0, %v1248
  %1250 = vmatmul.f32.gmra.mxu0 %v1211
  %v1251 = vpop.f32.mrf.mxu0
  %v1252 = vadd.f32 0.0, %v1251
  %1253 = vmatmul.f32.gmra.mxu0 %v1214
  %v1254 = vpop.f32.mrf.mxu0
  %v1255 = vadd.f32 0.0, %v1254
  %1256 = vmatmul.f32.gmra.mxu0 %v1217
  %v1257 = vpop.f32.mrf.mxu0
  %v1258 = vadd.f32 0.0, %v1257
  %1259 = vmatmul.f32.gmra.mxu0 %v1220
  %v1260 = vpop.f32.mrf.mxu0
  %v1261 = vadd.f32 0.0, %v1260
  %1262 = vmatmul.f32.gmra.mxu0 %v1223
  %v1263 = vpop.f32.mrf.mxu0
  %v1264 = vadd.f32 0.0, %v1263
  %1265 = vmatmul.f32.gmra.mxu0 %v1226
  %v1266 = vpop.f32.mrf.mxu0
  %v1267 = vadd.f32 0.0, %v1266
  %1268 = vdwg.mxu0
  %v1269 = vpack.c.bf16 %v1160, %v1157
  %v1270 = vpack.c.bf16 %v1166, %v1163
  %v1271 = vpack.c.bf16 %v1172, %v1169
  %v1272 = vpack.c.bf16 %v1178, %v1175
  %v1273 = vpack.c.bf16 %v1249, %v1246
  %v1274 = vpack.c.bf16 %v1255, %v1252
  %v1275 = vpack.c.bf16 %v1261, %v1258
  %v1276 = vpack.c.bf16 %v1267, %v1264
  %s1277 = scalar_lea.vmem %s5, 4
  %v1278 = vld [vmem:[%s1277] sm:$0xf]
  %v1280 = vsel %vm262, %v1269, 0
  %v1283 = vsel %vm262, %v1270, 0
  %v1286 = vsel %vm262, %v1271, 0
  %v1289 = vsel %vm262, %v1272, 0
  %v1292 = vsel %vm262, %v1273, 0
  %v1295 = vsel %vm262, %v1274, 0
  %v1298 = vsel %vm262, %v1275, 0
  %v1301 = vsel %vm262, %v1276, 0
  %vm1303 = vcmask 1043456
  %v1305 = vsel %vm1303, %v1278, 0
  %1307 = vmatpush.bf16.msra.mxu0 0
  %1308 = vmatpush.bf16.msra.mxu0 0
  %1309 = vmatpush.bf16.msra.mxu0 0
  %1310 = vmatpush.bf16.msra.mxu0 0
  %1311 = vmatpush.bf16.msra.mxu0 0
  %1312 = vmatpush.bf16.msra.mxu0 0
  %1313 = vmatpush.bf16.msra.mxu0 0
  %1314 = vmatpush.bf16.msra.mxu0 %v1305
  %1315 = vmatmul.bf16.gmra.mxu0 %v1280
  %v1316 = vpop.f32.mrf.mxu0
  %v1317 = vadd.f32 0.0, %v1316
  %v1318 = vpop.f32.mrf.mxu0
  %v1319 = vadd.f32 0.0, %v1318
  %1320 = vmatmul.bf16.gmra.mxu0 %v1283
  %v1321 = vpop.f32.mrf.mxu0
  %v1322 = vadd.f32 0.0, %v1321
  %v1323 = vpop.f32.mrf.mxu0
  %v1324 = vadd.f32 0.0, %v1323
  %1325 = vmatmul.bf16.gmra.mxu0 %v1286
  %v1326 = vpop.f32.mrf.mxu0
  %v1327 = vadd.f32 0.0, %v1326
  %v1328 = vpop.f32.mrf.mxu0
  %v1329 = vadd.f32 0.0, %v1328
  %1330 = vmatmul.bf16.gmra.mxu0 %v1289
  %v1331 = vpop.f32.mrf.mxu0
  %v1332 = vadd.f32 0.0, %v1331
  %v1333 = vpop.f32.mrf.mxu0
  %v1334 = vadd.f32 0.0, %v1333
  %1335 = vmatmul.bf16.gmra.mxu0 %v1292
  %v1336 = vpop.f32.mrf.mxu0
  %v1337 = vadd.f32 0.0, %v1336
  %v1338 = vpop.f32.mrf.mxu0
  %v1339 = vadd.f32 0.0, %v1338
  %1340 = vmatmul.bf16.gmra.mxu0 %v1295
  %v1341 = vpop.f32.mrf.mxu0
  %v1342 = vadd.f32 0.0, %v1341
  %v1343 = vpop.f32.mrf.mxu0
  %v1344 = vadd.f32 0.0, %v1343
  %1345 = vmatmul.bf16.gmra.mxu0 %v1298
  %v1346 = vpop.f32.mrf.mxu0
  %v1347 = vadd.f32 0.0, %v1346
  %v1348 = vpop.f32.mrf.mxu0
  %v1349 = vadd.f32 0.0, %v1348
  %1350 = vmatmul.bf16.gmra.mxu0 %v1301
  %v1351 = vpop.f32.mrf.mxu0
  %v1352 = vadd.f32 0.0, %v1351
  %v1353 = vpop.f32.mrf.mxu0
  %v1354 = vadd.f32 0.0, %v1353
  %1355 = vdwg.mxu0
  %v1357 = vsel %vm262, %v768, 0
  %v1360 = vsel %vm262, %v769, 0
  %v1363 = vsel %vm262, %v770, 0
  %v1366 = vsel %vm262, %v771, 0
  %v1369 = vsel %vm262, %v772, 0
  %v1372 = vsel %vm262, %v773, 0
  %v1375 = vsel %vm262, %v774, 0
  %v1378 = vsel %vm262, %v775, 0
  %v1381 = vsel %vm1303, %v776, 0
  %1383 = vmatpush.bf16.msra.mxu0 0
  %1384 = vmatpush.bf16.msra.mxu0 0
  %1385 = vmatpush.bf16.msra.mxu0 0
  %1386 = vmatpush.bf16.msra.mxu0 0
  %1387 = vmatpush.bf16.msra.mxu0 0
  %1388 = vmatpush.bf16.msra.mxu0 0
  %1389 = vmatpush.bf16.msra.mxu0 0
  %1390 = vmatpush.bf16.msra.mxu0 %v1381
  %1391 = vmatmul.bf16.gmra.mxu0 %v1357
  %v1392 = vpop.f32.mrf.mxu0
  %v1393 = vadd.f32 %v1317, %v1392
  %v1394 = vpop.f32.mrf.mxu0
  %v1395 = vadd.f32 %v1319, %v1394
  %1396 = vmatmul.bf16.gmra.mxu0 %v1360
  %v1397 = vpop.f32.mrf.mxu0
  %v1398 = vadd.f32 %v1322, %v1397
  %v1399 = vpop.f32.mrf.mxu0
  %v1400 = vadd.f32 %v1324, %v1399
  %1401 = vmatmul.bf16.gmra.mxu0 %v1363
  %v1402 = vpop.f32.mrf.mxu0
  %v1403 = vadd.f32 %v1327, %v1402
  %v1404 = vpop.f32.mrf.mxu0
  %v1405 = vadd.f32 %v1329, %v1404
  %1406 = vmatmul.bf16.gmra.mxu0 %v1366
  %v1407 = vpop.f32.mrf.mxu0
  %v1408 = vadd.f32 %v1332, %v1407
  %v1409 = vpop.f32.mrf.mxu0
  %v1410 = vadd.f32 %v1334, %v1409
  %1411 = vmatmul.bf16.gmra.mxu0 %v1369
  %v1412 = vpop.f32.mrf.mxu0
  %v1413 = vadd.f32 %v1337, %v1412
  %v1414 = vpop.f32.mrf.mxu0
  %v1415 = vadd.f32 %v1339, %v1414
  %1416 = vmatmul.bf16.gmra.mxu0 %v1372
  %v1417 = vpop.f32.mrf.mxu0
  %v1418 = vadd.f32 %v1342, %v1417
  %v1419 = vpop.f32.mrf.mxu0
  %v1420 = vadd.f32 %v1344, %v1419
  %1421 = vmatmul.bf16.gmra.mxu0 %v1375
  %v1422 = vpop.f32.mrf.mxu0
  %v1423 = vadd.f32 %v1347, %v1422
  %v1424 = vpop.f32.mrf.mxu0
  %v1425 = vadd.f32 %v1349, %v1424
  %1426 = vmatmul.bf16.gmra.mxu0 %v1378
  %v1427 = vpop.f32.mrf.mxu0
  %v1428 = vadd.f32 %v1352, %v1427
  %v1429 = vpop.f32.mrf.mxu0
  %v1430 = vadd.f32 %v1354, %v1429
  %1431 = vdwg.mxu0
  %1432 = vrot.lane.b32.xlu0 %v250, 112
  %v1433 = vpop.permute.xlu0 %1432
  %1434 = vrot.lane.b32.xlu0 %v251, 112
  %v1435 = vpop.permute.xlu0 %1434
  %1436 = vrot.lane.b32.xlu0 %v252, 112
  %v1437 = vpop.permute.xlu0 %1436
  %1438 = vrot.lane.b32.xlu0 %v253, 112
  %v1439 = vpop.permute.xlu0 %1438
  %1440 = vrot.lane.b32.xlu0 %v250, 80
  %v1441 = vpop.permute.xlu0 %1440
  %1442 = vrot.lane.b32.xlu0 %v251, 80
  %v1443 = vpop.permute.xlu0 %1442
  %1444 = vrot.lane.b32.xlu0 %v252, 80
  %v1445 = vpop.permute.xlu0 %1444
  %1446 = vrot.lane.b32.xlu0 %v253, 80
  %v1447 = vpop.permute.xlu0 %1446
  %v1449 = vsel %vm262, %v1433, 0
  %v1452 = vsel %vm262, %v1435, 0
  %v1455 = vsel %vm262, %v1437, 0
  %v1458 = vsel %vm262, %v1439, 0
  %v1461 = vsel %vm262, %v1441, 0
  %v1464 = vsel %vm262, %v1443, 0
  %v1467 = vsel %vm262, %v1445, 0
  %v1470 = vsel %vm262, %v1447, 0
  %1472 = vmatpush.bf16.xpose.msra.mxu0 0
  %1473 = vmatpush.bf16.xpose.msra.mxu0 0
  %1474 = vmatpush.bf16.xpose.msra.mxu0 0
  %1475 = vmatpush.bf16.xpose.msra.mxu0 0
  %1476 = vmatpush.bf16.xpose.msra.mxu0 %v1470
  %1477 = vmatpush.bf16.xpose.msra.mxu0 %v1467
  %1478 = vmatpush.bf16.xpose.msra.mxu0 %v1464
  %1479 = vmatpush.bf16.xpose.msra.mxu0 %v1461
  %1480 = vmatmul.bf16.gmra.mxu0 %v1449
  %v1481 = vpop.f32.mrf.mxu0
  %v1482 = vadd.f32 0.0, %v1481
  %v1483 = vpop.f32.mrf.mxu0
  %v1484 = vadd.f32 0.0, %v1483
  %1485 = vmatmul.bf16.gmra.mxu0 %v1452
  %v1486 = vpop.f32.mrf.mxu0
  %v1487 = vadd.f32 0.0, %v1486
  %v1488 = vpop.f32.mrf.mxu0
  %v1489 = vadd.f32 0.0, %v1488
  %1490 = vmatmul.bf16.gmra.mxu0 %v1455
  %v1491 = vpop.f32.mrf.mxu0
  %v1492 = vadd.f32 0.0, %v1491
  %v1493 = vpop.f32.mrf.mxu0
  %v1494 = vadd.f32 0.0, %v1493
  %1495 = vmatmul.bf16.gmra.mxu0 %v1458
  %v1496 = vpop.f32.mrf.mxu0
  %v1497 = vadd.f32 0.0, %v1496
  %v1498 = vpop.f32.mrf.mxu0
  %v1499 = vadd.f32 0.0, %v1498
  %1500 = vdwg.mxu0
  %1501 = vrot.lane.b32.xlu0 %v332, 112
  %v1502 = vpop.permute.xlu0 %1501
  %1503 = vrot.lane.b32.xlu0 %v333, 112
  %v1504 = vpop.permute.xlu0 %1503
  %1505 = vrot.lane.b32.xlu0 %v334, 112
  %v1506 = vpop.permute.xlu0 %1505
  %1507 = vrot.lane.b32.xlu0 %v335, 112
  %v1508 = vpop.permute.xlu0 %1507
  %1509 = vrot.lane.b32.xlu0 %v332, 80
  %v1510 = vpop.permute.xlu0 %1509
  %1511 = vrot.lane.b32.xlu0 %v333, 80
  %v1512 = vpop.permute.xlu0 %1511
  %1513 = vrot.lane.b32.xlu0 %v334, 80
  %v1514 = vpop.permute.xlu0 %1513
  %1515 = vrot.lane.b32.xlu0 %v335, 80
  %v1516 = vpop.permute.xlu0 %1515
  %v1518 = vsel %vm262, %v1502, 0
  %v1521 = vsel %vm262, %v1504, 0
  %v1524 = vsel %vm262, %v1506, 0
  %v1527 = vsel %vm262, %v1508, 0
  %v1530 = vsel %vm262, %v1510, 0
  %v1533 = vsel %vm262, %v1512, 0
  %v1536 = vsel %vm262, %v1514, 0
  %v1539 = vsel %vm262, %v1516, 0
  %1541 = vmatpush.bf16.xpose.msra.mxu0 0
  %1542 = vmatpush.bf16.xpose.msra.mxu0 0
  %1543 = vmatpush.bf16.xpose.msra.mxu0 0
  %1544 = vmatpush.bf16.xpose.msra.mxu0 0
  %1545 = vmatpush.bf16.xpose.msra.mxu0 %v1539
  %1546 = vmatpush.bf16.xpose.msra.mxu0 %v1536
  %1547 = vmatpush.bf16.xpose.msra.mxu0 %v1533
  %1548 = vmatpush.bf16.xpose.msra.mxu0 %v1530
  %1549 = vmatmul.bf16.gmra.mxu0 %v1518
  %v1550 = vpop.f32.mrf.mxu0
  %v1551 = vadd.f32 0.0, %v1550
  %v1552 = vpop.f32.mrf.mxu0
  %v1553 = vadd.f32 0.0, %v1552
  %1554 = vmatmul.bf16.gmra.mxu0 %v1521
  %v1555 = vpop.f32.mrf.mxu0
  %v1556 = vadd.f32 0.0, %v1555
  %v1557 = vpop.f32.mrf.mxu0
  %v1558 = vadd.f32 0.0, %v1557
  %1559 = vmatmul.bf16.gmra.mxu0 %v1524
  %v1560 = vpop.f32.mrf.mxu0
  %v1561 = vadd.f32 0.0, %v1560
  %v1562 = vpop.f32.mrf.mxu0
  %v1563 = vadd.f32 0.0, %v1562
  %1564 = vmatmul.bf16.gmra.mxu0 %v1527
  %v1565 = vpop.f32.mrf.mxu0
  %v1566 = vadd.f32 0.0, %v1565
  %v1567 = vpop.f32.mrf.mxu0
  %v1568 = vadd.f32 0.0, %v1567
  %1569 = vdwg.mxu0
  %v1570 = vsel %vm397, %v1482, -inf
  %1571 = vmax.xlane.f32.xlu0 %v1570
  %v1572 = vpop.xlane.xlu0 %1571
  %v1573 = vsel %vm397, %v1484, -inf
  %1574 = vmax.xlane.f32.xlu0 %v1573
  %v1575 = vpop.xlane.xlu0 %1574
  %v1576 = vsel %vm397, %v1487, -inf
  %1577 = vmax.xlane.f32.xlu0 %v1576
  %v1578 = vpop.xlane.xlu0 %1577
  %v1579 = vsel %vm397, %v1489, -inf
  %1580 = vmax.xlane.f32.xlu0 %v1579
  %v1581 = vpop.xlane.xlu0 %1580
  %v1582 = vsel %vm397, %v1492, -inf
  %1583 = vmax.xlane.f32.xlu0 %v1582
  %v1584 = vpop.xlane.xlu0 %1583
  %v1585 = vsel %vm397, %v1494, -inf
  %1586 = vmax.xlane.f32.xlu0 %v1585
  %v1587 = vpop.xlane.xlu0 %1586
  %v1588 = vsel %vm397, %v1497, -inf
  %1589 = vmax.xlane.f32.xlu0 %v1588
  %v1590 = vpop.xlane.xlu0 %1589
  %v1591 = vsel %vm397, %v1499, -inf
  %1592 = vmax.xlane.f32.xlu0 %v1591
  %v1593 = vpop.xlane.xlu0 %1592
  %v1594 = vsel %vm397, %v1551, -inf
  %1595 = vmax.xlane.f32.xlu0 %v1594
  %v1596 = vpop.xlane.xlu0 %1595
  %v1597 = vsel %vm397, %v1553, -inf
  %1598 = vmax.xlane.f32.xlu0 %v1597
  %v1599 = vpop.xlane.xlu0 %1598
  %v1600 = vsel %vm397, %v1556, -inf
  %1601 = vmax.xlane.f32.xlu0 %v1600
  %v1602 = vpop.xlane.xlu0 %1601
  %v1603 = vsel %vm397, %v1558, -inf
  %1604 = vmax.xlane.f32.xlu0 %v1603
  %v1605 = vpop.xlane.xlu0 %1604
  %v1606 = vsel %vm397, %v1561, -inf
  %1607 = vmax.xlane.f32.xlu0 %v1606
  %v1608 = vpop.xlane.xlu0 %1607
  %v1609 = vsel %vm397, %v1563, -inf
  %1610 = vmax.xlane.f32.xlu0 %v1609
  %v1611 = vpop.xlane.xlu0 %1610
  %v1612 = vsel %vm397, %v1566, -inf
  %1613 = vmax.xlane.f32.xlu0 %v1612
  %v1614 = vpop.xlane.xlu0 %1613
  %v1615 = vsel %vm397, %v1568, -inf
  %1616 = vmax.xlane.f32.xlu0 %v1615
  %v1617 = vpop.xlane.xlu0 %1616
  %v1618 = vsub.f32 %v1482, %v1572
  %v1619 = vsub.f32 %v1484, %v1575
  %v1620 = vsub.f32 %v1487, %v1578
  %v1621 = vsub.f32 %v1489, %v1581
  %v1622 = vsub.f32 %v1492, %v1584
  %v1623 = vsub.f32 %v1494, %v1587
  %v1624 = vsub.f32 %v1497, %v1590
  %v1625 = vsub.f32 %v1499, %v1593
  %v1626 = vsub.f32 %v1551, %v1596
  %v1627 = vsub.f32 %v1553, %v1599
  %v1628 = vsub.f32 %v1556, %v1602
  %v1629 = vsub.f32 %v1558, %v1605
  %v1630 = vsub.f32 %v1561, %v1608
  %v1631 = vsub.f32 %v1563, %v1611
  %v1632 = vsub.f32 %v1566, %v1614
  %v1633 = vsub.f32 %v1568, %v1617
  %v1634 = vmul.f32 %v1618, 1.442695
  %v1635 = vpow.pop %v1634
  %v1636 = vmul.f32 %v1619, 1.442695
  %v1637 = vpow.pop %v1636
  %v1638 = vmul.f32 %v1620, 1.442695
  %v1639 = vpow.pop %v1638
  %v1640 = vmul.f32 %v1621, 1.442695
  %v1641 = vpow.pop %v1640
  %v1642 = vmul.f32 %v1622, 1.442695
  %v1643 = vpow.pop %v1642
  %v1644 = vmul.f32 %v1623, 1.442695
  %v1645 = vpow.pop %v1644
  %v1646 = vmul.f32 %v1624, 1.442695
  %v1647 = vpow.pop %v1646
  %v1648 = vmul.f32 %v1625, 1.442695
  %v1649 = vpow.pop %v1648
  %v1650 = vmul.f32 %v1626, 1.442695
  %v1651 = vpow.pop %v1650
  %v1652 = vmul.f32 %v1627, 1.442695
  %v1653 = vpow.pop %v1652
  %v1654 = vmul.f32 %v1628, 1.442695
  %v1655 = vpow.pop %v1654
  %v1656 = vmul.f32 %v1629, 1.442695
  %v1657 = vpow.pop %v1656
  %v1658 = vmul.f32 %v1630, 1.442695
  %v1659 = vpow.pop %v1658
  %v1660 = vmul.f32 %v1631, 1.442695
  %v1661 = vpow.pop %v1660
  %v1662 = vmul.f32 %v1632, 1.442695
  %v1663 = vpow.pop %v1662
  %v1664 = vmul.f32 %v1633, 1.442695
  %v1665 = vpow.pop %v1664
  %v1666 = vsel %vm397, %v1635, 0.0
  %1667 = vadd.xlane.f32.xlu0 %v1666
  %v1668 = vpop.xlane.xlu0 %1667
  %v1669 = vsel %vm397, %v1637, 0.0
  %1670 = vadd.xlane.f32.xlu0 %v1669
  %v1671 = vpop.xlane.xlu0 %1670
  %v1672 = vsel %vm397, %v1639, 0.0
  %1673 = vadd.xlane.f32.xlu0 %v1672
  %v1674 = vpop.xlane.xlu0 %1673
  %v1675 = vsel %vm397, %v1641, 0.0
  %1676 = vadd.xlane.f32.xlu0 %v1675
  %v1677 = vpop.xlane.xlu0 %1676
  %v1678 = vsel %vm397, %v1643, 0.0
  %1679 = vadd.xlane.f32.xlu0 %v1678
  %v1680 = vpop.xlane.xlu0 %1679
  %v1681 = vsel %vm397, %v1645, 0.0
  %1682 = vadd.xlane.f32.xlu0 %v1681
  %v1683 = vpop.xlane.xlu0 %1682
  %v1684 = vsel %vm397, %v1647, 0.0
  %1685 = vadd.xlane.f32.xlu0 %v1684
  %v1686 = vpop.xlane.xlu0 %1685
  %v1687 = vsel %vm397, %v1649, 0.0
  %1688 = vadd.xlane.f32.xlu0 %v1687
  %v1689 = vpop.xlane.xlu0 %1688
  %v1690 = vsel %vm397, %v1651, 0.0
  %1691 = vadd.xlane.f32.xlu0 %v1690
  %v1692 = vpop.xlane.xlu0 %1691
  %v1693 = vsel %vm397, %v1653, 0.0
  %1694 = vadd.xlane.f32.xlu0 %v1693
  %v1695 = vpop.xlane.xlu0 %1694
  %v1696 = vsel %vm397, %v1655, 0.0
  %1697 = vadd.xlane.f32.xlu0 %v1696
  %v1698 = vpop.xlane.xlu0 %1697
  %v1699 = vsel %vm397, %v1657, 0.0
  %1700 = vadd.xlane.f32.xlu0 %v1699
  %v1701 = vpop.xlane.xlu0 %1700
  %v1702 = vsel %vm397, %v1659, 0.0
  %1703 = vadd.xlane.f32.xlu0 %v1702
  %v1704 = vpop.xlane.xlu0 %1703
  %v1705 = vsel %vm397, %v1661, 0.0
  %1706 = vadd.xlane.f32.xlu0 %v1705
  %v1707 = vpop.xlane.xlu0 %1706
  %v1708 = vsel %vm397, %v1663, 0.0
  %1709 = vadd.xlane.f32.xlu0 %v1708
  %v1710 = vpop.xlane.xlu0 %1709
  %v1711 = vsel %vm397, %v1665, 0.0
  %1712 = vadd.xlane.f32.xlu0 %v1711
  %v1713 = vpop.xlane.xlu0 %1712
  %v1714 = vrcp.pop %v1668
  %v1715 = vrcp.pop %v1671
  %v1716 = vrcp.pop %v1674
  %v1717 = vrcp.pop %v1677
  %v1718 = vrcp.pop %v1680
  %v1719 = vrcp.pop %v1683
  %v1720 = vrcp.pop %v1686
  %v1721 = vrcp.pop %v1689
  %v1722 = vrcp.pop %v1692
  %v1723 = vrcp.pop %v1695
  %v1724 = vrcp.pop %v1698
  %v1725 = vrcp.pop %v1701
  %v1726 = vrcp.pop %v1704
  %v1727 = vrcp.pop %v1707
  %v1728 = vrcp.pop %v1710
  %v1729 = vrcp.pop %v1713
  %v1730 = vmul.f32 %v1635, %v1714
  %v1731 = vmul.f32 %v1637, %v1715
  %v1732 = vmul.f32 %v1639, %v1716
  %v1733 = vmul.f32 %v1641, %v1717
  %v1734 = vmul.f32 %v1643, %v1718
  %v1735 = vmul.f32 %v1645, %v1719
  %v1736 = vmul.f32 %v1647, %v1720
  %v1737 = vmul.f32 %v1649, %v1721
  %v1738 = vmul.f32 %v1651, %v1722
  %v1739 = vmul.f32 %v1653, %v1723
  %v1740 = vmul.f32 %v1655, %v1724
  %v1741 = vmul.f32 %v1657, %v1725
  %v1742 = vmul.f32 %v1659, %v1726
  %v1743 = vmul.f32 %v1661, %v1727
  %v1744 = vmul.f32 %v1663, %v1728
  %v1745 = vmul.f32 %v1665, %v1729
  %1746 = vrot.lane.b32.xlu0 %v179, 48
  %v1747 = vpop.permute.xlu0 %1746
  %1748 = vrot.lane.b32.xlu0 %v181, 48
  %v1749 = vpop.permute.xlu0 %1748
  %1750 = vrot.lane.b32.xlu0 %v184, 48
  %v1751 = vpop.permute.xlu0 %1750
  %1752 = vrot.lane.b32.xlu0 %v186, 48
  %v1753 = vpop.permute.xlu0 %1752
  %1754 = vrot.lane.b32.xlu0 %v189, 48
  %v1755 = vpop.permute.xlu0 %1754
  %1756 = vrot.lane.b32.xlu0 %v191, 48
  %v1757 = vpop.permute.xlu0 %1756
  %1758 = vrot.lane.b32.xlu0 %v194, 48
  %v1759 = vpop.permute.xlu0 %1758
  %1760 = vrot.lane.b32.xlu0 %v196, 48
  %v1761 = vpop.permute.xlu0 %1760
  %v1771 = vsel %vm397, %v1730, 0
  %v1774 = vsel %vm397, %v1731, 0
  %v1777 = vsel %vm397, %v1732, 0
  %v1780 = vsel %vm397, %v1733, 0
  %v1783 = vsel %vm397, %v1734, 0
  %v1786 = vsel %vm397, %v1735, 0
  %v1789 = vsel %vm397, %v1736, 0
  %v1792 = vsel %vm397, %v1737, 0
  %1794 = vmatpush.msra.mxu0 0.0
  %1795 = vmatpush.msra.mxu0 0.0
  %1796 = vmatpush.msra.mxu0 0.0
  %1797 = vmatpush.msra.mxu0 0.0
  %1798 = vmatpush.msra.mxu0 0.0
  %1799 = vmatpush.msra.mxu0 0.0
  %1800 = vmatpush.msra.mxu0 0.0
  %1801 = vmatpush.msra.mxu0 0.0
  %1802 = vmatpush.msra.mxu0 %v1761
  %1803 = vmatpush.msra.mxu0 %v1759
  %1804 = vmatpush.msra.mxu0 %v1757
  %1805 = vmatpush.msra.mxu0 %v1755
  %1806 = vmatpush.msra.mxu0 %v1753
  %1807 = vmatpush.msra.mxu0 %v1751
  %1808 = vmatpush.msra.mxu0 %v1749
  %1809 = vmatpush.msra.mxu0 %v1747
  %1810 = vmatmul.f32.gmra.mxu0 %v1771
  %v1811 = vpop.f32.mrf.mxu0
  %v1812 = vadd.f32 0.0, %v1811
  %1813 = vmatmul.f32.gmra.mxu0 %v1774
  %v1814 = vpop.f32.mrf.mxu0
  %v1815 = vadd.f32 0.0, %v1814
  %1816 = vmatmul.f32.gmra.mxu0 %v1777
  %v1817 = vpop.f32.mrf.mxu0
  %v1818 = vadd.f32 0.0, %v1817
  %1819 = vmatmul.f32.gmra.mxu0 %v1780
  %v1820 = vpop.f32.mrf.mxu0
  %v1821 = vadd.f32 0.0, %v1820
  %1822 = vmatmul.f32.gmra.mxu0 %v1783
  %v1823 = vpop.f32.mrf.mxu0
  %v1824 = vadd.f32 0.0, %v1823
  %1825 = vmatmul.f32.gmra.mxu0 %v1786
  %v1826 = vpop.f32.mrf.mxu0
  %v1827 = vadd.f32 0.0, %v1826
  %1828 = vmatmul.f32.gmra.mxu0 %v1789
  %v1829 = vpop.f32.mrf.mxu0
  %v1830 = vadd.f32 0.0, %v1829
  %1831 = vmatmul.f32.gmra.mxu0 %v1792
  %v1832 = vpop.f32.mrf.mxu0
  %v1833 = vadd.f32 0.0, %v1832
  %1834 = vdwg.mxu0
  %1835 = vrot.lane.b32.xlu0 %v199, 48
  %v1836 = vpop.permute.xlu0 %1835
  %1837 = vrot.lane.b32.xlu0 %v201, 48
  %v1838 = vpop.permute.xlu0 %1837
  %1839 = vrot.lane.b32.xlu0 %v204, 48
  %v1840 = vpop.permute.xlu0 %1839
  %1841 = vrot.lane.b32.xlu0 %v206, 48
  %v1842 = vpop.permute.xlu0 %1841
  %1843 = vrot.lane.b32.xlu0 %v209, 48
  %v1844 = vpop.permute.xlu0 %1843
  %1845 = vrot.lane.b32.xlu0 %v211, 48
  %v1846 = vpop.permute.xlu0 %1845
  %1847 = vrot.lane.b32.xlu0 %v214, 48
  %v1848 = vpop.permute.xlu0 %1847
  %1849 = vrot.lane.b32.xlu0 %v216, 48
  %v1850 = vpop.permute.xlu0 %1849
  %v1860 = vsel %vm397, %v1738, 0
  %v1863 = vsel %vm397, %v1739, 0
  %v1866 = vsel %vm397, %v1740, 0
  %v1869 = vsel %vm397, %v1741, 0
  %v1872 = vsel %vm397, %v1742, 0
  %v1875 = vsel %vm397, %v1743, 0
  %v1878 = vsel %vm397, %v1744, 0
  %v1881 = vsel %vm397, %v1745, 0
  %1883 = vmatpush.msra.mxu0 0.0
  %1884 = vmatpush.msra.mxu0 0.0
  %1885 = vmatpush.msra.mxu0 0.0
  %1886 = vmatpush.msra.mxu0 0.0
  %1887 = vmatpush.msra.mxu0 0.0
  %1888 = vmatpush.msra.mxu0 0.0
  %1889 = vmatpush.msra.mxu0 0.0
  %1890 = vmatpush.msra.mxu0 0.0
  %1891 = vmatpush.msra.mxu0 %v1850
  %1892 = vmatpush.msra.mxu0 %v1848
  %1893 = vmatpush.msra.mxu0 %v1846
  %1894 = vmatpush.msra.mxu0 %v1844
  %1895 = vmatpush.msra.mxu0 %v1842
  %1896 = vmatpush.msra.mxu0 %v1840
  %1897 = vmatpush.msra.mxu0 %v1838
  %1898 = vmatpush.msra.mxu0 %v1836
  %1899 = vmatmul.f32.gmra.mxu0 %v1860
  %v1900 = vpop.f32.mrf.mxu0
  %v1901 = vadd.f32 0.0, %v1900
  %1902 = vmatmul.f32.gmra.mxu0 %v1863
  %v1903 = vpop.f32.mrf.mxu0
  %v1904 = vadd.f32 0.0, %v1903
  %1905 = vmatmul.f32.gmra.mxu0 %v1866
  %v1906 = vpop.f32.mrf.mxu0
  %v1907 = vadd.f32 0.0, %v1906
  %1908 = vmatmul.f32.gmra.mxu0 %v1869
  %v1909 = vpop.f32.mrf.mxu0
  %v1910 = vadd.f32 0.0, %v1909
  %1911 = vmatmul.f32.gmra.mxu0 %v1872
  %v1912 = vpop.f32.mrf.mxu0
  %v1913 = vadd.f32 0.0, %v1912
  %1914 = vmatmul.f32.gmra.mxu0 %v1875
  %v1915 = vpop.f32.mrf.mxu0
  %v1916 = vadd.f32 0.0, %v1915
  %1917 = vmatmul.f32.gmra.mxu0 %v1878
  %v1918 = vpop.f32.mrf.mxu0
  %v1919 = vadd.f32 0.0, %v1918
  %1920 = vmatmul.f32.gmra.mxu0 %v1881
  %v1921 = vpop.f32.mrf.mxu0
  %v1922 = vadd.f32 0.0, %v1921
  %1923 = vdwg.mxu0
  %v1924 = vpack.c.bf16 %v1815, %v1812
  %v1925 = vpack.c.bf16 %v1821, %v1818
  %v1926 = vpack.c.bf16 %v1827, %v1824
  %v1927 = vpack.c.bf16 %v1833, %v1830
  %v1928 = vpack.c.bf16 %v1904, %v1901
  %v1929 = vpack.c.bf16 %v1910, %v1907
  %v1930 = vpack.c.bf16 %v1916, %v1913
  %v1931 = vpack.c.bf16 %v1922, %v1919
  %s1932 = scalar_lea.vmem %s5, 8
  %v1933 = vld [vmem:[%s1932] sm:$0xf]
  %v1935 = vsel %vm262, %v1924, 0
  %v1938 = vsel %vm262, %v1925, 0
  %v1941 = vsel %vm262, %v1926, 0
  %v1944 = vsel %vm262, %v1927, 0
  %v1947 = vsel %vm262, %v1928, 0
  %v1950 = vsel %vm262, %v1929, 0
  %v1953 = vsel %vm262, %v1930, 0
  %v1956 = vsel %vm262, %v1931, 0
  %v1959 = vsel %vm1303, %v1933, 0
  %1961 = vmatpush.bf16.msra.mxu0 0
  %1962 = vmatpush.bf16.msra.mxu0 0
  %1963 = vmatpush.bf16.msra.mxu0 0
  %1964 = vmatpush.bf16.msra.mxu0 0
  %1965 = vmatpush.bf16.msra.mxu0 0
  %1966 = vmatpush.bf16.msra.mxu0 0
  %1967 = vmatpush.bf16.msra.mxu0 0
  %1968 = vmatpush.bf16.msra.mxu0 %v1959
  %1969 = vmatmul.bf16.gmra.mxu0 %v1935
  %v1970 = vpop.f32.mrf.mxu0
  %v1971 = vadd.f32 0.0, %v1970
  %v1972 = vpop.f32.mrf.mxu0
  %v1973 = vadd.f32 0.0, %v1972
  %1974 = vmatmul.bf16.gmra.mxu0 %v1938
  %v1975 = vpop.f32.mrf.mxu0
  %v1976 = vadd.f32 0.0, %v1975
  %v1977 = vpop.f32.mrf.mxu0
  %v1978 = vadd.f32 0.0, %v1977
  %1979 = vmatmul.bf16.gmra.mxu0 %v1941
  %v1980 = vpop.f32.mrf.mxu0
  %v1981 = vadd.f32 0.0, %v1980
  %v1982 = vpop.f32.mrf.mxu0
  %v1983 = vadd.f32 0.0, %v1982
  %1984 = vmatmul.bf16.gmra.mxu0 %v1944
  %v1985 = vpop.f32.mrf.mxu0
  %v1986 = vadd.f32 0.0, %v1985
  %v1987 = vpop.f32.mrf.mxu0
  %v1988 = vadd.f32 0.0, %v1987
  %1989 = vmatmul.bf16.gmra.mxu0 %v1947
  %v1990 = vpop.f32.mrf.mxu0
  %v1991 = vadd.f32 0.0, %v1990
  %v1992 = vpop.f32.mrf.mxu0
  %v1993 = vadd.f32 0.0, %v1992
  %1994 = vmatmul.bf16.gmra.mxu0 %v1950
  %v1995 = vpop.f32.mrf.mxu0
  %v1996 = vadd.f32 0.0, %v1995
  %v1997 = vpop.f32.mrf.mxu0
  %v1998 = vadd.f32 0.0, %v1997
  %1999 = vmatmul.bf16.gmra.mxu0 %v1953
  %v2000 = vpop.f32.mrf.mxu0
  %v2001 = vadd.f32 0.0, %v2000
  %v2002 = vpop.f32.mrf.mxu0
  %v2003 = vadd.f32 0.0, %v2002
  %2004 = vmatmul.bf16.gmra.mxu0 %v1956
  %v2005 = vpop.f32.mrf.mxu0
  %v2006 = vadd.f32 0.0, %v2005
  %v2007 = vpop.f32.mrf.mxu0
  %v2008 = vadd.f32 0.0, %v2007
  %2009 = vdwg.mxu0
  %v2010 = vadd.f32 %v1393, %v1971
  %v2011 = vadd.f32 %v1395, %v1973
  %v2012 = vadd.f32 %v1398, %v1976
  %v2013 = vadd.f32 %v1400, %v1978
  %v2014 = vadd.f32 %v1403, %v1981
  %v2015 = vadd.f32 %v1405, %v1983
  %v2016 = vadd.f32 %v1408, %v1986
  %v2017 = vadd.f32 %v1410, %v1988
  %v2018 = vadd.f32 %v1413, %v1991
  %v2019 = vadd.f32 %v1415, %v1993
  %v2020 = vadd.f32 %v1418, %v1996
  %v2021 = vadd.f32 %v1420, %v1998
  %v2022 = vadd.f32 %v1423, %v2001
  %v2023 = vadd.f32 %v1425, %v2003
  %v2024 = vadd.f32 %v1428, %v2006
  %v2025 = vadd.f32 %v1430, %v2008
  %2026 = vrot.lane.b32.xlu0 %v250, 104
  %v2027 = vpop.permute.xlu0 %2026
  %2028 = vrot.lane.b32.xlu0 %v251, 104
  %v2029 = vpop.permute.xlu0 %2028
  %2030 = vrot.lane.b32.xlu0 %v252, 104
  %v2031 = vpop.permute.xlu0 %2030
  %2032 = vrot.lane.b32.xlu0 %v253, 104
  %v2033 = vpop.permute.xlu0 %2032
  %2034 = vrot.lane.b32.xlu0 %v250, 72
  %v2035 = vpop.permute.xlu0 %2034
  %2036 = vrot.lane.b32.xlu0 %v251, 72
  %v2037 = vpop.permute.xlu0 %2036
  %2038 = vrot.lane.b32.xlu0 %v252, 72
  %v2039 = vpop.permute.xlu0 %2038
  %2040 = vrot.lane.b32.xlu0 %v253, 72
  %v2041 = vpop.permute.xlu0 %2040
  %v2043 = vsel %vm262, %v2027, 0
  %v2046 = vsel %vm262, %v2029, 0
  %v2049 = vsel %vm262, %v2031, 0
  %v2052 = vsel %vm262, %v2033, 0
  %v2055 = vsel %vm262, %v2035, 0
  %v2058 = vsel %vm262, %v2037, 0
  %v2061 = vsel %vm262, %v2039, 0
  %v2064 = vsel %vm262, %v2041, 0
  %2066 = vmatpush.bf16.xpose.msra.mxu0 0
  %2067 = vmatpush.bf16.xpose.msra.mxu0 0
  %2068 = vmatpush.bf16.xpose.msra.mxu0 0
  %2069 = vmatpush.bf16.xpose.msra.mxu0 0
  %2070 = vmatpush.bf16.xpose.msra.mxu0 %v2064
  %2071 = vmatpush.bf16.xpose.msra.mxu0 %v2061
  %2072 = vmatpush.bf16.xpose.msra.mxu0 %v2058
  %2073 = vmatpush.bf16.xpose.msra.mxu0 %v2055
  %2074 = vmatmul.bf16.gmra.mxu0 %v2043
  %v2075 = vpop.f32.mrf.mxu0
  %v2076 = vadd.f32 0.0, %v2075
  %v2077 = vpop.f32.mrf.mxu0
  %v2078 = vadd.f32 0.0, %v2077
  %2079 = vmatmul.bf16.gmra.mxu0 %v2046
  %v2080 = vpop.f32.mrf.mxu0
  %v2081 = vadd.f32 0.0, %v2080
  %v2082 = vpop.f32.mrf.mxu0
  %v2083 = vadd.f32 0.0, %v2082
  %2084 = vmatmul.bf16.gmra.mxu0 %v2049
  %v2085 = vpop.f32.mrf.mxu0
  %v2086 = vadd.f32 0.0, %v2085
  %v2087 = vpop.f32.mrf.mxu0
  %v2088 = vadd.f32 0.0, %v2087
  %2089 = vmatmul.bf16.gmra.mxu0 %v2052
  %v2090 = vpop.f32.mrf.mxu0
  %v2091 = vadd.f32 0.0, %v2090
  %v2092 = vpop.f32.mrf.mxu0
  %v2093 = vadd.f32 0.0, %v2092
  %2094 = vdwg.mxu0
  %2095 = vrot.lane.b32.xlu0 %v332, 104
  %v2096 = vpop.permute.xlu0 %2095
  %2097 = vrot.lane.b32.xlu0 %v333, 104
  %v2098 = vpop.permute.xlu0 %2097
  %2099 = vrot.lane.b32.xlu0 %v334, 104
  %v2100 = vpop.permute.xlu0 %2099
  %2101 = vrot.lane.b32.xlu0 %v335, 104
  %v2102 = vpop.permute.xlu0 %2101
  %2103 = vrot.lane.b32.xlu0 %v332, 72
  %v2104 = vpop.permute.xlu0 %2103
  %2105 = vrot.lane.b32.xlu0 %v333, 72
  %v2106 = vpop.permute.xlu0 %2105
  %2107 = vrot.lane.b32.xlu0 %v334, 72
  %v2108 = vpop.permute.xlu0 %2107
  %2109 = vrot.lane.b32.xlu0 %v335, 72
  %v2110 = vpop.permute.xlu0 %2109
  %v2112 = vsel %vm262, %v2096, 0
  %v2115 = vsel %vm262, %v2098, 0
  %v2118 = vsel %vm262, %v2100, 0
  %v2121 = vsel %vm262, %v2102, 0
  %v2124 = vsel %vm262, %v2104, 0
  %v2127 = vsel %vm262, %v2106, 0
  %v2130 = vsel %vm262, %v2108, 0
  %v2133 = vsel %vm262, %v2110, 0
  %2135 = vmatpush.bf16.xpose.msra.mxu0 0
  %2136 = vmatpush.bf16.xpose.msra.mxu0 0
  %2137 = vmatpush.bf16.xpose.msra.mxu0 0
  %2138 = vmatpush.bf16.xpose.msra.mxu0 0
  %2139 = vmatpush.bf16.xpose.msra.mxu0 %v2133
  %2140 = vmatpush.bf16.xpose.msra.mxu0 %v2130
  %2141 = vmatpush.bf16.xpose.msra.mxu0 %v2127
  %2142 = vmatpush.bf16.xpose.msra.mxu0 %v2124
  %2143 = vmatmul.bf16.gmra.mxu0 %v2112
  %v2144 = vpop.f32.mrf.mxu0
  %v2145 = vadd.f32 0.0, %v2144
  %v2146 = vpop.f32.mrf.mxu0
  %v2147 = vadd.f32 0.0, %v2146
  %2148 = vmatmul.bf16.gmra.mxu0 %v2115
  %v2149 = vpop.f32.mrf.mxu0
  %v2150 = vadd.f32 0.0, %v2149
  %v2151 = vpop.f32.mrf.mxu0
  %v2152 = vadd.f32 0.0, %v2151
  %2153 = vmatmul.bf16.gmra.mxu0 %v2118
  %v2154 = vpop.f32.mrf.mxu0
  %v2155 = vadd.f32 0.0, %v2154
  %v2156 = vpop.f32.mrf.mxu0
  %v2157 = vadd.f32 0.0, %v2156
  %2158 = vmatmul.bf16.gmra.mxu0 %v2121
  %v2159 = vpop.f32.mrf.mxu0
  %v2160 = vadd.f32 0.0, %v2159
  %v2161 = vpop.f32.mrf.mxu0
  %v2162 = vadd.f32 0.0, %v2161
  %2163 = vdwg.mxu0
  %v2164 = vsel %vm397, %v2076, -inf
  %2165 = vmax.xlane.f32.xlu0 %v2164
  %v2166 = vpop.xlane.xlu0 %2165
  %v2167 = vsel %vm397, %v2078, -inf
  %2168 = vmax.xlane.f32.xlu0 %v2167
  %v2169 = vpop.xlane.xlu0 %2168
  %v2170 = vsel %vm397, %v2081, -inf
  %2171 = vmax.xlane.f32.xlu0 %v2170
  %v2172 = vpop.xlane.xlu0 %2171
  %v2173 = vsel %vm397, %v2083, -inf
  %2174 = vmax.xlane.f32.xlu0 %v2173
  %v2175 = vpop.xlane.xlu0 %2174
  %v2176 = vsel %vm397, %v2086, -inf
  %2177 = vmax.xlane.f32.xlu0 %v2176
  %v2178 = vpop.xlane.xlu0 %2177
  %v2179 = vsel %vm397, %v2088, -inf
  %2180 = vmax.xlane.f32.xlu0 %v2179
  %v2181 = vpop.xlane.xlu0 %2180
  %v2182 = vsel %vm397, %v2091, -inf
  %2183 = vmax.xlane.f32.xlu0 %v2182
  %v2184 = vpop.xlane.xlu0 %2183
  %v2185 = vsel %vm397, %v2093, -inf
  %2186 = vmax.xlane.f32.xlu0 %v2185
  %v2187 = vpop.xlane.xlu0 %2186
  %v2188 = vsel %vm397, %v2145, -inf
  %2189 = vmax.xlane.f32.xlu0 %v2188
  %v2190 = vpop.xlane.xlu0 %2189
  %v2191 = vsel %vm397, %v2147, -inf
  %2192 = vmax.xlane.f32.xlu0 %v2191
  %v2193 = vpop.xlane.xlu0 %2192
  %v2194 = vsel %vm397, %v2150, -inf
  %2195 = vmax.xlane.f32.xlu0 %v2194
  %v2196 = vpop.xlane.xlu0 %2195
  %v2197 = vsel %vm397, %v2152, -inf
  %2198 = vmax.xlane.f32.xlu0 %v2197
  %v2199 = vpop.xlane.xlu0 %2198
  %v2200 = vsel %vm397, %v2155, -inf
  %2201 = vmax.xlane.f32.xlu0 %v2200
  %v2202 = vpop.xlane.xlu0 %2201
  %v2203 = vsel %vm397, %v2157, -inf
  %2204 = vmax.xlane.f32.xlu0 %v2203
  %v2205 = vpop.xlane.xlu0 %2204
  %v2206 = vsel %vm397, %v2160, -inf
  %2207 = vmax.xlane.f32.xlu0 %v2206
  %v2208 = vpop.xlane.xlu0 %2207
  %v2209 = vsel %vm397, %v2162, -inf
  %2210 = vmax.xlane.f32.xlu0 %v2209
  %v2211 = vpop.xlane.xlu0 %2210
  %v2212 = vsub.f32 %v2076, %v2166
  %v2213 = vsub.f32 %v2078, %v2169
  %v2214 = vsub.f32 %v2081, %v2172
  %v2215 = vsub.f32 %v2083, %v2175
  %v2216 = vsub.f32 %v2086, %v2178
  %v2217 = vsub.f32 %v2088, %v2181
  %v2218 = vsub.f32 %v2091, %v2184
  %v2219 = vsub.f32 %v2093, %v2187
  %v2220 = vsub.f32 %v2145, %v2190
  %v2221 = vsub.f32 %v2147, %v2193
  %v2222 = vsub.f32 %v2150, %v2196
  %v2223 = vsub.f32 %v2152, %v2199
  %v2224 = vsub.f32 %v2155, %v2202
  %v2225 = vsub.f32 %v2157, %v2205
  %v2226 = vsub.f32 %v2160, %v2208
  %v2227 = vsub.f32 %v2162, %v2211
  %v2228 = vmul.f32 %v2212, 1.442695
  %v2229 = vpow.pop %v2228
  %v2230 = vmul.f32 %v2213, 1.442695
  %v2231 = vpow.pop %v2230
  %v2232 = vmul.f32 %v2214, 1.442695
  %v2233 = vpow.pop %v2232
  %v2234 = vmul.f32 %v2215, 1.442695
  %v2235 = vpow.pop %v2234
  %v2236 = vmul.f32 %v2216, 1.442695
  %v2237 = vpow.pop %v2236
  %v2238 = vmul.f32 %v2217, 1.442695
  %v2239 = vpow.pop %v2238
  %v2240 = vmul.f32 %v2218, 1.442695
  %v2241 = vpow.pop %v2240
  %v2242 = vmul.f32 %v2219, 1.442695
  %v2243 = vpow.pop %v2242
  %v2244 = vmul.f32 %v2220, 1.442695
  %v2245 = vpow.pop %v2244
  %v2246 = vmul.f32 %v2221, 1.442695
  %v2247 = vpow.pop %v2246
  %v2248 = vmul.f32 %v2222, 1.442695
  %v2249 = vpow.pop %v2248
  %v2250 = vmul.f32 %v2223, 1.442695
  %v2251 = vpow.pop %v2250
  %v2252 = vmul.f32 %v2224, 1.442695
  %v2253 = vpow.pop %v2252
  %v2254 = vmul.f32 %v2225, 1.442695
  %v2255 = vpow.pop %v2254
  %v2256 = vmul.f32 %v2226, 1.442695
  %v2257 = vpow.pop %v2256
  %v2258 = vmul.f32 %v2227, 1.442695
  %v2259 = vpow.pop %v2258
  %v2260 = vsel %vm397, %v2229, 0.0
  %2261 = vadd.xlane.f32.xlu0 %v2260
  %v2262 = vpop.xlane.xlu0 %2261
  %v2263 = vsel %vm397, %v2231, 0.0
  %2264 = vadd.xlane.f32.xlu0 %v2263
  %v2265 = vpop.xlane.xlu0 %2264
  %v2266 = vsel %vm397, %v2233, 0.0
  %2267 = vadd.xlane.f32.xlu0 %v2266
  %v2268 = vpop.xlane.xlu0 %2267
  %v2269 = vsel %vm397, %v2235, 0.0
  %2270 = vadd.xlane.f32.xlu0 %v2269
  %v2271 = vpop.xlane.xlu0 %2270
  %v2272 = vsel %vm397, %v2237, 0.0
  %2273 = vadd.xlane.f32.xlu0 %v2272
  %v2274 = vpop.xlane.xlu0 %2273
  %v2275 = vsel %vm397, %v2239, 0.0
  %2276 = vadd.xlane.f32.xlu0 %v2275
  %v2277 = vpop.xlane.xlu0 %2276
  %v2278 = vsel %vm397, %v2241, 0.0
  %2279 = vadd.xlane.f32.xlu0 %v2278
  %v2280 = vpop.xlane.xlu0 %2279
  %v2281 = vsel %vm397, %v2243, 0.0
  %2282 = vadd.xlane.f32.xlu0 %v2281
  %v2283 = vpop.xlane.xlu0 %2282
  %v2284 = vsel %vm397, %v2245, 0.0
  %2285 = vadd.xlane.f32.xlu0 %v2284
  %v2286 = vpop.xlane.xlu0 %2285
  %v2287 = vsel %vm397, %v2247, 0.0
  %2288 = vadd.xlane.f32.xlu0 %v2287
  %v2289 = vpop.xlane.xlu0 %2288
  %v2290 = vsel %vm397, %v2249, 0.0
  %2291 = vadd.xlane.f32.xlu0 %v2290
  %v2292 = vpop.xlane.xlu0 %2291
  %v2293 = vsel %vm397, %v2251, 0.0
  %2294 = vadd.xlane.f32.xlu0 %v2293
  %v2295 = vpop.xlane.xlu0 %2294
  %v2296 = vsel %vm397, %v2253, 0.0
  %2297 = vadd.xlane.f32.xlu0 %v2296
  %v2298 = vpop.xlane.xlu0 %2297
  %v2299 = vsel %vm397, %v2255, 0.0
  %2300 = vadd.xlane.f32.xlu0 %v2299
  %v2301 = vpop.xlane.xlu0 %2300
  %v2302 = vsel %vm397, %v2257, 0.0
  %2303 = vadd.xlane.f32.xlu0 %v2302
  %v2304 = vpop.xlane.xlu0 %2303
  %v2305 = vsel %vm397, %v2259, 0.0
  %2306 = vadd.xlane.f32.xlu0 %v2305
  %v2307 = vpop.xlane.xlu0 %2306
  %v2308 = vrcp.pop %v2262
  %v2309 = vrcp.pop %v2265
  %v2310 = vrcp.pop %v2268
  %v2311 = vrcp.pop %v2271
  %v2312 = vrcp.pop %v2274
  %v2313 = vrcp.pop %v2277
  %v2314 = vrcp.pop %v2280
  %v2315 = vrcp.pop %v2283
  %v2316 = vrcp.pop %v2286
  %v2317 = vrcp.pop %v2289
  %v2318 = vrcp.pop %v2292
  %v2319 = vrcp.pop %v2295
  %v2320 = vrcp.pop %v2298
  %v2321 = vrcp.pop %v2301
  %v2322 = vrcp.pop %v2304
  %v2323 = vrcp.pop %v2307
  %v2324 = vmul.f32 %v2229, %v2308
  %v2325 = vmul.f32 %v2231, %v2309
  %v2326 = vmul.f32 %v2233, %v2310
  %v2327 = vmul.f32 %v2235, %v2311
  %v2328 = vmul.f32 %v2237, %v2312
  %v2329 = vmul.f32 %v2239, %v2313
  %v2330 = vmul.f32 %v2241, %v2314
  %v2331 = vmul.f32 %v2243, %v2315
  %v2332 = vmul.f32 %v2245, %v2316
  %v2333 = vmul.f32 %v2247, %v2317
  %v2334 = vmul.f32 %v2249, %v2318
  %v2335 = vmul.f32 %v2251, %v2319
  %v2336 = vmul.f32 %v2253, %v2320
  %v2337 = vmul.f32 %v2255, %v2321
  %v2338 = vmul.f32 %v2257, %v2322
  %v2339 = vmul.f32 %v2259, %v2323
  %2340 = vrot.lane.b32.xlu0 %v179, 40
  %v2341 = vpop.permute.xlu0 %2340
  %2342 = vrot.lane.b32.xlu0 %v181, 40
  %v2343 = vpop.permute.xlu0 %2342
  %2344 = vrot.lane.b32.xlu0 %v184, 40
  %v2345 = vpop.permute.xlu0 %2344
  %2346 = vrot.lane.b32.xlu0 %v186, 40
  %v2347 = vpop.permute.xlu0 %2346
  %2348 = vrot.lane.b32.xlu0 %v189, 40
  %v2349 = vpop.permute.xlu0 %2348
  %2350 = vrot.lane.b32.xlu0 %v191, 40
  %v2351 = vpop.permute.xlu0 %2350
  %2352 = vrot.lane.b32.xlu0 %v194, 40
  %v2353 = vpop.permute.xlu0 %2352
  %2354 = vrot.lane.b32.xlu0 %v196, 40
  %v2355 = vpop.permute.xlu0 %2354
  %v2365 = vsel %vm397, %v2324, 0
  %v2368 = vsel %vm397, %v2325, 0
  %v2371 = vsel %vm397, %v2326, 0
  %v2374 = vsel %vm397, %v2327, 0
  %v2377 = vsel %vm397, %v2328, 0
  %v2380 = vsel %vm397, %v2329, 0
  %v2383 = vsel %vm397, %v2330, 0
  %v2386 = vsel %vm397, %v2331, 0
  %2388 = vmatpush.msra.mxu0 0.0
  %2389 = vmatpush.msra.mxu0 0.0
  %2390 = vmatpush.msra.mxu0 0.0
  %2391 = vmatpush.msra.mxu0 0.0
  %2392 = vmatpush.msra.mxu0 0.0
  %2393 = vmatpush.msra.mxu0 0.0
  %2394 = vmatpush.msra.mxu0 0.0
  %2395 = vmatpush.msra.mxu0 0.0
  %2396 = vmatpush.msra.mxu0 %v2355
  %2397 = vmatpush.msra.mxu0 %v2353
  %2398 = vmatpush.msra.mxu0 %v2351
  %2399 = vmatpush.msra.mxu0 %v2349
  %2400 = vmatpush.msra.mxu0 %v2347
  %2401 = vmatpush.msra.mxu0 %v2345
  %2402 = vmatpush.msra.mxu0 %v2343
  %2403 = vmatpush.msra.mxu0 %v2341
  %2404 = vmatmul.f32.gmra.mxu0 %v2365
  %v2405 = vpop.f32.mrf.mxu0
  %v2406 = vadd.f32 0.0, %v2405
  %2407 = vmatmul.f32.gmra.mxu0 %v2368
  %v2408 = vpop.f32.mrf.mxu0
  %v2409 = vadd.f32 0.0, %v2408
  %2410 = vmatmul.f32.gmra.mxu0 %v2371
  %v2411 = vpop.f32.mrf.mxu0
  %v2412 = vadd.f32 0.0, %v2411
  %2413 = vmatmul.f32.gmra.mxu0 %v2374
  %v2414 = vpop.f32.mrf.mxu0
  %v2415 = vadd.f32 0.0, %v2414
  %2416 = vmatmul.f32.gmra.mxu0 %v2377
  %v2417 = vpop.f32.mrf.mxu0
  %v2418 = vadd.f32 0.0, %v2417
  %2419 = vmatmul.f32.gmra.mxu0 %v2380
  %v2420 = vpop.f32.mrf.mxu0
  %v2421 = vadd.f32 0.0, %v2420
  %2422 = vmatmul.f32.gmra.mxu0 %v2383
  %v2423 = vpop.f32.mrf.mxu0
  %v2424 = vadd.f32 0.0, %v2423
  %2425 = vmatmul.f32.gmra.mxu0 %v2386
  %v2426 = vpop.f32.mrf.mxu0
  %v2427 = vadd.f32 0.0, %v2426
  %2428 = vdwg.mxu0
  %2429 = vrot.lane.b32.xlu0 %v199, 40
  %v2430 = vpop.permute.xlu0 %2429
  %2431 = vrot.lane.b32.xlu0 %v201, 40
  %v2432 = vpop.permute.xlu0 %2431
  %2433 = vrot.lane.b32.xlu0 %v204, 40
  %v2434 = vpop.permute.xlu0 %2433
  %2435 = vrot.lane.b32.xlu0 %v206, 40
  %v2436 = vpop.permute.xlu0 %2435
  %2437 = vrot.lane.b32.xlu0 %v209, 40
  %v2438 = vpop.permute.xlu0 %2437
  %2439 = vrot.lane.b32.xlu0 %v211, 40
  %v2440 = vpop.permute.xlu0 %2439
  %2441 = vrot.lane.b32.xlu0 %v214, 40
  %v2442 = vpop.permute.xlu0 %2441
  %2443 = vrot.lane.b32.xlu0 %v216, 40
  %v2444 = vpop.permute.xlu0 %2443
  %v2454 = vsel %vm397, %v2332, 0
  %v2457 = vsel %vm397, %v2333, 0
  %v2460 = vsel %vm397, %v2334, 0
  %v2463 = vsel %vm397, %v2335, 0
  %v2466 = vsel %vm397, %v2336, 0
  %v2469 = vsel %vm397, %v2337, 0
  %v2472 = vsel %vm397, %v2338, 0
  %v2475 = vsel %vm397, %v2339, 0
  %2477 = vmatpush.msra.mxu0 0.0
  %2478 = vmatpush.msra.mxu0 0.0
  %2479 = vmatpush.msra.mxu0 0.0
  %2480 = vmatpush.msra.mxu0 0.0
  %2481 = vmatpush.msra.mxu0 0.0
  %2482 = vmatpush.msra.mxu0 0.0
  %2483 = vmatpush.msra.mxu0 0.0
  %2484 = vmatpush.msra.mxu0 0.0
  %2485 = vmatpush.msra.mxu0 %v2444
  %2486 = vmatpush.msra.mxu0 %v2442
  %2487 = vmatpush.msra.mxu0 %v2440
  %2488 = vmatpush.msra.mxu0 %v2438
  %2489 = vmatpush.msra.mxu0 %v2436
  %2490 = vmatpush.msra.mxu0 %v2434
  %2491 = vmatpush.msra.mxu0 %v2432
  %2492 = vmatpush.msra.mxu0 %v2430
  %2493 = vmatmul.f32.gmra.mxu0 %v2454
  %v2494 = vpop.f32.mrf.mxu0
  %v2495 = vadd.f32 0.0, %v2494
  %2496 = vmatmul.f32.gmra.mxu0 %v2457
  %v2497 = vpop.f32.mrf.mxu0
  %v2498 = vadd.f32 0.0, %v2497
  %2499 = vmatmul.f32.gmra.mxu0 %v2460
  %v2500 = vpop.f32.mrf.mxu0
  %v2501 = vadd.f32 0.0, %v2500
  %2502 = vmatmul.f32.gmra.mxu0 %v2463
  %v2503 = vpop.f32.mrf.mxu0
  %v2504 = vadd.f32 0.0, %v2503
  %2505 = vmatmul.f32.gmra.mxu0 %v2466
  %v2506 = vpop.f32.mrf.mxu0
  %v2507 = vadd.f32 0.0, %v2506
  %2508 = vmatmul.f32.gmra.mxu0 %v2469
  %v2509 = vpop.f32.mrf.mxu0
  %v2510 = vadd.f32 0.0, %v2509
  %2511 = vmatmul.f32.gmra.mxu0 %v2472
  %v2512 = vpop.f32.mrf.mxu0
  %v2513 = vadd.f32 0.0, %v2512
  %2514 = vmatmul.f32.gmra.mxu0 %v2475
  %v2515 = vpop.f32.mrf.mxu0
  %v2516 = vadd.f32 0.0, %v2515
  %2517 = vdwg.mxu0
  %v2518 = vpack.c.bf16 %v2409, %v2406
  %v2519 = vpack.c.bf16 %v2415, %v2412
  %v2520 = vpack.c.bf16 %v2421, %v2418
  %v2521 = vpack.c.bf16 %v2427, %v2424
  %v2522 = vpack.c.bf16 %v2498, %v2495
  %v2523 = vpack.c.bf16 %v2504, %v2501
  %v2524 = vpack.c.bf16 %v2510, %v2507
  %v2525 = vpack.c.bf16 %v2516, %v2513
  %s2526 = scalar_lea.vmem %s5, 12
  %v2527 = vld [vmem:[%s2526] sm:$0xf]
  %v2529 = vsel %vm262, %v2518, 0
  %v2532 = vsel %vm262, %v2519, 0
  %v2535 = vsel %vm262, %v2520, 0
  %v2538 = vsel %vm262, %v2521, 0
  %v2541 = vsel %vm262, %v2522, 0
  %v2544 = vsel %vm262, %v2523, 0
  %v2547 = vsel %vm262, %v2524, 0
  %v2550 = vsel %vm262, %v2525, 0
  %v2553 = vsel %vm1303, %v2527, 0
  %2555 = vmatpush.bf16.msra.mxu0 0
  %2556 = vmatpush.bf16.msra.mxu0 0
  %2557 = vmatpush.bf16.msra.mxu0 0
  %2558 = vmatpush.bf16.msra.mxu0 0
  %2559 = vmatpush.bf16.msra.mxu0 0
  %2560 = vmatpush.bf16.msra.mxu0 0
  %2561 = vmatpush.bf16.msra.mxu0 0
  %2562 = vmatpush.bf16.msra.mxu0 %v2553
  %2563 = vmatmul.bf16.gmra.mxu0 %v2529
  %v2564 = vpop.f32.mrf.mxu0
  %v2565 = vadd.f32 0.0, %v2564
  %v2566 = vpop.f32.mrf.mxu0
  %v2567 = vadd.f32 0.0, %v2566
  %2568 = vmatmul.bf16.gmra.mxu0 %v2532
  %v2569 = vpop.f32.mrf.mxu0
  %v2570 = vadd.f32 0.0, %v2569
  %v2571 = vpop.f32.mrf.mxu0
  %v2572 = vadd.f32 0.0, %v2571
  %2573 = vmatmul.bf16.gmra.mxu0 %v2535
  %v2574 = vpop.f32.mrf.mxu0
  %v2575 = vadd.f32 0.0, %v2574
  %v2576 = vpop.f32.mrf.mxu0
  %v2577 = vadd.f32 0.0, %v2576
  %2578 = vmatmul.bf16.gmra.mxu0 %v2538
  %v2579 = vpop.f32.mrf.mxu0
  %v2580 = vadd.f32 0.0, %v2579
  %v2581 = vpop.f32.mrf.mxu0
  %v2582 = vadd.f32 0.0, %v2581
  %2583 = vmatmul.bf16.gmra.mxu0 %v2541
  %v2584 = vpop.f32.mrf.mxu0
  %v2585 = vadd.f32 0.0, %v2584
  %v2586 = vpop.f32.mrf.mxu0
  %v2587 = vadd.f32 0.0, %v2586
  %2588 = vmatmul.bf16.gmra.mxu0 %v2544
  %v2589 = vpop.f32.mrf.mxu0
  %v2590 = vadd.f32 0.0, %v2589
  %v2591 = vpop.f32.mrf.mxu0
  %v2592 = vadd.f32 0.0, %v2591
  %2593 = vmatmul.bf16.gmra.mxu0 %v2547
  %v2594 = vpop.f32.mrf.mxu0
  %v2595 = vadd.f32 0.0, %v2594
  %v2596 = vpop.f32.mrf.mxu0
  %v2597 = vadd.f32 0.0, %v2596
  %2598 = vmatmul.bf16.gmra.mxu0 %v2550
  %v2599 = vpop.f32.mrf.mxu0
  %v2600 = vadd.f32 0.0, %v2599
  %v2601 = vpop.f32.mrf.mxu0
  %v2602 = vadd.f32 0.0, %v2601
  %2603 = vdwg.mxu0
  %v2604 = vadd.f32 %v2010, %v2565
  %v2605 = vadd.f32 %v2011, %v2567
  %v2606 = vadd.f32 %v2012, %v2570
  %v2607 = vadd.f32 %v2013, %v2572
  %v2608 = vadd.f32 %v2014, %v2575
  %v2609 = vadd.f32 %v2015, %v2577
  %v2610 = vadd.f32 %v2016, %v2580
  %v2611 = vadd.f32 %v2017, %v2582
  %v2612 = vadd.f32 %v2018, %v2585
  %v2613 = vadd.f32 %v2019, %v2587
  %v2614 = vadd.f32 %v2020, %v2590
  %v2615 = vadd.f32 %v2021, %v2592
  %v2616 = vadd.f32 %v2022, %v2595
  %v2617 = vadd.f32 %v2023, %v2597
  %v2618 = vadd.f32 %v2024, %v2600
  %v2619 = vadd.f32 %v2025, %v2602
  %v2621 = vperm.slane %v116, 0
  %v2623 = vadd.f32 %v2604, %v2621
  %v2624 = vadd.f32 %v2605, %v2621
  %v2625 = vadd.f32 %v2606, %v2621
  %v2626 = vadd.f32 %v2607, %v2621
  %v2627 = vadd.f32 %v2608, %v2621
  %v2628 = vadd.f32 %v2609, %v2621
  %v2629 = vadd.f32 %v2610, %v2621
  %v2630 = vadd.f32 %v2611, %v2621
  %v2631 = vadd.f32 %v2612, %v2621
  %v2632 = vadd.f32 %v2613, %v2621
  %v2633 = vadd.f32 %v2614, %v2621
  %v2634 = vadd.f32 %v2615, %v2621
  %v2635 = vadd.f32 %v2616, %v2621
  %v2636 = vadd.f32 %v2617, %v2621
  %v2637 = vadd.f32 %v2618, %v2621
  %v2638 = vadd.f32 %v2619, %v2621
  %v2639 = vadd.f32 %v99, %v2623
  %v2640 = vadd.f32 %v100, %v2624
  %v2641 = vadd.f32 %v101, %v2625
  %v2642 = vadd.f32 %v102, %v2626
  %v2643 = vadd.f32 %v103, %v2627
  %v2644 = vadd.f32 %v104, %v2628
  %v2645 = vadd.f32 %v105, %v2629
  %v2646 = vadd.f32 %v106, %v2630
  %v2647 = vadd.f32 %v107, %v2631
  %v2648 = vadd.f32 %v108, %v2632
  %v2649 = vadd.f32 %v109, %v2633
  %v2650 = vadd.f32 %v110, %v2634
  %v2651 = vadd.f32 %v111, %v2635
  %v2652 = vadd.f32 %v112, %v2636
  %v2653 = vadd.f32 %v113, %v2637
  %v2654 = vadd.f32 %v114, %v2638
  %v2655 = vld [vmem:[%s7] sm:$0x1]
  %v2656 = vld [vmem:[%s8] sm:$0x1]
  %v2657 = vsel %vm144, %v2639, 0.0
  %2658 = vadd.xlane.f32.xlu0 %v2657
  %v2659 = vpop.xlane.xlu0 %2658
  %v2660 = vsel %vm144, %v2640, 0.0
  %2661 = vadd.xlane.f32.xlu0 %v2660
  %v2662 = vpop.xlane.xlu0 %2661
  %v2663 = vsel %vm144, %v2641, 0.0
  %2664 = vadd.xlane.f32.xlu0 %v2663
  %v2665 = vpop.xlane.xlu0 %2664
  %v2666 = vsel %vm144, %v2642, 0.0
  %2667 = vadd.xlane.f32.xlu0 %v2666
  %v2668 = vpop.xlane.xlu0 %2667
  %v2669 = vsel %vm144, %v2643, 0.0
  %2670 = vadd.xlane.f32.xlu0 %v2669
  %v2671 = vpop.xlane.xlu0 %2670
  %v2672 = vsel %vm144, %v2644, 0.0
  %2673 = vadd.xlane.f32.xlu0 %v2672
  %v2674 = vpop.xlane.xlu0 %2673
  %v2675 = vsel %vm144, %v2645, 0.0
  %2676 = vadd.xlane.f32.xlu0 %v2675
  %v2677 = vpop.xlane.xlu0 %2676
  %v2678 = vsel %vm144, %v2646, 0.0
  %2679 = vadd.xlane.f32.xlu0 %v2678
  %v2680 = vpop.xlane.xlu0 %2679
  %v2681 = vsel %vm144, %v2647, 0.0
  %2682 = vadd.xlane.f32.xlu0 %v2681
  %v2683 = vpop.xlane.xlu0 %2682
  %v2684 = vsel %vm144, %v2648, 0.0
  %2685 = vadd.xlane.f32.xlu0 %v2684
  %v2686 = vpop.xlane.xlu0 %2685
  %v2687 = vsel %vm144, %v2649, 0.0
  %2688 = vadd.xlane.f32.xlu0 %v2687
  %v2689 = vpop.xlane.xlu0 %2688
  %v2690 = vsel %vm144, %v2650, 0.0
  %2691 = vadd.xlane.f32.xlu0 %v2690
  %v2692 = vpop.xlane.xlu0 %2691
  %v2693 = vsel %vm144, %v2651, 0.0
  %2694 = vadd.xlane.f32.xlu0 %v2693
  %v2695 = vpop.xlane.xlu0 %2694
  %v2696 = vsel %vm144, %v2652, 0.0
  %2697 = vadd.xlane.f32.xlu0 %v2696
  %v2698 = vpop.xlane.xlu0 %2697
  %v2699 = vsel %vm144, %v2653, 0.0
  %2700 = vadd.xlane.f32.xlu0 %v2699
  %v2701 = vpop.xlane.xlu0 %2700
  %v2702 = vsel %vm144, %v2654, 0.0
  %2703 = vadd.xlane.f32.xlu0 %v2702
  %v2704 = vpop.xlane.xlu0 %2703
  %v2705 = vrcp.pop 32.0
  %v2706 = vmul.f32 32.0, %v2705
  %v2707 = vsub.f32 1.0, %v2706
  %v2708 = vmul.f32 %v2705, %v2707
  %v2709 = vadd.f32 %v2705, %v2708
  %vm2710 = vweird.f32 %v2705
  %v2711 = vsel %vm2710, %v2705, %v2709
  %v2712 = vmul.f32 %v2659, %v2711
  %v2713 = vmul.f32 %v2662, %v2711
  %v2714 = vmul.f32 %v2665, %v2711
  %v2715 = vmul.f32 %v2668, %v2711
  %v2716 = vmul.f32 %v2671, %v2711
  %v2717 = vmul.f32 %v2674, %v2711
  %v2718 = vmul.f32 %v2677, %v2711
  %v2719 = vmul.f32 %v2680, %v2711
  %v2720 = vmul.f32 %v2683, %v2711
  %v2721 = vmul.f32 %v2686, %v2711
  %v2722 = vmul.f32 %v2689, %v2711
  %v2723 = vmul.f32 %v2692, %v2711
  %v2724 = vmul.f32 %v2695, %v2711
  %v2725 = vmul.f32 %v2698, %v2711
  %v2726 = vmul.f32 %v2701, %v2711
  %v2727 = vmul.f32 %v2704, %v2711
  %v2728 = vsub.f32 %v2639, %v2712
  %v2729 = vsub.f32 %v2640, %v2713
  %v2730 = vsub.f32 %v2641, %v2714
  %v2731 = vsub.f32 %v2642, %v2715
  %v2732 = vsub.f32 %v2643, %v2716
  %v2733 = vsub.f32 %v2644, %v2717
  %v2734 = vsub.f32 %v2645, %v2718
  %v2735 = vsub.f32 %v2646, %v2719
  %v2736 = vsub.f32 %v2647, %v2720
  %v2737 = vsub.f32 %v2648, %v2721
  %v2738 = vsub.f32 %v2649, %v2722
  %v2739 = vsub.f32 %v2650, %v2723
  %v2740 = vsub.f32 %v2651, %v2724
  %v2741 = vsub.f32 %v2652, %v2725
  %v2742 = vsub.f32 %v2653, %v2726
  %v2743 = vsub.f32 %v2654, %v2727
  %v2744 = vmul.f32 %v2728, %v2728
  %v2745 = vmul.f32 %v2729, %v2729
  %v2746 = vmul.f32 %v2730, %v2730
  %v2747 = vmul.f32 %v2731, %v2731
  %v2748 = vmul.f32 %v2732, %v2732
  %v2749 = vmul.f32 %v2733, %v2733
  %v2750 = vmul.f32 %v2734, %v2734
  %v2751 = vmul.f32 %v2735, %v2735
  %v2752 = vmul.f32 %v2736, %v2736
  %v2753 = vmul.f32 %v2737, %v2737
  %v2754 = vmul.f32 %v2738, %v2738
  %v2755 = vmul.f32 %v2739, %v2739
  %v2756 = vmul.f32 %v2740, %v2740
  %v2757 = vmul.f32 %v2741, %v2741
  %v2758 = vmul.f32 %v2742, %v2742
  %v2759 = vmul.f32 %v2743, %v2743
  %v2760 = vsel %vm144, %v2744, 0.0
  %2761 = vadd.xlane.f32.xlu0 %v2760
  %v2762 = vpop.xlane.xlu0 %2761
  %v2763 = vsel %vm144, %v2745, 0.0
  %2764 = vadd.xlane.f32.xlu0 %v2763
  %v2765 = vpop.xlane.xlu0 %2764
  %v2766 = vsel %vm144, %v2746, 0.0
  %2767 = vadd.xlane.f32.xlu0 %v2766
  %v2768 = vpop.xlane.xlu0 %2767
  %v2769 = vsel %vm144, %v2747, 0.0
  %2770 = vadd.xlane.f32.xlu0 %v2769
  %v2771 = vpop.xlane.xlu0 %2770
  %v2772 = vsel %vm144, %v2748, 0.0
  %2773 = vadd.xlane.f32.xlu0 %v2772
  %v2774 = vpop.xlane.xlu0 %2773
  %v2775 = vsel %vm144, %v2749, 0.0
  %2776 = vadd.xlane.f32.xlu0 %v2775
  %v2777 = vpop.xlane.xlu0 %2776
  %v2778 = vsel %vm144, %v2750, 0.0
  %2779 = vadd.xlane.f32.xlu0 %v2778
  %v2780 = vpop.xlane.xlu0 %2779
  %v2781 = vsel %vm144, %v2751, 0.0
  %2782 = vadd.xlane.f32.xlu0 %v2781
  %v2783 = vpop.xlane.xlu0 %2782
  %v2784 = vsel %vm144, %v2752, 0.0
  %2785 = vadd.xlane.f32.xlu0 %v2784
  %v2786 = vpop.xlane.xlu0 %2785
  %v2787 = vsel %vm144, %v2753, 0.0
  %2788 = vadd.xlane.f32.xlu0 %v2787
  %v2789 = vpop.xlane.xlu0 %2788
  %v2790 = vsel %vm144, %v2754, 0.0
  %2791 = vadd.xlane.f32.xlu0 %v2790
  %v2792 = vpop.xlane.xlu0 %2791
  %v2793 = vsel %vm144, %v2755, 0.0
  %2794 = vadd.xlane.f32.xlu0 %v2793
  %v2795 = vpop.xlane.xlu0 %2794
  %v2796 = vsel %vm144, %v2756, 0.0
  %2797 = vadd.xlane.f32.xlu0 %v2796
  %v2798 = vpop.xlane.xlu0 %2797
  %v2799 = vsel %vm144, %v2757, 0.0
  %2800 = vadd.xlane.f32.xlu0 %v2799
  %v2801 = vpop.xlane.xlu0 %2800
  %v2802 = vsel %vm144, %v2758, 0.0
  %2803 = vadd.xlane.f32.xlu0 %v2802
  %v2804 = vpop.xlane.xlu0 %2803
  %v2805 = vsel %vm144, %v2759, 0.0
  %2806 = vadd.xlane.f32.xlu0 %v2805
  %v2807 = vpop.xlane.xlu0 %2806
  %v2808 = vmul.f32 %v2762, %v2711
  %v2809 = vmul.f32 %v2765, %v2711
  %v2810 = vmul.f32 %v2768, %v2711
  %v2811 = vmul.f32 %v2771, %v2711
  %v2812 = vmul.f32 %v2774, %v2711
  %v2813 = vmul.f32 %v2777, %v2711
  %v2814 = vmul.f32 %v2780, %v2711
  %v2815 = vmul.f32 %v2783, %v2711
  %v2816 = vmul.f32 %v2786, %v2711
  %v2817 = vmul.f32 %v2789, %v2711
  %v2818 = vmul.f32 %v2792, %v2711
  %v2819 = vmul.f32 %v2795, %v2711
  %v2820 = vmul.f32 %v2798, %v2711
  %v2821 = vmul.f32 %v2801, %v2711
  %v2822 = vmul.f32 %v2804, %v2711
  %v2823 = vmul.f32 %v2807, %v2711
  %v2824 = vadd.f32 %v2808, 1e-05
  %v2825 = vadd.f32 %v2809, 1e-05
  %v2826 = vadd.f32 %v2810, 1e-05
  %v2827 = vadd.f32 %v2811, 1e-05
  %v2828 = vadd.f32 %v2812, 1e-05
  %v2829 = vadd.f32 %v2813, 1e-05
  %v2830 = vadd.f32 %v2814, 1e-05
  %v2831 = vadd.f32 %v2815, 1e-05
  %v2832 = vadd.f32 %v2816, 1e-05
  %v2833 = vadd.f32 %v2817, 1e-05
  %v2834 = vadd.f32 %v2818, 1e-05
  %v2835 = vadd.f32 %v2819, 1e-05
  %v2836 = vadd.f32 %v2820, 1e-05
  %v2837 = vadd.f32 %v2821, 1e-05
  %v2838 = vadd.f32 %v2822, 1e-05
  %v2839 = vadd.f32 %v2823, 1e-05
  %v2840 = vrsqrt.pop %v2824
  %v2841 = vmul.f32 %v2840, %v2824
  %v2842 = vmul.f32 %v2841, %v2840
  %v2843 = vmul.f32 0.5, %v2842
  %v2844 = vsub.f32 1.5, %v2843
  %v2845 = vmul.f32 %v2840, %v2844
  %vm2846 = vweird.f32 %v2824
  %vm2847 = vweird.f32 %v2840
  %vm2848 = vmor %vm2846, %vm2847
  %v2849 = vsel %vm2848, %v2840, %v2845
  %v2850 = vrsqrt.pop %v2825
  %v2851 = vmul.f32 %v2850, %v2825
  %v2852 = vmul.f32 %v2851, %v2850
  %v2853 = vmul.f32 0.5, %v2852
  %v2854 = vsub.f32 1.5, %v2853
  %v2855 = vmul.f32 %v2850, %v2854
  %vm2856 = vweird.f32 %v2825
  %vm2857 = vweird.f32 %v2850
  %vm2858 = vmor %vm2856, %vm2857
  %v2859 = vsel %vm2858, %v2850, %v2855
  %v2860 = vrsqrt.pop %v2826
  %v2861 = vmul.f32 %v2860, %v2826
  %v2862 = vmul.f32 %v2861, %v2860
  %v2863 = vmul.f32 0.5, %v2862
  %v2864 = vsub.f32 1.5, %v2863
  %v2865 = vmul.f32 %v2860, %v2864
  %vm2866 = vweird.f32 %v2826
  %vm2867 = vweird.f32 %v2860
  %vm2868 = vmor %vm2866, %vm2867
  %v2869 = vsel %vm2868, %v2860, %v2865
  %v2870 = vrsqrt.pop %v2827
  %v2871 = vmul.f32 %v2870, %v2827
  %v2872 = vmul.f32 %v2871, %v2870
  %v2873 = vmul.f32 0.5, %v2872
  %v2874 = vsub.f32 1.5, %v2873
  %v2875 = vmul.f32 %v2870, %v2874
  %vm2876 = vweird.f32 %v2827
  %vm2877 = vweird.f32 %v2870
  %vm2878 = vmor %vm2876, %vm2877
  %v2879 = vsel %vm2878, %v2870, %v2875
  %v2880 = vrsqrt.pop %v2828
  %v2881 = vmul.f32 %v2880, %v2828
  %v2882 = vmul.f32 %v2881, %v2880
  %v2883 = vmul.f32 0.5, %v2882
  %v2884 = vsub.f32 1.5, %v2883
  %v2885 = vmul.f32 %v2880, %v2884
  %vm2886 = vweird.f32 %v2828
  %vm2887 = vweird.f32 %v2880
  %vm2888 = vmor %vm2886, %vm2887
  %v2889 = vsel %vm2888, %v2880, %v2885
  %v2890 = vrsqrt.pop %v2829
  %v2891 = vmul.f32 %v2890, %v2829
  %v2892 = vmul.f32 %v2891, %v2890
  %v2893 = vmul.f32 0.5, %v2892
  %v2894 = vsub.f32 1.5, %v2893
  %v2895 = vmul.f32 %v2890, %v2894
  %vm2896 = vweird.f32 %v2829
  %vm2897 = vweird.f32 %v2890
  %vm2898 = vmor %vm2896, %vm2897
  %v2899 = vsel %vm2898, %v2890, %v2895
  %v2900 = vrsqrt.pop %v2830
  %v2901 = vmul.f32 %v2900, %v2830
  %v2902 = vmul.f32 %v2901, %v2900
  %v2903 = vmul.f32 0.5, %v2902
  %v2904 = vsub.f32 1.5, %v2903
  %v2905 = vmul.f32 %v2900, %v2904
  %vm2906 = vweird.f32 %v2830
  %vm2907 = vweird.f32 %v2900
  %vm2908 = vmor %vm2906, %vm2907
  %v2909 = vsel %vm2908, %v2900, %v2905
  %v2910 = vrsqrt.pop %v2831
  %v2911 = vmul.f32 %v2910, %v2831
  %v2912 = vmul.f32 %v2911, %v2910
  %v2913 = vmul.f32 0.5, %v2912
  %v2914 = vsub.f32 1.5, %v2913
  %v2915 = vmul.f32 %v2910, %v2914
  %vm2916 = vweird.f32 %v2831
  %vm2917 = vweird.f32 %v2910
  %vm2918 = vmor %vm2916, %vm2917
  %v2919 = vsel %vm2918, %v2910, %v2915
  %v2920 = vrsqrt.pop %v2832
  %v2921 = vmul.f32 %v2920, %v2832
  %v2922 = vmul.f32 %v2921, %v2920
  %v2923 = vmul.f32 0.5, %v2922
  %v2924 = vsub.f32 1.5, %v2923
  %v2925 = vmul.f32 %v2920, %v2924
  %vm2926 = vweird.f32 %v2832
  %vm2927 = vweird.f32 %v2920
  %vm2928 = vmor %vm2926, %vm2927
  %v2929 = vsel %vm2928, %v2920, %v2925
  %v2930 = vrsqrt.pop %v2833
  %v2931 = vmul.f32 %v2930, %v2833
  %v2932 = vmul.f32 %v2931, %v2930
  %v2933 = vmul.f32 0.5, %v2932
  %v2934 = vsub.f32 1.5, %v2933
  %v2935 = vmul.f32 %v2930, %v2934
  %vm2936 = vweird.f32 %v2833
  %vm2937 = vweird.f32 %v2930
  %vm2938 = vmor %vm2936, %vm2937
  %v2939 = vsel %vm2938, %v2930, %v2935
  %v2940 = vrsqrt.pop %v2834
  %v2941 = vmul.f32 %v2940, %v2834
  %v2942 = vmul.f32 %v2941, %v2940
  %v2943 = vmul.f32 0.5, %v2942
  %v2944 = vsub.f32 1.5, %v2943
  %v2945 = vmul.f32 %v2940, %v2944
  %vm2946 = vweird.f32 %v2834
  %vm2947 = vweird.f32 %v2940
  %vm2948 = vmor %vm2946, %vm2947
  %v2949 = vsel %vm2948, %v2940, %v2945
  %v2950 = vrsqrt.pop %v2835
  %v2951 = vmul.f32 %v2950, %v2835
  %v2952 = vmul.f32 %v2951, %v2950
  %v2953 = vmul.f32 0.5, %v2952
  %v2954 = vsub.f32 1.5, %v2953
  %v2955 = vmul.f32 %v2950, %v2954
  %vm2956 = vweird.f32 %v2835
  %vm2957 = vweird.f32 %v2950
  %vm2958 = vmor %vm2956, %vm2957
  %v2959 = vsel %vm2958, %v2950, %v2955
  %v2960 = vrsqrt.pop %v2836
  %v2961 = vmul.f32 %v2960, %v2836
  %v2962 = vmul.f32 %v2961, %v2960
  %v2963 = vmul.f32 0.5, %v2962
  %v2964 = vsub.f32 1.5, %v2963
  %v2965 = vmul.f32 %v2960, %v2964
  %vm2966 = vweird.f32 %v2836
  %vm2967 = vweird.f32 %v2960
  %vm2968 = vmor %vm2966, %vm2967
  %v2969 = vsel %vm2968, %v2960, %v2965
  %v2970 = vrsqrt.pop %v2837
  %v2971 = vmul.f32 %v2970, %v2837
  %v2972 = vmul.f32 %v2971, %v2970
  %v2973 = vmul.f32 0.5, %v2972
  %v2974 = vsub.f32 1.5, %v2973
  %v2975 = vmul.f32 %v2970, %v2974
  %vm2976 = vweird.f32 %v2837
  %vm2977 = vweird.f32 %v2970
  %vm2978 = vmor %vm2976, %vm2977
  %v2979 = vsel %vm2978, %v2970, %v2975
  %v2980 = vrsqrt.pop %v2838
  %v2981 = vmul.f32 %v2980, %v2838
  %v2982 = vmul.f32 %v2981, %v2980
  %v2983 = vmul.f32 0.5, %v2982
  %v2984 = vsub.f32 1.5, %v2983
  %v2985 = vmul.f32 %v2980, %v2984
  %vm2986 = vweird.f32 %v2838
  %vm2987 = vweird.f32 %v2980
  %vm2988 = vmor %vm2986, %vm2987
  %v2989 = vsel %vm2988, %v2980, %v2985
  %v2990 = vrsqrt.pop %v2839
  %v2991 = vmul.f32 %v2990, %v2839
  %v2992 = vmul.f32 %v2991, %v2990
  %v2993 = vmul.f32 0.5, %v2992
  %v2994 = vsub.f32 1.5, %v2993
  %v2995 = vmul.f32 %v2990, %v2994
  %vm2996 = vweird.f32 %v2839
  %vm2997 = vweird.f32 %v2990
  %vm2998 = vmor %vm2996, %vm2997
  %v2999 = vsel %vm2998, %v2990, %v2995
  %v3000 = vmul.f32 %v2728, %v2849
  %v3001 = vmul.f32 %v2729, %v2859
  %v3002 = vmul.f32 %v2730, %v2869
  %v3003 = vmul.f32 %v2731, %v2879
  %v3004 = vmul.f32 %v2732, %v2889
  %v3005 = vmul.f32 %v2733, %v2899
  %v3006 = vmul.f32 %v2734, %v2909
  %v3007 = vmul.f32 %v2735, %v2919
  %v3008 = vmul.f32 %v2736, %v2929
  %v3009 = vmul.f32 %v2737, %v2939
  %v3010 = vmul.f32 %v2738, %v2949
  %v3011 = vmul.f32 %v2739, %v2959
  %v3012 = vmul.f32 %v2740, %v2969
  %v3013 = vmul.f32 %v2741, %v2979
  %v3014 = vmul.f32 %v2742, %v2989
  %v3015 = vmul.f32 %v2743, %v2999
  %v3017 = vperm.slane %v2655, 0
  %v3019 = vmul.f32 %v3000, %v3017
  %v3020 = vmul.f32 %v3001, %v3017
  %v3021 = vmul.f32 %v3002, %v3017
  %v3022 = vmul.f32 %v3003, %v3017
  %v3023 = vmul.f32 %v3004, %v3017
  %v3024 = vmul.f32 %v3005, %v3017
  %v3025 = vmul.f32 %v3006, %v3017
  %v3026 = vmul.f32 %v3007, %v3017
  %v3027 = vmul.f32 %v3008, %v3017
  %v3028 = vmul.f32 %v3009, %v3017
  %v3029 = vmul.f32 %v3010, %v3017
  %v3030 = vmul.f32 %v3011, %v3017
  %v3031 = vmul.f32 %v3012, %v3017
  %v3032 = vmul.f32 %v3013, %v3017
  %v3033 = vmul.f32 %v3014, %v3017
  %v3034 = vmul.f32 %v3015, %v3017
  %v3036 = vperm.slane %v2656, 0
  %v3038 = vadd.f32 %v3019, %v3036
  %v3039 = vadd.f32 %v3020, %v3036
  %v3040 = vadd.f32 %v3021, %v3036
  %v3041 = vadd.f32 %v3022, %v3036
  %v3042 = vadd.f32 %v3023, %v3036
  %v3043 = vadd.f32 %v3024, %v3036
  %v3044 = vadd.f32 %v3025, %v3036
  %v3045 = vadd.f32 %v3026, %v3036
  %v3046 = vadd.f32 %v3027, %v3036
  %v3047 = vadd.f32 %v3028, %v3036
  %v3048 = vadd.f32 %v3029, %v3036
  %v3049 = vadd.f32 %v3030, %v3036
  %v3050 = vadd.f32 %v3031, %v3036
  %v3051 = vadd.f32 %v3032, %v3036
  %v3052 = vadd.f32 %v3033, %v3036
  %v3053 = vadd.f32 %v3034, %v3036
  %v3054 = vpack.c.bf16 %v3039, %v3038
  %v3055 = vpack.c.bf16 %v3041, %v3040
  %v3056 = vpack.c.bf16 %v3043, %v3042
  %v3057 = vpack.c.bf16 %v3045, %v3044
  %v3058 = vpack.c.bf16 %v3047, %v3046
  %v3059 = vpack.c.bf16 %v3049, %v3048
  %v3060 = vpack.c.bf16 %v3051, %v3050
  %v3061 = vpack.c.bf16 %v3053, %v3052
  %v3062 = vld [vmem:[%s9] sm:$0xf]
  %v3063 = vld [vmem:[%s9 + $0x4] sm:$0xf]
  %v3064 = vld [vmem:[%s9 + $0x8] sm:$0xf]
  %v3065 = vld [vmem:[%s9 + $0xc] sm:$0xf]
  %v3066 = vld [vmem:[%s10] sm:$0x1]
  %v3068 = vperm.slane %v3066, 0
  %v3074 = vunpack.c.l.b16 %v3062
  %v3075 = vunpack.c.l.b16 %v3063
  %v3076 = vunpack.c.l.b16 %v3064
  %v3077 = vunpack.c.l.b16 %v3065
  %v3078 = vpack.c.b16 %v3075, %v3074
  %v3079 = vpack.c.b16 %v3077, %v3076
  %v3083 = vsel %vm144, %v3054, 0
  %v3086 = vsel %vm144, %v3055, 0
  %v3089 = vsel %vm144, %v3056, 0
  %v3092 = vsel %vm144, %v3057, 0
  %v3095 = vsel %vm144, %v3058, 0
  %v3098 = vsel %vm144, %v3059, 0
  %v3101 = vsel %vm144, %v3060, 0
  %v3104 = vsel %vm144, %v3061, 0
  %3106 = vmatpush.bf16.msra.mxu0 0
  %3107 = vmatpush.bf16.msra.mxu0 0
  %3108 = vmatpush.bf16.msra.mxu0 0
  %3109 = vmatpush.bf16.msra.mxu0 0
  %3110 = vmatpush.bf16.msra.mxu0 0
  %3111 = vmatpush.bf16.msra.mxu0 0
  %3112 = vmatpush.bf16.msra.mxu0 %v3079
  %3113 = vmatpush.bf16.msra.mxu0 %v3078
  %3114 = vmatmul.bf16.gmra.mxu0 %v3083
  %v3115 = vpop.f32.mrf.mxu0
  %v3116 = vadd.f32 %v3068, %v3115
  %v3117 = vpop.f32.mrf.mxu0
  %v3118 = vadd.f32 %v3068, %v3117
  %3119 = vmatmul.bf16.gmra.mxu0 %v3086
  %v3120 = vpop.f32.mrf.mxu0
  %v3121 = vadd.f32 %v3068, %v3120
  %v3122 = vpop.f32.mrf.mxu0
  %v3123 = vadd.f32 %v3068, %v3122
  %3124 = vmatmul.bf16.gmra.mxu0 %v3089
  %v3125 = vpop.f32.mrf.mxu0
  %v3126 = vadd.f32 %v3068, %v3125
  %v3127 = vpop.f32.mrf.mxu0
  %v3128 = vadd.f32 %v3068, %v3127
  %3129 = vmatmul.bf16.gmra.mxu0 %v3092
  %v3130 = vpop.f32.mrf.mxu0
  %v3131 = vadd.f32 %v3068, %v3130
  %v3132 = vpop.f32.mrf.mxu0
  %v3133 = vadd.f32 %v3068, %v3132
  %3134 = vmatmul.bf16.gmra.mxu0 %v3095
  %v3135 = vpop.f32.mrf.mxu0
  %v3136 = vadd.f32 %v3068, %v3135
  %v3137 = vpop.f32.mrf.mxu0
  %v3138 = vadd.f32 %v3068, %v3137
  %3139 = vmatmul.bf16.gmra.mxu0 %v3098
  %v3140 = vpop.f32.mrf.mxu0
  %v3141 = vadd.f32 %v3068, %v3140
  %v3142 = vpop.f32.mrf.mxu0
  %v3143 = vadd.f32 %v3068, %v3142
  %3144 = vmatmul.bf16.gmra.mxu0 %v3101
  %v3145 = vpop.f32.mrf.mxu0
  %v3146 = vadd.f32 %v3068, %v3145
  %v3147 = vpop.f32.mrf.mxu0
  %v3148 = vadd.f32 %v3068, %v3147
  %3149 = vmatmul.bf16.gmra.mxu0 %v3104
  %v3150 = vpop.f32.mrf.mxu0
  %v3151 = vadd.f32 %v3068, %v3150
  %v3152 = vpop.f32.mrf.mxu0
  %v3153 = vadd.f32 %v3068, %v3152
  %3154 = vdwg.mxu0
  %v3155 = vand.u32 2147483647, %v3116
  %v3156 = vand.u32 2147483647, %v3118
  %v3157 = vand.u32 2147483647, %v3121
  %v3158 = vand.u32 2147483647, %v3123
  %v3159 = vand.u32 2147483647, %v3126
  %v3160 = vand.u32 2147483647, %v3128
  %v3161 = vand.u32 2147483647, %v3131
  %v3162 = vand.u32 2147483647, %v3133
  %v3163 = vand.u32 2147483647, %v3136
  %v3164 = vand.u32 2147483647, %v3138
  %v3165 = vand.u32 2147483647, %v3141
  %v3166 = vand.u32 2147483647, %v3143
  %v3167 = vand.u32 2147483647, %v3146
  %v3168 = vand.u32 2147483647, %v3148
  %v3169 = vand.u32 2147483647, %v3151
  %v3170 = vand.u32 2147483647, %v3153
  %v3171 = vsub.f32 0.0, %v3155
  %v3172 = vsub.f32 0.0, %v3156
  %v3173 = vsub.f32 0.0, %v3157
  %v3174 = vsub.f32 0.0, %v3158
  %v3175 = vsub.f32 0.0, %v3159
  %v3176 = vsub.f32 0.0, %v3160
  %v3177 = vsub.f32 0.0, %v3161
  %v3178 = vsub.f32 0.0, %v3162
  %v3179 = vsub.f32 0.0, %v3163
  %v3180 = vsub.f32 0.0, %v3164
  %v3181 = vsub.f32 0.0, %v3165
  %v3182 = vsub.f32 0.0, %v3166
  %v3183 = vsub.f32 0.0, %v3167
  %v3184 = vsub.f32 0.0, %v3168
  %v3185 = vsub.f32 0.0, %v3169
  %v3186 = vsub.f32 0.0, %v3170
  %v3187 = vmul.f32 %v3171, 1.442695
  %v3188 = vpow.pop %v3187
  %v3189 = vmul.f32 %v3172, 1.442695
  %v3190 = vpow.pop %v3189
  %v3191 = vmul.f32 %v3173, 1.442695
  %v3192 = vpow.pop %v3191
  %v3193 = vmul.f32 %v3174, 1.442695
  %v3194 = vpow.pop %v3193
  %v3195 = vmul.f32 %v3175, 1.442695
  %v3196 = vpow.pop %v3195
  %v3197 = vmul.f32 %v3176, 1.442695
  %v3198 = vpow.pop %v3197
  %v3199 = vmul.f32 %v3177, 1.442695
  %v3200 = vpow.pop %v3199
  %v3201 = vmul.f32 %v3178, 1.442695
  %v3202 = vpow.pop %v3201
  %v3203 = vmul.f32 %v3179, 1.442695
  %v3204 = vpow.pop %v3203
  %v3205 = vmul.f32 %v3180, 1.442695
  %v3206 = vpow.pop %v3205
  %v3207 = vmul.f32 %v3181, 1.442695
  %v3208 = vpow.pop %v3207
  %v3209 = vmul.f32 %v3182, 1.442695
  %v3210 = vpow.pop %v3209
  %v3211 = vmul.f32 %v3183, 1.442695
  %v3212 = vpow.pop %v3211
  %v3213 = vmul.f32 %v3184, 1.442695
  %v3214 = vpow.pop %v3213
  %v3215 = vmul.f32 %v3185, 1.442695
  %v3216 = vpow.pop %v3215
  %v3217 = vmul.f32 %v3186, 1.442695
  %v3218 = vpow.pop %v3217
  %v3219 = vadd.f32 %v3188, 1.0
  %v3220 = vlog2.pop %v3219
  %v3221 = vmul.f32 %v3220, 0.6931472
  %v3222 = vmul.f32 -0.5, %v3188
  %v3223 = vadd.f32 %v3222, 1.0
  %v3224 = vmul.f32 %v3223, %v3188
  %v3225 = vand.u32 2147483647, %v3188
  %vm3226 = vcmp.lt.f32.partialorder %v3225, 0.0004427343
  %v3227 = vsel %vm3226, %v3224, %v3221
  %v3228 = vadd.f32 %v3190, 1.0
  %v3229 = vlog2.pop %v3228
  %v3230 = vmul.f32 %v3229, 0.6931472
  %v3231 = vmul.f32 -0.5, %v3190
  %v3232 = vadd.f32 %v3231, 1.0
  %v3233 = vmul.f32 %v3232, %v3190
  %v3234 = vand.u32 2147483647, %v3190
  %vm3235 = vcmp.lt.f32.partialorder %v3234, 0.0004427343
  %v3236 = vsel %vm3235, %v3233, %v3230
  %v3237 = vadd.f32 %v3192, 1.0
  %v3238 = vlog2.pop %v3237
  %v3239 = vmul.f32 %v3238, 0.6931472
  %v3240 = vmul.f32 -0.5, %v3192
  %v3241 = vadd.f32 %v3240, 1.0
  %v3242 = vmul.f32 %v3241, %v3192
  %v3243 = vand.u32 2147483647, %v3192
  %vm3244 = vcmp.lt.f32.partialorder %v3243, 0.0004427343
  %v3245 = vsel %vm3244, %v3242, %v3239
  %v3246 = vadd.f32 %v3194, 1.0
  %v3247 = vlog2.pop %v3246
  %v3248 = vmul.f32 %v3247, 0.6931472
  %v3249 = vmul.f32 -0.5, %v3194
  %v3250 = vadd.f32 %v3249, 1.0
  %v3251 = vmul.f32 %v3250, %v3194
  %v3252 = vand.u32 2147483647, %v3194
  %vm3253 = vcmp.lt.f32.partialorder %v3252, 0.0004427343
  %v3254 = vsel %vm3253, %v3251, %v3248
  %v3255 = vadd.f32 %v3196, 1.0
  %v3256 = vlog2.pop %v3255
  %v3257 = vmul.f32 %v3256, 0.6931472
  %v3258 = vmul.f32 -0.5, %v3196
  %v3259 = vadd.f32 %v3258, 1.0
  %v3260 = vmul.f32 %v3259, %v3196
  %v3261 = vand.u32 2147483647, %v3196
  %vm3262 = vcmp.lt.f32.partialorder %v3261, 0.0004427343
  %v3263 = vsel %vm3262, %v3260, %v3257
  %v3264 = vadd.f32 %v3198, 1.0
  %v3265 = vlog2.pop %v3264
  %v3266 = vmul.f32 %v3265, 0.6931472
  %v3267 = vmul.f32 -0.5, %v3198
  %v3268 = vadd.f32 %v3267, 1.0
  %v3269 = vmul.f32 %v3268, %v3198
  %v3270 = vand.u32 2147483647, %v3198
  %vm3271 = vcmp.lt.f32.partialorder %v3270, 0.0004427343
  %v3272 = vsel %vm3271, %v3269, %v3266
  %v3273 = vadd.f32 %v3200, 1.0
  %v3274 = vlog2.pop %v3273
  %v3275 = vmul.f32 %v3274, 0.6931472
  %v3276 = vmul.f32 -0.5, %v3200
  %v3277 = vadd.f32 %v3276, 1.0
  %v3278 = vmul.f32 %v3277, %v3200
  %v3279 = vand.u32 2147483647, %v3200
  %vm3280 = vcmp.lt.f32.partialorder %v3279, 0.0004427343
  %v3281 = vsel %vm3280, %v3278, %v3275
  %v3282 = vadd.f32 %v3202, 1.0
  %v3283 = vlog2.pop %v3282
  %v3284 = vmul.f32 %v3283, 0.6931472
  %v3285 = vmul.f32 -0.5, %v3202
  %v3286 = vadd.f32 %v3285, 1.0
  %v3287 = vmul.f32 %v3286, %v3202
  %v3288 = vand.u32 2147483647, %v3202
  %vm3289 = vcmp.lt.f32.partialorder %v3288, 0.0004427343
  %v3290 = vsel %vm3289, %v3287, %v3284
  %v3291 = vadd.f32 %v3204, 1.0
  %v3292 = vlog2.pop %v3291
  %v3293 = vmul.f32 %v3292, 0.6931472
  %v3294 = vmul.f32 -0.5, %v3204
  %v3295 = vadd.f32 %v3294, 1.0
  %v3296 = vmul.f32 %v3295, %v3204
  %v3297 = vand.u32 2147483647, %v3204
  %vm3298 = vcmp.lt.f32.partialorder %v3297, 0.0004427343
  %v3299 = vsel %vm3298, %v3296, %v3293
  %v3300 = vadd.f32 %v3206, 1.0
  %v3301 = vlog2.pop %v3300
  %v3302 = vmul.f32 %v3301, 0.6931472
  %v3303 = vmul.f32 -0.5, %v3206
  %v3304 = vadd.f32 %v3303, 1.0
  %v3305 = vmul.f32 %v3304, %v3206
  %v3306 = vand.u32 2147483647, %v3206
  %vm3307 = vcmp.lt.f32.partialorder %v3306, 0.0004427343
  %v3308 = vsel %vm3307, %v3305, %v3302
  %v3309 = vadd.f32 %v3208, 1.0
  %v3310 = vlog2.pop %v3309
  %v3311 = vmul.f32 %v3310, 0.6931472
  %v3312 = vmul.f32 -0.5, %v3208
  %v3313 = vadd.f32 %v3312, 1.0
  %v3314 = vmul.f32 %v3313, %v3208
  %v3315 = vand.u32 2147483647, %v3208
  %vm3316 = vcmp.lt.f32.partialorder %v3315, 0.0004427343
  %v3317 = vsel %vm3316, %v3314, %v3311
  %v3318 = vadd.f32 %v3210, 1.0
  %v3319 = vlog2.pop %v3318
  %v3320 = vmul.f32 %v3319, 0.6931472
  %v3321 = vmul.f32 -0.5, %v3210
  %v3322 = vadd.f32 %v3321, 1.0
  %v3323 = vmul.f32 %v3322, %v3210
  %v3324 = vand.u32 2147483647, %v3210
  %vm3325 = vcmp.lt.f32.partialorder %v3324, 0.0004427343
  %v3326 = vsel %vm3325, %v3323, %v3320
  %v3327 = vadd.f32 %v3212, 1.0
  %v3328 = vlog2.pop %v3327
  %v3329 = vmul.f32 %v3328, 0.6931472
  %v3330 = vmul.f32 -0.5, %v3212
  %v3331 = vadd.f32 %v3330, 1.0
  %v3332 = vmul.f32 %v3331, %v3212
  %v3333 = vand.u32 2147483647, %v3212
  %vm3334 = vcmp.lt.f32.partialorder %v3333, 0.0004427343
  %v3335 = vsel %vm3334, %v3332, %v3329
  %v3336 = vadd.f32 %v3214, 1.0
  %v3337 = vlog2.pop %v3336
  %v3338 = vmul.f32 %v3337, 0.6931472
  %v3339 = vmul.f32 -0.5, %v3214
  %v3340 = vadd.f32 %v3339, 1.0
  %v3341 = vmul.f32 %v3340, %v3214
  %v3342 = vand.u32 2147483647, %v3214
  %vm3343 = vcmp.lt.f32.partialorder %v3342, 0.0004427343
  %v3344 = vsel %vm3343, %v3341, %v3338
  %v3345 = vadd.f32 %v3216, 1.0
  %v3346 = vlog2.pop %v3345
  %v3347 = vmul.f32 %v3346, 0.6931472
  %v3348 = vmul.f32 -0.5, %v3216
  %v3349 = vadd.f32 %v3348, 1.0
  %v3350 = vmul.f32 %v3349, %v3216
  %v3351 = vand.u32 2147483647, %v3216
  %vm3352 = vcmp.lt.f32.partialorder %v3351, 0.0004427343
  %v3353 = vsel %vm3352, %v3350, %v3347
  %v3354 = vadd.f32 %v3218, 1.0
  %v3355 = vlog2.pop %v3354
  %v3356 = vmul.f32 %v3355, 0.6931472
  %v3357 = vmul.f32 -0.5, %v3218
  %v3358 = vadd.f32 %v3357, 1.0
  %v3359 = vmul.f32 %v3358, %v3218
  %v3360 = vand.u32 2147483647, %v3218
  %vm3361 = vcmp.lt.f32.partialorder %v3360, 0.0004427343
  %v3362 = vsel %vm3361, %v3359, %v3356
  %v3363 = vmax.f32 %v3116, 0.0
  %v3364 = vmax.f32 %v3118, 0.0
  %v3365 = vmax.f32 %v3121, 0.0
  %v3366 = vmax.f32 %v3123, 0.0
  %v3367 = vmax.f32 %v3126, 0.0
  %v3368 = vmax.f32 %v3128, 0.0
  %v3369 = vmax.f32 %v3131, 0.0
  %v3370 = vmax.f32 %v3133, 0.0
  %v3371 = vmax.f32 %v3136, 0.0
  %v3372 = vmax.f32 %v3138, 0.0
  %v3373 = vmax.f32 %v3141, 0.0
  %v3374 = vmax.f32 %v3143, 0.0
  %v3375 = vmax.f32 %v3146, 0.0
  %v3376 = vmax.f32 %v3148, 0.0
  %v3377 = vmax.f32 %v3151, 0.0
  %v3378 = vmax.f32 %v3153, 0.0
  %v3379 = vadd.f32 %v3227, %v3363
  %v3380 = vadd.f32 %v3236, %v3364
  %v3381 = vadd.f32 %v3245, %v3365
  %v3382 = vadd.f32 %v3254, %v3366
  %v3383 = vadd.f32 %v3263, %v3367
  %v3384 = vadd.f32 %v3272, %v3368
  %v3385 = vadd.f32 %v3281, %v3369
  %v3386 = vadd.f32 %v3290, %v3370
  %v3387 = vadd.f32 %v3299, %v3371
  %v3388 = vadd.f32 %v3308, %v3372
  %v3389 = vadd.f32 %v3317, %v3373
  %v3390 = vadd.f32 %v3326, %v3374
  %v3391 = vadd.f32 %v3335, %v3375
  %v3392 = vadd.f32 %v3344, %v3376
  %v3393 = vadd.f32 %v3353, %v3377
  %v3394 = vadd.f32 %v3362, %v3378
  %v3395 = vtanh.pop %v3379
  %v3396 = vtanh.pop %v3380
  %v3397 = vtanh.pop %v3381
  %v3398 = vtanh.pop %v3382
  %v3399 = vtanh.pop %v3383
  %v3400 = vtanh.pop %v3384
  %v3401 = vtanh.pop %v3385
  %v3402 = vtanh.pop %v3386
  %v3403 = vtanh.pop %v3387
  %v3404 = vtanh.pop %v3388
  %v3405 = vtanh.pop %v3389
  %v3406 = vtanh.pop %v3390
  %v3407 = vtanh.pop %v3391
  %v3408 = vtanh.pop %v3392
  %v3409 = vtanh.pop %v3393
  %v3410 = vtanh.pop %v3394
  %v3411 = vmul.f32 %v3116, %v3395
  %v3412 = vmul.f32 %v3118, %v3396
  %v3413 = vmul.f32 %v3121, %v3397
  %v3414 = vmul.f32 %v3123, %v3398
  %v3415 = vmul.f32 %v3126, %v3399
  %v3416 = vmul.f32 %v3128, %v3400
  %v3417 = vmul.f32 %v3131, %v3401
  %v3418 = vmul.f32 %v3133, %v3402
  %v3419 = vmul.f32 %v3136, %v3403
  %v3420 = vmul.f32 %v3138, %v3404
  %v3421 = vmul.f32 %v3141, %v3405
  %v3422 = vmul.f32 %v3143, %v3406
  %v3423 = vmul.f32 %v3146, %v3407
  %v3424 = vmul.f32 %v3148, %v3408
  %v3425 = vmul.f32 %v3151, %v3409
  %v3426 = vmul.f32 %v3153, %v3410
  %v3427 = vpack.c.bf16 %v3412, %v3411
  %v3428 = vpack.c.bf16 %v3414, %v3413
  %v3429 = vpack.c.bf16 %v3416, %v3415
  %v3430 = vpack.c.bf16 %v3418, %v3417
  %v3431 = vpack.c.bf16 %v3420, %v3419
  %v3432 = vpack.c.bf16 %v3422, %v3421
  %v3433 = vpack.c.bf16 %v3424, %v3423
  %v3434 = vpack.c.bf16 %v3426, %v3425
  %v3435 = vld [vmem:[%s11] sm:$0xf]
  %v3436 = vld [vmem:[%s11 + $0x4] sm:$0xf]
  %v3437 = vld [vmem:[%s11 + $0x8] sm:$0xf]
  %v3438 = vld [vmem:[%s11 + $0xc] sm:$0xf]
  %v3439 = vld [vmem:[%s11 + $0x10] sm:$0xf]
  %v3440 = vld [vmem:[%s11 + $0x14] sm:$0xf]
  %v3441 = vld [vmem:[%s11 + $0x18] sm:$0xf]
  %v3442 = vld [vmem:[%s11 + $0x1c] sm:$0xf]
  %v3443 = vld [vmem:[%s12] sm:$0x1]
  %v3445 = vperm.slane %v3443, 0
  %v3455 = vunpack.c.l.b16 %v3435
  %v3456 = vunpack.c.l.b16 %v3436
  %v3457 = vunpack.c.l.b16 %v3437
  %v3458 = vunpack.c.l.b16 %v3438
  %v3459 = vunpack.c.l.b16 %v3439
  %v3460 = vunpack.c.l.b16 %v3440
  %v3461 = vunpack.c.l.b16 %v3441
  %v3462 = vunpack.c.l.b16 %v3442
  %v3463 = vpack.c.b16 %v3456, %v3455
  %v3464 = vpack.c.b16 %v3458, %v3457
  %v3465 = vpack.c.b16 %v3460, %v3459
  %v3466 = vpack.c.b16 %v3462, %v3461
  %v3472 = vsel %vm397, %v3427, 0
  %v3475 = vsel %vm397, %v3428, 0
  %v3478 = vsel %vm397, %v3429, 0
  %v3481 = vsel %vm397, %v3430, 0
  %v3484 = vsel %vm397, %v3431, 0
  %v3487 = vsel %vm397, %v3432, 0
  %v3490 = vsel %vm397, %v3433, 0
  %v3493 = vsel %vm397, %v3434, 0
  %3495 = vmatpush.bf16.msra.mxu0 0
  %3496 = vmatpush.bf16.msra.mxu0 0
  %3497 = vmatpush.bf16.msra.mxu0 0
  %3498 = vmatpush.bf16.msra.mxu0 0
  %3499 = vmatpush.bf16.msra.mxu0 %v3466
  %3500 = vmatpush.bf16.msra.mxu0 %v3465
  %3501 = vmatpush.bf16.msra.mxu0 %v3464
  %3502 = vmatpush.bf16.msra.mxu0 %v3463
  %3503 = vmatmul.bf16.gmra.mxu0 %v3472
  %v3504 = vpop.f32.mrf.mxu0
  %v3505 = vadd.f32 %v3445, %v3504
  %v3506 = vpop.f32.mrf.mxu0
  %v3507 = vadd.f32 %v3445, %v3506
  %3508 = vmatmul.bf16.gmra.mxu0 %v3475
  %v3509 = vpop.f32.mrf.mxu0
  %v3510 = vadd.f32 %v3445, %v3509
  %v3511 = vpop.f32.mrf.mxu0
  %v3512 = vadd.f32 %v3445, %v3511
  %3513 = vmatmul.bf16.gmra.mxu0 %v3478
  %v3514 = vpop.f32.mrf.mxu0
  %v3515 = vadd.f32 %v3445, %v3514
  %v3516 = vpop.f32.mrf.mxu0
  %v3517 = vadd.f32 %v3445, %v3516
  %3518 = vmatmul.bf16.gmra.mxu0 %v3481
  %v3519 = vpop.f32.mrf.mxu0
  %v3520 = vadd.f32 %v3445, %v3519
  %v3521 = vpop.f32.mrf.mxu0
  %v3522 = vadd.f32 %v3445, %v3521
  %3523 = vmatmul.bf16.gmra.mxu0 %v3484
  %v3524 = vpop.f32.mrf.mxu0
  %v3525 = vadd.f32 %v3445, %v3524
  %v3526 = vpop.f32.mrf.mxu0
  %v3527 = vadd.f32 %v3445, %v3526
  %3528 = vmatmul.bf16.gmra.mxu0 %v3487
  %v3529 = vpop.f32.mrf.mxu0
  %v3530 = vadd.f32 %v3445, %v3529
  %v3531 = vpop.f32.mrf.mxu0
  %v3532 = vadd.f32 %v3445, %v3531
  %3533 = vmatmul.bf16.gmra.mxu0 %v3490
  %v3534 = vpop.f32.mrf.mxu0
  %v3535 = vadd.f32 %v3445, %v3534
  %v3536 = vpop.f32.mrf.mxu0
  %v3537 = vadd.f32 %v3445, %v3536
  %3538 = vmatmul.bf16.gmra.mxu0 %v3493
  %v3539 = vpop.f32.mrf.mxu0
  %v3540 = vadd.f32 %v3445, %v3539
  %v3541 = vpop.f32.mrf.mxu0
  %v3542 = vadd.f32 %v3445, %v3541
  %3543 = vdwg.mxu0
  %v3544 = vadd.f32 %v3038, %v3505
  %v3545 = vadd.f32 %v3039, %v3507
  %v3546 = vadd.f32 %v3040, %v3510
  %v3547 = vadd.f32 %v3041, %v3512
  %v3548 = vadd.f32 %v3042, %v3515
  %v3549 = vadd.f32 %v3043, %v3517
  %v3550 = vadd.f32 %v3044, %v3520
  %v3551 = vadd.f32 %v3045, %v3522
  %v3552 = vadd.f32 %v3046, %v3525
  %v3553 = vadd.f32 %v3047, %v3527
  %v3554 = vadd.f32 %v3048, %v3530
  %v3555 = vadd.f32 %v3049, %v3532
  %v3556 = vadd.f32 %v3050, %v3535
  %v3557 = vadd.f32 %v3051, %v3537
  %v3558 = vadd.f32 %v3052, %v3540
  %v3559 = vadd.f32 %v3053, %v3542
  %v3560 = vld [vmem:[%s13] sm:$0x1]
  %v3561 = vld [vmem:[%s14] sm:$0x1]
  %v3562 = vsel %vm144, %v3544, 0.0
  %3563 = vadd.xlane.f32.xlu0 %v3562
  %v3564 = vpop.xlane.xlu0 %3563
  %v3565 = vsel %vm144, %v3545, 0.0
  %3566 = vadd.xlane.f32.xlu0 %v3565
  %v3567 = vpop.xlane.xlu0 %3566
  %v3568 = vsel %vm144, %v3546, 0.0
  %3569 = vadd.xlane.f32.xlu0 %v3568
  %v3570 = vpop.xlane.xlu0 %3569
  %v3571 = vsel %vm144, %v3547, 0.0
  %3572 = vadd.xlane.f32.xlu0 %v3571
  %v3573 = vpop.xlane.xlu0 %3572
  %v3574 = vsel %vm144, %v3548, 0.0
  %3575 = vadd.xlane.f32.xlu0 %v3574
  %v3576 = vpop.xlane.xlu0 %3575
  %v3577 = vsel %vm144, %v3549, 0.0
  %3578 = vadd.xlane.f32.xlu0 %v3577
  %v3579 = vpop.xlane.xlu0 %3578
  %v3580 = vsel %vm144, %v3550, 0.0
  %3581 = vadd.xlane.f32.xlu0 %v3580
  %v3582 = vpop.xlane.xlu0 %3581
  %v3583 = vsel %vm144, %v3551, 0.0
  %3584 = vadd.xlane.f32.xlu0 %v3583
  %v3585 = vpop.xlane.xlu0 %3584
  %v3586 = vsel %vm144, %v3552, 0.0
  %3587 = vadd.xlane.f32.xlu0 %v3586
  %v3588 = vpop.xlane.xlu0 %3587
  %v3589 = vsel %vm144, %v3553, 0.0
  %3590 = vadd.xlane.f32.xlu0 %v3589
  %v3591 = vpop.xlane.xlu0 %3590
  %v3592 = vsel %vm144, %v3554, 0.0
  %3593 = vadd.xlane.f32.xlu0 %v3592
  %v3594 = vpop.xlane.xlu0 %3593
  %v3595 = vsel %vm144, %v3555, 0.0
  %3596 = vadd.xlane.f32.xlu0 %v3595
  %v3597 = vpop.xlane.xlu0 %3596
  %v3598 = vsel %vm144, %v3556, 0.0
  %3599 = vadd.xlane.f32.xlu0 %v3598
  %v3600 = vpop.xlane.xlu0 %3599
  %v3601 = vsel %vm144, %v3557, 0.0
  %3602 = vadd.xlane.f32.xlu0 %v3601
  %v3603 = vpop.xlane.xlu0 %3602
  %v3604 = vsel %vm144, %v3558, 0.0
  %3605 = vadd.xlane.f32.xlu0 %v3604
  %v3606 = vpop.xlane.xlu0 %3605
  %v3607 = vsel %vm144, %v3559, 0.0
  %3608 = vadd.xlane.f32.xlu0 %v3607
  %v3609 = vpop.xlane.xlu0 %3608
  %v3610 = vmul.f32 %v3564, %v2711
  %v3611 = vmul.f32 %v3567, %v2711
  %v3612 = vmul.f32 %v3570, %v2711
  %v3613 = vmul.f32 %v3573, %v2711
  %v3614 = vmul.f32 %v3576, %v2711
  %v3615 = vmul.f32 %v3579, %v2711
  %v3616 = vmul.f32 %v3582, %v2711
  %v3617 = vmul.f32 %v3585, %v2711
  %v3618 = vmul.f32 %v3588, %v2711
  %v3619 = vmul.f32 %v3591, %v2711
  %v3620 = vmul.f32 %v3594, %v2711
  %v3621 = vmul.f32 %v3597, %v2711
  %v3622 = vmul.f32 %v3600, %v2711
  %v3623 = vmul.f32 %v3603, %v2711
  %v3624 = vmul.f32 %v3606, %v2711
  %v3625 = vmul.f32 %v3609, %v2711
  %v3626 = vsub.f32 %v3544, %v3610
  %v3627 = vsub.f32 %v3545, %v3611
  %v3628 = vsub.f32 %v3546, %v3612
  %v3629 = vsub.f32 %v3547, %v3613
  %v3630 = vsub.f32 %v3548, %v3614
  %v3631 = vsub.f32 %v3549, %v3615
  %v3632 = vsub.f32 %v3550, %v3616
  %v3633 = vsub.f32 %v3551, %v3617
  %v3634 = vsub.f32 %v3552, %v3618
  %v3635 = vsub.f32 %v3553, %v3619
  %v3636 = vsub.f32 %v3554, %v3620
  %v3637 = vsub.f32 %v3555, %v3621
  %v3638 = vsub.f32 %v3556, %v3622
  %v3639 = vsub.f32 %v3557, %v3623
  %v3640 = vsub.f32 %v3558, %v3624
  %v3641 = vsub.f32 %v3559, %v3625
  %v3642 = vmul.f32 %v3626, %v3626
  %v3643 = vmul.f32 %v3627, %v3627
  %v3644 = vmul.f32 %v3628, %v3628
  %v3645 = vmul.f32 %v3629, %v3629
  %v3646 = vmul.f32 %v3630, %v3630
  %v3647 = vmul.f32 %v3631, %v3631
  %v3648 = vmul.f32 %v3632, %v3632
  %v3649 = vmul.f32 %v3633, %v3633
  %v3650 = vmul.f32 %v3634, %v3634
  %v3651 = vmul.f32 %v3635, %v3635
  %v3652 = vmul.f32 %v3636, %v3636
  %v3653 = vmul.f32 %v3637, %v3637
  %v3654 = vmul.f32 %v3638, %v3638
  %v3655 = vmul.f32 %v3639, %v3639
  %v3656 = vmul.f32 %v3640, %v3640
  %v3657 = vmul.f32 %v3641, %v3641
  %v3658 = vsel %vm144, %v3642, 0.0
  %3659 = vadd.xlane.f32.xlu0 %v3658
  %v3660 = vpop.xlane.xlu0 %3659
  %v3661 = vsel %vm144, %v3643, 0.0
  %3662 = vadd.xlane.f32.xlu0 %v3661
  %v3663 = vpop.xlane.xlu0 %3662
  %v3664 = vsel %vm144, %v3644, 0.0
  %3665 = vadd.xlane.f32.xlu0 %v3664
  %v3666 = vpop.xlane.xlu0 %3665
  %v3667 = vsel %vm144, %v3645, 0.0
  %3668 = vadd.xlane.f32.xlu0 %v3667
  %v3669 = vpop.xlane.xlu0 %3668
  %v3670 = vsel %vm144, %v3646, 0.0
  %3671 = vadd.xlane.f32.xlu0 %v3670
  %v3672 = vpop.xlane.xlu0 %3671
  %v3673 = vsel %vm144, %v3647, 0.0
  %3674 = vadd.xlane.f32.xlu0 %v3673
  %v3675 = vpop.xlane.xlu0 %3674
  %v3676 = vsel %vm144, %v3648, 0.0
  %3677 = vadd.xlane.f32.xlu0 %v3676
  %v3678 = vpop.xlane.xlu0 %3677
  %v3679 = vsel %vm144, %v3649, 0.0
  %3680 = vadd.xlane.f32.xlu0 %v3679
  %v3681 = vpop.xlane.xlu0 %3680
  %v3682 = vsel %vm144, %v3650, 0.0
  %3683 = vadd.xlane.f32.xlu0 %v3682
  %v3684 = vpop.xlane.xlu0 %3683
  %v3685 = vsel %vm144, %v3651, 0.0
  %3686 = vadd.xlane.f32.xlu0 %v3685
  %v3687 = vpop.xlane.xlu0 %3686
  %v3688 = vsel %vm144, %v3652, 0.0
  %3689 = vadd.xlane.f32.xlu0 %v3688
  %v3690 = vpop.xlane.xlu0 %3689
  %v3691 = vsel %vm144, %v3653, 0.0
  %3692 = vadd.xlane.f32.xlu0 %v3691
  %v3693 = vpop.xlane.xlu0 %3692
  %v3694 = vsel %vm144, %v3654, 0.0
  %3695 = vadd.xlane.f32.xlu0 %v3694
  %v3696 = vpop.xlane.xlu0 %3695
  %v3697 = vsel %vm144, %v3655, 0.0
  %3698 = vadd.xlane.f32.xlu0 %v3697
  %v3699 = vpop.xlane.xlu0 %3698
  %v3700 = vsel %vm144, %v3656, 0.0
  %3701 = vadd.xlane.f32.xlu0 %v3700
  %v3702 = vpop.xlane.xlu0 %3701
  %v3703 = vsel %vm144, %v3657, 0.0
  %3704 = vadd.xlane.f32.xlu0 %v3703
  %v3705 = vpop.xlane.xlu0 %3704
  %v3706 = vmul.f32 %v3660, %v2711
  %v3707 = vmul.f32 %v3663, %v2711
  %v3708 = vmul.f32 %v3666, %v2711
  %v3709 = vmul.f32 %v3669, %v2711
  %v3710 = vmul.f32 %v3672, %v2711
  %v3711 = vmul.f32 %v3675, %v2711
  %v3712 = vmul.f32 %v3678, %v2711
  %v3713 = vmul.f32 %v3681, %v2711
  %v3714 = vmul.f32 %v3684, %v2711
  %v3715 = vmul.f32 %v3687, %v2711
  %v3716 = vmul.f32 %v3690, %v2711
  %v3717 = vmul.f32 %v3693, %v2711
  %v3718 = vmul.f32 %v3696, %v2711
  %v3719 = vmul.f32 %v3699, %v2711
  %v3720 = vmul.f32 %v3702, %v2711
  %v3721 = vmul.f32 %v3705, %v2711
  %v3722 = vadd.f32 %v3706, 1e-05
  %v3723 = vadd.f32 %v3707, 1e-05
  %v3724 = vadd.f32 %v3708, 1e-05
  %v3725 = vadd.f32 %v3709, 1e-05
  %v3726 = vadd.f32 %v3710, 1e-05
  %v3727 = vadd.f32 %v3711, 1e-05
  %v3728 = vadd.f32 %v3712, 1e-05
  %v3729 = vadd.f32 %v3713, 1e-05
  %v3730 = vadd.f32 %v3714, 1e-05
  %v3731 = vadd.f32 %v3715, 1e-05
  %v3732 = vadd.f32 %v3716, 1e-05
  %v3733 = vadd.f32 %v3717, 1e-05
  %v3734 = vadd.f32 %v3718, 1e-05
  %v3735 = vadd.f32 %v3719, 1e-05
  %v3736 = vadd.f32 %v3720, 1e-05
  %v3737 = vadd.f32 %v3721, 1e-05
  %v3738 = vrsqrt.pop %v3722
  %v3739 = vmul.f32 %v3738, %v3722
  %v3740 = vmul.f32 %v3739, %v3738
  %v3741 = vmul.f32 0.5, %v3740
  %v3742 = vsub.f32 1.5, %v3741
  %v3743 = vmul.f32 %v3738, %v3742
  %vm3744 = vweird.f32 %v3722
  %vm3745 = vweird.f32 %v3738
  %vm3746 = vmor %vm3744, %vm3745
  %v3747 = vsel %vm3746, %v3738, %v3743
  %v3748 = vrsqrt.pop %v3723
  %v3749 = vmul.f32 %v3748, %v3723
  %v3750 = vmul.f32 %v3749, %v3748
  %v3751 = vmul.f32 0.5, %v3750
  %v3752 = vsub.f32 1.5, %v3751
  %v3753 = vmul.f32 %v3748, %v3752
  %vm3754 = vweird.f32 %v3723
  %vm3755 = vweird.f32 %v3748
  %vm3756 = vmor %vm3754, %vm3755
  %v3757 = vsel %vm3756, %v3748, %v3753
  %v3758 = vrsqrt.pop %v3724
  %v3759 = vmul.f32 %v3758, %v3724
  %v3760 = vmul.f32 %v3759, %v3758
  %v3761 = vmul.f32 0.5, %v3760
  %v3762 = vsub.f32 1.5, %v3761
  %v3763 = vmul.f32 %v3758, %v3762
  %vm3764 = vweird.f32 %v3724
  %vm3765 = vweird.f32 %v3758
  %vm3766 = vmor %vm3764, %vm3765
  %v3767 = vsel %vm3766, %v3758, %v3763
  %v3768 = vrsqrt.pop %v3725
  %v3769 = vmul.f32 %v3768, %v3725
  %v3770 = vmul.f32 %v3769, %v3768
  %v3771 = vmul.f32 0.5, %v3770
  %v3772 = vsub.f32 1.5, %v3771
  %v3773 = vmul.f32 %v3768, %v3772
  %vm3774 = vweird.f32 %v3725
  %vm3775 = vweird.f32 %v3768
  %vm3776 = vmor %vm3774, %vm3775
  %v3777 = vsel %vm3776, %v3768, %v3773
  %v3778 = vrsqrt.pop %v3726
  %v3779 = vmul.f32 %v3778, %v3726
  %v3780 = vmul.f32 %v3779, %v3778
  %v3781 = vmul.f32 0.5, %v3780
  %v3782 = vsub.f32 1.5, %v3781
  %v3783 = vmul.f32 %v3778, %v3782
  %vm3784 = vweird.f32 %v3726
  %vm3785 = vweird.f32 %v3778
  %vm3786 = vmor %vm3784, %vm3785
  %v3787 = vsel %vm3786, %v3778, %v3783
  %v3788 = vrsqrt.pop %v3727
  %v3789 = vmul.f32 %v3788, %v3727
  %v3790 = vmul.f32 %v3789, %v3788
  %v3791 = vmul.f32 0.5, %v3790
  %v3792 = vsub.f32 1.5, %v3791
  %v3793 = vmul.f32 %v3788, %v3792
  %vm3794 = vweird.f32 %v3727
  %vm3795 = vweird.f32 %v3788
  %vm3796 = vmor %vm3794, %vm3795
  %v3797 = vsel %vm3796, %v3788, %v3793
  %v3798 = vrsqrt.pop %v3728
  %v3799 = vmul.f32 %v3798, %v3728
  %v3800 = vmul.f32 %v3799, %v3798
  %v3801 = vmul.f32 0.5, %v3800
  %v3802 = vsub.f32 1.5, %v3801
  %v3803 = vmul.f32 %v3798, %v3802
  %vm3804 = vweird.f32 %v3728
  %vm3805 = vweird.f32 %v3798
  %vm3806 = vmor %vm3804, %vm3805
  %v3807 = vsel %vm3806, %v3798, %v3803
  %v3808 = vrsqrt.pop %v3729
  %v3809 = vmul.f32 %v3808, %v3729
  %v3810 = vmul.f32 %v3809, %v3808
  %v3811 = vmul.f32 0.5, %v3810
  %v3812 = vsub.f32 1.5, %v3811
  %v3813 = vmul.f32 %v3808, %v3812
  %vm3814 = vweird.f32 %v3729
  %vm3815 = vweird.f32 %v3808
  %vm3816 = vmor %vm3814, %vm3815
  %v3817 = vsel %vm3816, %v3808, %v3813
  %v3818 = vrsqrt.pop %v3730
  %v3819 = vmul.f32 %v3818, %v3730
  %v3820 = vmul.f32 %v3819, %v3818
  %v3821 = vmul.f32 0.5, %v3820
  %v3822 = vsub.f32 1.5, %v3821
  %v3823 = vmul.f32 %v3818, %v3822
  %vm3824 = vweird.f32 %v3730
  %vm3825 = vweird.f32 %v3818
  %vm3826 = vmor %vm3824, %vm3825
  %v3827 = vsel %vm3826, %v3818, %v3823
  %v3828 = vrsqrt.pop %v3731
  %v3829 = vmul.f32 %v3828, %v3731
  %v3830 = vmul.f32 %v3829, %v3828
  %v3831 = vmul.f32 0.5, %v3830
  %v3832 = vsub.f32 1.5, %v3831
  %v3833 = vmul.f32 %v3828, %v3832
  %vm3834 = vweird.f32 %v3731
  %vm3835 = vweird.f32 %v3828
  %vm3836 = vmor %vm3834, %vm3835
  %v3837 = vsel %vm3836, %v3828, %v3833
  %v3838 = vrsqrt.pop %v3732
  %v3839 = vmul.f32 %v3838, %v3732
  %v3840 = vmul.f32 %v3839, %v3838
  %v3841 = vmul.f32 0.5, %v3840
  %v3842 = vsub.f32 1.5, %v3841
  %v3843 = vmul.f32 %v3838, %v3842
  %vm3844 = vweird.f32 %v3732
  %vm3845 = vweird.f32 %v3838
  %vm3846 = vmor %vm3844, %vm3845
  %v3847 = vsel %vm3846, %v3838, %v3843
  %v3848 = vrsqrt.pop %v3733
  %v3849 = vmul.f32 %v3848, %v3733
  %v3850 = vmul.f32 %v3849, %v3848
  %v3851 = vmul.f32 0.5, %v3850
  %v3852 = vsub.f32 1.5, %v3851
  %v3853 = vmul.f32 %v3848, %v3852
  %vm3854 = vweird.f32 %v3733
  %vm3855 = vweird.f32 %v3848
  %vm3856 = vmor %vm3854, %vm3855
  %v3857 = vsel %vm3856, %v3848, %v3853
  %v3858 = vrsqrt.pop %v3734
  %v3859 = vmul.f32 %v3858, %v3734
  %v3860 = vmul.f32 %v3859, %v3858
  %v3861 = vmul.f32 0.5, %v3860
  %v3862 = vsub.f32 1.5, %v3861
  %v3863 = vmul.f32 %v3858, %v3862
  %vm3864 = vweird.f32 %v3734
  %vm3865 = vweird.f32 %v3858
  %vm3866 = vmor %vm3864, %vm3865
  %v3867 = vsel %vm3866, %v3858, %v3863
  %v3868 = vrsqrt.pop %v3735
  %v3869 = vmul.f32 %v3868, %v3735
  %v3870 = vmul.f32 %v3869, %v3868
  %v3871 = vmul.f32 0.5, %v3870
  %v3872 = vsub.f32 1.5, %v3871
  %v3873 = vmul.f32 %v3868, %v3872
  %vm3874 = vweird.f32 %v3735
  %vm3875 = vweird.f32 %v3868
  %vm3876 = vmor %vm3874, %vm3875
  %v3877 = vsel %vm3876, %v3868, %v3873
  %v3878 = vrsqrt.pop %v3736
  %v3879 = vmul.f32 %v3878, %v3736
  %v3880 = vmul.f32 %v3879, %v3878
  %v3881 = vmul.f32 0.5, %v3880
  %v3882 = vsub.f32 1.5, %v3881
  %v3883 = vmul.f32 %v3878, %v3882
  %vm3884 = vweird.f32 %v3736
  %vm3885 = vweird.f32 %v3878
  %vm3886 = vmor %vm3884, %vm3885
  %v3887 = vsel %vm3886, %v3878, %v3883
  %v3888 = vrsqrt.pop %v3737
  %v3889 = vmul.f32 %v3888, %v3737
  %v3890 = vmul.f32 %v3889, %v3888
  %v3891 = vmul.f32 0.5, %v3890
  %v3892 = vsub.f32 1.5, %v3891
  %v3893 = vmul.f32 %v3888, %v3892
  %vm3894 = vweird.f32 %v3737
  %vm3895 = vweird.f32 %v3888
  %vm3896 = vmor %vm3894, %vm3895
  %v3897 = vsel %vm3896, %v3888, %v3893
  %v3898 = vmul.f32 %v3626, %v3747
  %v3899 = vmul.f32 %v3627, %v3757
  %v3900 = vmul.f32 %v3628, %v3767
  %v3901 = vmul.f32 %v3629, %v3777
  %v3902 = vmul.f32 %v3630, %v3787
  %v3903 = vmul.f32 %v3631, %v3797
  %v3904 = vmul.f32 %v3632, %v3807
  %v3905 = vmul.f32 %v3633, %v3817
  %v3906 = vmul.f32 %v3634, %v3827
  %v3907 = vmul.f32 %v3635, %v3837
  %v3908 = vmul.f32 %v3636, %v3847
  %v3909 = vmul.f32 %v3637, %v3857
  %v3910 = vmul.f32 %v3638, %v3867
  %v3911 = vmul.f32 %v3639, %v3877
  %v3912 = vmul.f32 %v3640, %v3887
  %v3913 = vmul.f32 %v3641, %v3897
  %v3915 = vperm.slane %v3560, 0
  %v3917 = vmul.f32 %v3898, %v3915
  %v3918 = vmul.f32 %v3899, %v3915
  %v3919 = vmul.f32 %v3900, %v3915
  %v3920 = vmul.f32 %v3901, %v3915
  %v3921 = vmul.f32 %v3902, %v3915
  %v3922 = vmul.f32 %v3903, %v3915
  %v3923 = vmul.f32 %v3904, %v3915
  %v3924 = vmul.f32 %v3905, %v3915
  %v3925 = vmul.f32 %v3906, %v3915
  %v3926 = vmul.f32 %v3907, %v3915
  %v3927 = vmul.f32 %v3908, %v3915
  %v3928 = vmul.f32 %v3909, %v3915
  %v3929 = vmul.f32 %v3910, %v3915
  %v3930 = vmul.f32 %v3911, %v3915
  %v3931 = vmul.f32 %v3912, %v3915
  %v3932 = vmul.f32 %v3913, %v3915
  %v3934 = vperm.slane %v3561, 0
  %v3936 = vadd.f32 %v3917, %v3934
  %v3937 = vadd.f32 %v3918, %v3934
  %v3938 = vadd.f32 %v3919, %v3934
  %v3939 = vadd.f32 %v3920, %v3934
  %v3940 = vadd.f32 %v3921, %v3934
  %v3941 = vadd.f32 %v3922, %v3934
  %v3942 = vadd.f32 %v3923, %v3934
  %v3943 = vadd.f32 %v3924, %v3934
  %v3944 = vadd.f32 %v3925, %v3934
  %v3945 = vadd.f32 %v3926, %v3934
  %v3946 = vadd.f32 %v3927, %v3934
  %v3947 = vadd.f32 %v3928, %v3934
  %v3948 = vadd.f32 %v3929, %v3934
  %v3949 = vadd.f32 %v3930, %v3934
  %v3950 = vadd.f32 %v3931, %v3934
  %v3951 = vadd.f32 %v3932, %v3934
  %s3952 = scalar_lea.vmem %s4, 1
  %v3953 = vld [vmem:[%s3952] sm:$0x1]
  %s3954 = scalar_lea.vmem %s6, 1
  %v3955 = vld [vmem:[%s3954] sm:$0x1]
  %v3956 = vpack.c.bf16 %v3937, %v3936
  %v3957 = vpack.c.bf16 %v3939, %v3938
  %v3958 = vpack.c.bf16 %v3941, %v3940
  %v3959 = vpack.c.bf16 %v3943, %v3942
  %v3960 = vpack.c.bf16 %v3945, %v3944
  %v3961 = vpack.c.bf16 %v3947, %v3946
  %v3962 = vpack.c.bf16 %v3949, %v3948
  %v3963 = vpack.c.bf16 %v3951, %v3950
  %s3964 = scalar_lea.vmem %s3, 16
  %v3965 = vld [vmem:[%s3964] sm:$0xf]
  %v3966 = vld [vmem:[%s3964 + $0x4] sm:$0xf]
  %v3967 = vld [vmem:[%s3964 + $0x8] sm:$0xf]
  %v3968 = vld [vmem:[%s3964 + $0xc] sm:$0xf]
  %v3970 = vperm.slane %v3953, 0
  %v3976 = vunpack.c.l.b16 %v3965
  %v3977 = vunpack.c.l.b16 %v3966
  %v3978 = vunpack.c.l.b16 %v3967
  %v3979 = vunpack.c.l.b16 %v3968
  %v3980 = vpack.c.b16 %v3977, %v3976
  %v3981 = vpack.c.b16 %v3979, %v3978
  %v3985 = vsel %vm144, %v3956, 0
  %v3988 = vsel %vm144, %v3957, 0
  %v3991 = vsel %vm144, %v3958, 0
  %v3994 = vsel %vm144, %v3959, 0
  %v3997 = vsel %vm144, %v3960, 0
  %v4000 = vsel %vm144, %v3961, 0
  %v4003 = vsel %vm144, %v3962, 0
  %v4006 = vsel %vm144, %v3963, 0
  %4008 = vmatpush.bf16.msra.mxu0 0
  %4009 = vmatpush.bf16.msra.mxu0 0
  %4010 = vmatpush.bf16.msra.mxu0 0
  %4011 = vmatpush.bf16.msra.mxu0 0
  %4012 = vmatpush.bf16.msra.mxu0 0
  %4013 = vmatpush.bf16.msra.mxu0 0
  %4014 = vmatpush.bf16.msra.mxu0 %v3981
  %4015 = vmatpush.bf16.msra.mxu0 %v3980
  %4016 = vmatmul.bf16.gmra.mxu0 %v3985
  %v4017 = vpop.f32.mrf.mxu0
  %v4018 = vadd.f32 %v3970, %v4017
  %v4019 = vpop.f32.mrf.mxu0
  %v4020 = vadd.f32 %v3970, %v4019
  %4021 = vmatmul.bf16.gmra.mxu0 %v3988
  %v4022 = vpop.f32.mrf.mxu0
  %v4023 = vadd.f32 %v3970, %v4022
  %v4024 = vpop.f32.mrf.mxu0
  %v4025 = vadd.f32 %v3970, %v4024
  %4026 = vmatmul.bf16.gmra.mxu0 %v3991
  %v4027 = vpop.f32.mrf.mxu0
  %v4028 = vadd.f32 %v3970, %v4027
  %v4029 = vpop.f32.mrf.mxu0
  %v4030 = vadd.f32 %v3970, %v4029
  %4031 = vmatmul.bf16.gmra.mxu0 %v3994
  %v4032 = vpop.f32.mrf.mxu0
  %v4033 = vadd.f32 %v3970, %v4032
  %v4034 = vpop.f32.mrf.mxu0
  %v4035 = vadd.f32 %v3970, %v4034
  %4036 = vmatmul.bf16.gmra.mxu0 %v3997
  %v4037 = vpop.f32.mrf.mxu0
  %v4038 = vadd.f32 %v3970, %v4037
  %v4039 = vpop.f32.mrf.mxu0
  %v4040 = vadd.f32 %v3970, %v4039
  %4041 = vmatmul.bf16.gmra.mxu0 %v4000
  %v4042 = vpop.f32.mrf.mxu0
  %v4043 = vadd.f32 %v3970, %v4042
  %v4044 = vpop.f32.mrf.mxu0
  %v4045 = vadd.f32 %v3970, %v4044
  %4046 = vmatmul.bf16.gmra.mxu0 %v4003
  %v4047 = vpop.f32.mrf.mxu0
  %v4048 = vadd.f32 %v3970, %v4047
  %v4049 = vpop.f32.mrf.mxu0
  %v4050 = vadd.f32 %v3970, %v4049
  %4051 = vmatmul.bf16.gmra.mxu0 %v4006
  %v4052 = vpop.f32.mrf.mxu0
  %v4053 = vadd.f32 %v3970, %v4052
  %v4054 = vpop.f32.mrf.mxu0
  %v4055 = vadd.f32 %v3970, %v4054
  %4056 = vdwg.mxu0
  %v4057 = vpack.c.bf16 %v4018, %v4018
  %v4058 = vpack.c.bf16 %v4020, %v4020
  %v4059 = vpack.c.bf16 %v4023, %v4023
  %v4060 = vpack.c.bf16 %v4025, %v4025
  %v4061 = vpack.c.bf16 %v4028, %v4028
  %v4062 = vpack.c.bf16 %v4030, %v4030
  %v4063 = vpack.c.bf16 %v4033, %v4033
  %v4064 = vpack.c.bf16 %v4035, %v4035
  %v4065 = vpack.c.bf16 %v4038, %v4038
  %v4066 = vpack.c.bf16 %v4040, %v4040
  %v4067 = vpack.c.bf16 %v4043, %v4043
  %v4068 = vpack.c.bf16 %v4045, %v4045
  %v4069 = vpack.c.bf16 %v4048, %v4048
  %v4070 = vpack.c.bf16 %v4050, %v4050
  %v4071 = vpack.c.bf16 %v4053, %v4053
  %v4072 = vpack.c.bf16 %v4055, %v4055
  %v4081 = vunpack.c.l.b16 %v4057
  %v4082 = vunpack.c.l.b16 %v4058
  %v4083 = vunpack.c.l.b16 %v4059
  %v4084 = vunpack.c.l.b16 %v4060
  %v4085 = vunpack.c.l.b16 %v4061
  %v4086 = vunpack.c.l.b16 %v4062
  %v4087 = vunpack.c.l.b16 %v4063
  %v4088 = vunpack.c.l.b16 %v4064
  %v4089 = vpack.c.b16 %v4082, %v4081
  %v4090 = vpack.c.b16 %v4084, %v4083
  %v4091 = vpack.c.b16 %v4086, %v4085
  %v4092 = vpack.c.b16 %v4088, %v4087
  %4093 = vrot.lane.b32.xlu0 %v4089, 96
  %v4094 = vpop.permute.xlu0 %4093
  %4095 = vrot.lane.b32.xlu0 %v4090, 96
  %v4096 = vpop.permute.xlu0 %4095
  %4097 = vrot.lane.b32.xlu0 %v4091, 96
  %v4098 = vpop.permute.xlu0 %4097
  %4099 = vrot.lane.b32.xlu0 %v4092, 96
  %v4100 = vpop.permute.xlu0 %4099
  %v4102 = vsel %vm262, %v4089, 0
  %v4105 = vsel %vm262, %v4090, 0
  %v4108 = vsel %vm262, %v4091, 0
  %v4111 = vsel %vm262, %v4092, 0
  %v4114 = vsel %vm262, %v4094, 0
  %v4117 = vsel %vm262, %v4096, 0
  %v4120 = vsel %vm262, %v4098, 0
  %v4123 = vsel %vm262, %v4100, 0
  %4125 = vmatpush.bf16.xpose.msra.mxu0 0
  %4126 = vmatpush.bf16.xpose.msra.mxu0 0
  %4127 = vmatpush.bf16.xpose.msra.mxu0 0
  %4128 = vmatpush.bf16.xpose.msra.mxu0 0
  %4129 = vmatpush.bf16.xpose.msra.mxu0 %v4123
  %4130 = vmatpush.bf16.xpose.msra.mxu0 %v4120
  %4131 = vmatpush.bf16.xpose.msra.mxu0 %v4117
  %4132 = vmatpush.bf16.xpose.msra.mxu0 %v4114
  %4133 = vmatmul.bf16.gmra.mxu0 %v4102
  %v4134 = vpop.f32.mrf.mxu0
  %v4135 = vadd.f32 0.0, %v4134
  %v4136 = vpop.f32.mrf.mxu0
  %v4137 = vadd.f32 0.0, %v4136
  %4138 = vmatmul.bf16.gmra.mxu0 %v4105
  %v4139 = vpop.f32.mrf.mxu0
  %v4140 = vadd.f32 0.0, %v4139
  %v4141 = vpop.f32.mrf.mxu0
  %v4142 = vadd.f32 0.0, %v4141
  %4143 = vmatmul.bf16.gmra.mxu0 %v4108
  %v4144 = vpop.f32.mrf.mxu0
  %v4145 = vadd.f32 0.0, %v4144
  %v4146 = vpop.f32.mrf.mxu0
  %v4147 = vadd.f32 0.0, %v4146
  %4148 = vmatmul.bf16.gmra.mxu0 %v4111
  %v4149 = vpop.f32.mrf.mxu0
  %v4150 = vadd.f32 0.0, %v4149
  %v4151 = vpop.f32.mrf.mxu0
  %v4152 = vadd.f32 0.0, %v4151
  %4153 = vdwg.mxu0
  %v4162 = vunpack.c.l.b16 %v4065
  %v4163 = vunpack.c.l.b16 %v4066
  %v4164 = vunpack.c.l.b16 %v4067
  %v4165 = vunpack.c.l.b16 %v4068
  %v4166 = vunpack.c.l.b16 %v4069
  %v4167 = vunpack.c.l.b16 %v4070
  %v4168 = vunpack.c.l.b16 %v4071
  %v4169 = vunpack.c.l.b16 %v4072
  %v4170 = vpack.c.b16 %v4163, %v4162
  %v4171 = vpack.c.b16 %v4165, %v4164
  %v4172 = vpack.c.b16 %v4167, %v4166
  %v4173 = vpack.c.b16 %v4169, %v4168
  %4174 = vrot.lane.b32.xlu0 %v4170, 96
  %v4175 = vpop.permute.xlu0 %4174
  %4176 = vrot.lane.b32.xlu0 %v4171, 96
  %v4177 = vpop.permute.xlu0 %4176
  %4178 = vrot.lane.b32.xlu0 %v4172, 96
  %v4179 = vpop.permute.xlu0 %4178
  %4180 = vrot.lane.b32.xlu0 %v4173, 96
  %v4181 = vpop.permute.xlu0 %4180
  %v4183 = vsel %vm262, %v4170, 0
  %v4186 = vsel %vm262, %v4171, 0
  %v4189 = vsel %vm262, %v4172, 0
  %v4192 = vsel %vm262, %v4173, 0
  %v4195 = vsel %vm262, %v4175, 0
  %v4198 = vsel %vm262, %v4177, 0
  %v4201 = vsel %vm262, %v4179, 0
  %v4204 = vsel %vm262, %v4181, 0
  %4206 = vmatpush.bf16.xpose.msra.mxu0 0
  %4207 = vmatpush.bf16.xpose.msra.mxu0 0
  %4208 = vmatpush.bf16.xpose.msra.mxu0 0
  %4209 = vmatpush.bf16.xpose.msra.mxu0 0
  %4210 = vmatpush.bf16.xpose.msra.mxu0 %v4204
  %4211 = vmatpush.bf16.xpose.msra.mxu0 %v4201
  %4212 = vmatpush.bf16.xpose.msra.mxu0 %v4198
  %4213 = vmatpush.bf16.xpose.msra.mxu0 %v4195
  %4214 = vmatmul.bf16.gmra.mxu0 %v4183
  %v4215 = vpop.f32.mrf.mxu0
  %v4216 = vadd.f32 0.0, %v4215
  %v4217 = vpop.f32.mrf.mxu0
  %v4218 = vadd.f32 0.0, %v4217
  %4219 = vmatmul.bf16.gmra.mxu0 %v4186
  %v4220 = vpop.f32.mrf.mxu0
  %v4221 = vadd.f32 0.0, %v4220
  %v4222 = vpop.f32.mrf.mxu0
  %v4223 = vadd.f32 0.0, %v4222
  %4224 = vmatmul.bf16.gmra.mxu0 %v4189
  %v4225 = vpop.f32.mrf.mxu0
  %v4226 = vadd.f32 0.0, %v4225
  %v4227 = vpop.f32.mrf.mxu0
  %v4228 = vadd.f32 0.0, %v4227
  %4229 = vmatmul.bf16.gmra.mxu0 %v4192
  %v4230 = vpop.f32.mrf.mxu0
  %v4231 = vadd.f32 0.0, %v4230
  %v4232 = vpop.f32.mrf.mxu0
  %v4233 = vadd.f32 0.0, %v4232
  %4234 = vdwg.mxu0
  %v4235 = vsel %vm397, %v4135, -inf
  %4236 = vmax.xlane.f32.xlu0 %v4235
  %v4237 = vpop.xlane.xlu0 %4236
  %v4238 = vsel %vm397, %v4137, -inf
  %4239 = vmax.xlane.f32.xlu0 %v4238
  %v4240 = vpop.xlane.xlu0 %4239
  %v4241 = vsel %vm397, %v4140, -inf
  %4242 = vmax.xlane.f32.xlu0 %v4241
  %v4243 = vpop.xlane.xlu0 %4242
  %v4244 = vsel %vm397, %v4142, -inf
  %4245 = vmax.xlane.f32.xlu0 %v4244
  %v4246 = vpop.xlane.xlu0 %4245
  %v4247 = vsel %vm397, %v4145, -inf
  %4248 = vmax.xlane.f32.xlu0 %v4247
  %v4249 = vpop.xlane.xlu0 %4248
  %v4250 = vsel %vm397, %v4147, -inf
  %4251 = vmax.xlane.f32.xlu0 %v4250
  %v4252 = vpop.xlane.xlu0 %4251
  %v4253 = vsel %vm397, %v4150, -inf
  %4254 = vmax.xlane.f32.xlu0 %v4253
  %v4255 = vpop.xlane.xlu0 %4254
  %v4256 = vsel %vm397, %v4152, -inf
  %4257 = vmax.xlane.f32.xlu0 %v4256
  %v4258 = vpop.xlane.xlu0 %4257
  %v4259 = vsel %vm397, %v4216, -inf
  %4260 = vmax.xlane.f32.xlu0 %v4259
  %v4261 = vpop.xlane.xlu0 %4260
  %v4262 = vsel %vm397, %v4218, -inf
  %4263 = vmax.xlane.f32.xlu0 %v4262
  %v4264 = vpop.xlane.xlu0 %4263
  %v4265 = vsel %vm397, %v4221, -inf
  %4266 = vmax.xlane.f32.xlu0 %v4265
  %v4267 = vpop.xlane.xlu0 %4266
  %v4268 = vsel %vm397, %v4223, -inf
  %4269 = vmax.xlane.f32.xlu0 %v4268
  %v4270 = vpop.xlane.xlu0 %4269
  %v4271 = vsel %vm397, %v4226, -inf
  %4272 = vmax.xlane.f32.xlu0 %v4271
  %v4273 = vpop.xlane.xlu0 %4272
  %v4274 = vsel %vm397, %v4228, -inf
  %4275 = vmax.xlane.f32.xlu0 %v4274
  %v4276 = vpop.xlane.xlu0 %4275
  %v4277 = vsel %vm397, %v4231, -inf
  %4278 = vmax.xlane.f32.xlu0 %v4277
  %v4279 = vpop.xlane.xlu0 %4278
  %v4280 = vsel %vm397, %v4233, -inf
  %4281 = vmax.xlane.f32.xlu0 %v4280
  %v4282 = vpop.xlane.xlu0 %4281
  %v4283 = vsub.f32 %v4135, %v4237
  %v4284 = vsub.f32 %v4137, %v4240
  %v4285 = vsub.f32 %v4140, %v4243
  %v4286 = vsub.f32 %v4142, %v4246
  %v4287 = vsub.f32 %v4145, %v4249
  %v4288 = vsub.f32 %v4147, %v4252
  %v4289 = vsub.f32 %v4150, %v4255
  %v4290 = vsub.f32 %v4152, %v4258
  %v4291 = vsub.f32 %v4216, %v4261
  %v4292 = vsub.f32 %v4218, %v4264
  %v4293 = vsub.f32 %v4221, %v4267
  %v4294 = vsub.f32 %v4223, %v4270
  %v4295 = vsub.f32 %v4226, %v4273
  %v4296 = vsub.f32 %v4228, %v4276
  %v4297 = vsub.f32 %v4231, %v4279
  %v4298 = vsub.f32 %v4233, %v4282
  %v4299 = vmul.f32 %v4283, 1.442695
  %v4300 = vpow.pop %v4299
  %v4301 = vmul.f32 %v4284, 1.442695
  %v4302 = vpow.pop %v4301
  %v4303 = vmul.f32 %v4285, 1.442695
  %v4304 = vpow.pop %v4303
  %v4305 = vmul.f32 %v4286, 1.442695
  %v4306 = vpow.pop %v4305
  %v4307 = vmul.f32 %v4287, 1.442695
  %v4308 = vpow.pop %v4307
  %v4309 = vmul.f32 %v4288, 1.442695
  %v4310 = vpow.pop %v4309
  %v4311 = vmul.f32 %v4289, 1.442695
  %v4312 = vpow.pop %v4311
  %v4313 = vmul.f32 %v4290, 1.442695
  %v4314 = vpow.pop %v4313
  %v4315 = vmul.f32 %v4291, 1.442695
  %v4316 = vpow.pop %v4315
  %v4317 = vmul.f32 %v4292, 1.442695
  %v4318 = vpow.pop %v4317
  %v4319 = vmul.f32 %v4293, 1.442695
  %v4320 = vpow.pop %v4319
  %v4321 = vmul.f32 %v4294, 1.442695
  %v4322 = vpow.pop %v4321
  %v4323 = vmul.f32 %v4295, 1.442695
  %v4324 = vpow.pop %v4323
  %v4325 = vmul.f32 %v4296, 1.442695
  %v4326 = vpow.pop %v4325
  %v4327 = vmul.f32 %v4297, 1.442695
  %v4328 = vpow.pop %v4327
  %v4329 = vmul.f32 %v4298, 1.442695
  %v4330 = vpow.pop %v4329
  %v4331 = vsel %vm397, %v4300, 0.0
  %4332 = vadd.xlane.f32.xlu0 %v4331
  %v4333 = vpop.xlane.xlu0 %4332
  %v4334 = vsel %vm397, %v4302, 0.0
  %4335 = vadd.xlane.f32.xlu0 %v4334
  %v4336 = vpop.xlane.xlu0 %4335
  %v4337 = vsel %vm397, %v4304, 0.0
  %4338 = vadd.xlane.f32.xlu0 %v4337
  %v4339 = vpop.xlane.xlu0 %4338
  %v4340 = vsel %vm397, %v4306, 0.0
  %4341 = vadd.xlane.f32.xlu0 %v4340
  %v4342 = vpop.xlane.xlu0 %4341
  %v4343 = vsel %vm397, %v4308, 0.0
  %4344 = vadd.xlane.f32.xlu0 %v4343
  %v4345 = vpop.xlane.xlu0 %4344
  %v4346 = vsel %vm397, %v4310, 0.0
  %4347 = vadd.xlane.f32.xlu0 %v4346
  %v4348 = vpop.xlane.xlu0 %4347
  %v4349 = vsel %vm397, %v4312, 0.0
  %4350 = vadd.xlane.f32.xlu0 %v4349
  %v4351 = vpop.xlane.xlu0 %4350
  %v4352 = vsel %vm397, %v4314, 0.0
  %4353 = vadd.xlane.f32.xlu0 %v4352
  %v4354 = vpop.xlane.xlu0 %4353
  %v4355 = vsel %vm397, %v4316, 0.0
  %4356 = vadd.xlane.f32.xlu0 %v4355
  %v4357 = vpop.xlane.xlu0 %4356
  %v4358 = vsel %vm397, %v4318, 0.0
  %4359 = vadd.xlane.f32.xlu0 %v4358
  %v4360 = vpop.xlane.xlu0 %4359
  %v4361 = vsel %vm397, %v4320, 0.0
  %4362 = vadd.xlane.f32.xlu0 %v4361
  %v4363 = vpop.xlane.xlu0 %4362
  %v4364 = vsel %vm397, %v4322, 0.0
  %4365 = vadd.xlane.f32.xlu0 %v4364
  %v4366 = vpop.xlane.xlu0 %4365
  %v4367 = vsel %vm397, %v4324, 0.0
  %4368 = vadd.xlane.f32.xlu0 %v4367
  %v4369 = vpop.xlane.xlu0 %4368
  %v4370 = vsel %vm397, %v4326, 0.0
  %4371 = vadd.xlane.f32.xlu0 %v4370
  %v4372 = vpop.xlane.xlu0 %4371
  %v4373 = vsel %vm397, %v4328, 0.0
  %4374 = vadd.xlane.f32.xlu0 %v4373
  %v4375 = vpop.xlane.xlu0 %4374
  %v4376 = vsel %vm397, %v4330, 0.0
  %4377 = vadd.xlane.f32.xlu0 %v4376
  %v4378 = vpop.xlane.xlu0 %4377
  %v4379 = vrcp.pop %v4333
  %v4380 = vrcp.pop %v4336
  %v4381 = vrcp.pop %v4339
  %v4382 = vrcp.pop %v4342
  %v4383 = vrcp.pop %v4345
  %v4384 = vrcp.pop %v4348
  %v4385 = vrcp.pop %v4351
  %v4386 = vrcp.pop %v4354
  %v4387 = vrcp.pop %v4357
  %v4388 = vrcp.pop %v4360
  %v4389 = vrcp.pop %v4363
  %v4390 = vrcp.pop %v4366
  %v4391 = vrcp.pop %v4369
  %v4392 = vrcp.pop %v4372
  %v4393 = vrcp.pop %v4375
  %v4394 = vrcp.pop %v4378
  %v4395 = vmul.f32 %v4300, %v4379
  %v4396 = vmul.f32 %v4302, %v4380
  %v4397 = vmul.f32 %v4304, %v4381
  %v4398 = vmul.f32 %v4306, %v4382
  %v4399 = vmul.f32 %v4308, %v4383
  %v4400 = vmul.f32 %v4310, %v4384
  %v4401 = vmul.f32 %v4312, %v4385
  %v4402 = vmul.f32 %v4314, %v4386
  %v4403 = vmul.f32 %v4316, %v4387
  %v4404 = vmul.f32 %v4318, %v4388
  %v4405 = vmul.f32 %v4320, %v4389
  %v4406 = vmul.f32 %v4322, %v4390
  %v4407 = vmul.f32 %v4324, %v4391
  %v4408 = vmul.f32 %v4326, %v4392
  %v4409 = vmul.f32 %v4328, %v4393
  %v4410 = vmul.f32 %v4330, %v4394
  %4419 = vrot.lane.b32.xlu0 %v4018, 64
  %v4420 = vpop.permute.xlu0 %4419
  %4421 = vrot.lane.b32.xlu0 %v4020, 64
  %v4422 = vpop.permute.xlu0 %4421
  %4423 = vrot.lane.b32.xlu0 %v4023, 64
  %v4424 = vpop.permute.xlu0 %4423
  %4425 = vrot.lane.b32.xlu0 %v4025, 64
  %v4426 = vpop.permute.xlu0 %4425
  %4427 = vrot.lane.b32.xlu0 %v4028, 64
  %v4428 = vpop.permute.xlu0 %4427
  %4429 = vrot.lane.b32.xlu0 %v4030, 64
  %v4430 = vpop.permute.xlu0 %4429
  %4431 = vrot.lane.b32.xlu0 %v4033, 64
  %v4432 = vpop.permute.xlu0 %4431
  %4433 = vrot.lane.b32.xlu0 %v4035, 64
  %v4434 = vpop.permute.xlu0 %4433
  %v4444 = vsel %vm397, %v4395, 0
  %v4447 = vsel %vm397, %v4396, 0
  %v4450 = vsel %vm397, %v4397, 0
  %v4453 = vsel %vm397, %v4398, 0
  %v4456 = vsel %vm397, %v4399, 0
  %v4459 = vsel %vm397, %v4400, 0
  %v4462 = vsel %vm397, %v4401, 0
  %v4465 = vsel %vm397, %v4402, 0
  %4467 = vmatpush.msra.mxu0 0.0
  %4468 = vmatpush.msra.mxu0 0.0
  %4469 = vmatpush.msra.mxu0 0.0
  %4470 = vmatpush.msra.mxu0 0.0
  %4471 = vmatpush.msra.mxu0 0.0
  %4472 = vmatpush.msra.mxu0 0.0
  %4473 = vmatpush.msra.mxu0 0.0
  %4474 = vmatpush.msra.mxu0 0.0
  %4475 = vmatpush.msra.mxu0 %v4434
  %4476 = vmatpush.msra.mxu0 %v4432
  %4477 = vmatpush.msra.mxu0 %v4430
  %4478 = vmatpush.msra.mxu0 %v4428
  %4479 = vmatpush.msra.mxu0 %v4426
  %4480 = vmatpush.msra.mxu0 %v4424
  %4481 = vmatpush.msra.mxu0 %v4422
  %4482 = vmatpush.msra.mxu0 %v4420
  %4483 = vmatmul.f32.gmra.mxu0 %v4444
  %v4484 = vpop.f32.mrf.mxu0
  %v4485 = vadd.f32 0.0, %v4484
  %4486 = vmatmul.f32.gmra.mxu0 %v4447
  %v4487 = vpop.f32.mrf.mxu0
  %v4488 = vadd.f32 0.0, %v4487
  %4489 = vmatmul.f32.gmra.mxu0 %v4450
  %v4490 = vpop.f32.mrf.mxu0
  %v4491 = vadd.f32 0.0, %v4490
  %4492 = vmatmul.f32.gmra.mxu0 %v4453
  %v4493 = vpop.f32.mrf.mxu0
  %v4494 = vadd.f32 0.0, %v4493
  %4495 = vmatmul.f32.gmra.mxu0 %v4456
  %v4496 = vpop.f32.mrf.mxu0
  %v4497 = vadd.f32 0.0, %v4496
  %4498 = vmatmul.f32.gmra.mxu0 %v4459
  %v4499 = vpop.f32.mrf.mxu0
  %v4500 = vadd.f32 0.0, %v4499
  %4501 = vmatmul.f32.gmra.mxu0 %v4462
  %v4502 = vpop.f32.mrf.mxu0
  %v4503 = vadd.f32 0.0, %v4502
  %4504 = vmatmul.f32.gmra.mxu0 %v4465
  %v4505 = vpop.f32.mrf.mxu0
  %v4506 = vadd.f32 0.0, %v4505
  %4507 = vdwg.mxu0
  %4516 = vrot.lane.b32.xlu0 %v4038, 64
  %v4517 = vpop.permute.xlu0 %4516
  %4518 = vrot.lane.b32.xlu0 %v4040, 64
  %v4519 = vpop.permute.xlu0 %4518
  %4520 = vrot.lane.b32.xlu0 %v4043, 64
  %v4521 = vpop.permute.xlu0 %4520
  %4522 = vrot.lane.b32.xlu0 %v4045, 64
  %v4523 = vpop.permute.xlu0 %4522
  %4524 = vrot.lane.b32.xlu0 %v4048, 64
  %v4525 = vpop.permute.xlu0 %4524
  %4526 = vrot.lane.b32.xlu0 %v4050, 64
  %v4527 = vpop.permute.xlu0 %4526
  %4528 = vrot.lane.b32.xlu0 %v4053, 64
  %v4529 = vpop.permute.xlu0 %4528
  %4530 = vrot.lane.b32.xlu0 %v4055, 64
  %v4531 = vpop.permute.xlu0 %4530
  %v4541 = vsel %vm397, %v4403, 0
  %v4544 = vsel %vm397, %v4404, 0
  %v4547 = vsel %vm397, %v4405, 0
  %v4550 = vsel %vm397, %v4406, 0
  %v4553 = vsel %vm397, %v4407, 0
  %v4556 = vsel %vm397, %v4408, 0
  %v4559 = vsel %vm397, %v4409, 0
  %v4562 = vsel %vm397, %v4410, 0
  %4564 = vmatpush.msra.mxu0 0.0
  %4565 = vmatpush.msra.mxu0 0.0
  %4566 = vmatpush.msra.mxu0 0.0
  %4567 = vmatpush.msra.mxu0 0.0
  %4568 = vmatpush.msra.mxu0 0.0
  %4569 = vmatpush.msra.mxu0 0.0
  %4570 = vmatpush.msra.mxu0 0.0
  %4571 = vmatpush.msra.mxu0 0.0
  %4572 = vmatpush.msra.mxu0 %v4531
  %4573 = vmatpush.msra.mxu0 %v4529
  %4574 = vmatpush.msra.mxu0 %v4527
  %4575 = vmatpush.msra.mxu0 %v4525
  %4576 = vmatpush.msra.mxu0 %v4523
  %4577 = vmatpush.msra.mxu0 %v4521
  %4578 = vmatpush.msra.mxu0 %v4519
  %4579 = vmatpush.msra.mxu0 %v4517
  %4580 = vmatmul.f32.gmra.mxu0 %v4541
  %v4581 = vpop.f32.mrf.mxu0
  %v4582 = vadd.f32 0.0, %v4581
  %4583 = vmatmul.f32.gmra.mxu0 %v4544
  %v4584 = vpop.f32.mrf.mxu0
  %v4585 = vadd.f32 0.0, %v4584
  %4586 = vmatmul.f32.gmra.mxu0 %v4547
  %v4587 = vpop.f32.mrf.mxu0
  %v4588 = vadd.f32 0.0, %v4587
  %4589 = vmatmul.f32.gmra.mxu0 %v4550
  %v4590 = vpop.f32.mrf.mxu0
  %v4591 = vadd.f32 0.0, %v4590
  %4592 = vmatmul.f32.gmra.mxu0 %v4553
  %v4593 = vpop.f32.mrf.mxu0
  %v4594 = vadd.f32 0.0, %v4593
  %4595 = vmatmul.f32.gmra.mxu0 %v4556
  %v4596 = vpop.f32.mrf.mxu0
  %v4597 = vadd.f32 0.0, %v4596
  %4598 = vmatmul.f32.gmra.mxu0 %v4559
  %v4599 = vpop.f32.mrf.mxu0
  %v4600 = vadd.f32 0.0, %v4599
  %4601 = vmatmul.f32.gmra.mxu0 %v4562
  %v4602 = vpop.f32.mrf.mxu0
  %v4603 = vadd.f32 0.0, %v4602
  %4604 = vdwg.mxu0
  %v4605 = vpack.c.bf16 %v4488, %v4485
  %v4606 = vpack.c.bf16 %v4494, %v4491
  %v4607 = vpack.c.bf16 %v4500, %v4497
  %v4608 = vpack.c.bf16 %v4506, %v4503
  %v4609 = vpack.c.bf16 %v4585, %v4582
  %v4610 = vpack.c.bf16 %v4591, %v4588
  %v4611 = vpack.c.bf16 %v4597, %v4594
  %v4612 = vpack.c.bf16 %v4603, %v4600
  %s4613 = scalar_lea.vmem %s5, 16
  %v4614 = vld [vmem:[%s4613] sm:$0xf]
  %4615 = vrot.lane.b32.xlu0 %v4089, 120
  %v4616 = vpop.permute.xlu0 %4615
  %4617 = vrot.lane.b32.xlu0 %v4090, 120
  %v4618 = vpop.permute.xlu0 %4617
  %4619 = vrot.lane.b32.xlu0 %v4091, 120
  %v4620 = vpop.permute.xlu0 %4619
  %4621 = vrot.lane.b32.xlu0 %v4092, 120
  %v4622 = vpop.permute.xlu0 %4621
  %4623 = vrot.lane.b32.xlu0 %v4089, 88
  %v4624 = vpop.permute.xlu0 %4623
  %4625 = vrot.lane.b32.xlu0 %v4090, 88
  %v4626 = vpop.permute.xlu0 %4625
  %4627 = vrot.lane.b32.xlu0 %v4091, 88
  %v4628 = vpop.permute.xlu0 %4627
  %4629 = vrot.lane.b32.xlu0 %v4092, 88
  %v4630 = vpop.permute.xlu0 %4629
  %v4632 = vsel %vm262, %v4616, 0
  %v4635 = vsel %vm262, %v4618, 0
  %v4638 = vsel %vm262, %v4620, 0
  %v4641 = vsel %vm262, %v4622, 0
  %v4644 = vsel %vm262, %v4624, 0
  %v4647 = vsel %vm262, %v4626, 0
  %v4650 = vsel %vm262, %v4628, 0
  %v4653 = vsel %vm262, %v4630, 0
  %4655 = vmatpush.bf16.xpose.msra.mxu0 0
  %4656 = vmatpush.bf16.xpose.msra.mxu0 0
  %4657 = vmatpush.bf16.xpose.msra.mxu0 0
  %4658 = vmatpush.bf16.xpose.msra.mxu0 0
  %4659 = vmatpush.bf16.xpose.msra.mxu0 %v4653
  %4660 = vmatpush.bf16.xpose.msra.mxu0 %v4650
  %4661 = vmatpush.bf16.xpose.msra.mxu0 %v4647
  %4662 = vmatpush.bf16.xpose.msra.mxu0 %v4644
  %4663 = vmatmul.bf16.gmra.mxu0 %v4632
  %v4664 = vpop.f32.mrf.mxu0
  %v4665 = vadd.f32 0.0, %v4664
  %v4666 = vpop.f32.mrf.mxu0
  %v4667 = vadd.f32 0.0, %v4666
  %4668 = vmatmul.bf16.gmra.mxu0 %v4635
  %v4669 = vpop.f32.mrf.mxu0
  %v4670 = vadd.f32 0.0, %v4669
  %v4671 = vpop.f32.mrf.mxu0
  %v4672 = vadd.f32 0.0, %v4671
  %4673 = vmatmul.bf16.gmra.mxu0 %v4638
  %v4674 = vpop.f32.mrf.mxu0
  %v4675 = vadd.f32 0.0, %v4674
  %v4676 = vpop.f32.mrf.mxu0
  %v4677 = vadd.f32 0.0, %v4676
  %4678 = vmatmul.bf16.gmra.mxu0 %v4641
  %v4679 = vpop.f32.mrf.mxu0
  %v4680 = vadd.f32 0.0, %v4679
  %v4681 = vpop.f32.mrf.mxu0
  %v4682 = vadd.f32 0.0, %v4681
  %4683 = vdwg.mxu0
  %4684 = vrot.lane.b32.xlu0 %v4170, 120
  %v4685 = vpop.permute.xlu0 %4684
  %4686 = vrot.lane.b32.xlu0 %v4171, 120
  %v4687 = vpop.permute.xlu0 %4686
  %4688 = vrot.lane.b32.xlu0 %v4172, 120
  %v4689 = vpop.permute.xlu0 %4688
  %4690 = vrot.lane.b32.xlu0 %v4173, 120
  %v4691 = vpop.permute.xlu0 %4690
  %4692 = vrot.lane.b32.xlu0 %v4170, 88
  %v4693 = vpop.permute.xlu0 %4692
  %4694 = vrot.lane.b32.xlu0 %v4171, 88
  %v4695 = vpop.permute.xlu0 %4694
  %4696 = vrot.lane.b32.xlu0 %v4172, 88
  %v4697 = vpop.permute.xlu0 %4696
  %4698 = vrot.lane.b32.xlu0 %v4173, 88
  %v4699 = vpop.permute.xlu0 %4698
  %v4701 = vsel %vm262, %v4685, 0
  %v4704 = vsel %vm262, %v4687, 0
  %v4707 = vsel %vm262, %v4689, 0
  %v4710 = vsel %vm262, %v4691, 0
  %v4713 = vsel %vm262, %v4693, 0
  %v4716 = vsel %vm262, %v4695, 0
  %v4719 = vsel %vm262, %v4697, 0
  %v4722 = vsel %vm262, %v4699, 0
  %4724 = vmatpush.bf16.xpose.msra.mxu0 0
  %4725 = vmatpush.bf16.xpose.msra.mxu0 0
  %4726 = vmatpush.bf16.xpose.msra.mxu0 0
  %4727 = vmatpush.bf16.xpose.msra.mxu0 0
  %4728 = vmatpush.bf16.xpose.msra.mxu0 %v4722
  %4729 = vmatpush.bf16.xpose.msra.mxu0 %v4719
  %4730 = vmatpush.bf16.xpose.msra.mxu0 %v4716
  %4731 = vmatpush.bf16.xpose.msra.mxu0 %v4713
  %4732 = vmatmul.bf16.gmra.mxu0 %v4701
  %v4733 = vpop.f32.mrf.mxu0
  %v4734 = vadd.f32 0.0, %v4733
  %v4735 = vpop.f32.mrf.mxu0
  %v4736 = vadd.f32 0.0, %v4735
  %4737 = vmatmul.bf16.gmra.mxu0 %v4704
  %v4738 = vpop.f32.mrf.mxu0
  %v4739 = vadd.f32 0.0, %v4738
  %v4740 = vpop.f32.mrf.mxu0
  %v4741 = vadd.f32 0.0, %v4740
  %4742 = vmatmul.bf16.gmra.mxu0 %v4707
  %v4743 = vpop.f32.mrf.mxu0
  %v4744 = vadd.f32 0.0, %v4743
  %v4745 = vpop.f32.mrf.mxu0
  %v4746 = vadd.f32 0.0, %v4745
  %4747 = vmatmul.bf16.gmra.mxu0 %v4710
  %v4748 = vpop.f32.mrf.mxu0
  %v4749 = vadd.f32 0.0, %v4748
  %v4750 = vpop.f32.mrf.mxu0
  %v4751 = vadd.f32 0.0, %v4750
  %4752 = vdwg.mxu0
  %v4753 = vsel %vm397, %v4665, -inf
  %4754 = vmax.xlane.f32.xlu0 %v4753
  %v4755 = vpop.xlane.xlu0 %4754
  %v4756 = vsel %vm397, %v4667, -inf
  %4757 = vmax.xlane.f32.xlu0 %v4756
  %v4758 = vpop.xlane.xlu0 %4757
  %v4759 = vsel %vm397, %v4670, -inf
  %4760 = vmax.xlane.f32.xlu0 %v4759
  %v4761 = vpop.xlane.xlu0 %4760
  %v4762 = vsel %vm397, %v4672, -inf
  %4763 = vmax.xlane.f32.xlu0 %v4762
  %v4764 = vpop.xlane.xlu0 %4763
  %v4765 = vsel %vm397, %v4675, -inf
  %4766 = vmax.xlane.f32.xlu0 %v4765
  %v4767 = vpop.xlane.xlu0 %4766
  %v4768 = vsel %vm397, %v4677, -inf
  %4769 = vmax.xlane.f32.xlu0 %v4768
  %v4770 = vpop.xlane.xlu0 %4769
  %v4771 = vsel %vm397, %v4680, -inf
  %4772 = vmax.xlane.f32.xlu0 %v4771
  %v4773 = vpop.xlane.xlu0 %4772
  %v4774 = vsel %vm397, %v4682, -inf
  %4775 = vmax.xlane.f32.xlu0 %v4774
  %v4776 = vpop.xlane.xlu0 %4775
  %v4777 = vsel %vm397, %v4734, -inf
  %4778 = vmax.xlane.f32.xlu0 %v4777
  %v4779 = vpop.xlane.xlu0 %4778
  %v4780 = vsel %vm397, %v4736, -inf
  %4781 = vmax.xlane.f32.xlu0 %v4780
  %v4782 = vpop.xlane.xlu0 %4781
  %v4783 = vsel %vm397, %v4739, -inf
  %4784 = vmax.xlane.f32.xlu0 %v4783
  %v4785 = vpop.xlane.xlu0 %4784
  %v4786 = vsel %vm397, %v4741, -inf
  %4787 = vmax.xlane.f32.xlu0 %v4786
  %v4788 = vpop.xlane.xlu0 %4787
  %v4789 = vsel %vm397, %v4744, -inf
  %4790 = vmax.xlane.f32.xlu0 %v4789
  %v4791 = vpop.xlane.xlu0 %4790
  %v4792 = vsel %vm397, %v4746, -inf
  %4793 = vmax.xlane.f32.xlu0 %v4792
  %v4794 = vpop.xlane.xlu0 %4793
  %v4795 = vsel %vm397, %v4749, -inf
  %4796 = vmax.xlane.f32.xlu0 %v4795
  %v4797 = vpop.xlane.xlu0 %4796
  %v4798 = vsel %vm397, %v4751, -inf
  %4799 = vmax.xlane.f32.xlu0 %v4798
  %v4800 = vpop.xlane.xlu0 %4799
  %v4801 = vsub.f32 %v4665, %v4755
  %v4802 = vsub.f32 %v4667, %v4758
  %v4803 = vsub.f32 %v4670, %v4761
  %v4804 = vsub.f32 %v4672, %v4764
  %v4805 = vsub.f32 %v4675, %v4767
  %v4806 = vsub.f32 %v4677, %v4770
  %v4807 = vsub.f32 %v4680, %v4773
  %v4808 = vsub.f32 %v4682, %v4776
  %v4809 = vsub.f32 %v4734, %v4779
  %v4810 = vsub.f32 %v4736, %v4782
  %v4811 = vsub.f32 %v4739, %v4785
  %v4812 = vsub.f32 %v4741, %v4788
  %v4813 = vsub.f32 %v4744, %v4791
  %v4814 = vsub.f32 %v4746, %v4794
  %v4815 = vsub.f32 %v4749, %v4797
  %v4816 = vsub.f32 %v4751, %v4800
  %v4817 = vmul.f32 %v4801, 1.442695
  %v4818 = vpow.pop %v4817
  %v4819 = vmul.f32 %v4802, 1.442695
  %v4820 = vpow.pop %v4819
  %v4821 = vmul.f32 %v4803, 1.442695
  %v4822 = vpow.pop %v4821
  %v4823 = vmul.f32 %v4804, 1.442695
  %v4824 = vpow.pop %v4823
  %v4825 = vmul.f32 %v4805, 1.442695
  %v4826 = vpow.pop %v4825
  %v4827 = vmul.f32 %v4806, 1.442695
  %v4828 = vpow.pop %v4827
  %v4829 = vmul.f32 %v4807, 1.442695
  %v4830 = vpow.pop %v4829
  %v4831 = vmul.f32 %v4808, 1.442695
  %v4832 = vpow.pop %v4831
  %v4833 = vmul.f32 %v4809, 1.442695
  %v4834 = vpow.pop %v4833
  %v4835 = vmul.f32 %v4810, 1.442695
  %v4836 = vpow.pop %v4835
  %v4837 = vmul.f32 %v4811, 1.442695
  %v4838 = vpow.pop %v4837
  %v4839 = vmul.f32 %v4812, 1.442695
  %v4840 = vpow.pop %v4839
  %v4841 = vmul.f32 %v4813, 1.442695
  %v4842 = vpow.pop %v4841
  %v4843 = vmul.f32 %v4814, 1.442695
  %v4844 = vpow.pop %v4843
  %v4845 = vmul.f32 %v4815, 1.442695
  %v4846 = vpow.pop %v4845
  %v4847 = vmul.f32 %v4816, 1.442695
  %v4848 = vpow.pop %v4847
  %v4849 = vsel %vm397, %v4818, 0.0
  %4850 = vadd.xlane.f32.xlu0 %v4849
  %v4851 = vpop.xlane.xlu0 %4850
  %v4852 = vsel %vm397, %v4820, 0.0
  %4853 = vadd.xlane.f32.xlu0 %v4852
  %v4854 = vpop.xlane.xlu0 %4853
  %v4855 = vsel %vm397, %v4822, 0.0
  %4856 = vadd.xlane.f32.xlu0 %v4855
  %v4857 = vpop.xlane.xlu0 %4856
  %v4858 = vsel %vm397, %v4824, 0.0
  %4859 = vadd.xlane.f32.xlu0 %v4858
  %v4860 = vpop.xlane.xlu0 %4859
  %v4861 = vsel %vm397, %v4826, 0.0
  %4862 = vadd.xlane.f32.xlu0 %v4861
  %v4863 = vpop.xlane.xlu0 %4862
  %v4864 = vsel %vm397, %v4828, 0.0
  %4865 = vadd.xlane.f32.xlu0 %v4864
  %v4866 = vpop.xlane.xlu0 %4865
  %v4867 = vsel %vm397, %v4830, 0.0
  %4868 = vadd.xlane.f32.xlu0 %v4867
  %v4869 = vpop.xlane.xlu0 %4868
  %v4870 = vsel %vm397, %v4832, 0.0
  %4871 = vadd.xlane.f32.xlu0 %v4870
  %v4872 = vpop.xlane.xlu0 %4871
  %v4873 = vsel %vm397, %v4834, 0.0
  %4874 = vadd.xlane.f32.xlu0 %v4873
  %v4875 = vpop.xlane.xlu0 %4874
  %v4876 = vsel %vm397, %v4836, 0.0
  %4877 = vadd.xlane.f32.xlu0 %v4876
  %v4878 = vpop.xlane.xlu0 %4877
  %v4879 = vsel %vm397, %v4838, 0.0
  %4880 = vadd.xlane.f32.xlu0 %v4879
  %v4881 = vpop.xlane.xlu0 %4880
  %v4882 = vsel %vm397, %v4840, 0.0
  %4883 = vadd.xlane.f32.xlu0 %v4882
  %v4884 = vpop.xlane.xlu0 %4883
  %v4885 = vsel %vm397, %v4842, 0.0
  %4886 = vadd.xlane.f32.xlu0 %v4885
  %v4887 = vpop.xlane.xlu0 %4886
  %v4888 = vsel %vm397, %v4844, 0.0
  %4889 = vadd.xlane.f32.xlu0 %v4888
  %v4890 = vpop.xlane.xlu0 %4889
  %v4891 = vsel %vm397, %v4846, 0.0
  %4892 = vadd.xlane.f32.xlu0 %v4891
  %v4893 = vpop.xlane.xlu0 %4892
  %v4894 = vsel %vm397, %v4848, 0.0
  %4895 = vadd.xlane.f32.xlu0 %v4894
  %v4896 = vpop.xlane.xlu0 %4895
  %v4897 = vrcp.pop %v4851
  %v4898 = vrcp.pop %v4854
  %v4899 = vrcp.pop %v4857
  %v4900 = vrcp.pop %v4860
  %v4901 = vrcp.pop %v4863
  %v4902 = vrcp.pop %v4866
  %v4903 = vrcp.pop %v4869
  %v4904 = vrcp.pop %v4872
  %v4905 = vrcp.pop %v4875
  %v4906 = vrcp.pop %v4878
  %v4907 = vrcp.pop %v4881
  %v4908 = vrcp.pop %v4884
  %v4909 = vrcp.pop %v4887
  %v4910 = vrcp.pop %v4890
  %v4911 = vrcp.pop %v4893
  %v4912 = vrcp.pop %v4896
  %v4913 = vmul.f32 %v4818, %v4897
  %v4914 = vmul.f32 %v4820, %v4898
  %v4915 = vmul.f32 %v4822, %v4899
  %v4916 = vmul.f32 %v4824, %v4900
  %v4917 = vmul.f32 %v4826, %v4901
  %v4918 = vmul.f32 %v4828, %v4902
  %v4919 = vmul.f32 %v4830, %v4903
  %v4920 = vmul.f32 %v4832, %v4904
  %v4921 = vmul.f32 %v4834, %v4905
  %v4922 = vmul.f32 %v4836, %v4906
  %v4923 = vmul.f32 %v4838, %v4907
  %v4924 = vmul.f32 %v4840, %v4908
  %v4925 = vmul.f32 %v4842, %v4909
  %v4926 = vmul.f32 %v4844, %v4910
  %v4927 = vmul.f32 %v4846, %v4911
  %v4928 = vmul.f32 %v4848, %v4912
  %4929 = vrot.lane.b32.xlu0 %v4018, 56
  %v4930 = vpop.permute.xlu0 %4929
  %4931 = vrot.lane.b32.xlu0 %v4020, 56
  %v4932 = vpop.permute.xlu0 %4931
  %4933 = vrot.lane.b32.xlu0 %v4023, 56
  %v4934 = vpop.permute.xlu0 %4933
  %4935 = vrot.lane.b32.xlu0 %v4025, 56
  %v4936 = vpop.permute.xlu0 %4935
  %4937 = vrot.lane.b32.xlu0 %v4028, 56
  %v4938 = vpop.permute.xlu0 %4937
  %4939 = vrot.lane.b32.xlu0 %v4030, 56
  %v4940 = vpop.permute.xlu0 %4939
  %4941 = vrot.lane.b32.xlu0 %v4033, 56
  %v4942 = vpop.permute.xlu0 %4941
  %4943 = vrot.lane.b32.xlu0 %v4035, 56
  %v4944 = vpop.permute.xlu0 %4943
  %v4954 = vsel %vm397, %v4913, 0
  %v4957 = vsel %vm397, %v4914, 0
  %v4960 = vsel %vm397, %v4915, 0
  %v4963 = vsel %vm397, %v4916, 0
  %v4966 = vsel %vm397, %v4917, 0
  %v4969 = vsel %vm397, %v4918, 0
  %v4972 = vsel %vm397, %v4919, 0
  %v4975 = vsel %vm397, %v4920, 0
  %4977 = vmatpush.msra.mxu0 0.0
  %4978 = vmatpush.msra.mxu0 0.0
  %4979 = vmatpush.msra.mxu0 0.0
  %4980 = vmatpush.msra.mxu0 0.0
  %4981 = vmatpush.msra.mxu0 0.0
  %4982 = vmatpush.msra.mxu0 0.0
  %4983 = vmatpush.msra.mxu0 0.0
  %4984 = vmatpush.msra.mxu0 0.0
  %4985 = vmatpush.msra.mxu0 %v4944
  %4986 = vmatpush.msra.mxu0 %v4942
  %4987 = vmatpush.msra.mxu0 %v4940
  %4988 = vmatpush.msra.mxu0 %v4938
  %4989 = vmatpush.msra.mxu0 %v4936
  %4990 = vmatpush.msra.mxu0 %v4934
  %4991 = vmatpush.msra.mxu0 %v4932
  %4992 = vmatpush.msra.mxu0 %v4930
  %4993 = vmatmul.f32.gmra.mxu0 %v4954
  %v4994 = vpop.f32.mrf.mxu0
  %v4995 = vadd.f32 0.0, %v4994
  %4996 = vmatmul.f32.gmra.mxu0 %v4957
  %v4997 = vpop.f32.mrf.mxu0
  %v4998 = vadd.f32 0.0, %v4997
  %4999 = vmatmul.f32.gmra.mxu0 %v4960
  %v5000 = vpop.f32.mrf.mxu0
  %v5001 = vadd.f32 0.0, %v5000
  %5002 = vmatmul.f32.gmra.mxu0 %v4963
  %v5003 = vpop.f32.mrf.mxu0
  %v5004 = vadd.f32 0.0, %v5003
  %5005 = vmatmul.f32.gmra.mxu0 %v4966
  %v5006 = vpop.f32.mrf.mxu0
  %v5007 = vadd.f32 0.0, %v5006
  %5008 = vmatmul.f32.gmra.mxu0 %v4969
  %v5009 = vpop.f32.mrf.mxu0
  %v5010 = vadd.f32 0.0, %v5009
  %5011 = vmatmul.f32.gmra.mxu0 %v4972
  %v5012 = vpop.f32.mrf.mxu0
  %v5013 = vadd.f32 0.0, %v5012
  %5014 = vmatmul.f32.gmra.mxu0 %v4975
  %v5015 = vpop.f32.mrf.mxu0
  %v5016 = vadd.f32 0.0, %v5015
  %5017 = vdwg.mxu0
  %5018 = vrot.lane.b32.xlu0 %v4038, 56
  %v5019 = vpop.permute.xlu0 %5018
  %5020 = vrot.lane.b32.xlu0 %v4040, 56
  %v5021 = vpop.permute.xlu0 %5020
  %5022 = vrot.lane.b32.xlu0 %v4043, 56
  %v5023 = vpop.permute.xlu0 %5022
  %5024 = vrot.lane.b32.xlu0 %v4045, 56
  %v5025 = vpop.permute.xlu0 %5024
  %5026 = vrot.lane.b32.xlu0 %v4048, 56
  %v5027 = vpop.permute.xlu0 %5026
  %5028 = vrot.lane.b32.xlu0 %v4050, 56
  %v5029 = vpop.permute.xlu0 %5028
  %5030 = vrot.lane.b32.xlu0 %v4053, 56
  %v5031 = vpop.permute.xlu0 %5030
  %5032 = vrot.lane.b32.xlu0 %v4055, 56
  %v5033 = vpop.permute.xlu0 %5032
  %v5043 = vsel %vm397, %v4921, 0
  %v5046 = vsel %vm397, %v4922, 0
  %v5049 = vsel %vm397, %v4923, 0
  %v5052 = vsel %vm397, %v4924, 0
  %v5055 = vsel %vm397, %v4925, 0
  %v5058 = vsel %vm397, %v4926, 0
  %v5061 = vsel %vm397, %v4927, 0
  %v5064 = vsel %vm397, %v4928, 0
  %5066 = vmatpush.msra.mxu0 0.0
  %5067 = vmatpush.msra.mxu0 0.0
  %5068 = vmatpush.msra.mxu0 0.0
  %5069 = vmatpush.msra.mxu0 0.0
  %5070 = vmatpush.msra.mxu0 0.0
  %5071 = vmatpush.msra.mxu0 0.0
  %5072 = vmatpush.msra.mxu0 0.0
  %5073 = vmatpush.msra.mxu0 0.0
  %5074 = vmatpush.msra.mxu0 %v5033
  %5075 = vmatpush.msra.mxu0 %v5031
  %5076 = vmatpush.msra.mxu0 %v5029
  %5077 = vmatpush.msra.mxu0 %v5027
  %5078 = vmatpush.msra.mxu0 %v5025
  %5079 = vmatpush.msra.mxu0 %v5023
  %5080 = vmatpush.msra.mxu0 %v5021
  %5081 = vmatpush.msra.mxu0 %v5019
  %5082 = vmatmul.f32.gmra.mxu0 %v5043
  %v5083 = vpop.f32.mrf.mxu0
  %v5084 = vadd.f32 0.0, %v5083
  %5085 = vmatmul.f32.gmra.mxu0 %v5046
  %v5086 = vpop.f32.mrf.mxu0
  %v5087 = vadd.f32 0.0, %v5086
  %5088 = vmatmul.f32.gmra.mxu0 %v5049
  %v5089 = vpop.f32.mrf.mxu0
  %v5090 = vadd.f32 0.0, %v5089
  %5091 = vmatmul.f32.gmra.mxu0 %v5052
  %v5092 = vpop.f32.mrf.mxu0
  %v5093 = vadd.f32 0.0, %v5092
  %5094 = vmatmul.f32.gmra.mxu0 %v5055
  %v5095 = vpop.f32.mrf.mxu0
  %v5096 = vadd.f32 0.0, %v5095
  %5097 = vmatmul.f32.gmra.mxu0 %v5058
  %v5098 = vpop.f32.mrf.mxu0
  %v5099 = vadd.f32 0.0, %v5098
  %5100 = vmatmul.f32.gmra.mxu0 %v5061
  %v5101 = vpop.f32.mrf.mxu0
  %v5102 = vadd.f32 0.0, %v5101
  %5103 = vmatmul.f32.gmra.mxu0 %v5064
  %v5104 = vpop.f32.mrf.mxu0
  %v5105 = vadd.f32 0.0, %v5104
  %5106 = vdwg.mxu0
  %v5107 = vpack.c.bf16 %v4998, %v4995
  %v5108 = vpack.c.bf16 %v5004, %v5001
  %v5109 = vpack.c.bf16 %v5010, %v5007
  %v5110 = vpack.c.bf16 %v5016, %v5013
  %v5111 = vpack.c.bf16 %v5087, %v5084
  %v5112 = vpack.c.bf16 %v5093, %v5090
  %v5113 = vpack.c.bf16 %v5099, %v5096
  %v5114 = vpack.c.bf16 %v5105, %v5102
  %s5115 = scalar_lea.vmem %s5, 20
  %v5116 = vld [vmem:[%s5115] sm:$0xf]
  %v5118 = vsel %vm262, %v5107, 0
  %v5121 = vsel %vm262, %v5108, 0
  %v5124 = vsel %vm262, %v5109, 0
  %v5127 = vsel %vm262, %v5110, 0
  %v5130 = vsel %vm262, %v5111, 0
  %v5133 = vsel %vm262, %v5112, 0
  %v5136 = vsel %vm262, %v5113, 0
  %v5139 = vsel %vm262, %v5114, 0
  %v5142 = vsel %vm1303, %v5116, 0
  %5144 = vmatpush.bf16.msra.mxu0 0
  %5145 = vmatpush.bf16.msra.mxu0 0
  %5146 = vmatpush.bf16.msra.mxu0 0
  %5147 = vmatpush.bf16.msra.mxu0 0
  %5148 = vmatpush.bf16.msra.mxu0 0
  %5149 = vmatpush.bf16.msra.mxu0 0
  %5150 = vmatpush.bf16.msra.mxu0 0
  %5151 = vmatpush.bf16.msra.mxu0 %v5142
  %5152 = vmatmul.bf16.gmra.mxu0 %v5118
  %v5153 = vpop.f32.mrf.mxu0
  %v5154 = vadd.f32 0.0, %v5153
  %v5155 = vpop.f32.mrf.mxu0
  %v5156 = vadd.f32 0.0, %v5155
  %5157 = vmatmul.bf16.gmra.mxu0 %v5121
  %v5158 = vpop.f32.mrf.mxu0
  %v5159 = vadd.f32 0.0, %v5158
  %v5160 = vpop.f32.mrf.mxu0
  %v5161 = vadd.f32 0.0, %v5160
  %5162 = vmatmul.bf16.gmra.mxu0 %v5124
  %v5163 = vpop.f32.mrf.mxu0
  %v5164 = vadd.f32 0.0, %v5163
  %v5165 = vpop.f32.mrf.mxu0
  %v5166 = vadd.f32 0.0, %v5165
  %5167 = vmatmul.bf16.gmra.mxu0 %v5127
  %v5168 = vpop.f32.mrf.mxu0
  %v5169 = vadd.f32 0.0, %v5168
  %v5170 = vpop.f32.mrf.mxu0
  %v5171 = vadd.f32 0.0, %v5170
  %5172 = vmatmul.bf16.gmra.mxu0 %v5130
  %v5173 = vpop.f32.mrf.mxu0
  %v5174 = vadd.f32 0.0, %v5173
  %v5175 = vpop.f32.mrf.mxu0
  %v5176 = vadd.f32 0.0, %v5175
  %5177 = vmatmul.bf16.gmra.mxu0 %v5133
  %v5178 = vpop.f32.mrf.mxu0
  %v5179 = vadd.f32 0.0, %v5178
  %v5180 = vpop.f32.mrf.mxu0
  %v5181 = vadd.f32 0.0, %v5180
  %5182 = vmatmul.bf16.gmra.mxu0 %v5136
  %v5183 = vpop.f32.mrf.mxu0
  %v5184 = vadd.f32 0.0, %v5183
  %v5185 = vpop.f32.mrf.mxu0
  %v5186 = vadd.f32 0.0, %v5185
  %5187 = vmatmul.bf16.gmra.mxu0 %v5139
  %v5188 = vpop.f32.mrf.mxu0
  %v5189 = vadd.f32 0.0, %v5188
  %v5190 = vpop.f32.mrf.mxu0
  %v5191 = vadd.f32 0.0, %v5190
  %5192 = vdwg.mxu0
  %v5194 = vsel %vm262, %v4605, 0
  %v5197 = vsel %vm262, %v4606, 0
  %v5200 = vsel %vm262, %v4607, 0
  %v5203 = vsel %vm262, %v4608, 0
  %v5206 = vsel %vm262, %v4609, 0
  %v5209 = vsel %vm262, %v4610, 0
  %v5212 = vsel %vm262, %v4611, 0
  %v5215 = vsel %vm262, %v4612, 0
  %v5218 = vsel %vm1303, %v4614, 0
  %5220 = vmatpush.bf16.msra.mxu0 0
  %5221 = vmatpush.bf16.msra.mxu0 0
  %5222 = vmatpush.bf16.msra.mxu0 0
  %5223 = vmatpush.bf16.msra.mxu0 0
  %5224 = vmatpush.bf16.msra.mxu0 0
  %5225 = vmatpush.bf16.msra.mxu0 0
  %5226 = vmatpush.bf16.msra.mxu0 0
  %5227 = vmatpush.bf16.msra.mxu0 %v5218
  %5228 = vmatmul.bf16.gmra.mxu0 %v5194
  %v5229 = vpop.f32.mrf.mxu0
  %v5230 = vadd.f32 %v5154, %v5229
  %v5231 = vpop.f32.mrf.mxu0
  %v5232 = vadd.f32 %v5156, %v5231
  %5233 = vmatmul.bf16.gmra.mxu0 %v5197
  %v5234 = vpop.f32.mrf.mxu0
  %v5235 = vadd.f32 %v5159, %v5234
  %v5236 = vpop.f32.mrf.mxu0
  %v5237 = vadd.f32 %v5161, %v5236
  %5238 = vmatmul.bf16.gmra.mxu0 %v5200
  %v5239 = vpop.f32.mrf.mxu0
  %v5240 = vadd.f32 %v5164, %v5239
  %v5241 = vpop.f32.mrf.mxu0
  %v5242 = vadd.f32 %v5166, %v5241
  %5243 = vmatmul.bf16.gmra.mxu0 %v5203
  %v5244 = vpop.f32.mrf.mxu0
  %v5245 = vadd.f32 %v5169, %v5244
  %v5246 = vpop.f32.mrf.mxu0
  %v5247 = vadd.f32 %v5171, %v5246
  %5248 = vmatmul.bf16.gmra.mxu0 %v5206
  %v5249 = vpop.f32.mrf.mxu0
  %v5250 = vadd.f32 %v5174, %v5249
  %v5251 = vpop.f32.mrf.mxu0
  %v5252 = vadd.f32 %v5176, %v5251
  %5253 = vmatmul.bf16.gmra.mxu0 %v5209
  %v5254 = vpop.f32.mrf.mxu0
  %v5255 = vadd.f32 %v5179, %v5254
  %v5256 = vpop.f32.mrf.mxu0
  %v5257 = vadd.f32 %v5181, %v5256
  %5258 = vmatmul.bf16.gmra.mxu0 %v5212
  %v5259 = vpop.f32.mrf.mxu0
  %v5260 = vadd.f32 %v5184, %v5259
  %v5261 = vpop.f32.mrf.mxu0
  %v5262 = vadd.f32 %v5186, %v5261
  %5263 = vmatmul.bf16.gmra.mxu0 %v5215
  %v5264 = vpop.f32.mrf.mxu0
  %v5265 = vadd.f32 %v5189, %v5264
  %v5266 = vpop.f32.mrf.mxu0
  %v5267 = vadd.f32 %v5191, %v5266
  %5268 = vdwg.mxu0
  %5269 = vrot.lane.b32.xlu0 %v4089, 112
  %v5270 = vpop.permute.xlu0 %5269
  %5271 = vrot.lane.b32.xlu0 %v4090, 112
  %v5272 = vpop.permute.xlu0 %5271
  %5273 = vrot.lane.b32.xlu0 %v4091, 112
  %v5274 = vpop.permute.xlu0 %5273
  %5275 = vrot.lane.b32.xlu0 %v4092, 112
  %v5276 = vpop.permute.xlu0 %5275
  %5277 = vrot.lane.b32.xlu0 %v4089, 80
  %v5278 = vpop.permute.xlu0 %5277
  %5279 = vrot.lane.b32.xlu0 %v4090, 80
  %v5280 = vpop.permute.xlu0 %5279
  %5281 = vrot.lane.b32.xlu0 %v4091, 80
  %v5282 = vpop.permute.xlu0 %5281
  %5283 = vrot.lane.b32.xlu0 %v4092, 80
  %v5284 = vpop.permute.xlu0 %5283
  %v5286 = vsel %vm262, %v5270, 0
  %v5289 = vsel %vm262, %v5272, 0
  %v5292 = vsel %vm262, %v5274, 0
  %v5295 = vsel %vm262, %v5276, 0
  %v5298 = vsel %vm262, %v5278, 0
  %v5301 = vsel %vm262, %v5280, 0
  %v5304 = vsel %vm262, %v5282, 0
  %v5307 = vsel %vm262, %v5284, 0
  %5309 = vmatpush.bf16.xpose.msra.mxu0 0
  %5310 = vmatpush.bf16.xpose.msra.mxu0 0
  %5311 = vmatpush.bf16.xpose.msra.mxu0 0
  %5312 = vmatpush.bf16.xpose.msra.mxu0 0
  %5313 = vmatpush.bf16.xpose.msra.mxu0 %v5307
  %5314 = vmatpush.bf16.xpose.msra.mxu0 %v5304
  %5315 = vmatpush.bf16.xpose.msra.mxu0 %v5301
  %5316 = vmatpush.bf16.xpose.msra.mxu0 %v5298
  %5317 = vmatmul.bf16.gmra.mxu0 %v5286
  %v5318 = vpop.f32.mrf.mxu0
  %v5319 = vadd.f32 0.0, %v5318
  %v5320 = vpop.f32.mrf.mxu0
  %v5321 = vadd.f32 0.0, %v5320
  %5322 = vmatmul.bf16.gmra.mxu0 %v5289
  %v5323 = vpop.f32.mrf.mxu0
  %v5324 = vadd.f32 0.0, %v5323
  %v5325 = vpop.f32.mrf.mxu0
  %v5326 = vadd.f32 0.0, %v5325
  %5327 = vmatmul.bf16.gmra.mxu0 %v5292
  %v5328 = vpop.f32.mrf.mxu0
  %v5329 = vadd.f32 0.0, %v5328
  %v5330 = vpop.f32.mrf.mxu0
  %v5331 = vadd.f32 0.0, %v5330
  %5332 = vmatmul.bf16.gmra.mxu0 %v5295
  %v5333 = vpop.f32.mrf.mxu0
  %v5334 = vadd.f32 0.0, %v5333
  %v5335 = vpop.f32.mrf.mxu0
  %v5336 = vadd.f32 0.0, %v5335
  %5337 = vdwg.mxu0
  %5338 = vrot.lane.b32.xlu0 %v4170, 112
  %v5339 = vpop.permute.xlu0 %5338
  %5340 = vrot.lane.b32.xlu0 %v4171, 112
  %v5341 = vpop.permute.xlu0 %5340
  %5342 = vrot.lane.b32.xlu0 %v4172, 112
  %v5343 = vpop.permute.xlu0 %5342
  %5344 = vrot.lane.b32.xlu0 %v4173, 112
  %v5345 = vpop.permute.xlu0 %5344
  %5346 = vrot.lane.b32.xlu0 %v4170, 80
  %v5347 = vpop.permute.xlu0 %5346
  %5348 = vrot.lane.b32.xlu0 %v4171, 80
  %v5349 = vpop.permute.xlu0 %5348
  %5350 = vrot.lane.b32.xlu0 %v4172, 80
  %v5351 = vpop.permute.xlu0 %5350
  %5352 = vrot.lane.b32.xlu0 %v4173, 80
  %v5353 = vpop.permute.xlu0 %5352
  %v5355 = vsel %vm262, %v5339, 0
  %v5358 = vsel %vm262, %v5341, 0
  %v5361 = vsel %vm262, %v5343, 0
  %v5364 = vsel %vm262, %v5345, 0
  %v5367 = vsel %vm262, %v5347, 0
  %v5370 = vsel %vm262, %v5349, 0
  %v5373 = vsel %vm262, %v5351, 0
  %v5376 = vsel %vm262, %v5353, 0
  %5378 = vmatpush.bf16.xpose.msra.mxu0 0
  %5379 = vmatpush.bf16.xpose.msra.mxu0 0
  %5380 = vmatpush.bf16.xpose.msra.mxu0 0
  %5381 = vmatpush.bf16.xpose.msra.mxu0 0
  %5382 = vmatpush.bf16.xpose.msra.mxu0 %v5376
  %5383 = vmatpush.bf16.xpose.msra.mxu0 %v5373
  %5384 = vmatpush.bf16.xpose.msra.mxu0 %v5370
  %5385 = vmatpush.bf16.xpose.msra.mxu0 %v5367
  %5386 = vmatmul.bf16.gmra.mxu0 %v5355
  %v5387 = vpop.f32.mrf.mxu0
  %v5388 = vadd.f32 0.0, %v5387
  %v5389 = vpop.f32.mrf.mxu0
  %v5390 = vadd.f32 0.0, %v5389
  %5391 = vmatmul.bf16.gmra.mxu0 %v5358
  %v5392 = vpop.f32.mrf.mxu0
  %v5393 = vadd.f32 0.0, %v5392
  %v5394 = vpop.f32.mrf.mxu0
  %v5395 = vadd.f32 0.0, %v5394
  %5396 = vmatmul.bf16.gmra.mxu0 %v5361
  %v5397 = vpop.f32.mrf.mxu0
  %v5398 = vadd.f32 0.0, %v5397
  %v5399 = vpop.f32.mrf.mxu0
  %v5400 = vadd.f32 0.0, %v5399
  %5401 = vmatmul.bf16.gmra.mxu0 %v5364
  %v5402 = vpop.f32.mrf.mxu0
  %v5403 = vadd.f32 0.0, %v5402
  %v5404 = vpop.f32.mrf.mxu0
  %v5405 = vadd.f32 0.0, %v5404
  %5406 = vdwg.mxu0
  %v5407 = vsel %vm397, %v5319, -inf
  %5408 = vmax.xlane.f32.xlu0 %v5407
  %v5409 = vpop.xlane.xlu0 %5408
  %v5410 = vsel %vm397, %v5321, -inf
  %5411 = vmax.xlane.f32.xlu0 %v5410
  %v5412 = vpop.xlane.xlu0 %5411
  %v5413 = vsel %vm397, %v5324, -inf
  %5414 = vmax.xlane.f32.xlu0 %v5413
  %v5415 = vpop.xlane.xlu0 %5414
  %v5416 = vsel %vm397, %v5326, -inf
  %5417 = vmax.xlane.f32.xlu0 %v5416
  %v5418 = vpop.xlane.xlu0 %5417
  %v5419 = vsel %vm397, %v5329, -inf
  %5420 = vmax.xlane.f32.xlu0 %v5419
  %v5421 = vpop.xlane.xlu0 %5420
  %v5422 = vsel %vm397, %v5331, -inf
  %5423 = vmax.xlane.f32.xlu0 %v5422
  %v5424 = vpop.xlane.xlu0 %5423
  %v5425 = vsel %vm397, %v5334, -inf
  %5426 = vmax.xlane.f32.xlu0 %v5425
  %v5427 = vpop.xlane.xlu0 %5426
  %v5428 = vsel %vm397, %v5336, -inf
  %5429 = vmax.xlane.f32.xlu0 %v5428
  %v5430 = vpop.xlane.xlu0 %5429
  %v5431 = vsel %vm397, %v5388, -inf
  %5432 = vmax.xlane.f32.xlu0 %v5431
  %v5433 = vpop.xlane.xlu0 %5432
  %v5434 = vsel %vm397, %v5390, -inf
  %5435 = vmax.xlane.f32.xlu0 %v5434
  %v5436 = vpop.xlane.xlu0 %5435
  %v5437 = vsel %vm397, %v5393, -inf
  %5438 = vmax.xlane.f32.xlu0 %v5437
  %v5439 = vpop.xlane.xlu0 %5438
  %v5440 = vsel %vm397, %v5395, -inf
  %5441 = vmax.xlane.f32.xlu0 %v5440
  %v5442 = vpop.xlane.xlu0 %5441
  %v5443 = vsel %vm397, %v5398, -inf
  %5444 = vmax.xlane.f32.xlu0 %v5443
  %v5445 = vpop.xlane.xlu0 %5444
  %v5446 = vsel %vm397, %v5400, -inf
  %5447 = vmax.xlane.f32.xlu0 %v5446
  %v5448 = vpop.xlane.xlu0 %5447
  %v5449 = vsel %vm397, %v5403, -inf
  %5450 = vmax.xlane.f32.xlu0 %v5449
  %v5451 = vpop.xlane.xlu0 %5450
  %v5452 = vsel %vm397, %v5405, -inf
  %5453 = vmax.xlane.f32.xlu0 %v5452
  %v5454 = vpop.xlane.xlu0 %5453
  %v5455 = vsub.f32 %v5319, %v5409
  %v5456 = vsub.f32 %v5321, %v5412
  %v5457 = vsub.f32 %v5324, %v5415
  %v5458 = vsub.f32 %v5326, %v5418
  %v5459 = vsub.f32 %v5329, %v5421
  %v5460 = vsub.f32 %v5331, %v5424
  %v5461 = vsub.f32 %v5334, %v5427
  %v5462 = vsub.f32 %v5336, %v5430
  %v5463 = vsub.f32 %v5388, %v5433
  %v5464 = vsub.f32 %v5390, %v5436
  %v5465 = vsub.f32 %v5393, %v5439
  %v5466 = vsub.f32 %v5395, %v5442
  %v5467 = vsub.f32 %v5398, %v5445
  %v5468 = vsub.f32 %v5400, %v5448
  %v5469 = vsub.f32 %v5403, %v5451
  %v5470 = vsub.f32 %v5405, %v5454
  %v5471 = vmul.f32 %v5455, 1.442695
  %v5472 = vpow.pop %v5471
  %v5473 = vmul.f32 %v5456, 1.442695
  %v5474 = vpow.pop %v5473
  %v5475 = vmul.f32 %v5457, 1.442695
  %v5476 = vpow.pop %v5475
  %v5477 = vmul.f32 %v5458, 1.442695
  %v5478 = vpow.pop %v5477
  %v5479 = vmul.f32 %v5459, 1.442695
  %v5480 = vpow.pop %v5479
  %v5481 = vmul.f32 %v5460, 1.442695
  %v5482 = vpow.pop %v5481
  %v5483 = vmul.f32 %v5461, 1.442695
  %v5484 = vpow.pop %v5483
  %v5485 = vmul.f32 %v5462, 1.442695
  %v5486 = vpow.pop %v5485
  %v5487 = vmul.f32 %v5463, 1.442695
  %v5488 = vpow.pop %v5487
  %v5489 = vmul.f32 %v5464, 1.442695
  %v5490 = vpow.pop %v5489
  %v5491 = vmul.f32 %v5465, 1.442695
  %v5492 = vpow.pop %v5491
  %v5493 = vmul.f32 %v5466, 1.442695
  %v5494 = vpow.pop %v5493
  %v5495 = vmul.f32 %v5467, 1.442695
  %v5496 = vpow.pop %v5495
  %v5497 = vmul.f32 %v5468, 1.442695
  %v5498 = vpow.pop %v5497
  %v5499 = vmul.f32 %v5469, 1.442695
  %v5500 = vpow.pop %v5499
  %v5501 = vmul.f32 %v5470, 1.442695
  %v5502 = vpow.pop %v5501
  %v5503 = vsel %vm397, %v5472, 0.0
  %5504 = vadd.xlane.f32.xlu0 %v5503
  %v5505 = vpop.xlane.xlu0 %5504
  %v5506 = vsel %vm397, %v5474, 0.0
  %5507 = vadd.xlane.f32.xlu0 %v5506
  %v5508 = vpop.xlane.xlu0 %5507
  %v5509 = vsel %vm397, %v5476, 0.0
  %5510 = vadd.xlane.f32.xlu0 %v5509
  %v5511 = vpop.xlane.xlu0 %5510
  %v5512 = vsel %vm397, %v5478, 0.0
  %5513 = vadd.xlane.f32.xlu0 %v5512
  %v5514 = vpop.xlane.xlu0 %5513
  %v5515 = vsel %vm397, %v5480, 0.0
  %5516 = vadd.xlane.f32.xlu0 %v5515
  %v5517 = vpop.xlane.xlu0 %5516
  %v5518 = vsel %vm397, %v5482, 0.0
  %5519 = vadd.xlane.f32.xlu0 %v5518
  %v5520 = vpop.xlane.xlu0 %5519
  %v5521 = vsel %vm397, %v5484, 0.0
  %5522 = vadd.xlane.f32.xlu0 %v5521
  %v5523 = vpop.xlane.xlu0 %5522
  %v5524 = vsel %vm397, %v5486, 0.0
  %5525 = vadd.xlane.f32.xlu0 %v5524
  %v5526 = vpop.xlane.xlu0 %5525
  %v5527 = vsel %vm397, %v5488, 0.0
  %5528 = vadd.xlane.f32.xlu0 %v5527
  %v5529 = vpop.xlane.xlu0 %5528
  %v5530 = vsel %vm397, %v5490, 0.0
  %5531 = vadd.xlane.f32.xlu0 %v5530
  %v5532 = vpop.xlane.xlu0 %5531
  %v5533 = vsel %vm397, %v5492, 0.0
  %5534 = vadd.xlane.f32.xlu0 %v5533
  %v5535 = vpop.xlane.xlu0 %5534
  %v5536 = vsel %vm397, %v5494, 0.0
  %5537 = vadd.xlane.f32.xlu0 %v5536
  %v5538 = vpop.xlane.xlu0 %5537
  %v5539 = vsel %vm397, %v5496, 0.0
  %5540 = vadd.xlane.f32.xlu0 %v5539
  %v5541 = vpop.xlane.xlu0 %5540
  %v5542 = vsel %vm397, %v5498, 0.0
  %5543 = vadd.xlane.f32.xlu0 %v5542
  %v5544 = vpop.xlane.xlu0 %5543
  %v5545 = vsel %vm397, %v5500, 0.0
  %5546 = vadd.xlane.f32.xlu0 %v5545
  %v5547 = vpop.xlane.xlu0 %5546
  %v5548 = vsel %vm397, %v5502, 0.0
  %5549 = vadd.xlane.f32.xlu0 %v5548
  %v5550 = vpop.xlane.xlu0 %5549
  %v5551 = vrcp.pop %v5505
  %v5552 = vrcp.pop %v5508
  %v5553 = vrcp.pop %v5511
  %v5554 = vrcp.pop %v5514
  %v5555 = vrcp.pop %v5517
  %v5556 = vrcp.pop %v5520
  %v5557 = vrcp.pop %v5523
  %v5558 = vrcp.pop %v5526
  %v5559 = vrcp.pop %v5529
  %v5560 = vrcp.pop %v5532
  %v5561 = vrcp.pop %v5535
  %v5562 = vrcp.pop %v5538
  %v5563 = vrcp.pop %v5541
  %v5564 = vrcp.pop %v5544
  %v5565 = vrcp.pop %v5547
  %v5566 = vrcp.pop %v5550
  %v5567 = vmul.f32 %v5472, %v5551
  %v5568 = vmul.f32 %v5474, %v5552
  %v5569 = vmul.f32 %v5476, %v5553
  %v5570 = vmul.f32 %v5478, %v5554
  %v5571 = vmul.f32 %v5480, %v5555
  %v5572 = vmul.f32 %v5482, %v5556
  %v5573 = vmul.f32 %v5484, %v5557
  %v5574 = vmul.f32 %v5486, %v5558
  %v5575 = vmul.f32 %v5488, %v5559
  %v5576 = vmul.f32 %v5490, %v5560
  %v5577 = vmul.f32 %v5492, %v5561
  %v5578 = vmul.f32 %v5494, %v5562
  %v5579 = vmul.f32 %v5496, %v5563
  %v5580 = vmul.f32 %v5498, %v5564
  %v5581 = vmul.f32 %v5500, %v5565
  %v5582 = vmul.f32 %v5502, %v5566
  %5583 = vrot.lane.b32.xlu0 %v4018, 48
  %v5584 = vpop.permute.xlu0 %5583
  %5585 = vrot.lane.b32.xlu0 %v4020, 48
  %v5586 = vpop.permute.xlu0 %5585
  %5587 = vrot.lane.b32.xlu0 %v4023, 48
  %v5588 = vpop.permute.xlu0 %5587
  %5589 = vrot.lane.b32.xlu0 %v4025, 48
  %v5590 = vpop.permute.xlu0 %5589
  %5591 = vrot.lane.b32.xlu0 %v4028, 48
  %v5592 = vpop.permute.xlu0 %5591
  %5593 = vrot.lane.b32.xlu0 %v4030, 48
  %v5594 = vpop.permute.xlu0 %5593
  %5595 = vrot.lane.b32.xlu0 %v4033, 48
  %v5596 = vpop.permute.xlu0 %5595
  %5597 = vrot.lane.b32.xlu0 %v4035, 48
  %v5598 = vpop.permute.xlu0 %5597
  %v5608 = vsel %vm397, %v5567, 0
  %v5611 = vsel %vm397, %v5568, 0
  %v5614 = vsel %vm397, %v5569, 0
  %v5617 = vsel %vm397, %v5570, 0
  %v5620 = vsel %vm397, %v5571, 0
  %v5623 = vsel %vm397, %v5572, 0
  %v5626 = vsel %vm397, %v5573, 0
  %v5629 = vsel %vm397, %v5574, 0
  %5631 = vmatpush.msra.mxu0 0.0
  %5632 = vmatpush.msra.mxu0 0.0
  %5633 = vmatpush.msra.mxu0 0.0
  %5634 = vmatpush.msra.mxu0 0.0
  %5635 = vmatpush.msra.mxu0 0.0
  %5636 = vmatpush.msra.mxu0 0.0
  %5637 = vmatpush.msra.mxu0 0.0
  %5638 = vmatpush.msra.mxu0 0.0
  %5639 = vmatpush.msra.mxu0 %v5598
  %5640 = vmatpush.msra.mxu0 %v5596
  %5641 = vmatpush.msra.mxu0 %v5594
  %5642 = vmatpush.msra.mxu0 %v5592
  %5643 = vmatpush.msra.mxu0 %v5590
  %5644 = vmatpush.msra.mxu0 %v5588
  %5645 = vmatpush.msra.mxu0 %v5586
  %5646 = vmatpush.msra.mxu0 %v5584
  %5647 = vmatmul.f32.gmra.mxu0 %v5608
  %v5648 = vpop.f32.mrf.mxu0
  %v5649 = vadd.f32 0.0, %v5648
  %5650 = vmatmul.f32.gmra.mxu0 %v5611
  %v5651 = vpop.f32.mrf.mxu0
  %v5652 = vadd.f32 0.0, %v5651
  %5653 = vmatmul.f32.gmra.mxu0 %v5614
  %v5654 = vpop.f32.mrf.mxu0
  %v5655 = vadd.f32 0.0, %v5654
  %5656 = vmatmul.f32.gmra.mxu0 %v5617
  %v5657 = vpop.f32.mrf.mxu0
  %v5658 = vadd.f32 0.0, %v5657
  %5659 = vmatmul.f32.gmra.mxu0 %v5620
  %v5660 = vpop.f32.mrf.mxu0
  %v5661 = vadd.f32 0.0, %v5660
  %5662 = vmatmul.f32.gmra.mxu0 %v5623
  %v5663 = vpop.f32.mrf.mxu0
  %v5664 = vadd.f32 0.0, %v5663
  %5665 = vmatmul.f32.gmra.mxu0 %v5626
  %v5666 = vpop.f32.mrf.mxu0
  %v5667 = vadd.f32 0.0, %v5666
  %5668 = vmatmul.f32.gmra.mxu0 %v5629
  %v5669 = vpop.f32.mrf.mxu0
  %v5670 = vadd.f32 0.0, %v5669
  %5671 = vdwg.mxu0
  %5672 = vrot.lane.b32.xlu0 %v4038, 48
  %v5673 = vpop.permute.xlu0 %5672
  %5674 = vrot.lane.b32.xlu0 %v4040, 48
  %v5675 = vpop.permute.xlu0 %5674
  %5676 = vrot.lane.b32.xlu0 %v4043, 48
  %v5677 = vpop.permute.xlu0 %5676
  %5678 = vrot.lane.b32.xlu0 %v4045, 48
  %v5679 = vpop.permute.xlu0 %5678
  %5680 = vrot.lane.b32.xlu0 %v4048, 48
  %v5681 = vpop.permute.xlu0 %5680
  %5682 = vrot.lane.b32.xlu0 %v4050, 48
  %v5683 = vpop.permute.xlu0 %5682
  %5684 = vrot.lane.b32.xlu0 %v4053, 48
  %v5685 = vpop.permute.xlu0 %5684
  %5686 = vrot.lane.b32.xlu0 %v4055, 48
  %v5687 = vpop.permute.xlu0 %5686
  %v5697 = vsel %vm397, %v5575, 0
  %v5700 = vsel %vm397, %v5576, 0
  %v5703 = vsel %vm397, %v5577, 0
  %v5706 = vsel %vm397, %v5578, 0
  %v5709 = vsel %vm397, %v5579, 0
  %v5712 = vsel %vm397, %v5580, 0
  %v5715 = vsel %vm397, %v5581, 0
  %v5718 = vsel %vm397, %v5582, 0
  %5720 = vmatpush.msra.mxu0 0.0
  %5721 = vmatpush.msra.mxu0 0.0
  %5722 = vmatpush.msra.mxu0 0.0
  %5723 = vmatpush.msra.mxu0 0.0
  %5724 = vmatpush.msra.mxu0 0.0
  %5725 = vmatpush.msra.mxu0 0.0
  %5726 = vmatpush.msra.mxu0 0.0
  %5727 = vmatpush.msra.mxu0 0.0
  %5728 = vmatpush.msra.mxu0 %v5687
  %5729 = vmatpush.msra.mxu0 %v5685
  %5730 = vmatpush.msra.mxu0 %v5683
  %5731 = vmatpush.msra.mxu0 %v5681
  %5732 = vmatpush.msra.mxu0 %v5679
  %5733 = vmatpush.msra.mxu0 %v5677
  %5734 = vmatpush.msra.mxu0 %v5675
  %5735 = vmatpush.msra.mxu0 %v5673
  %5736 = vmatmul.f32.gmra.mxu0 %v5697
  %v5737 = vpop.f32.mrf.mxu0
  %v5738 = vadd.f32 0.0, %v5737
  %5739 = vmatmul.f32.gmra.mxu0 %v5700
  %v5740 = vpop.f32.mrf.mxu0
  %v5741 = vadd.f32 0.0, %v5740
  %5742 = vmatmul.f32.gmra.mxu0 %v5703
  %v5743 = vpop.f32.mrf.mxu0
  %v5744 = vadd.f32 0.0, %v5743
  %5745 = vmatmul.f32.gmra.mxu0 %v5706
  %v5746 = vpop.f32.mrf.mxu0
  %v5747 = vadd.f32 0.0, %v5746
  %5748 = vmatmul.f32.gmra.mxu0 %v5709
  %v5749 = vpop.f32.mrf.mxu0
  %v5750 = vadd.f32 0.0, %v5749
  %5751 = vmatmul.f32.gmra.mxu0 %v5712
  %v5752 = vpop.f32.mrf.mxu0
  %v5753 = vadd.f32 0.0, %v5752
  %5754 = vmatmul.f32.gmra.mxu0 %v5715
  %v5755 = vpop.f32.mrf.mxu0
  %v5756 = vadd.f32 0.0, %v5755
  %5757 = vmatmul.f32.gmra.mxu0 %v5718
  %v5758 = vpop.f32.mrf.mxu0
  %v5759 = vadd.f32 0.0, %v5758
  %5760 = vdwg.mxu0
  %v5761 = vpack.c.bf16 %v5652, %v5649
  %v5762 = vpack.c.bf16 %v5658, %v5655
  %v5763 = vpack.c.bf16 %v5664, %v5661
  %v5764 = vpack.c.bf16 %v5670, %v5667
  %v5765 = vpack.c.bf16 %v5741, %v5738
  %v5766 = vpack.c.bf16 %v5747, %v5744
  %v5767 = vpack.c.bf16 %v5753, %v5750
  %v5768 = vpack.c.bf16 %v5759, %v5756
  %s5769 = scalar_lea.vmem %s5, 24
  %v5770 = vld [vmem:[%s5769] sm:$0xf]
  %v5772 = vsel %vm262, %v5761, 0
  %v5775 = vsel %vm262, %v5762, 0
  %v5778 = vsel %vm262, %v5763, 0
  %v5781 = vsel %vm262, %v5764, 0
  %v5784 = vsel %vm262, %v5765, 0
  %v5787 = vsel %vm262, %v5766, 0
  %v5790 = vsel %vm262, %v5767, 0
  %v5793 = vsel %vm262, %v5768, 0
  %v5796 = vsel %vm1303, %v5770, 0
  %5798 = vmatpush.bf16.msra.mxu0 0
  %5799 = vmatpush.bf16.msra.mxu0 0
  %5800 = vmatpush.bf16.msra.mxu0 0
  %5801 = vmatpush.bf16.msra.mxu0 0
  %5802 = vmatpush.bf16.msra.mxu0 0
  %5803 = vmatpush.bf16.msra.mxu0 0
  %5804 = vmatpush.bf16.msra.mxu0 0
  %5805 = vmatpush.bf16.msra.mxu0 %v5796
  %5806 = vmatmul.bf16.gmra.mxu0 %v5772
  %v5807 = vpop.f32.mrf.mxu0
  %v5808 = vadd.f32 0.0, %v5807
  %v5809 = vpop.f32.mrf.mxu0
  %v5810 = vadd.f32 0.0, %v5809
  %5811 = vmatmul.bf16.gmra.mxu0 %v5775
  %v5812 = vpop.f32.mrf.mxu0
  %v5813 = vadd.f32 0.0, %v5812
  %v5814 = vpop.f32.mrf.mxu0
  %v5815 = vadd.f32 0.0, %v5814
  %5816 = vmatmul.bf16.gmra.mxu0 %v5778
  %v5817 = vpop.f32.mrf.mxu0
  %v5818 = vadd.f32 0.0, %v5817
  %v5819 = vpop.f32.mrf.mxu0
  %v5820 = vadd.f32 0.0, %v5819
  %5821 = vmatmul.bf16.gmra.mxu0 %v5781
  %v5822 = vpop.f32.mrf.mxu0
  %v5823 = vadd.f32 0.0, %v5822
  %v5824 = vpop.f32.mrf.mxu0
  %v5825 = vadd.f32 0.0, %v5824
  %5826 = vmatmul.bf16.gmra.mxu0 %v5784
  %v5827 = vpop.f32.mrf.mxu0
  %v5828 = vadd.f32 0.0, %v5827
  %v5829 = vpop.f32.mrf.mxu0
  %v5830 = vadd.f32 0.0, %v5829
  %5831 = vmatmul.bf16.gmra.mxu0 %v5787
  %v5832 = vpop.f32.mrf.mxu0
  %v5833 = vadd.f32 0.0, %v5832
  %v5834 = vpop.f32.mrf.mxu0
  %v5835 = vadd.f32 0.0, %v5834
  %5836 = vmatmul.bf16.gmra.mxu0 %v5790
  %v5837 = vpop.f32.mrf.mxu0
  %v5838 = vadd.f32 0.0, %v5837
  %v5839 = vpop.f32.mrf.mxu0
  %v5840 = vadd.f32 0.0, %v5839
  %5841 = vmatmul.bf16.gmra.mxu0 %v5793
  %v5842 = vpop.f32.mrf.mxu0
  %v5843 = vadd.f32 0.0, %v5842
  %v5844 = vpop.f32.mrf.mxu0
  %v5845 = vadd.f32 0.0, %v5844
  %5846 = vdwg.mxu0
  %v5847 = vadd.f32 %v5230, %v5808
  %v5848 = vadd.f32 %v5232, %v5810
  %v5849 = vadd.f32 %v5235, %v5813
  %v5850 = vadd.f32 %v5237, %v5815
  %v5851 = vadd.f32 %v5240, %v5818
  %v5852 = vadd.f32 %v5242, %v5820
  %v5853 = vadd.f32 %v5245, %v5823
  %v5854 = vadd.f32 %v5247, %v5825
  %v5855 = vadd.f32 %v5250, %v5828
  %v5856 = vadd.f32 %v5252, %v5830
  %v5857 = vadd.f32 %v5255, %v5833
  %v5858 = vadd.f32 %v5257, %v5835
  %v5859 = vadd.f32 %v5260, %v5838
  %v5860 = vadd.f32 %v5262, %v5840
  %v5861 = vadd.f32 %v5265, %v5843
  %v5862 = vadd.f32 %v5267, %v5845
  %5863 = vrot.lane.b32.xlu0 %v4089, 104
  %v5864 = vpop.permute.xlu0 %5863
  %5865 = vrot.lane.b32.xlu0 %v4090, 104
  %v5866 = vpop.permute.xlu0 %5865
  %5867 = vrot.lane.b32.xlu0 %v4091, 104
  %v5868 = vpop.permute.xlu0 %5867
  %5869 = vrot.lane.b32.xlu0 %v4092, 104
  %v5870 = vpop.permute.xlu0 %5869
  %5871 = vrot.lane.b32.xlu0 %v4089, 72
  %v5872 = vpop.permute.xlu0 %5871
  %5873 = vrot.lane.b32.xlu0 %v4090, 72
  %v5874 = vpop.permute.xlu0 %5873
  %5875 = vrot.lane.b32.xlu0 %v4091, 72
  %v5876 = vpop.permute.xlu0 %5875
  %5877 = vrot.lane.b32.xlu0 %v4092, 72
  %v5878 = vpop.permute.xlu0 %5877
  %v5880 = vsel %vm262, %v5864, 0
  %v5883 = vsel %vm262, %v5866, 0
  %v5886 = vsel %vm262, %v5868, 0
  %v5889 = vsel %vm262, %v5870, 0
  %v5892 = vsel %vm262, %v5872, 0
  %v5895 = vsel %vm262, %v5874, 0
  %v5898 = vsel %vm262, %v5876, 0
  %v5901 = vsel %vm262, %v5878, 0
  %5903 = vmatpush.bf16.xpose.msra.mxu0 0
  %5904 = vmatpush.bf16.xpose.msra.mxu0 0
  %5905 = vmatpush.bf16.xpose.msra.mxu0 0
  %5906 = vmatpush.bf16.xpose.msra.mxu0 0
  %5907 = vmatpush.bf16.xpose.msra.mxu0 %v5901
  %5908 = vmatpush.bf16.xpose.msra.mxu0 %v5898
  %5909 = vmatpush.bf16.xpose.msra.mxu0 %v5895
  %5910 = vmatpush.bf16.xpose.msra.mxu0 %v5892
  %5911 = vmatmul.bf16.gmra.mxu0 %v5880
  %v5912 = vpop.f32.mrf.mxu0
  %v5913 = vadd.f32 0.0, %v5912
  %v5914 = vpop.f32.mrf.mxu0
  %v5915 = vadd.f32 0.0, %v5914
  %5916 = vmatmul.bf16.gmra.mxu0 %v5883
  %v5917 = vpop.f32.mrf.mxu0
  %v5918 = vadd.f32 0.0, %v5917
  %v5919 = vpop.f32.mrf.mxu0
  %v5920 = vadd.f32 0.0, %v5919
  %5921 = vmatmul.bf16.gmra.mxu0 %v5886
  %v5922 = vpop.f32.mrf.mxu0
  %v5923 = vadd.f32 0.0, %v5922
  %v5924 = vpop.f32.mrf.mxu0
  %v5925 = vadd.f32 0.0, %v5924
  %5926 = vmatmul.bf16.gmra.mxu0 %v5889
  %v5927 = vpop.f32.mrf.mxu0
  %v5928 = vadd.f32 0.0, %v5927
  %v5929 = vpop.f32.mrf.mxu0
  %v5930 = vadd.f32 0.0, %v5929
  %5931 = vdwg.mxu0
  %5932 = vrot.lane.b32.xlu0 %v4170, 104
  %v5933 = vpop.permute.xlu0 %5932
  %5934 = vrot.lane.b32.xlu0 %v4171, 104
  %v5935 = vpop.permute.xlu0 %5934
  %5936 = vrot.lane.b32.xlu0 %v4172, 104
  %v5937 = vpop.permute.xlu0 %5936
  %5938 = vrot.lane.b32.xlu0 %v4173, 104
  %v5939 = vpop.permute.xlu0 %5938
  %5940 = vrot.lane.b32.xlu0 %v4170, 72
  %v5941 = vpop.permute.xlu0 %5940
  %5942 = vrot.lane.b32.xlu0 %v4171, 72
  %v5943 = vpop.permute.xlu0 %5942
  %5944 = vrot.lane.b32.xlu0 %v4172, 72
  %v5945 = vpop.permute.xlu0 %5944
  %5946 = vrot.lane.b32.xlu0 %v4173, 72
  %v5947 = vpop.permute.xlu0 %5946
  %v5949 = vsel %vm262, %v5933, 0
  %v5952 = vsel %vm262, %v5935, 0
  %v5955 = vsel %vm262, %v5937, 0
  %v5958 = vsel %vm262, %v5939, 0
  %v5961 = vsel %vm262, %v5941, 0
  %v5964 = vsel %vm262, %v5943, 0
  %v5967 = vsel %vm262, %v5945, 0
  %v5970 = vsel %vm262, %v5947, 0
  %5972 = vmatpush.bf16.xpose.msra.mxu0 0
  %5973 = vmatpush.bf16.xpose.msra.mxu0 0
  %5974 = vmatpush.bf16.xpose.msra.mxu0 0
  %5975 = vmatpush.bf16.xpose.msra.mxu0 0
  %5976 = vmatpush.bf16.xpose.msra.mxu0 %v5970
  %5977 = vmatpush.bf16.xpose.msra.mxu0 %v5967
  %5978 = vmatpush.bf16.xpose.msra.mxu0 %v5964
  %5979 = vmatpush.bf16.xpose.msra.mxu0 %v5961
  %5980 = vmatmul.bf16.gmra.mxu0 %v5949
  %v5981 = vpop.f32.mrf.mxu0
  %v5982 = vadd.f32 0.0, %v5981
  %v5983 = vpop.f32.mrf.mxu0
  %v5984 = vadd.f32 0.0, %v5983
  %5985 = vmatmul.bf16.gmra.mxu0 %v5952
  %v5986 = vpop.f32.mrf.mxu0
  %v5987 = vadd.f32 0.0, %v5986
  %v5988 = vpop.f32.mrf.mxu0
  %v5989 = vadd.f32 0.0, %v5988
  %5990 = vmatmul.bf16.gmra.mxu0 %v5955
  %v5991 = vpop.f32.mrf.mxu0
  %v5992 = vadd.f32 0.0, %v5991
  %v5993 = vpop.f32.mrf.mxu0
  %v5994 = vadd.f32 0.0, %v5993
  %5995 = vmatmul.bf16.gmra.mxu0 %v5958
  %v5996 = vpop.f32.mrf.mxu0
  %v5997 = vadd.f32 0.0, %v5996
  %v5998 = vpop.f32.mrf.mxu0
  %v5999 = vadd.f32 0.0, %v5998
  %6000 = vdwg.mxu0
  %v6001 = vsel %vm397, %v5913, -inf
  %6002 = vmax.xlane.f32.xlu0 %v6001
  %v6003 = vpop.xlane.xlu0 %6002
  %v6004 = vsel %vm397, %v5915, -inf
  %6005 = vmax.xlane.f32.xlu0 %v6004
  %v6006 = vpop.xlane.xlu0 %6005
  %v6007 = vsel %vm397, %v5918, -inf
  %6008 = vmax.xlane.f32.xlu0 %v6007
  %v6009 = vpop.xlane.xlu0 %6008
  %v6010 = vsel %vm397, %v5920, -inf
  %6011 = vmax.xlane.f32.xlu0 %v6010
  %v6012 = vpop.xlane.xlu0 %6011
  %v6013 = vsel %vm397, %v5923, -inf
  %6014 = vmax.xlane.f32.xlu0 %v6013
  %v6015 = vpop.xlane.xlu0 %6014
  %v6016 = vsel %vm397, %v5925, -inf
  %6017 = vmax.xlane.f32.xlu0 %v6016
  %v6018 = vpop.xlane.xlu0 %6017
  %v6019 = vsel %vm397, %v5928, -inf
  %6020 = vmax.xlane.f32.xlu0 %v6019
  %v6021 = vpop.xlane.xlu0 %6020
  %v6022 = vsel %vm397, %v5930, -inf
  %6023 = vmax.xlane.f32.xlu0 %v6022
  %v6024 = vpop.xlane.xlu0 %6023
  %v6025 = vsel %vm397, %v5982, -inf
  %6026 = vmax.xlane.f32.xlu0 %v6025
  %v6027 = vpop.xlane.xlu0 %6026
  %v6028 = vsel %vm397, %v5984, -inf
  %6029 = vmax.xlane.f32.xlu0 %v6028
  %v6030 = vpop.xlane.xlu0 %6029
  %v6031 = vsel %vm397, %v5987, -inf
  %6032 = vmax.xlane.f32.xlu0 %v6031
  %v6033 = vpop.xlane.xlu0 %6032
  %v6034 = vsel %vm397, %v5989, -inf
  %6035 = vmax.xlane.f32.xlu0 %v6034
  %v6036 = vpop.xlane.xlu0 %6035
  %v6037 = vsel %vm397, %v5992, -inf
  %6038 = vmax.xlane.f32.xlu0 %v6037
  %v6039 = vpop.xlane.xlu0 %6038
  %v6040 = vsel %vm397, %v5994, -inf
  %6041 = vmax.xlane.f32.xlu0 %v6040
  %v6042 = vpop.xlane.xlu0 %6041
  %v6043 = vsel %vm397, %v5997, -inf
  %6044 = vmax.xlane.f32.xlu0 %v6043
  %v6045 = vpop.xlane.xlu0 %6044
  %v6046 = vsel %vm397, %v5999, -inf
  %6047 = vmax.xlane.f32.xlu0 %v6046
  %v6048 = vpop.xlane.xlu0 %6047
  %v6049 = vsub.f32 %v5913, %v6003
  %v6050 = vsub.f32 %v5915, %v6006
  %v6051 = vsub.f32 %v5918, %v6009
  %v6052 = vsub.f32 %v5920, %v6012
  %v6053 = vsub.f32 %v5923, %v6015
  %v6054 = vsub.f32 %v5925, %v6018
  %v6055 = vsub.f32 %v5928, %v6021
  %v6056 = vsub.f32 %v5930, %v6024
  %v6057 = vsub.f32 %v5982, %v6027
  %v6058 = vsub.f32 %v5984, %v6030
  %v6059 = vsub.f32 %v5987, %v6033
  %v6060 = vsub.f32 %v5989, %v6036
  %v6061 = vsub.f32 %v5992, %v6039
  %v6062 = vsub.f32 %v5994, %v6042
  %v6063 = vsub.f32 %v5997, %v6045
  %v6064 = vsub.f32 %v5999, %v6048
  %v6065 = vmul.f32 %v6049, 1.442695
  %v6066 = vpow.pop %v6065
  %v6067 = vmul.f32 %v6050, 1.442695
  %v6068 = vpow.pop %v6067
  %v6069 = vmul.f32 %v6051, 1.442695
  %v6070 = vpow.pop %v6069
  %v6071 = vmul.f32 %v6052, 1.442695
  %v6072 = vpow.pop %v6071
  %v6073 = vmul.f32 %v6053, 1.442695
  %v6074 = vpow.pop %v6073
  %v6075 = vmul.f32 %v6054, 1.442695
  %v6076 = vpow.pop %v6075
  %v6077 = vmul.f32 %v6055, 1.442695
  %v6078 = vpow.pop %v6077
  %v6079 = vmul.f32 %v6056, 1.442695
  %v6080 = vpow.pop %v6079
  %v6081 = vmul.f32 %v6057, 1.442695
  %v6082 = vpow.pop %v6081
  %v6083 = vmul.f32 %v6058, 1.442695
  %v6084 = vpow.pop %v6083
  %v6085 = vmul.f32 %v6059, 1.442695
  %v6086 = vpow.pop %v6085
  %v6087 = vmul.f32 %v6060, 1.442695
  %v6088 = vpow.pop %v6087
  %v6089 = vmul.f32 %v6061, 1.442695
  %v6090 = vpow.pop %v6089
  %v6091 = vmul.f32 %v6062, 1.442695
  %v6092 = vpow.pop %v6091
  %v6093 = vmul.f32 %v6063, 1.442695
  %v6094 = vpow.pop %v6093
  %v6095 = vmul.f32 %v6064, 1.442695
  %v6096 = vpow.pop %v6095
  %v6097 = vsel %vm397, %v6066, 0.0
  %6098 = vadd.xlane.f32.xlu0 %v6097
  %v6099 = vpop.xlane.xlu0 %6098
  %v6100 = vsel %vm397, %v6068, 0.0
  %6101 = vadd.xlane.f32.xlu0 %v6100
  %v6102 = vpop.xlane.xlu0 %6101
  %v6103 = vsel %vm397, %v6070, 0.0
  %6104 = vadd.xlane.f32.xlu0 %v6103
  %v6105 = vpop.xlane.xlu0 %6104
  %v6106 = vsel %vm397, %v6072, 0.0
  %6107 = vadd.xlane.f32.xlu0 %v6106
  %v6108 = vpop.xlane.xlu0 %6107
  %v6109 = vsel %vm397, %v6074, 0.0
  %6110 = vadd.xlane.f32.xlu0 %v6109
  %v6111 = vpop.xlane.xlu0 %6110
  %v6112 = vsel %vm397, %v6076, 0.0
  %6113 = vadd.xlane.f32.xlu0 %v6112
  %v6114 = vpop.xlane.xlu0 %6113
  %v6115 = vsel %vm397, %v6078, 0.0
  %6116 = vadd.xlane.f32.xlu0 %v6115
  %v6117 = vpop.xlane.xlu0 %6116
  %v6118 = vsel %vm397, %v6080, 0.0
  %6119 = vadd.xlane.f32.xlu0 %v6118
  %v6120 = vpop.xlane.xlu0 %6119
  %v6121 = vsel %vm397, %v6082, 0.0
  %6122 = vadd.xlane.f32.xlu0 %v6121
  %v6123 = vpop.xlane.xlu0 %6122
  %v6124 = vsel %vm397, %v6084, 0.0
  %6125 = vadd.xlane.f32.xlu0 %v6124
  %v6126 = vpop.xlane.xlu0 %6125
  %v6127 = vsel %vm397, %v6086, 0.0
  %6128 = vadd.xlane.f32.xlu0 %v6127
  %v6129 = vpop.xlane.xlu0 %6128
  %v6130 = vsel %vm397, %v6088, 0.0
  %6131 = vadd.xlane.f32.xlu0 %v6130
  %v6132 = vpop.xlane.xlu0 %6131
  %v6133 = vsel %vm397, %v6090, 0.0
  %6134 = vadd.xlane.f32.xlu0 %v6133
  %v6135 = vpop.xlane.xlu0 %6134
  %v6136 = vsel %vm397, %v6092, 0.0
  %6137 = vadd.xlane.f32.xlu0 %v6136
  %v6138 = vpop.xlane.xlu0 %6137
  %v6139 = vsel %vm397, %v6094, 0.0
  %6140 = vadd.xlane.f32.xlu0 %v6139
  %v6141 = vpop.xlane.xlu0 %6140
  %v6142 = vsel %vm397, %v6096, 0.0
  %6143 = vadd.xlane.f32.xlu0 %v6142
  %v6144 = vpop.xlane.xlu0 %6143
  %v6145 = vrcp.pop %v6099
  %v6146 = vrcp.pop %v6102
  %v6147 = vrcp.pop %v6105
  %v6148 = vrcp.pop %v6108
  %v6149 = vrcp.pop %v6111
  %v6150 = vrcp.pop %v6114
  %v6151 = vrcp.pop %v6117
  %v6152 = vrcp.pop %v6120
  %v6153 = vrcp.pop %v6123
  %v6154 = vrcp.pop %v6126
  %v6155 = vrcp.pop %v6129
  %v6156 = vrcp.pop %v6132
  %v6157 = vrcp.pop %v6135
  %v6158 = vrcp.pop %v6138
  %v6159 = vrcp.pop %v6141
  %v6160 = vrcp.pop %v6144
  %v6161 = vmul.f32 %v6066, %v6145
  %v6162 = vmul.f32 %v6068, %v6146
  %v6163 = vmul.f32 %v6070, %v6147
  %v6164 = vmul.f32 %v6072, %v6148
  %v6165 = vmul.f32 %v6074, %v6149
  %v6166 = vmul.f32 %v6076, %v6150
  %v6167 = vmul.f32 %v6078, %v6151
  %v6168 = vmul.f32 %v6080, %v6152
  %v6169 = vmul.f32 %v6082, %v6153
  %v6170 = vmul.f32 %v6084, %v6154
  %v6171 = vmul.f32 %v6086, %v6155
  %v6172 = vmul.f32 %v6088, %v6156
  %v6173 = vmul.f32 %v6090, %v6157
  %v6174 = vmul.f32 %v6092, %v6158
  %v6175 = vmul.f32 %v6094, %v6159
  %v6176 = vmul.f32 %v6096, %v6160
  %6177 = vrot.lane.b32.xlu0 %v4018, 40
  %v6178 = vpop.permute.xlu0 %6177
  %6179 = vrot.lane.b32.xlu0 %v4020, 40
  %v6180 = vpop.permute.xlu0 %6179
  %6181 = vrot.lane.b32.xlu0 %v4023, 40
  %v6182 = vpop.permute.xlu0 %6181
  %6183 = vrot.lane.b32.xlu0 %v4025, 40
  %v6184 = vpop.permute.xlu0 %6183
  %6185 = vrot.lane.b32.xlu0 %v4028, 40
  %v6186 = vpop.permute.xlu0 %6185
  %6187 = vrot.lane.b32.xlu0 %v4030, 40
  %v6188 = vpop.permute.xlu0 %6187
  %6189 = vrot.lane.b32.xlu0 %v4033, 40
  %v6190 = vpop.permute.xlu0 %6189
  %6191 = vrot.lane.b32.xlu0 %v4035, 40
  %v6192 = vpop.permute.xlu0 %6191
  %v6202 = vsel %vm397, %v6161, 0
  %v6205 = vsel %vm397, %v6162, 0
  %v6208 = vsel %vm397, %v6163, 0
  %v6211 = vsel %vm397, %v6164, 0
  %v6214 = vsel %vm397, %v6165, 0
  %v6217 = vsel %vm397, %v6166, 0
  %v6220 = vsel %vm397, %v6167, 0
  %v6223 = vsel %vm397, %v6168, 0
  %6225 = vmatpush.msra.mxu0 0.0
  %6226 = vmatpush.msra.mxu0 0.0
  %6227 = vmatpush.msra.mxu0 0.0
  %6228 = vmatpush.msra.mxu0 0.0
  %6229 = vmatpush.msra.mxu0 0.0
  %6230 = vmatpush.msra.mxu0 0.0
  %6231 = vmatpush.msra.mxu0 0.0
  %6232 = vmatpush.msra.mxu0 0.0
  %6233 = vmatpush.msra.mxu0 %v6192
  %6234 = vmatpush.msra.mxu0 %v6190
  %6235 = vmatpush.msra.mxu0 %v6188
  %6236 = vmatpush.msra.mxu0 %v6186
  %6237 = vmatpush.msra.mxu0 %v6184
  %6238 = vmatpush.msra.mxu0 %v6182
  %6239 = vmatpush.msra.mxu0 %v6180
  %6240 = vmatpush.msra.mxu0 %v6178
  %6241 = vmatmul.f32.gmra.mxu0 %v6202
  %v6242 = vpop.f32.mrf.mxu0
  %v6243 = vadd.f32 0.0, %v6242
  %6244 = vmatmul.f32.gmra.mxu0 %v6205
  %v6245 = vpop.f32.mrf.mxu0
  %v6246 = vadd.f32 0.0, %v6245
  %6247 = vmatmul.f32.gmra.mxu0 %v6208
  %v6248 = vpop.f32.mrf.mxu0
  %v6249 = vadd.f32 0.0, %v6248
  %6250 = vmatmul.f32.gmra.mxu0 %v6211
  %v6251 = vpop.f32.mrf.mxu0
  %v6252 = vadd.f32 0.0, %v6251
  %6253 = vmatmul.f32.gmra.mxu0 %v6214
  %v6254 = vpop.f32.mrf.mxu0
  %v6255 = vadd.f32 0.0, %v6254
  %6256 = vmatmul.f32.gmra.mxu0 %v6217
  %v6257 = vpop.f32.mrf.mxu0
  %v6258 = vadd.f32 0.0, %v6257
  %6259 = vmatmul.f32.gmra.mxu0 %v6220
  %v6260 = vpop.f32.mrf.mxu0
  %v6261 = vadd.f32 0.0, %v6260
  %6262 = vmatmul.f32.gmra.mxu0 %v6223
  %v6263 = vpop.f32.mrf.mxu0
  %v6264 = vadd.f32 0.0, %v6263
  %6265 = vdwg.mxu0
  %6266 = vrot.lane.b32.xlu0 %v4038, 40
  %v6267 = vpop.permute.xlu0 %6266
  %6268 = vrot.lane.b32.xlu0 %v4040, 40
  %v6269 = vpop.permute.xlu0 %6268
  %6270 = vrot.lane.b32.xlu0 %v4043, 40
  %v6271 = vpop.permute.xlu0 %6270
  %6272 = vrot.lane.b32.xlu0 %v4045, 40
  %v6273 = vpop.permute.xlu0 %6272
  %6274 = vrot.lane.b32.xlu0 %v4048, 40
  %v6275 = vpop.permute.xlu0 %6274
  %6276 = vrot.lane.b32.xlu0 %v4050, 40
  %v6277 = vpop.permute.xlu0 %6276
  %6278 = vrot.lane.b32.xlu0 %v4053, 40
  %v6279 = vpop.permute.xlu0 %6278
  %6280 = vrot.lane.b32.xlu0 %v4055, 40
  %v6281 = vpop.permute.xlu0 %6280
  %v6291 = vsel %vm397, %v6169, 0
  %v6294 = vsel %vm397, %v6170, 0
  %v6297 = vsel %vm397, %v6171, 0
  %v6300 = vsel %vm397, %v6172, 0
  %v6303 = vsel %vm397, %v6173, 0
  %v6306 = vsel %vm397, %v6174, 0
  %v6309 = vsel %vm397, %v6175, 0
  %v6312 = vsel %vm397, %v6176, 0
  %6314 = vmatpush.msra.mxu0 0.0
  %6315 = vmatpush.msra.mxu0 0.0
  %6316 = vmatpush.msra.mxu0 0.0
  %6317 = vmatpush.msra.mxu0 0.0
  %6318 = vmatpush.msra.mxu0 0.0
  %6319 = vmatpush.msra.mxu0 0.0
  %6320 = vmatpush.msra.mxu0 0.0
  %6321 = vmatpush.msra.mxu0 0.0
  %6322 = vmatpush.msra.mxu0 %v6281
  %6323 = vmatpush.msra.mxu0 %v6279
  %6324 = vmatpush.msra.mxu0 %v6277
  %6325 = vmatpush.msra.mxu0 %v6275
  %6326 = vmatpush.msra.mxu0 %v6273
  %6327 = vmatpush.msra.mxu0 %v6271
  %6328 = vmatpush.msra.mxu0 %v6269
  %6329 = vmatpush.msra.mxu0 %v6267
  %6330 = vmatmul.f32.gmra.mxu0 %v6291
  %v6331 = vpop.f32.mrf.mxu0
  %v6332 = vadd.f32 0.0, %v6331
  %6333 = vmatmul.f32.gmra.mxu0 %v6294
  %v6334 = vpop.f32.mrf.mxu0
  %v6335 = vadd.f32 0.0, %v6334
  %6336 = vmatmul.f32.gmra.mxu0 %v6297
  %v6337 = vpop.f32.mrf.mxu0
  %v6338 = vadd.f32 0.0, %v6337
  %6339 = vmatmul.f32.gmra.mxu0 %v6300
  %v6340 = vpop.f32.mrf.mxu0
  %v6341 = vadd.f32 0.0, %v6340
  %6342 = vmatmul.f32.gmra.mxu0 %v6303
  %v6343 = vpop.f32.mrf.mxu0
  %v6344 = vadd.f32 0.0, %v6343
  %6345 = vmatmul.f32.gmra.mxu0 %v6306
  %v6346 = vpop.f32.mrf.mxu0
  %v6347 = vadd.f32 0.0, %v6346
  %6348 = vmatmul.f32.gmra.mxu0 %v6309
  %v6349 = vpop.f32.mrf.mxu0
  %v6350 = vadd.f32 0.0, %v6349
  %6351 = vmatmul.f32.gmra.mxu0 %v6312
  %v6352 = vpop.f32.mrf.mxu0
  %v6353 = vadd.f32 0.0, %v6352
  %6354 = vdwg.mxu0
  %v6355 = vpack.c.bf16 %v6246, %v6243
  %v6356 = vpack.c.bf16 %v6252, %v6249
  %v6357 = vpack.c.bf16 %v6258, %v6255
  %v6358 = vpack.c.bf16 %v6264, %v6261
  %v6359 = vpack.c.bf16 %v6335, %v6332
  %v6360 = vpack.c.bf16 %v6341, %v6338
  %v6361 = vpack.c.bf16 %v6347, %v6344
  %v6362 = vpack.c.bf16 %v6353, %v6350
  %s6363 = scalar_lea.vmem %s5, 28
  %v6364 = vld [vmem:[%s6363] sm:$0xf]
  %v6366 = vsel %vm262, %v6355, 0
  %v6369 = vsel %vm262, %v6356, 0
  %v6372 = vsel %vm262, %v6357, 0
  %v6375 = vsel %vm262, %v6358, 0
  %v6378 = vsel %vm262, %v6359, 0
  %v6381 = vsel %vm262, %v6360, 0
  %v6384 = vsel %vm262, %v6361, 0
  %v6387 = vsel %vm262, %v6362, 0
  %v6390 = vsel %vm1303, %v6364, 0
  %6392 = vmatpush.bf16.msra.mxu0 0
  %6393 = vmatpush.bf16.msra.mxu0 0
  %6394 = vmatpush.bf16.msra.mxu0 0
  %6395 = vmatpush.bf16.msra.mxu0 0
  %6396 = vmatpush.bf16.msra.mxu0 0
  %6397 = vmatpush.bf16.msra.mxu0 0
  %6398 = vmatpush.bf16.msra.mxu0 0
  %6399 = vmatpush.bf16.msra.mxu0 %v6390
  %6400 = vmatmul.bf16.gmra.mxu0 %v6366
  %v6401 = vpop.f32.mrf.mxu0
  %v6402 = vadd.f32 0.0, %v6401
  %v6403 = vpop.f32.mrf.mxu0
  %v6404 = vadd.f32 0.0, %v6403
  %6405 = vmatmul.bf16.gmra.mxu0 %v6369
  %v6406 = vpop.f32.mrf.mxu0
  %v6407 = vadd.f32 0.0, %v6406
  %v6408 = vpop.f32.mrf.mxu0
  %v6409 = vadd.f32 0.0, %v6408
  %6410 = vmatmul.bf16.gmra.mxu0 %v6372
  %v6411 = vpop.f32.mrf.mxu0
  %v6412 = vadd.f32 0.0, %v6411
  %v6413 = vpop.f32.mrf.mxu0
  %v6414 = vadd.f32 0.0, %v6413
  %6415 = vmatmul.bf16.gmra.mxu0 %v6375
  %v6416 = vpop.f32.mrf.mxu0
  %v6417 = vadd.f32 0.0, %v6416
  %v6418 = vpop.f32.mrf.mxu0
  %v6419 = vadd.f32 0.0, %v6418
  %6420 = vmatmul.bf16.gmra.mxu0 %v6378
  %v6421 = vpop.f32.mrf.mxu0
  %v6422 = vadd.f32 0.0, %v6421
  %v6423 = vpop.f32.mrf.mxu0
  %v6424 = vadd.f32 0.0, %v6423
  %6425 = vmatmul.bf16.gmra.mxu0 %v6381
  %v6426 = vpop.f32.mrf.mxu0
  %v6427 = vadd.f32 0.0, %v6426
  %v6428 = vpop.f32.mrf.mxu0
  %v6429 = vadd.f32 0.0, %v6428
  %6430 = vmatmul.bf16.gmra.mxu0 %v6384
  %v6431 = vpop.f32.mrf.mxu0
  %v6432 = vadd.f32 0.0, %v6431
  %v6433 = vpop.f32.mrf.mxu0
  %v6434 = vadd.f32 0.0, %v6433
  %6435 = vmatmul.bf16.gmra.mxu0 %v6387
  %v6436 = vpop.f32.mrf.mxu0
  %v6437 = vadd.f32 0.0, %v6436
  %v6438 = vpop.f32.mrf.mxu0
  %v6439 = vadd.f32 0.0, %v6438
  %6440 = vdwg.mxu0
  %v6441 = vadd.f32 %v5847, %v6402
  %v6442 = vadd.f32 %v5848, %v6404
  %v6443 = vadd.f32 %v5849, %v6407
  %v6444 = vadd.f32 %v5850, %v6409
  %v6445 = vadd.f32 %v5851, %v6412
  %v6446 = vadd.f32 %v5852, %v6414
  %v6447 = vadd.f32 %v5853, %v6417
  %v6448 = vadd.f32 %v5854, %v6419
  %v6449 = vadd.f32 %v5855, %v6422
  %v6450 = vadd.f32 %v5856, %v6424
  %v6451 = vadd.f32 %v5857, %v6427
  %v6452 = vadd.f32 %v5858, %v6429
  %v6453 = vadd.f32 %v5859, %v6432
  %v6454 = vadd.f32 %v5860, %v6434
  %v6455 = vadd.f32 %v5861, %v6437
  %v6456 = vadd.f32 %v5862, %v6439
  %v6458 = vperm.slane %v3955, 0
  %v6460 = vadd.f32 %v6441, %v6458
  %v6461 = vadd.f32 %v6442, %v6458
  %v6462 = vadd.f32 %v6443, %v6458
  %v6463 = vadd.f32 %v6444, %v6458
  %v6464 = vadd.f32 %v6445, %v6458
  %v6465 = vadd.f32 %v6446, %v6458
  %v6466 = vadd.f32 %v6447, %v6458
  %v6467 = vadd.f32 %v6448, %v6458
  %v6468 = vadd.f32 %v6449, %v6458
  %v6469 = vadd.f32 %v6450, %v6458
  %v6470 = vadd.f32 %v6451, %v6458
  %v6471 = vadd.f32 %v6452, %v6458
  %v6472 = vadd.f32 %v6453, %v6458
  %v6473 = vadd.f32 %v6454, %v6458
  %v6474 = vadd.f32 %v6455, %v6458
  %v6475 = vadd.f32 %v6456, %v6458
  %v6476 = vadd.f32 %v3936, %v6460
  %v6477 = vadd.f32 %v3937, %v6461
  %v6478 = vadd.f32 %v3938, %v6462
  %v6479 = vadd.f32 %v3939, %v6463
  %v6480 = vadd.f32 %v3940, %v6464
  %v6481 = vadd.f32 %v3941, %v6465
  %v6482 = vadd.f32 %v3942, %v6466
  %v6483 = vadd.f32 %v3943, %v6467
  %v6484 = vadd.f32 %v3944, %v6468
  %v6485 = vadd.f32 %v3945, %v6469
  %v6486 = vadd.f32 %v3946, %v6470
  %v6487 = vadd.f32 %v3947, %v6471
  %v6488 = vadd.f32 %v3948, %v6472
  %v6489 = vadd.f32 %v3949, %v6473
  %v6490 = vadd.f32 %v3950, %v6474
  %v6491 = vadd.f32 %v3951, %v6475
  %s6492 = scalar_lea.vmem %s7, 1
  %v6493 = vld [vmem:[%s6492] sm:$0x1]
  %s6494 = scalar_lea.vmem %s8, 1
  %v6495 = vld [vmem:[%s6494] sm:$0x1]
  %v6496 = vsel %vm144, %v6476, 0.0
  %6497 = vadd.xlane.f32.xlu0 %v6496
  %v6498 = vpop.xlane.xlu0 %6497
  %v6499 = vsel %vm144, %v6477, 0.0
  %6500 = vadd.xlane.f32.xlu0 %v6499
  %v6501 = vpop.xlane.xlu0 %6500
  %v6502 = vsel %vm144, %v6478, 0.0
  %6503 = vadd.xlane.f32.xlu0 %v6502
  %v6504 = vpop.xlane.xlu0 %6503
  %v6505 = vsel %vm144, %v6479, 0.0
  %6506 = vadd.xlane.f32.xlu0 %v6505
  %v6507 = vpop.xlane.xlu0 %6506
  %v6508 = vsel %vm144, %v6480, 0.0
  %6509 = vadd.xlane.f32.xlu0 %v6508
  %v6510 = vpop.xlane.xlu0 %6509
  %v6511 = vsel %vm144, %v6481, 0.0
  %6512 = vadd.xlane.f32.xlu0 %v6511
  %v6513 = vpop.xlane.xlu0 %6512
  %v6514 = vsel %vm144, %v6482, 0.0
  %6515 = vadd.xlane.f32.xlu0 %v6514
  %v6516 = vpop.xlane.xlu0 %6515
  %v6517 = vsel %vm144, %v6483, 0.0
  %6518 = vadd.xlane.f32.xlu0 %v6517
  %v6519 = vpop.xlane.xlu0 %6518
  %v6520 = vsel %vm144, %v6484, 0.0
  %6521 = vadd.xlane.f32.xlu0 %v6520
  %v6522 = vpop.xlane.xlu0 %6521
  %v6523 = vsel %vm144, %v6485, 0.0
  %6524 = vadd.xlane.f32.xlu0 %v6523
  %v6525 = vpop.xlane.xlu0 %6524
  %v6526 = vsel %vm144, %v6486, 0.0
  %6527 = vadd.xlane.f32.xlu0 %v6526
  %v6528 = vpop.xlane.xlu0 %6527
  %v6529 = vsel %vm144, %v6487, 0.0
  %6530 = vadd.xlane.f32.xlu0 %v6529
  %v6531 = vpop.xlane.xlu0 %6530
  %v6532 = vsel %vm144, %v6488, 0.0
  %6533 = vadd.xlane.f32.xlu0 %v6532
  %v6534 = vpop.xlane.xlu0 %6533
  %v6535 = vsel %vm144, %v6489, 0.0
  %6536 = vadd.xlane.f32.xlu0 %v6535
  %v6537 = vpop.xlane.xlu0 %6536
  %v6538 = vsel %vm144, %v6490, 0.0
  %6539 = vadd.xlane.f32.xlu0 %v6538
  %v6540 = vpop.xlane.xlu0 %6539
  %v6541 = vsel %vm144, %v6491, 0.0
  %6542 = vadd.xlane.f32.xlu0 %v6541
  %v6543 = vpop.xlane.xlu0 %6542
  %v6544 = vmul.f32 %v6498, %v2711
  %v6545 = vmul.f32 %v6501, %v2711
  %v6546 = vmul.f32 %v6504, %v2711
  %v6547 = vmul.f32 %v6507, %v2711
  %v6548 = vmul.f32 %v6510, %v2711
  %v6549 = vmul.f32 %v6513, %v2711
  %v6550 = vmul.f32 %v6516, %v2711
  %v6551 = vmul.f32 %v6519, %v2711
  %v6552 = vmul.f32 %v6522, %v2711
  %v6553 = vmul.f32 %v6525, %v2711
  %v6554 = vmul.f32 %v6528, %v2711
  %v6555 = vmul.f32 %v6531, %v2711
  %v6556 = vmul.f32 %v6534, %v2711
  %v6557 = vmul.f32 %v6537, %v2711
  %v6558 = vmul.f32 %v6540, %v2711
  %v6559 = vmul.f32 %v6543, %v2711
  %v6560 = vsub.f32 %v6476, %v6544
  %v6561 = vsub.f32 %v6477, %v6545
  %v6562 = vsub.f32 %v6478, %v6546
  %v6563 = vsub.f32 %v6479, %v6547
  %v6564 = vsub.f32 %v6480, %v6548
  %v6565 = vsub.f32 %v6481, %v6549
  %v6566 = vsub.f32 %v6482, %v6550
  %v6567 = vsub.f32 %v6483, %v6551
  %v6568 = vsub.f32 %v6484, %v6552
  %v6569 = vsub.f32 %v6485, %v6553
  %v6570 = vsub.f32 %v6486, %v6554
  %v6571 = vsub.f32 %v6487, %v6555
  %v6572 = vsub.f32 %v6488, %v6556
  %v6573 = vsub.f32 %v6489, %v6557
  %v6574 = vsub.f32 %v6490, %v6558
  %v6575 = vsub.f32 %v6491, %v6559
  %v6576 = vmul.f32 %v6560, %v6560
  %v6577 = vmul.f32 %v6561, %v6561
  %v6578 = vmul.f32 %v6562, %v6562
  %v6579 = vmul.f32 %v6563, %v6563
  %v6580 = vmul.f32 %v6564, %v6564
  %v6581 = vmul.f32 %v6565, %v6565
  %v6582 = vmul.f32 %v6566, %v6566
  %v6583 = vmul.f32 %v6567, %v6567
  %v6584 = vmul.f32 %v6568, %v6568
  %v6585 = vmul.f32 %v6569, %v6569
  %v6586 = vmul.f32 %v6570, %v6570
  %v6587 = vmul.f32 %v6571, %v6571
  %v6588 = vmul.f32 %v6572, %v6572
  %v6589 = vmul.f32 %v6573, %v6573
  %v6590 = vmul.f32 %v6574, %v6574
  %v6591 = vmul.f32 %v6575, %v6575
  %v6592 = vsel %vm144, %v6576, 0.0
  %6593 = vadd.xlane.f32.xlu0 %v6592
  %v6594 = vpop.xlane.xlu0 %6593
  %v6595 = vsel %vm144, %v6577, 0.0
  %6596 = vadd.xlane.f32.xlu0 %v6595
  %v6597 = vpop.xlane.xlu0 %6596
  %v6598 = vsel %vm144, %v6578, 0.0
  %6599 = vadd.xlane.f32.xlu0 %v6598
  %v6600 = vpop.xlane.xlu0 %6599
  %v6601 = vsel %vm144, %v6579, 0.0
  %6602 = vadd.xlane.f32.xlu0 %v6601
  %v6603 = vpop.xlane.xlu0 %6602
  %v6604 = vsel %vm144, %v6580, 0.0
  %6605 = vadd.xlane.f32.xlu0 %v6604
  %v6606 = vpop.xlane.xlu0 %6605
  %v6607 = vsel %vm144, %v6581, 0.0
  %6608 = vadd.xlane.f32.xlu0 %v6607
  %v6609 = vpop.xlane.xlu0 %6608
  %v6610 = vsel %vm144, %v6582, 0.0
  %6611 = vadd.xlane.f32.xlu0 %v6610
  %v6612 = vpop.xlane.xlu0 %6611
  %v6613 = vsel %vm144, %v6583, 0.0
  %6614 = vadd.xlane.f32.xlu0 %v6613
  %v6615 = vpop.xlane.xlu0 %6614
  %v6616 = vsel %vm144, %v6584, 0.0
  %6617 = vadd.xlane.f32.xlu0 %v6616
  %v6618 = vpop.xlane.xlu0 %6617
  %v6619 = vsel %vm144, %v6585, 0.0
  %6620 = vadd.xlane.f32.xlu0 %v6619
  %v6621 = vpop.xlane.xlu0 %6620
  %v6622 = vsel %vm144, %v6586, 0.0
  %6623 = vadd.xlane.f32.xlu0 %v6622
  %v6624 = vpop.xlane.xlu0 %6623
  %v6625 = vsel %vm144, %v6587, 0.0
  %6626 = vadd.xlane.f32.xlu0 %v6625
  %v6627 = vpop.xlane.xlu0 %6626
  %v6628 = vsel %vm144, %v6588, 0.0
  %6629 = vadd.xlane.f32.xlu0 %v6628
  %v6630 = vpop.xlane.xlu0 %6629
  %v6631 = vsel %vm144, %v6589, 0.0
  %6632 = vadd.xlane.f32.xlu0 %v6631
  %v6633 = vpop.xlane.xlu0 %6632
  %v6634 = vsel %vm144, %v6590, 0.0
  %6635 = vadd.xlane.f32.xlu0 %v6634
  %v6636 = vpop.xlane.xlu0 %6635
  %v6637 = vsel %vm144, %v6591, 0.0
  %6638 = vadd.xlane.f32.xlu0 %v6637
  %v6639 = vpop.xlane.xlu0 %6638
  %v6640 = vmul.f32 %v6594, %v2711
  %v6641 = vmul.f32 %v6597, %v2711
  %v6642 = vmul.f32 %v6600, %v2711
  %v6643 = vmul.f32 %v6603, %v2711
  %v6644 = vmul.f32 %v6606, %v2711
  %v6645 = vmul.f32 %v6609, %v2711
  %v6646 = vmul.f32 %v6612, %v2711
  %v6647 = vmul.f32 %v6615, %v2711
  %v6648 = vmul.f32 %v6618, %v2711
  %v6649 = vmul.f32 %v6621, %v2711
  %v6650 = vmul.f32 %v6624, %v2711
  %v6651 = vmul.f32 %v6627, %v2711
  %v6652 = vmul.f32 %v6630, %v2711
  %v6653 = vmul.f32 %v6633, %v2711
  %v6654 = vmul.f32 %v6636, %v2711
  %v6655 = vmul.f32 %v6639, %v2711
  %v6656 = vadd.f32 %v6640, 1e-05
  %v6657 = vadd.f32 %v6641, 1e-05
  %v6658 = vadd.f32 %v6642, 1e-05
  %v6659 = vadd.f32 %v6643, 1e-05
  %v6660 = vadd.f32 %v6644, 1e-05
  %v6661 = vadd.f32 %v6645, 1e-05
  %v6662 = vadd.f32 %v6646, 1e-05
  %v6663 = vadd.f32 %v6647, 1e-05
  %v6664 = vadd.f32 %v6648, 1e-05
  %v6665 = vadd.f32 %v6649, 1e-05
  %v6666 = vadd.f32 %v6650, 1e-05
  %v6667 = vadd.f32 %v6651, 1e-05
  %v6668 = vadd.f32 %v6652, 1e-05
  %v6669 = vadd.f32 %v6653, 1e-05
  %v6670 = vadd.f32 %v6654, 1e-05
  %v6671 = vadd.f32 %v6655, 1e-05
  %v6672 = vrsqrt.pop %v6656
  %v6673 = vmul.f32 %v6672, %v6656
  %v6674 = vmul.f32 %v6673, %v6672
  %v6675 = vmul.f32 0.5, %v6674
  %v6676 = vsub.f32 1.5, %v6675
  %v6677 = vmul.f32 %v6672, %v6676
  %vm6678 = vweird.f32 %v6656
  %vm6679 = vweird.f32 %v6672
  %vm6680 = vmor %vm6678, %vm6679
  %v6681 = vsel %vm6680, %v6672, %v6677
  %v6682 = vrsqrt.pop %v6657
  %v6683 = vmul.f32 %v6682, %v6657
  %v6684 = vmul.f32 %v6683, %v6682
  %v6685 = vmul.f32 0.5, %v6684
  %v6686 = vsub.f32 1.5, %v6685
  %v6687 = vmul.f32 %v6682, %v6686
  %vm6688 = vweird.f32 %v6657
  %vm6689 = vweird.f32 %v6682
  %vm6690 = vmor %vm6688, %vm6689
  %v6691 = vsel %vm6690, %v6682, %v6687
  %v6692 = vrsqrt.pop %v6658
  %v6693 = vmul.f32 %v6692, %v6658
  %v6694 = vmul.f32 %v6693, %v6692
  %v6695 = vmul.f32 0.5, %v6694
  %v6696 = vsub.f32 1.5, %v6695
  %v6697 = vmul.f32 %v6692, %v6696
  %vm6698 = vweird.f32 %v6658
  %vm6699 = vweird.f32 %v6692
  %vm6700 = vmor %vm6698, %vm6699
  %v6701 = vsel %vm6700, %v6692, %v6697
  %v6702 = vrsqrt.pop %v6659
  %v6703 = vmul.f32 %v6702, %v6659
  %v6704 = vmul.f32 %v6703, %v6702
  %v6705 = vmul.f32 0.5, %v6704
  %v6706 = vsub.f32 1.5, %v6705
  %v6707 = vmul.f32 %v6702, %v6706
  %vm6708 = vweird.f32 %v6659
  %vm6709 = vweird.f32 %v6702
  %vm6710 = vmor %vm6708, %vm6709
  %v6711 = vsel %vm6710, %v6702, %v6707
  %v6712 = vrsqrt.pop %v6660
  %v6713 = vmul.f32 %v6712, %v6660
  %v6714 = vmul.f32 %v6713, %v6712
  %v6715 = vmul.f32 0.5, %v6714
  %v6716 = vsub.f32 1.5, %v6715
  %v6717 = vmul.f32 %v6712, %v6716
  %vm6718 = vweird.f32 %v6660
  %vm6719 = vweird.f32 %v6712
  %vm6720 = vmor %vm6718, %vm6719
  %v6721 = vsel %vm6720, %v6712, %v6717
  %v6722 = vrsqrt.pop %v6661
  %v6723 = vmul.f32 %v6722, %v6661
  %v6724 = vmul.f32 %v6723, %v6722
  %v6725 = vmul.f32 0.5, %v6724
  %v6726 = vsub.f32 1.5, %v6725
  %v6727 = vmul.f32 %v6722, %v6726
  %vm6728 = vweird.f32 %v6661
  %vm6729 = vweird.f32 %v6722
  %vm6730 = vmor %vm6728, %vm6729
  %v6731 = vsel %vm6730, %v6722, %v6727
  %v6732 = vrsqrt.pop %v6662
  %v6733 = vmul.f32 %v6732, %v6662
  %v6734 = vmul.f32 %v6733, %v6732
  %v6735 = vmul.f32 0.5, %v6734
  %v6736 = vsub.f32 1.5, %v6735
  %v6737 = vmul.f32 %v6732, %v6736
  %vm6738 = vweird.f32 %v6662
  %vm6739 = vweird.f32 %v6732
  %vm6740 = vmor %vm6738, %vm6739
  %v6741 = vsel %vm6740, %v6732, %v6737
  %v6742 = vrsqrt.pop %v6663
  %v6743 = vmul.f32 %v6742, %v6663
  %v6744 = vmul.f32 %v6743, %v6742
  %v6745 = vmul.f32 0.5, %v6744
  %v6746 = vsub.f32 1.5, %v6745
  %v6747 = vmul.f32 %v6742, %v6746
  %vm6748 = vweird.f32 %v6663
  %vm6749 = vweird.f32 %v6742
  %vm6750 = vmor %vm6748, %vm6749
  %v6751 = vsel %vm6750, %v6742, %v6747
  %v6752 = vrsqrt.pop %v6664
  %v6753 = vmul.f32 %v6752, %v6664
  %v6754 = vmul.f32 %v6753, %v6752
  %v6755 = vmul.f32 0.5, %v6754
  %v6756 = vsub.f32 1.5, %v6755
  %v6757 = vmul.f32 %v6752, %v6756
  %vm6758 = vweird.f32 %v6664
  %vm6759 = vweird.f32 %v6752
  %vm6760 = vmor %vm6758, %vm6759
  %v6761 = vsel %vm6760, %v6752, %v6757
  %v6762 = vrsqrt.pop %v6665
  %v6763 = vmul.f32 %v6762, %v6665
  %v6764 = vmul.f32 %v6763, %v6762
  %v6765 = vmul.f32 0.5, %v6764
  %v6766 = vsub.f32 1.5, %v6765
  %v6767 = vmul.f32 %v6762, %v6766
  %vm6768 = vweird.f32 %v6665
  %vm6769 = vweird.f32 %v6762
  %vm6770 = vmor %vm6768, %vm6769
  %v6771 = vsel %vm6770, %v6762, %v6767
  %v6772 = vrsqrt.pop %v6666
  %v6773 = vmul.f32 %v6772, %v6666
  %v6774 = vmul.f32 %v6773, %v6772
  %v6775 = vmul.f32 0.5, %v6774
  %v6776 = vsub.f32 1.5, %v6775
  %v6777 = vmul.f32 %v6772, %v6776
  %vm6778 = vweird.f32 %v6666
  %vm6779 = vweird.f32 %v6772
  %vm6780 = vmor %vm6778, %vm6779
  %v6781 = vsel %vm6780, %v6772, %v6777
  %v6782 = vrsqrt.pop %v6667
  %v6783 = vmul.f32 %v6782, %v6667
  %v6784 = vmul.f32 %v6783, %v6782
  %v6785 = vmul.f32 0.5, %v6784
  %v6786 = vsub.f32 1.5, %v6785
  %v6787 = vmul.f32 %v6782, %v6786
  %vm6788 = vweird.f32 %v6667
  %vm6789 = vweird.f32 %v6782
  %vm6790 = vmor %vm6788, %vm6789
  %v6791 = vsel %vm6790, %v6782, %v6787
  %v6792 = vrsqrt.pop %v6668
  %v6793 = vmul.f32 %v6792, %v6668
  %v6794 = vmul.f32 %v6793, %v6792
  %v6795 = vmul.f32 0.5, %v6794
  %v6796 = vsub.f32 1.5, %v6795
  %v6797 = vmul.f32 %v6792, %v6796
  %vm6798 = vweird.f32 %v6668
  %vm6799 = vweird.f32 %v6792
  %vm6800 = vmor %vm6798, %vm6799
  %v6801 = vsel %vm6800, %v6792, %v6797
  %v6802 = vrsqrt.pop %v6669
  %v6803 = vmul.f32 %v6802, %v6669
  %v6804 = vmul.f32 %v6803, %v6802
  %v6805 = vmul.f32 0.5, %v6804
  %v6806 = vsub.f32 1.5, %v6805
  %v6807 = vmul.f32 %v6802, %v6806
  %vm6808 = vweird.f32 %v6669
  %vm6809 = vweird.f32 %v6802
  %vm6810 = vmor %vm6808, %vm6809
  %v6811 = vsel %vm6810, %v6802, %v6807
  %v6812 = vrsqrt.pop %v6670
  %v6813 = vmul.f32 %v6812, %v6670
  %v6814 = vmul.f32 %v6813, %v6812
  %v6815 = vmul.f32 0.5, %v6814
  %v6816 = vsub.f32 1.5, %v6815
  %v6817 = vmul.f32 %v6812, %v6816
  %vm6818 = vweird.f32 %v6670
  %vm6819 = vweird.f32 %v6812
  %vm6820 = vmor %vm6818, %vm6819
  %v6821 = vsel %vm6820, %v6812, %v6817
  %v6822 = vrsqrt.pop %v6671
  %v6823 = vmul.f32 %v6822, %v6671
  %v6824 = vmul.f32 %v6823, %v6822
  %v6825 = vmul.f32 0.5, %v6824
  %v6826 = vsub.f32 1.5, %v6825
  %v6827 = vmul.f32 %v6822, %v6826
  %vm6828 = vweird.f32 %v6671
  %vm6829 = vweird.f32 %v6822
  %vm6830 = vmor %vm6828, %vm6829
  %v6831 = vsel %vm6830, %v6822, %v6827
  %v6832 = vmul.f32 %v6560, %v6681
  %v6833 = vmul.f32 %v6561, %v6691
  %v6834 = vmul.f32 %v6562, %v6701
  %v6835 = vmul.f32 %v6563, %v6711
  %v6836 = vmul.f32 %v6564, %v6721
  %v6837 = vmul.f32 %v6565, %v6731
  %v6838 = vmul.f32 %v6566, %v6741
  %v6839 = vmul.f32 %v6567, %v6751
  %v6840 = vmul.f32 %v6568, %v6761
  %v6841 = vmul.f32 %v6569, %v6771
  %v6842 = vmul.f32 %v6570, %v6781
  %v6843 = vmul.f32 %v6571, %v6791
  %v6844 = vmul.f32 %v6572, %v6801
  %v6845 = vmul.f32 %v6573, %v6811
  %v6846 = vmul.f32 %v6574, %v6821
  %v6847 = vmul.f32 %v6575, %v6831
  %v6849 = vperm.slane %v6493, 0
  %v6851 = vmul.f32 %v6832, %v6849
  %v6852 = vmul.f32 %v6833, %v6849
  %v6853 = vmul.f32 %v6834, %v6849
  %v6854 = vmul.f32 %v6835, %v6849
  %v6855 = vmul.f32 %v6836, %v6849
  %v6856 = vmul.f32 %v6837, %v6849
  %v6857 = vmul.f32 %v6838, %v6849
  %v6858 = vmul.f32 %v6839, %v6849
  %v6859 = vmul.f32 %v6840, %v6849
  %v6860 = vmul.f32 %v6841, %v6849
  %v6861 = vmul.f32 %v6842, %v6849
  %v6862 = vmul.f32 %v6843, %v6849
  %v6863 = vmul.f32 %v6844, %v6849
  %v6864 = vmul.f32 %v6845, %v6849
  %v6865 = vmul.f32 %v6846, %v6849
  %v6866 = vmul.f32 %v6847, %v6849
  %v6868 = vperm.slane %v6495, 0
  %v6870 = vadd.f32 %v6851, %v6868
  %v6871 = vadd.f32 %v6852, %v6868
  %v6872 = vadd.f32 %v6853, %v6868
  %v6873 = vadd.f32 %v6854, %v6868
  %v6874 = vadd.f32 %v6855, %v6868
  %v6875 = vadd.f32 %v6856, %v6868
  %v6876 = vadd.f32 %v6857, %v6868
  %v6877 = vadd.f32 %v6858, %v6868
  %v6878 = vadd.f32 %v6859, %v6868
  %v6879 = vadd.f32 %v6860, %v6868
  %v6880 = vadd.f32 %v6861, %v6868
  %v6881 = vadd.f32 %v6862, %v6868
  %v6882 = vadd.f32 %v6863, %v6868
  %v6883 = vadd.f32 %v6864, %v6868
  %v6884 = vadd.f32 %v6865, %v6868
  %v6885 = vadd.f32 %v6866, %v6868
  %v6886 = vpack.c.bf16 %v6871, %v6870
  %v6887 = vpack.c.bf16 %v6873, %v6872
  %v6888 = vpack.c.bf16 %v6875, %v6874
  %v6889 = vpack.c.bf16 %v6877, %v6876
  %v6890 = vpack.c.bf16 %v6879, %v6878
  %v6891 = vpack.c.bf16 %v6881, %v6880
  %v6892 = vpack.c.bf16 %v6883, %v6882
  %v6893 = vpack.c.bf16 %v6885, %v6884
  %s6894 = scalar_lea.vmem %s9, 16
  %v6895 = vld [vmem:[%s6894] sm:$0xf]
  %v6896 = vld [vmem:[%s6894 + $0x4] sm:$0xf]
  %v6897 = vld [vmem:[%s6894 + $0x8] sm:$0xf]
  %v6898 = vld [vmem:[%s6894 + $0xc] sm:$0xf]
  %s6899 = scalar_lea.vmem %s10, 1
  %v6900 = vld [vmem:[%s6899] sm:$0x1]
  %v6902 = vperm.slane %v6900, 0
  %v6908 = vunpack.c.l.b16 %v6895
  %v6909 = vunpack.c.l.b16 %v6896
  %v6910 = vunpack.c.l.b16 %v6897
  %v6911 = vunpack.c.l.b16 %v6898
  %v6912 = vpack.c.b16 %v6909, %v6908
  %v6913 = vpack.c.b16 %v6911, %v6910
  %v6917 = vsel %vm144, %v6886, 0
  %v6920 = vsel %vm144, %v6887, 0
  %v6923 = vsel %vm144, %v6888, 0
  %v6926 = vsel %vm144, %v6889, 0
  %v6929 = vsel %vm144, %v6890, 0
  %v6932 = vsel %vm144, %v6891, 0
  %v6935 = vsel %vm144, %v6892, 0
  %v6938 = vsel %vm144, %v6893, 0
  %6940 = vmatpush.bf16.msra.mxu0 0
  %6941 = vmatpush.bf16.msra.mxu0 0
  %6942 = vmatpush.bf16.msra.mxu0 0
  %6943 = vmatpush.bf16.msra.mxu0 0
  %6944 = vmatpush.bf16.msra.mxu0 0
  %6945 = vmatpush.bf16.msra.mxu0 0
  %6946 = vmatpush.bf16.msra.mxu0 %v6913
  %6947 = vmatpush.bf16.msra.mxu0 %v6912
  %6948 = vmatmul.bf16.gmra.mxu0 %v6917
  %v6949 = vpop.f32.mrf.mxu0
  %v6950 = vadd.f32 %v6902, %v6949
  %v6951 = vpop.f32.mrf.mxu0
  %v6952 = vadd.f32 %v6902, %v6951
  %6953 = vmatmul.bf16.gmra.mxu0 %v6920
  %v6954 = vpop.f32.mrf.mxu0
  %v6955 = vadd.f32 %v6902, %v6954
  %v6956 = vpop.f32.mrf.mxu0
  %v6957 = vadd.f32 %v6902, %v6956
  %6958 = vmatmul.bf16.gmra.mxu0 %v6923
  %v6959 = vpop.f32.mrf.mxu0
  %v6960 = vadd.f32 %v6902, %v6959
  %v6961 = vpop.f32.mrf.mxu0
  %v6962 = vadd.f32 %v6902, %v6961
  %6963 = vmatmul.bf16.gmra.mxu0 %v6926
  %v6964 = vpop.f32.mrf.mxu0
  %v6965 = vadd.f32 %v6902, %v6964
  %v6966 = vpop.f32.mrf.mxu0
  %v6967 = vadd.f32 %v6902, %v6966
  %6968 = vmatmul.bf16.gmra.mxu0 %v6929
  %v6969 = vpop.f32.mrf.mxu0
  %v6970 = vadd.f32 %v6902, %v6969
  %v6971 = vpop.f32.mrf.mxu0
  %v6972 = vadd.f32 %v6902, %v6971
  %6973 = vmatmul.bf16.gmra.mxu0 %v6932
  %v6974 = vpop.f32.mrf.mxu0
  %v6975 = vadd.f32 %v6902, %v6974
  %v6976 = vpop.f32.mrf.mxu0
  %v6977 = vadd.f32 %v6902, %v6976
  %6978 = vmatmul.bf16.gmra.mxu0 %v6935
  %v6979 = vpop.f32.mrf.mxu0
  %v6980 = vadd.f32 %v6902, %v6979
  %v6981 = vpop.f32.mrf.mxu0
  %v6982 = vadd.f32 %v6902, %v6981
  %6983 = vmatmul.bf16.gmra.mxu0 %v6938
  %v6984 = vpop.f32.mrf.mxu0
  %v6985 = vadd.f32 %v6902, %v6984
  %v6986 = vpop.f32.mrf.mxu0
  %v6987 = vadd.f32 %v6902, %v6986
  %6988 = vdwg.mxu0
  %v6989 = vand.u32 2147483647, %v6950
  %v6990 = vand.u32 2147483647, %v6952
  %v6991 = vand.u32 2147483647, %v6955
  %v6992 = vand.u32 2147483647, %v6957
  %v6993 = vand.u32 2147483647, %v6960
  %v6994 = vand.u32 2147483647, %v6962
  %v6995 = vand.u32 2147483647, %v6965
  %v6996 = vand.u32 2147483647, %v6967
  %v6997 = vand.u32 2147483647, %v6970
  %v6998 = vand.u32 2147483647, %v6972
  %v6999 = vand.u32 2147483647, %v6975
  %v7000 = vand.u32 2147483647, %v6977
  %v7001 = vand.u32 2147483647, %v6980
  %v7002 = vand.u32 2147483647, %v6982
  %v7003 = vand.u32 2147483647, %v6985
  %v7004 = vand.u32 2147483647, %v6987
  %v7005 = vsub.f32 0.0, %v6989
  %v7006 = vsub.f32 0.0, %v6990
  %v7007 = vsub.f32 0.0, %v6991
  %v7008 = vsub.f32 0.0, %v6992
  %v7009 = vsub.f32 0.0, %v6993
  %v7010 = vsub.f32 0.0, %v6994
  %v7011 = vsub.f32 0.0, %v6995
  %v7012 = vsub.f32 0.0, %v6996
  %v7013 = vsub.f32 0.0, %v6997
  %v7014 = vsub.f32 0.0, %v6998
  %v7015 = vsub.f32 0.0, %v6999
  %v7016 = vsub.f32 0.0, %v7000
  %v7017 = vsub.f32 0.0, %v7001
  %v7018 = vsub.f32 0.0, %v7002
  %v7019 = vsub.f32 0.0, %v7003
  %v7020 = vsub.f32 0.0, %v7004
  %v7021 = vmul.f32 %v7005, 1.442695
  %v7022 = vpow.pop %v7021
  %v7023 = vmul.f32 %v7006, 1.442695
  %v7024 = vpow.pop %v7023
  %v7025 = vmul.f32 %v7007, 1.442695
  %v7026 = vpow.pop %v7025
  %v7027 = vmul.f32 %v7008, 1.442695
  %v7028 = vpow.pop %v7027
  %v7029 = vmul.f32 %v7009, 1.442695
  %v7030 = vpow.pop %v7029
  %v7031 = vmul.f32 %v7010, 1.442695
  %v7032 = vpow.pop %v7031
  %v7033 = vmul.f32 %v7011, 1.442695
  %v7034 = vpow.pop %v7033
  %v7035 = vmul.f32 %v7012, 1.442695
  %v7036 = vpow.pop %v7035
  %v7037 = vmul.f32 %v7013, 1.442695
  %v7038 = vpow.pop %v7037
  %v7039 = vmul.f32 %v7014, 1.442695
  %v7040 = vpow.pop %v7039
  %v7041 = vmul.f32 %v7015, 1.442695
  %v7042 = vpow.pop %v7041
  %v7043 = vmul.f32 %v7016, 1.442695
  %v7044 = vpow.pop %v7043
  %v7045 = vmul.f32 %v7017, 1.442695
  %v7046 = vpow.pop %v7045
  %v7047 = vmul.f32 %v7018, 1.442695
  %v7048 = vpow.pop %v7047
  %v7049 = vmul.f32 %v7019, 1.442695
  %v7050 = vpow.pop %v7049
  %v7051 = vmul.f32 %v7020, 1.442695
  %v7052 = vpow.pop %v7051
  %v7053 = vadd.f32 %v7022, 1.0
  %v7054 = vlog2.pop %v7053
  %v7055 = vmul.f32 %v7054, 0.6931472
  %v7056 = vmul.f32 -0.5, %v7022
  %v7057 = vadd.f32 %v7056, 1.0
  %v7058 = vmul.f32 %v7057, %v7022
  %v7059 = vand.u32 2147483647, %v7022
  %vm7060 = vcmp.lt.f32.partialorder %v7059, 0.0004427343
  %v7061 = vsel %vm7060, %v7058, %v7055
  %v7062 = vadd.f32 %v7024, 1.0
  %v7063 = vlog2.pop %v7062
  %v7064 = vmul.f32 %v7063, 0.6931472
  %v7065 = vmul.f32 -0.5, %v7024
  %v7066 = vadd.f32 %v7065, 1.0
  %v7067 = vmul.f32 %v7066, %v7024
  %v7068 = vand.u32 2147483647, %v7024
  %vm7069 = vcmp.lt.f32.partialorder %v7068, 0.0004427343
  %v7070 = vsel %vm7069, %v7067, %v7064
  %v7071 = vadd.f32 %v7026, 1.0
  %v7072 = vlog2.pop %v7071
  %v7073 = vmul.f32 %v7072, 0.6931472
  %v7074 = vmul.f32 -0.5, %v7026
  %v7075 = vadd.f32 %v7074, 1.0
  %v7076 = vmul.f32 %v7075, %v7026
  %v7077 = vand.u32 2147483647, %v7026
  %vm7078 = vcmp.lt.f32.partialorder %v7077, 0.0004427343
  %v7079 = vsel %vm7078, %v7076, %v7073
  %v7080 = vadd.f32 %v7028, 1.0
  %v7081 = vlog2.pop %v7080
  %v7082 = vmul.f32 %v7081, 0.6931472
  %v7083 = vmul.f32 -0.5, %v7028
  %v7084 = vadd.f32 %v7083, 1.0
  %v7085 = vmul.f32 %v7084, %v7028
  %v7086 = vand.u32 2147483647, %v7028
  %vm7087 = vcmp.lt.f32.partialorder %v7086, 0.0004427343
  %v7088 = vsel %vm7087, %v7085, %v7082
  %v7089 = vadd.f32 %v7030, 1.0
  %v7090 = vlog2.pop %v7089
  %v7091 = vmul.f32 %v7090, 0.6931472
  %v7092 = vmul.f32 -0.5, %v7030
  %v7093 = vadd.f32 %v7092, 1.0
  %v7094 = vmul.f32 %v7093, %v7030
  %v7095 = vand.u32 2147483647, %v7030
  %vm7096 = vcmp.lt.f32.partialorder %v7095, 0.0004427343
  %v7097 = vsel %vm7096, %v7094, %v7091
  %v7098 = vadd.f32 %v7032, 1.0
  %v7099 = vlog2.pop %v7098
  %v7100 = vmul.f32 %v7099, 0.6931472
  %v7101 = vmul.f32 -0.5, %v7032
  %v7102 = vadd.f32 %v7101, 1.0
  %v7103 = vmul.f32 %v7102, %v7032
  %v7104 = vand.u32 2147483647, %v7032
  %vm7105 = vcmp.lt.f32.partialorder %v7104, 0.0004427343
  %v7106 = vsel %vm7105, %v7103, %v7100
  %v7107 = vadd.f32 %v7034, 1.0
  %v7108 = vlog2.pop %v7107
  %v7109 = vmul.f32 %v7108, 0.6931472
  %v7110 = vmul.f32 -0.5, %v7034
  %v7111 = vadd.f32 %v7110, 1.0
  %v7112 = vmul.f32 %v7111, %v7034
  %v7113 = vand.u32 2147483647, %v7034
  %vm7114 = vcmp.lt.f32.partialorder %v7113, 0.0004427343
  %v7115 = vsel %vm7114, %v7112, %v7109
  %v7116 = vadd.f32 %v7036, 1.0
  %v7117 = vlog2.pop %v7116
  %v7118 = vmul.f32 %v7117, 0.6931472
  %v7119 = vmul.f32 -0.5, %v7036
  %v7120 = vadd.f32 %v7119, 1.0
  %v7121 = vmul.f32 %v7120, %v7036
  %v7122 = vand.u32 2147483647, %v7036
  %vm7123 = vcmp.lt.f32.partialorder %v7122, 0.0004427343
  %v7124 = vsel %vm7123, %v7121, %v7118
  %v7125 = vadd.f32 %v7038, 1.0
  %v7126 = vlog2.pop %v7125
  %v7127 = vmul.f32 %v7126, 0.6931472
  %v7128 = vmul.f32 -0.5, %v7038
  %v7129 = vadd.f32 %v7128, 1.0
  %v7130 = vmul.f32 %v7129, %v7038
  %v7131 = vand.u32 2147483647, %v7038
  %vm7132 = vcmp.lt.f32.partialorder %v7131, 0.0004427343
  %v7133 = vsel %vm7132, %v7130, %v7127
  %v7134 = vadd.f32 %v7040, 1.0
  %v7135 = vlog2.pop %v7134
  %v7136 = vmul.f32 %v7135, 0.6931472
  %v7137 = vmul.f32 -0.5, %v7040
  %v7138 = vadd.f32 %v7137, 1.0
  %v7139 = vmul.f32 %v7138, %v7040
  %v7140 = vand.u32 2147483647, %v7040
  %vm7141 = vcmp.lt.f32.partialorder %v7140, 0.0004427343
  %v7142 = vsel %vm7141, %v7139, %v7136
  %v7143 = vadd.f32 %v7042, 1.0
  %v7144 = vlog2.pop %v7143
  %v7145 = vmul.f32 %v7144, 0.6931472
  %v7146 = vmul.f32 -0.5, %v7042
  %v7147 = vadd.f32 %v7146, 1.0
  %v7148 = vmul.f32 %v7147, %v7042
  %v7149 = vand.u32 2147483647, %v7042
  %vm7150 = vcmp.lt.f32.partialorder %v7149, 0.0004427343
  %v7151 = vsel %vm7150, %v7148, %v7145
  %v7152 = vadd.f32 %v7044, 1.0
  %v7153 = vlog2.pop %v7152
  %v7154 = vmul.f32 %v7153, 0.6931472
  %v7155 = vmul.f32 -0.5, %v7044
  %v7156 = vadd.f32 %v7155, 1.0
  %v7157 = vmul.f32 %v7156, %v7044
  %v7158 = vand.u32 2147483647, %v7044
  %vm7159 = vcmp.lt.f32.partialorder %v7158, 0.0004427343
  %v7160 = vsel %vm7159, %v7157, %v7154
  %v7161 = vadd.f32 %v7046, 1.0
  %v7162 = vlog2.pop %v7161
  %v7163 = vmul.f32 %v7162, 0.6931472
  %v7164 = vmul.f32 -0.5, %v7046
  %v7165 = vadd.f32 %v7164, 1.0
  %v7166 = vmul.f32 %v7165, %v7046
  %v7167 = vand.u32 2147483647, %v7046
  %vm7168 = vcmp.lt.f32.partialorder %v7167, 0.0004427343
  %v7169 = vsel %vm7168, %v7166, %v7163
  %v7170 = vadd.f32 %v7048, 1.0
  %v7171 = vlog2.pop %v7170
  %v7172 = vmul.f32 %v7171, 0.6931472
  %v7173 = vmul.f32 -0.5, %v7048
  %v7174 = vadd.f32 %v7173, 1.0
  %v7175 = vmul.f32 %v7174, %v7048
  %v7176 = vand.u32 2147483647, %v7048
  %vm7177 = vcmp.lt.f32.partialorder %v7176, 0.0004427343
  %v7178 = vsel %vm7177, %v7175, %v7172
  %v7179 = vadd.f32 %v7050, 1.0
  %v7180 = vlog2.pop %v7179
  %v7181 = vmul.f32 %v7180, 0.6931472
  %v7182 = vmul.f32 -0.5, %v7050
  %v7183 = vadd.f32 %v7182, 1.0
  %v7184 = vmul.f32 %v7183, %v7050
  %v7185 = vand.u32 2147483647, %v7050
  %vm7186 = vcmp.lt.f32.partialorder %v7185, 0.0004427343
  %v7187 = vsel %vm7186, %v7184, %v7181
  %v7188 = vadd.f32 %v7052, 1.0
  %v7189 = vlog2.pop %v7188
  %v7190 = vmul.f32 %v7189, 0.6931472
  %v7191 = vmul.f32 -0.5, %v7052
  %v7192 = vadd.f32 %v7191, 1.0
  %v7193 = vmul.f32 %v7192, %v7052
  %v7194 = vand.u32 2147483647, %v7052
  %vm7195 = vcmp.lt.f32.partialorder %v7194, 0.0004427343
  %v7196 = vsel %vm7195, %v7193, %v7190
  %v7197 = vmax.f32 %v6950, 0.0
  %v7198 = vmax.f32 %v6952, 0.0
  %v7199 = vmax.f32 %v6955, 0.0
  %v7200 = vmax.f32 %v6957, 0.0
  %v7201 = vmax.f32 %v6960, 0.0
  %v7202 = vmax.f32 %v6962, 0.0
  %v7203 = vmax.f32 %v6965, 0.0
  %v7204 = vmax.f32 %v6967, 0.0
  %v7205 = vmax.f32 %v6970, 0.0
  %v7206 = vmax.f32 %v6972, 0.0
  %v7207 = vmax.f32 %v6975, 0.0
  %v7208 = vmax.f32 %v6977, 0.0
  %v7209 = vmax.f32 %v6980, 0.0
  %v7210 = vmax.f32 %v6982, 0.0
  %v7211 = vmax.f32 %v6985, 0.0
  %v7212 = vmax.f32 %v6987, 0.0
  %v7213 = vadd.f32 %v7061, %v7197
  %v7214 = vadd.f32 %v7070, %v7198
  %v7215 = vadd.f32 %v7079, %v7199
  %v7216 = vadd.f32 %v7088, %v7200
  %v7217 = vadd.f32 %v7097, %v7201
  %v7218 = vadd.f32 %v7106, %v7202
  %v7219 = vadd.f32 %v7115, %v7203
  %v7220 = vadd.f32 %v7124, %v7204
  %v7221 = vadd.f32 %v7133, %v7205
  %v7222 = vadd.f32 %v7142, %v7206
  %v7223 = vadd.f32 %v7151, %v7207
  %v7224 = vadd.f32 %v7160, %v7208
  %v7225 = vadd.f32 %v7169, %v7209
  %v7226 = vadd.f32 %v7178, %v7210
  %v7227 = vadd.f32 %v7187, %v7211
  %v7228 = vadd.f32 %v7196, %v7212
  %v7229 = vtanh.pop %v7213
  %v7230 = vtanh.pop %v7214
  %v7231 = vtanh.pop %v7215
  %v7232 = vtanh.pop %v7216
  %v7233 = vtanh.pop %v7217
  %v7234 = vtanh.pop %v7218
  %v7235 = vtanh.pop %v7219
  %v7236 = vtanh.pop %v7220
  %v7237 = vtanh.pop %v7221
  %v7238 = vtanh.pop %v7222
  %v7239 = vtanh.pop %v7223
  %v7240 = vtanh.pop %v7224
  %v7241 = vtanh.pop %v7225
  %v7242 = vtanh.pop %v7226
  %v7243 = vtanh.pop %v7227
  %v7244 = vtanh.pop %v7228
  %v7245 = vmul.f32 %v6950, %v7229
  %v7246 = vmul.f32 %v6952, %v7230
  %v7247 = vmul.f32 %v6955, %v7231
  %v7248 = vmul.f32 %v6957, %v7232
  %v7249 = vmul.f32 %v6960, %v7233
  %v7250 = vmul.f32 %v6962, %v7234
  %v7251 = vmul.f32 %v6965, %v7235
  %v7252 = vmul.f32 %v6967, %v7236
  %v7253 = vmul.f32 %v6970, %v7237
  %v7254 = vmul.f32 %v6972, %v7238
  %v7255 = vmul.f32 %v6975, %v7239
  %v7256 = vmul.f32 %v6977, %v7240
  %v7257 = vmul.f32 %v6980, %v7241
  %v7258 = vmul.f32 %v6982, %v7242
  %v7259 = vmul.f32 %v6985, %v7243
  %v7260 = vmul.f32 %v6987, %v7244
  %v7261 = vpack.c.bf16 %v7246, %v7245
  %v7262 = vpack.c.bf16 %v7248, %v7247
  %v7263 = vpack.c.bf16 %v7250, %v7249
  %v7264 = vpack.c.bf16 %v7252, %v7251
  %v7265 = vpack.c.bf16 %v7254, %v7253
  %v7266 = vpack.c.bf16 %v7256, %v7255
  %v7267 = vpack.c.bf16 %v7258, %v7257
  %v7268 = vpack.c.bf16 %v7260, %v7259
  %s7269 = scalar_lea.vmem %s11, 32
  %v7270 = vld [vmem:[%s7269] sm:$0xf]
  %v7271 = vld [vmem:[%s7269 + $0x4] sm:$0xf]
  %v7272 = vld [vmem:[%s7269 + $0x8] sm:$0xf]
  %v7273 = vld [vmem:[%s7269 + $0xc] sm:$0xf]
  %v7274 = vld [vmem:[%s7269 + $0x10] sm:$0xf]
  %v7275 = vld [vmem:[%s7269 + $0x14] sm:$0xf]
  %v7276 = vld [vmem:[%s7269 + $0x18] sm:$0xf]
  %v7277 = vld [vmem:[%s7269 + $0x1c] sm:$0xf]
  %s7278 = scalar_lea.vmem %s12, 1
  %v7279 = vld [vmem:[%s7278] sm:$0x1]
  %v7281 = vperm.slane %v7279, 0
  %v7291 = vunpack.c.l.b16 %v7270
  %v7292 = vunpack.c.l.b16 %v7271
  %v7293 = vunpack.c.l.b16 %v7272
  %v7294 = vunpack.c.l.b16 %v7273
  %v7295 = vunpack.c.l.b16 %v7274
  %v7296 = vunpack.c.l.b16 %v7275
  %v7297 = vunpack.c.l.b16 %v7276
  %v7298 = vunpack.c.l.b16 %v7277
  %v7299 = vpack.c.b16 %v7292, %v7291
  %v7300 = vpack.c.b16 %v7294, %v7293
  %v7301 = vpack.c.b16 %v7296, %v7295
  %v7302 = vpack.c.b16 %v7298, %v7297
  %v7308 = vsel %vm397, %v7261, 0
  %v7311 = vsel %vm397, %v7262, 0
  %v7314 = vsel %vm397, %v7263, 0
  %v7317 = vsel %vm397, %v7264, 0
  %v7320 = vsel %vm397, %v7265, 0
  %v7323 = vsel %vm397, %v7266, 0
  %v7326 = vsel %vm397, %v7267, 0
  %v7329 = vsel %vm397, %v7268, 0
  %7331 = vmatpush.bf16.msra.mxu0 0
  %7332 = vmatpush.bf16.msra.mxu0 0
  %7333 = vmatpush.bf16.msra.mxu0 0
  %7334 = vmatpush.bf16.msra.mxu0 0
  %7335 = vmatpush.bf16.msra.mxu0 %v7302
  %7336 = vmatpush.bf16.msra.mxu0 %v7301
  %7337 = vmatpush.bf16.msra.mxu0 %v7300
  %7338 = vmatpush.bf16.msra.mxu0 %v7299
  %7339 = vmatmul.bf16.gmra.mxu0 %v7308
  %v7340 = vpop.f32.mrf.mxu0
  %v7341 = vadd.f32 %v7281, %v7340
  %v7342 = vpop.f32.mrf.mxu0
  %v7343 = vadd.f32 %v7281, %v7342
  %7344 = vmatmul.bf16.gmra.mxu0 %v7311
  %v7345 = vpop.f32.mrf.mxu0
  %v7346 = vadd.f32 %v7281, %v7345
  %v7347 = vpop.f32.mrf.mxu0
  %v7348 = vadd.f32 %v7281, %v7347
  %7349 = vmatmul.bf16.gmra.mxu0 %v7314
  %v7350 = vpop.f32.mrf.mxu0
  %v7351 = vadd.f32 %v7281, %v7350
  %v7352 = vpop.f32.mrf.mxu0
  %v7353 = vadd.f32 %v7281, %v7352
  %7354 = vmatmul.bf16.gmra.mxu0 %v7317
  %v7355 = vpop.f32.mrf.mxu0
  %v7356 = vadd.f32 %v7281, %v7355
  %v7357 = vpop.f32.mrf.mxu0
  %v7358 = vadd.f32 %v7281, %v7357
  %7359 = vmatmul.bf16.gmra.mxu0 %v7320
  %v7360 = vpop.f32.mrf.mxu0
  %v7361 = vadd.f32 %v7281, %v7360
  %v7362 = vpop.f32.mrf.mxu0
  %v7363 = vadd.f32 %v7281, %v7362
  %7364 = vmatmul.bf16.gmra.mxu0 %v7323
  %v7365 = vpop.f32.mrf.mxu0
  %v7366 = vadd.f32 %v7281, %v7365
  %v7367 = vpop.f32.mrf.mxu0
  %v7368 = vadd.f32 %v7281, %v7367
  %7369 = vmatmul.bf16.gmra.mxu0 %v7326
  %v7370 = vpop.f32.mrf.mxu0
  %v7371 = vadd.f32 %v7281, %v7370
  %v7372 = vpop.f32.mrf.mxu0
  %v7373 = vadd.f32 %v7281, %v7372
  %7374 = vmatmul.bf16.gmra.mxu0 %v7329
  %v7375 = vpop.f32.mrf.mxu0
  %v7376 = vadd.f32 %v7281, %v7375
  %v7377 = vpop.f32.mrf.mxu0
  %v7378 = vadd.f32 %v7281, %v7377
  %7379 = vdwg.mxu0
  %v7380 = vadd.f32 %v6870, %v7341
  %v7381 = vadd.f32 %v6871, %v7343
  %v7382 = vadd.f32 %v6872, %v7346
  %v7383 = vadd.f32 %v6873, %v7348
  %v7384 = vadd.f32 %v6874, %v7351
  %v7385 = vadd.f32 %v6875, %v7353
  %v7386 = vadd.f32 %v6876, %v7356
  %v7387 = vadd.f32 %v6877, %v7358
  %v7388 = vadd.f32 %v6878, %v7361
  %v7389 = vadd.f32 %v6879, %v7363
  %v7390 = vadd.f32 %v6880, %v7366
  %v7391 = vadd.f32 %v6881, %v7368
  %v7392 = vadd.f32 %v6882, %v7371
  %v7393 = vadd.f32 %v6883, %v7373
  %v7394 = vadd.f32 %v6884, %v7376
  %v7395 = vadd.f32 %v6885, %v7378
  %s7396 = scalar_lea.vmem %s13, 1
  %v7397 = vld [vmem:[%s7396] sm:$0x1]
  %s7398 = scalar_lea.vmem %s14, 1
  %v7399 = vld [vmem:[%s7398] sm:$0x1]
  %v7400 = vsel %vm144, %v7380, 0.0
  %7401 = vadd.xlane.f32.xlu0 %v7400
  %v7402 = vpop.xlane.xlu0 %7401
  %v7403 = vsel %vm144, %v7381, 0.0
  %7404 = vadd.xlane.f32.xlu0 %v7403
  %v7405 = vpop.xlane.xlu0 %7404
  %v7406 = vsel %vm144, %v7382, 0.0
  %7407 = vadd.xlane.f32.xlu0 %v7406
  %v7408 = vpop.xlane.xlu0 %7407
  %v7409 = vsel %vm144, %v7383, 0.0
  %7410 = vadd.xlane.f32.xlu0 %v7409
  %v7411 = vpop.xlane.xlu0 %7410
  %v7412 = vsel %vm144, %v7384, 0.0
  %7413 = vadd.xlane.f32.xlu0 %v7412
  %v7414 = vpop.xlane.xlu0 %7413
  %v7415 = vsel %vm144, %v7385, 0.0
  %7416 = vadd.xlane.f32.xlu0 %v7415
  %v7417 = vpop.xlane.xlu0 %7416
  %v7418 = vsel %vm144, %v7386, 0.0
  %7419 = vadd.xlane.f32.xlu0 %v7418
  %v7420 = vpop.xlane.xlu0 %7419
  %v7421 = vsel %vm144, %v7387, 0.0
  %7422 = vadd.xlane.f32.xlu0 %v7421
  %v7423 = vpop.xlane.xlu0 %7422
  %v7424 = vsel %vm144, %v7388, 0.0
  %7425 = vadd.xlane.f32.xlu0 %v7424
  %v7426 = vpop.xlane.xlu0 %7425
  %v7427 = vsel %vm144, %v7389, 0.0
  %7428 = vadd.xlane.f32.xlu0 %v7427
  %v7429 = vpop.xlane.xlu0 %7428
  %v7430 = vsel %vm144, %v7390, 0.0
  %7431 = vadd.xlane.f32.xlu0 %v7430
  %v7432 = vpop.xlane.xlu0 %7431
  %v7433 = vsel %vm144, %v7391, 0.0
  %7434 = vadd.xlane.f32.xlu0 %v7433
  %v7435 = vpop.xlane.xlu0 %7434
  %v7436 = vsel %vm144, %v7392, 0.0
  %7437 = vadd.xlane.f32.xlu0 %v7436
  %v7438 = vpop.xlane.xlu0 %7437
  %v7439 = vsel %vm144, %v7393, 0.0
  %7440 = vadd.xlane.f32.xlu0 %v7439
  %v7441 = vpop.xlane.xlu0 %7440
  %v7442 = vsel %vm144, %v7394, 0.0
  %7443 = vadd.xlane.f32.xlu0 %v7442
  %v7444 = vpop.xlane.xlu0 %7443
  %v7445 = vsel %vm144, %v7395, 0.0
  %7446 = vadd.xlane.f32.xlu0 %v7445
  %v7447 = vpop.xlane.xlu0 %7446
  %v7448 = vmul.f32 %v7402, %v2711
  %v7449 = vmul.f32 %v7405, %v2711
  %v7450 = vmul.f32 %v7408, %v2711
  %v7451 = vmul.f32 %v7411, %v2711
  %v7452 = vmul.f32 %v7414, %v2711
  %v7453 = vmul.f32 %v7417, %v2711
  %v7454 = vmul.f32 %v7420, %v2711
  %v7455 = vmul.f32 %v7423, %v2711
  %v7456 = vmul.f32 %v7426, %v2711
  %v7457 = vmul.f32 %v7429, %v2711
  %v7458 = vmul.f32 %v7432, %v2711
  %v7459 = vmul.f32 %v7435, %v2711
  %v7460 = vmul.f32 %v7438, %v2711
  %v7461 = vmul.f32 %v7441, %v2711
  %v7462 = vmul.f32 %v7444, %v2711
  %v7463 = vmul.f32 %v7447, %v2711
  %v7464 = vsub.f32 %v7380, %v7448
  %v7465 = vsub.f32 %v7381, %v7449
  %v7466 = vsub.f32 %v7382, %v7450
  %v7467 = vsub.f32 %v7383, %v7451
  %v7468 = vsub.f32 %v7384, %v7452
  %v7469 = vsub.f32 %v7385, %v7453
  %v7470 = vsub.f32 %v7386, %v7454
  %v7471 = vsub.f32 %v7387, %v7455
  %v7472 = vsub.f32 %v7388, %v7456
  %v7473 = vsub.f32 %v7389, %v7457
  %v7474 = vsub.f32 %v7390, %v7458
  %v7475 = vsub.f32 %v7391, %v7459
  %v7476 = vsub.f32 %v7392, %v7460
  %v7477 = vsub.f32 %v7393, %v7461
  %v7478 = vsub.f32 %v7394, %v7462
  %v7479 = vsub.f32 %v7395, %v7463
  %v7480 = vmul.f32 %v7464, %v7464
  %v7481 = vmul.f32 %v7465, %v7465
  %v7482 = vmul.f32 %v7466, %v7466
  %v7483 = vmul.f32 %v7467, %v7467
  %v7484 = vmul.f32 %v7468, %v7468
  %v7485 = vmul.f32 %v7469, %v7469
  %v7486 = vmul.f32 %v7470, %v7470
  %v7487 = vmul.f32 %v7471, %v7471
  %v7488 = vmul.f32 %v7472, %v7472
  %v7489 = vmul.f32 %v7473, %v7473
  %v7490 = vmul.f32 %v7474, %v7474
  %v7491 = vmul.f32 %v7475, %v7475
  %v7492 = vmul.f32 %v7476, %v7476
  %v7493 = vmul.f32 %v7477, %v7477
  %v7494 = vmul.f32 %v7478, %v7478
  %v7495 = vmul.f32 %v7479, %v7479
  %v7496 = vsel %vm144, %v7480, 0.0
  %7497 = vadd.xlane.f32.xlu0 %v7496
  %v7498 = vpop.xlane.xlu0 %7497
  %v7499 = vsel %vm144, %v7481, 0.0
  %7500 = vadd.xlane.f32.xlu0 %v7499
  %v7501 = vpop.xlane.xlu0 %7500
  %v7502 = vsel %vm144, %v7482, 0.0
  %7503 = vadd.xlane.f32.xlu0 %v7502
  %v7504 = vpop.xlane.xlu0 %7503
  %v7505 = vsel %vm144, %v7483, 0.0
  %7506 = vadd.xlane.f32.xlu0 %v7505
  %v7507 = vpop.xlane.xlu0 %7506
  %v7508 = vsel %vm144, %v7484, 0.0
  %7509 = vadd.xlane.f32.xlu0 %v7508
  %v7510 = vpop.xlane.xlu0 %7509
  %v7511 = vsel %vm144, %v7485, 0.0
  %7512 = vadd.xlane.f32.xlu0 %v7511
  %v7513 = vpop.xlane.xlu0 %7512
  %v7514 = vsel %vm144, %v7486, 0.0
  %7515 = vadd.xlane.f32.xlu0 %v7514
  %v7516 = vpop.xlane.xlu0 %7515
  %v7517 = vsel %vm144, %v7487, 0.0
  %7518 = vadd.xlane.f32.xlu0 %v7517
  %v7519 = vpop.xlane.xlu0 %7518
  %v7520 = vsel %vm144, %v7488, 0.0
  %7521 = vadd.xlane.f32.xlu0 %v7520
  %v7522 = vpop.xlane.xlu0 %7521
  %v7523 = vsel %vm144, %v7489, 0.0
  %7524 = vadd.xlane.f32.xlu0 %v7523
  %v7525 = vpop.xlane.xlu0 %7524
  %v7526 = vsel %vm144, %v7490, 0.0
  %7527 = vadd.xlane.f32.xlu0 %v7526
  %v7528 = vpop.xlane.xlu0 %7527
  %v7529 = vsel %vm144, %v7491, 0.0
  %7530 = vadd.xlane.f32.xlu0 %v7529
  %v7531 = vpop.xlane.xlu0 %7530
  %v7532 = vsel %vm144, %v7492, 0.0
  %7533 = vadd.xlane.f32.xlu0 %v7532
  %v7534 = vpop.xlane.xlu0 %7533
  %v7535 = vsel %vm144, %v7493, 0.0
  %7536 = vadd.xlane.f32.xlu0 %v7535
  %v7537 = vpop.xlane.xlu0 %7536
  %v7538 = vsel %vm144, %v7494, 0.0
  %7539 = vadd.xlane.f32.xlu0 %v7538
  %v7540 = vpop.xlane.xlu0 %7539
  %v7541 = vsel %vm144, %v7495, 0.0
  %7542 = vadd.xlane.f32.xlu0 %v7541
  %v7543 = vpop.xlane.xlu0 %7542
  %v7544 = vmul.f32 %v7498, %v2711
  %v7545 = vmul.f32 %v7501, %v2711
  %v7546 = vmul.f32 %v7504, %v2711
  %v7547 = vmul.f32 %v7507, %v2711
  %v7548 = vmul.f32 %v7510, %v2711
  %v7549 = vmul.f32 %v7513, %v2711
  %v7550 = vmul.f32 %v7516, %v2711
  %v7551 = vmul.f32 %v7519, %v2711
  %v7552 = vmul.f32 %v7522, %v2711
  %v7553 = vmul.f32 %v7525, %v2711
  %v7554 = vmul.f32 %v7528, %v2711
  %v7555 = vmul.f32 %v7531, %v2711
  %v7556 = vmul.f32 %v7534, %v2711
  %v7557 = vmul.f32 %v7537, %v2711
  %v7558 = vmul.f32 %v7540, %v2711
  %v7559 = vmul.f32 %v7543, %v2711
  %v7560 = vadd.f32 %v7544, 1e-05
  %v7561 = vadd.f32 %v7545, 1e-05
  %v7562 = vadd.f32 %v7546, 1e-05
  %v7563 = vadd.f32 %v7547, 1e-05
  %v7564 = vadd.f32 %v7548, 1e-05
  %v7565 = vadd.f32 %v7549, 1e-05
  %v7566 = vadd.f32 %v7550, 1e-05
  %v7567 = vadd.f32 %v7551, 1e-05
  %v7568 = vadd.f32 %v7552, 1e-05
  %v7569 = vadd.f32 %v7553, 1e-05
  %v7570 = vadd.f32 %v7554, 1e-05
  %v7571 = vadd.f32 %v7555, 1e-05
  %v7572 = vadd.f32 %v7556, 1e-05
  %v7573 = vadd.f32 %v7557, 1e-05
  %v7574 = vadd.f32 %v7558, 1e-05
  %v7575 = vadd.f32 %v7559, 1e-05
  %v7576 = vrsqrt.pop %v7560
  %v7577 = vmul.f32 %v7576, %v7560
  %v7578 = vmul.f32 %v7577, %v7576
  %v7579 = vmul.f32 0.5, %v7578
  %v7580 = vsub.f32 1.5, %v7579
  %v7581 = vmul.f32 %v7576, %v7580
  %vm7582 = vweird.f32 %v7560
  %vm7583 = vweird.f32 %v7576
  %vm7584 = vmor %vm7582, %vm7583
  %v7585 = vsel %vm7584, %v7576, %v7581
  %v7586 = vrsqrt.pop %v7561
  %v7587 = vmul.f32 %v7586, %v7561
  %v7588 = vmul.f32 %v7587, %v7586
  %v7589 = vmul.f32 0.5, %v7588
  %v7590 = vsub.f32 1.5, %v7589
  %v7591 = vmul.f32 %v7586, %v7590
  %vm7592 = vweird.f32 %v7561
  %vm7593 = vweird.f32 %v7586
  %vm7594 = vmor %vm7592, %vm7593
  %v7595 = vsel %vm7594, %v7586, %v7591
  %v7596 = vrsqrt.pop %v7562
  %v7597 = vmul.f32 %v7596, %v7562
  %v7598 = vmul.f32 %v7597, %v7596
  %v7599 = vmul.f32 0.5, %v7598
  %v7600 = vsub.f32 1.5, %v7599
  %v7601 = vmul.f32 %v7596, %v7600
  %vm7602 = vweird.f32 %v7562
  %vm7603 = vweird.f32 %v7596
  %vm7604 = vmor %vm7602, %vm7603
  %v7605 = vsel %vm7604, %v7596, %v7601
  %v7606 = vrsqrt.pop %v7563
  %v7607 = vmul.f32 %v7606, %v7563
  %v7608 = vmul.f32 %v7607, %v7606
  %v7609 = vmul.f32 0.5, %v7608
  %v7610 = vsub.f32 1.5, %v7609
  %v7611 = vmul.f32 %v7606, %v7610
  %vm7612 = vweird.f32 %v7563
  %vm7613 = vweird.f32 %v7606
  %vm7614 = vmor %vm7612, %vm7613
  %v7615 = vsel %vm7614, %v7606, %v7611
  %v7616 = vrsqrt.pop %v7564
  %v7617 = vmul.f32 %v7616, %v7564
  %v7618 = vmul.f32 %v7617, %v7616
  %v7619 = vmul.f32 0.5, %v7618
  %v7620 = vsub.f32 1.5, %v7619
  %v7621 = vmul.f32 %v7616, %v7620
  %vm7622 = vweird.f32 %v7564
  %vm7623 = vweird.f32 %v7616
  %vm7624 = vmor %vm7622, %vm7623
  %v7625 = vsel %vm7624, %v7616, %v7621
  %v7626 = vrsqrt.pop %v7565
  %v7627 = vmul.f32 %v7626, %v7565
  %v7628 = vmul.f32 %v7627, %v7626
  %v7629 = vmul.f32 0.5, %v7628
  %v7630 = vsub.f32 1.5, %v7629
  %v7631 = vmul.f32 %v7626, %v7630
  %vm7632 = vweird.f32 %v7565
  %vm7633 = vweird.f32 %v7626
  %vm7634 = vmor %vm7632, %vm7633
  %v7635 = vsel %vm7634, %v7626, %v7631
  %v7636 = vrsqrt.pop %v7566
  %v7637 = vmul.f32 %v7636, %v7566
  %v7638 = vmul.f32 %v7637, %v7636
  %v7639 = vmul.f32 0.5, %v7638
  %v7640 = vsub.f32 1.5, %v7639
  %v7641 = vmul.f32 %v7636, %v7640
  %vm7642 = vweird.f32 %v7566
  %vm7643 = vweird.f32 %v7636
  %vm7644 = vmor %vm7642, %vm7643
  %v7645 = vsel %vm7644, %v7636, %v7641
  %v7646 = vrsqrt.pop %v7567
  %v7647 = vmul.f32 %v7646, %v7567
  %v7648 = vmul.f32 %v7647, %v7646
  %v7649 = vmul.f32 0.5, %v7648
  %v7650 = vsub.f32 1.5, %v7649
  %v7651 = vmul.f32 %v7646, %v7650
  %vm7652 = vweird.f32 %v7567
  %vm7653 = vweird.f32 %v7646
  %vm7654 = vmor %vm7652, %vm7653
  %v7655 = vsel %vm7654, %v7646, %v7651
  %v7656 = vrsqrt.pop %v7568
  %v7657 = vmul.f32 %v7656, %v7568
  %v7658 = vmul.f32 %v7657, %v7656
  %v7659 = vmul.f32 0.5, %v7658
  %v7660 = vsub.f32 1.5, %v7659
  %v7661 = vmul.f32 %v7656, %v7660
  %vm7662 = vweird.f32 %v7568
  %vm7663 = vweird.f32 %v7656
  %vm7664 = vmor %vm7662, %vm7663
  %v7665 = vsel %vm7664, %v7656, %v7661
  %v7666 = vrsqrt.pop %v7569
  %v7667 = vmul.f32 %v7666, %v7569
  %v7668 = vmul.f32 %v7667, %v7666
  %v7669 = vmul.f32 0.5, %v7668
  %v7670 = vsub.f32 1.5, %v7669
  %v7671 = vmul.f32 %v7666, %v7670
  %vm7672 = vweird.f32 %v7569
  %vm7673 = vweird.f32 %v7666
  %vm7674 = vmor %vm7672, %vm7673
  %v7675 = vsel %vm7674, %v7666, %v7671
  %v7676 = vrsqrt.pop %v7570
  %v7677 = vmul.f32 %v7676, %v7570
  %v7678 = vmul.f32 %v7677, %v7676
  %v7679 = vmul.f32 0.5, %v7678
  %v7680 = vsub.f32 1.5, %v7679
  %v7681 = vmul.f32 %v7676, %v7680
  %vm7682 = vweird.f32 %v7570
  %vm7683 = vweird.f32 %v7676
  %vm7684 = vmor %vm7682, %vm7683
  %v7685 = vsel %vm7684, %v7676, %v7681
  %v7686 = vrsqrt.pop %v7571
  %v7687 = vmul.f32 %v7686, %v7571
  %v7688 = vmul.f32 %v7687, %v7686
  %v7689 = vmul.f32 0.5, %v7688
  %v7690 = vsub.f32 1.5, %v7689
  %v7691 = vmul.f32 %v7686, %v7690
  %vm7692 = vweird.f32 %v7571
  %vm7693 = vweird.f32 %v7686
  %vm7694 = vmor %vm7692, %vm7693
  %v7695 = vsel %vm7694, %v7686, %v7691
  %v7696 = vrsqrt.pop %v7572
  %v7697 = vmul.f32 %v7696, %v7572
  %v7698 = vmul.f32 %v7697, %v7696
  %v7699 = vmul.f32 0.5, %v7698
  %v7700 = vsub.f32 1.5, %v7699
  %v7701 = vmul.f32 %v7696, %v7700
  %vm7702 = vweird.f32 %v7572
  %vm7703 = vweird.f32 %v7696
  %vm7704 = vmor %vm7702, %vm7703
  %v7705 = vsel %vm7704, %v7696, %v7701
  %v7706 = vrsqrt.pop %v7573
  %v7707 = vmul.f32 %v7706, %v7573
  %v7708 = vmul.f32 %v7707, %v7706
  %v7709 = vmul.f32 0.5, %v7708
  %v7710 = vsub.f32 1.5, %v7709
  %v7711 = vmul.f32 %v7706, %v7710
  %vm7712 = vweird.f32 %v7573
  %vm7713 = vweird.f32 %v7706
  %vm7714 = vmor %vm7712, %vm7713
  %v7715 = vsel %vm7714, %v7706, %v7711
  %v7716 = vrsqrt.pop %v7574
  %v7717 = vmul.f32 %v7716, %v7574
  %v7718 = vmul.f32 %v7717, %v7716
  %v7719 = vmul.f32 0.5, %v7718
  %v7720 = vsub.f32 1.5, %v7719
  %v7721 = vmul.f32 %v7716, %v7720
  %vm7722 = vweird.f32 %v7574
  %vm7723 = vweird.f32 %v7716
  %vm7724 = vmor %vm7722, %vm7723
  %v7725 = vsel %vm7724, %v7716, %v7721
  %v7726 = vrsqrt.pop %v7575
  %v7727 = vmul.f32 %v7726, %v7575
  %v7728 = vmul.f32 %v7727, %v7726
  %v7729 = vmul.f32 0.5, %v7728
  %v7730 = vsub.f32 1.5, %v7729
  %v7731 = vmul.f32 %v7726, %v7730
  %vm7732 = vweird.f32 %v7575
  %vm7733 = vweird.f32 %v7726
  %vm7734 = vmor %vm7732, %vm7733
  %v7735 = vsel %vm7734, %v7726, %v7731
  %v7736 = vmul.f32 %v7464, %v7585
  %v7737 = vmul.f32 %v7465, %v7595
  %v7738 = vmul.f32 %v7466, %v7605
  %v7739 = vmul.f32 %v7467, %v7615
  %v7740 = vmul.f32 %v7468, %v7625
  %v7741 = vmul.f32 %v7469, %v7635
  %v7742 = vmul.f32 %v7470, %v7645
  %v7743 = vmul.f32 %v7471, %v7655
  %v7744 = vmul.f32 %v7472, %v7665
  %v7745 = vmul.f32 %v7473, %v7675
  %v7746 = vmul.f32 %v7474, %v7685
  %v7747 = vmul.f32 %v7475, %v7695
  %v7748 = vmul.f32 %v7476, %v7705
  %v7749 = vmul.f32 %v7477, %v7715
  %v7750 = vmul.f32 %v7478, %v7725
  %v7751 = vmul.f32 %v7479, %v7735
  %v7753 = vperm.slane %v7397, 0
  %v7755 = vmul.f32 %v7736, %v7753
  %v7756 = vmul.f32 %v7737, %v7753
  %v7757 = vmul.f32 %v7738, %v7753
  %v7758 = vmul.f32 %v7739, %v7753
  %v7759 = vmul.f32 %v7740, %v7753
  %v7760 = vmul.f32 %v7741, %v7753
  %v7761 = vmul.f32 %v7742, %v7753
  %v7762 = vmul.f32 %v7743, %v7753
  %v7763 = vmul.f32 %v7744, %v7753
  %v7764 = vmul.f32 %v7745, %v7753
  %v7765 = vmul.f32 %v7746, %v7753
  %v7766 = vmul.f32 %v7747, %v7753
  %v7767 = vmul.f32 %v7748, %v7753
  %v7768 = vmul.f32 %v7749, %v7753
  %v7769 = vmul.f32 %v7750, %v7753
  %v7770 = vmul.f32 %v7751, %v7753
  %v7772 = vperm.slane %v7399, 0
  %v7774 = vadd.f32 %v7755, %v7772
  %v7775 = vadd.f32 %v7756, %v7772
  %v7776 = vadd.f32 %v7757, %v7772
  %v7777 = vadd.f32 %v7758, %v7772
  %v7778 = vadd.f32 %v7759, %v7772
  %v7779 = vadd.f32 %v7760, %v7772
  %v7780 = vadd.f32 %v7761, %v7772
  %v7781 = vadd.f32 %v7762, %v7772
  %v7782 = vadd.f32 %v7763, %v7772
  %v7783 = vadd.f32 %v7764, %v7772
  %v7784 = vadd.f32 %v7765, %v7772
  %v7785 = vadd.f32 %v7766, %v7772
  %v7786 = vadd.f32 %v7767, %v7772
  %v7787 = vadd.f32 %v7768, %v7772
  %v7788 = vadd.f32 %v7769, %v7772
  %v7789 = vadd.f32 %v7770, %v7772
  %7790 = vst.msk [vmem:[%s15] sm:$0xff] %vm144, %v7774
  %7791 = vst.msk [vmem:[%s15 + $0x8] sm:$0xff] %vm144, %v7775
  %7792 = vst.msk [vmem:[%s15 + $0x10] sm:$0xff] %vm144, %v7776
  %7793 = vst.msk [vmem:[%s15 + $0x18] sm:$0xff] %vm144, %v7777
  %7794 = vst.msk [vmem:[%s15 + $0x20] sm:$0xff] %vm144, %v7778
  %7795 = vst.msk [vmem:[%s15 + $0x28] sm:$0xff] %vm144, %v7779
  %7796 = vst.msk [vmem:[%s15 + $0x30] sm:$0xff] %vm144, %v7780
  %7797 = vst.msk [vmem:[%s15 + $0x38] sm:$0xff] %vm144, %v7781
  %7798 = vst.msk [vmem:[%s15 + $0x40] sm:$0xff] %vm144, %v7782
  %7799 = vst.msk [vmem:[%s15 + $0x48] sm:$0xff] %vm144, %v7783
  %7800 = vst.msk [vmem:[%s15 + $0x50] sm:$0xff] %vm144, %v7784
  %7801 = vst.msk [vmem:[%s15 + $0x58] sm:$0xff] %vm144, %v7785
  %7802 = vst.msk [vmem:[%s15 + $0x60] sm:$0xff] %vm144, %v7786
  %7803 = vst.msk [vmem:[%s15 + $0x68] sm:$0xff] %vm144, %v7787
  %7804 = vst.msk [vmem:[%s15 + $0x70] sm:$0xff] %vm144, %v7788
  %7805 = vst.msk [vmem:[%s15 + $0x78] sm:$0xff] %vm144, %v7789
  // Predicated region
  $region62: #{chessformer_encoder.1} parent=0 // pred_check
    _
  $region63: #{chessformer_encoder.1} parent=0 // pred_check_branch
    %7807 = sbr.rel (0) target = $region65
  $region64: #{chessformer_encoder.1} parent=0 // pred_region
    _
  $region65: #{chessformer_encoder.1} parent=0 // pred_fallthru
    _
  // Predicated region
  $region66: #{chessformer_encoder.1} parent=0 // pred_check
    _
  $region67: #{chessformer_encoder.1} parent=0 // pred_check_branch
    %7809 = sbr.rel (0) target = $region69
  $region68: #{chessformer_encoder.1} parent=0 // pred_region
    _
  $region69: #{chessformer_encoder.1} parent=0 // pred_fallthru
    _

</llo_original>
